<compile_context>
chip_gen: v7x
topology: tpu7x:2x2x1
jax: 0.10.0
libtpu: 0.0.40
codegen_flags: <defaults>
</compile_context>

<pallas_src>
import jax
import jax.numpy as jnp
from jax import lax
from jax.experimental import pallas as pl
from jax.experimental.pallas import tpu as pltpu

_LANE = 128


def _round_up(x, m):
    return ((x + m - 1) // m) * m


def _spectral_normalize(w_oihw, n_iter=10):
    """Spectral norm of the conv weight (PyTorch reshapes to (Cout, Cin*k*k)).
    PyTorch keeps a persistent u and does one power-iteration step per forward; here
    we run a fixed number of steps from a deterministic start (no persistent state)."""
    cout = w_oihw.shape[0]
    mat = w_oihw.reshape(cout, -1).astype(jnp.float32)
    v = jnp.full((mat.shape[1],), 1.0 / jnp.sqrt(mat.shape[1]), jnp.float32)

    def body(_, v):
        u = mat @ v
        u = u / (jnp.linalg.norm(u) + 1e-12)
        v = mat.T @ u
        v = v / (jnp.linalg.norm(v) + 1e-12)
        return v

    v = lax.fori_loop(0, n_iter, body, v)
    sigma = jnp.linalg.norm(mat @ v)
    return w_oihw / (sigma + 1e-12)


def _phase_weights_folded(w_hwio):
    """Pre-combine a 3x3 kernel into 4 sub-pixel-phase weights equivalent to
    (2x nearest upsample -> ReflectionPad2d(1) -> 3x3 conv), with the column tap
    pair (b=0,1) folded into the contraction dim.

    Returns (8, 2*Cin, Cout); index = (2*dy + dx)*2 + a."""
    S = {(0, 0): (0,), (0, 1): (1, 2), (1, 0): (0, 1), (1, 1): (2,)}
    out = []
    for dy in range(2):
        for dx in range(2):
            for a in range(2):
                blocks = []
                for b in range(2):
                    acc = jnp.zeros_like(w_hwio[0, 0])
                    for kh in S[(dy, a)]:
                        for kw in S[(dx, b)]:
                            acc = acc + w_hwio[kh, kw]
                    blocks.append(acc)
                out.append(jnp.concatenate(blocks, axis=0))   # (2*Cin, Cout)
    return jnp.stack(out, axis=0)


def _pick_tile_h(H, W, Cin, C1p, C2p, c2_store, out_bytes,
                 budget_bytes=40 * 1024 * 1024):
    """Largest divisor of H whose total VMEM footprint (double-buffered input/output
    blocks, weights, scratch) fits the budget.  Prefers TH == H (no halo recompute)."""
    def lane(c):
        return _round_up(max(int(c), 1), _LANE)

    fixed = (2 * (H + 4) * (W + 2) * lane(Cin) * 2                 # input block x2
             + 2 * (3 * 3 * Cin * C1p + 8 * 2 * C1p * C2p) * 2     # weights x2
             + 2 * (C1p + C2p) * 4)                                # biases x2

    def per_tile(th):
        return ((th + 4) * W * lane(3 * Cin) * 2                   # xcat
                + (th + 2) * W * C1p * 4                           # acc1
                + (th + 2) * W * 3 * C1p * 2                       # y1cat
                + th * W * C2p * 4                                 # acc2
                + 2 * 4 * th * W * lane(c2_store) * out_bytes)     # output block x2

    for th in range(H, 0, -1):
        if H % th == 0 and fixed + per_tile(th) <= budget_bytes:
            return th
    # TODO(synk): for very large W*C even TH=1 overflows the budget; a W-tiled /
    # manual-halo-DMA path (and cdiv-grid masked last tile for prime H) would be needed.
    return 1


def _make_fused_kernel(W, Cin, C1p, C2p, C2s, TH, NH):
    """One grid step (n, t) produces final output rows [2*t*TH, 2*(t+1)*TH),
    phase-separated: o_ref[2*dy+dx, k, w, :] = z[2*(t*TH+k)+dy, 2*w+dx, :C2s]."""
    KROWS = TH + 2          # conv1 rows per tile (core TH rows + one halo row each side)

    def kernel(x_ref, w1_ref, w2_ref, b1_ref, b2_ref, o_ref,
               xcat, acc1, y1cat, acc2):
        t = pl.program_id(1)
        row0 = pl.multiple_of(t * TH, TH)   # window start in the (H+4)-row padded image

        # ---- stage the 3 kw column shifts of this tile's window into ONE slab ----
        # xcat[r, w, kw*Cin:(kw+1)*Cin] = x_padded[row0 + r, w + kw, :]
        for kw in range(3):
            xcat[:, :, kw * Cin:(kw + 1) * Cin] = x_ref[
                pl.ds(row0, TH + 4), pl.ds(kw, W), :]

        # ---- conv1: 3 K-folded tap matmuls (K = 3*Cin), f32 accumulate in VMEM ----
        for kh in range(3):
            tap = lax.dot_general(
                xcat[pl.ds(kh, KROWS)], w1_ref[kh],
                dimension_numbers=(((2,), (0,)), ((), ())),
                preferred_element_type=jnp.float32)              # (KROWS, W, C1p)
            if kh == 0:
                acc1[...] = tap
            else:
                acc1[...] += tap
        # acc1[k] == conv1 row (t*TH - 1 + k) wherever that row exists.  The one row
        # per image boundary that falls outside is fixed with a single-row copy
        # (edge replication == reflect-pad-of-nearest-upsample row semantics).

        @pl.when(t == 0)
        def _top():
            acc1[0] = acc1[1]

        @pl.when(t == NH - 1)
        def _bottom():
            acc1[TH + 1] = acc1[TH]

        # ---- bias + LeakyReLU(0.2) + bf16 cast fused into the conv2 staging copies ----
        b1v = b1_ref[0]

        def act(v):
            v = v + b1v
            return jnp.maximum(v, 0.2 * v).astype(jnp.bfloat16)

        # y1cat lanes = [shift0 | shift1 | shift2]; shift s = column offset (s-1) with
        # edge replication (reflect-pad-of-nearest-upsample column semantics).
        y1cat[:, :, C1p:2 * C1p] = act(acc1[...])
        y1cat[:, :, 0:C1p] = act(
            jnp.concatenate([acc1[:, 0:1], acc1[:, 0:W - 1]], axis=1))
        y1cat[:, :, 2 * C1p:3 * C1p] = act(
            jnp.concatenate([acc1[:, 1:W], acc1[:, W - 1:W]], axis=1))

        # ---- conv2 fused with 2x nearest upsample: 4 phases x 2 K-folded taps ----
        b2v = b2_ref[0]
        for dy in range(2):
            for dx in range(2):
                for a in range(2):
                    patch = y1cat[dy + a:dy + a + TH, :,
                                  dx * C1p:(dx + 2) * C1p]        # (TH, W, 2*C1p)
                    tap = lax.dot_general(
                        patch, w2_ref[(dy * 2 + dx) * 2 + a],
                        dimension_numbers=(((2,), (0,)), ((), ())),
                        preferred_element_type=jnp.float32)       # (TH, W, C2p)
                    if a == 0:
                        acc2[...] = tap
                    else:
                        acc2[...] += tap
                z = acc2[...] + b2v
                z = jnp.maximum(z, 0.2 * z)
                o_ref[dy * 2 + dx] = z[:, :, :C2s].astype(o_ref.dtype)

    return kernel


def up_conv_block(x_nchw, params, out_dtype=None):
    """Full Up_ConvBlock forward. Input NCHW (PyTorch convention); output NCHW."""
    w1, b1, w2, b2 = params["w1"], params["b1"], params["w2"], params["b2"]
    N, Cin, H, W = x_nchw.shape
    C1 = w1.shape[0]
    C2 = w2.shape[0]
    C1p = _round_up(C1, _LANE)
    C2p = _round_up(C2, _LANE)
    out_dtype = x_nchw.dtype if out_dtype is None else out_dtype

    # Spectral norm on raw OIHW weights, OIHW -> HWIO, K-fold taps, pad out-channels.
    w1h = jnp.transpose(_spectral_normalize(w1), (2, 3, 1, 0))            # (3,3,Cin,C1)
    w2h = jnp.transpose(_spectral_normalize(w2), (2, 3, 1, 0))            # (3,3,C1,C2)
    w1f = jnp.pad(w1h, ((0, 0), (0, 0), (0, 0), (0, C1p - C1)))
    w1f = w1f.reshape(3, 3 * Cin, C1p).astype(jnp.bfloat16)               # (3,3Cin,C1p)
    w2pad = jnp.pad(w2h, ((0, 0), (0, 0), (0, C1p - C1), (0, C2p - C2)))
    w2f = _phase_weights_folded(w2pad).astype(jnp.bfloat16)               # (8,2C1p,C2p)
    b1p = jnp.pad(b1, (0, C1p - C1)).reshape(1, C1p).astype(jnp.float32)
    b2p = jnp.pad(b2, (0, C2p - C2)).reshape(1, C2p).astype(jnp.float32)

    # NCHW -> NHWC bf16, reflect-pad H/W by 1, plus one throw-away row top & bottom so
    # every tile's conv1 window is uniform (boundary rows fixed in-kernel by pl.when).
    # TODO(synk): fuse this pad/transpose/cast of the (small) input into the kernel.
    x = jnp.transpose(x_nchw, (0, 2, 3, 1)).astype(jnp.bfloat16)
    xq = jnp.pad(x, ((0, 0), (1, 1), (1, 1), (0, 0)), mode="reflect")
    xq = jnp.pad(xq, ((0, 0), (1, 1), (0, 0), (0, 0)), mode="edge")       # (N,H+4,W+2,Cin)

    # Lane-dense output store only when the channel padding is small (<= 25%).
    store_padded = (C2p - C2) * 4 <= C2p
    C2s = C2p if store_padded else C2
    out_bytes = jnp.dtype(out_dtype).itemsize
    TH = _pick_tile_h(H, W, Cin, C1p, C2p, C2s, out_bytes)
    NH = H // TH

    # TODO(synk): on v7x, when N == 1 and NH is small, split W (or the 4 phases) onto a
    # parallel grid axis so both TensorCores stay busy.
    # TODO(synk): single-buffer the constant weight/bias blocks (pl.Buffered(1)) once
    # that pipeline mode is exercised; saves a wasted second copy of w2f in VMEM.
    out4 = pl.pallas_call(
        _make_fused_kernel(W, Cin, C1p, C2p, C2s, TH, NH),
        out_shape=jax.ShapeDtypeStruct((4 * N, H, W, C2s), out_dtype),
        grid_spec=pltpu.PrefetchScalarGridSpec(
            num_scalar_prefetch=0,
            grid=(N, NH),
            in_specs=[
                # Whole padded image per batch; resident across the t axis, auto-pipelined.
                pl.BlockSpec((None, H + 4, W + 2, Cin), lambda n, t: (n, 0, 0, 0)),
                pl.BlockSpec((3, 3 * Cin, C1p), lambda n, t: (0, 0, 0)),   # conv1 weights
                pl.BlockSpec((8, 2 * C1p, C2p), lambda n, t: (0, 0, 0)),   # conv2 phase wts
                pl.BlockSpec((1, C1p), lambda n, t: (0, 0)),               # bias1
                pl.BlockSpec((1, C2p), lambda n, t: (0, 0)),               # bias2
            ],
            out_specs=pl.BlockSpec((4, TH, W, C2s), lambda n, t: (n, t, 0, 0)),
            scratch_shapes=[
                pltpu.VMEM((TH + 4, W, 3 * Cin), jnp.bfloat16),   # kw-folded input slab
                pltpu.VMEM((TH + 2, W, C1p), jnp.float32),        # conv1 accumulator
                pltpu.VMEM((TH + 2, W, 3 * C1p), jnp.bfloat16),   # col-shifted conv1 act
                pltpu.VMEM((TH, W, C2p), jnp.float32),            # conv2 accumulator
            ]),
        compiler_params=pltpu.CompilerParams(
            dimension_semantics=("parallel", "parallel"),
            vmem_limit_bytes=48 * 1024 * 1024),
    )(xq, w1f, w2f, b1p, b2p)

    # Phase-separated NHWC -> interleaved NCHW.  This single transpose is the
    # unavoidable layout conversion required by the module's channels-first contract.
    # TODO(synk): return NHWC / phase-separated directly if the consumer allows it.
    y = out4[..., :C2].reshape(N, 2, 2, H, W, C2)
    y = jnp.transpose(y, (0, 5, 3, 1, 4, 2)).reshape(N, C2, 2 * H, 2 * W)
    return y


def init_params(key, dim_in, dim_out, ksize=3):
    k1, k2, k3, k4 = jax.random.split(key, 4)
    # Deterministic synthetic weights in PyTorch OIHW layout.
    w1 = 0.1 * jax.random.normal(k1, (dim_out, dim_in, ksize, ksize), jnp.float32)
    b1 = 0.05 * jax.random.normal(k2, (dim_out,), jnp.float32)
    w2 = 0.1 * jax.random.normal(k3, (dim_out, dim_out, ksize, ksize), jnp.float32)
    b2 = 0.05 * jax.random.normal(k4, (dim_out,), jnp.float32)
    return {"w1": w1, "b1": b1, "w2": w2, "b2": b2}


if __name__ == "__main__":
    key = jax.random.PRNGKey(0)
    kx, kp = jax.random.split(key)

    N, C_IN, C_OUT, H, W = 2, 4, 8, 16, 16
    x = jax.random.normal(kx, (N, C_IN, H, W), jnp.float32)   # NCHW input
    params = init_params(kp, C_IN, C_OUT)

    y = jax.jit(up_conv_block)(x, params)
    y = jax.block_until_ready(y)

    assert y.shape == (N, C_OUT, 2 * H, 2 * W), y.shape
    assert bool(jnp.isfinite(y).all())
    print("KERNEL_OK")
</pallas_src>

<mosaic_0001>
module attributes {stable_mosaic.version = 11 : i64} {
  func.func @kernel(%arg0: i32, %arg1: i32, %arg2: memref<1x20x18x4xbf16, #tpu.memory_space<vmem>>, %arg3: memref<3x12x128xbf16, #tpu.memory_space<vmem>>, %arg4: memref<8x256x128xbf16, #tpu.memory_space<vmem>>, %arg5: memref<1x128xf32, #tpu.memory_space<vmem>>, %arg6: memref<1x128xf32, #tpu.memory_space<vmem>>, %arg7: memref<4x16x16x8xf32, #tpu.memory_space<vmem>>, %arg8: memref<20x16x12xbf16, #tpu.memory_space<vmem>>, %arg9: memref<18x16x128xf32, #tpu.memory_space<vmem>>, %arg10: memref<18x16x384xbf16, #tpu.memory_space<vmem>>, %arg11: memref<16x16x128xf32, #tpu.memory_space<vmem>>) attributes {dimension_semantics = [#tpu.dimension_semantics<parallel>, #tpu.dimension_semantics<parallel>], iteration_bounds = array<i64: 2, 1>, scalar_prefetch = 0 : i64, scratch_operands = 4 : i64, tpu.core_type = #tpu.core_type<tc>, window_params = [{transform_indices = @transform_0, window_bounds = array<i64: 1, 20, 18, 4>}, {pipeline_mode = #tpu.pipeline_mode<synchronous>, transform_indices = @transform_1, window_bounds = array<i64: 3, 12, 128>}, {pipeline_mode = #tpu.pipeline_mode<synchronous>, transform_indices = @transform_2, window_bounds = array<i64: 8, 256, 128>}, {pipeline_mode = #tpu.pipeline_mode<synchronous>, transform_indices = @transform_3, window_bounds = array<i64: 1, 128>}, {pipeline_mode = #tpu.pipeline_mode<synchronous>, transform_indices = @transform_4, window_bounds = array<i64: 1, 128>}, {transform_indices = @transform_5, window_bounds = array<i64: 4, 16, 16, 8>}]} {
    %c16_i32 = arith.constant 16 : i32
    %0 = arith.muli %arg1, %c16_i32 : i32
    %1 = tpu.assume_multiple %0, 16 : i32
    %c0 = arith.constant 0 : index
    %2 = arith.index_cast %1 : i32 to index
    %c0_0 = arith.constant 0 : index
    %c0_1 = arith.constant 0 : index
    %3 = vector.load %arg2[%c0, %2, %c0_0, %c0_1] : memref<1x20x18x4xbf16, #tpu.memory_space<vmem>>, vector<1x20x16x4xbf16>
    %4 = vector.shape_cast %3 : vector<1x20x16x4xbf16> to vector<20x16x4xbf16>
    %c0_2 = arith.constant 0 : index
    %c0_3 = arith.constant 0 : index
    %c0_4 = arith.constant 0 : index
    %5 = vector.load %arg8[%c0_2, %c0_3, %c0_4] : memref<20x16x12xbf16, #tpu.memory_space<vmem>>, vector<20x16x4xbf16>
    tpu.vector_store %arg8[%c0_2, %c0_3, %c0_4], %4 {strides = array<i32>} : memref<20x16x12xbf16, #tpu.memory_space<vmem>>, vector<20x16x4xbf16>,
    %c0_5 = arith.constant 0 : index
    %6 = arith.index_cast %1 : i32 to index
    %c1 = arith.constant 1 : index
    %c0_6 = arith.constant 0 : index
    %7 = vector.load %arg2[%c0_5, %6, %c1, %c0_6] : memref<1x20x18x4xbf16, #tpu.memory_space<vmem>>, vector<1x20x16x4xbf16>
    %8 = vector.shape_cast %7 : vector<1x20x16x4xbf16> to vector<20x16x4xbf16>
    %c0_7 = arith.constant 0 : index
    %c0_8 = arith.constant 0 : index
    %c4 = arith.constant 4 : index
    %9 = vector.load %arg8[%c0_7, %c0_8, %c4] : memref<20x16x12xbf16, #tpu.memory_space<vmem>>, vector<20x16x4xbf16>
    tpu.vector_store %arg8[%c0_7, %c0_8, %c4], %8 {strides = array<i32>} : memref<20x16x12xbf16, #tpu.memory_space<vmem>>, vector<20x16x4xbf16>,
    %c0_9 = arith.constant 0 : index
    %10 = arith.index_cast %1 : i32 to index
    %c2 = arith.constant 2 : index
    %c0_10 = arith.constant 0 : index
    %11 = vector.load %arg2[%c0_9, %10, %c2, %c0_10] : memref<1x20x18x4xbf16, #tpu.memory_space<vmem>>, vector<1x20x16x4xbf16>
    %12 = vector.shape_cast %11 : vector<1x20x16x4xbf16> to vector<20x16x4xbf16>
    %c0_11 = arith.constant 0 : index
    %c0_12 = arith.constant 0 : index
    %c8 = arith.constant 8 : index
    %13 = vector.load %arg8[%c0_11, %c0_12, %c8] : memref<20x16x12xbf16, #tpu.memory_space<vmem>>, vector<20x16x4xbf16>
    tpu.vector_store %arg8[%c0_11, %c0_12, %c8], %12 {strides = array<i32>} : memref<20x16x12xbf16, #tpu.memory_space<vmem>>, vector<20x16x4xbf16>,
    %c0_13 = arith.constant 0 : index
    %c0_14 = arith.constant 0 : index
    %c0_15 = arith.constant 0 : index
    %14 = vector.load %arg8[%c0_13, %c0_14, %c0_15] : memref<20x16x12xbf16, #tpu.memory_space<vmem>>, vector<18x16x12xbf16>
    %c0_16 = arith.constant 0 : index
    %c0_17 = arith.constant 0 : index
    %c0_18 = arith.constant 0 : index
    %15 = vector.load %arg3[%c0_16, %c0_17, %c0_18] : memref<3x12x128xbf16, #tpu.memory_space<vmem>>, vector<1x12x128xbf16>
    %16 = vector.shape_cast %15 : vector<1x12x128xbf16> to vector<12x128xbf16>
    %cst = arith.constant dense<0.000000e+00> : vector<18x16x128xf32>
    %17 = tpu.matmul %14, %16, %cst {dimension_numbers = #tpu.dot_dimension_numbers<[2], [0], [0, 1], [1], [0, 0, 0, 1, 1, 1], [], []>} : vector<18x16x12xbf16>, vector<12x128xbf16>, vector<18x16x128xf32> -> vector<18x16x128xf32>
    %c0_19 = arith.constant 0 : index
    %c0_20 = arith.constant 0 : index
    %c0_21 = arith.constant 0 : index
    %18 = vector.load %arg9[%c0_19, %c0_20, %c0_21] : memref<18x16x128xf32, #tpu.memory_space<vmem>>, vector<18x16x128xf32>
    tpu.vector_store %arg9[%c0_19, %c0_20, %c0_21], %17 {strides = array<i32>} : memref<18x16x128xf32, #tpu.memory_space<vmem>>, vector<18x16x128xf32>,
    %c1_22 = arith.constant 1 : index
    %c0_23 = arith.constant 0 : index
    %c0_24 = arith.constant 0 : index
    %19 = vector.load %arg8[%c1_22, %c0_23, %c0_24] : memref<20x16x12xbf16, #tpu.memory_space<vmem>>, vector<18x16x12xbf16>
    %c1_25 = arith.constant 1 : index
    %c0_26 = arith.constant 0 : index
    %c0_27 = arith.constant 0 : index
    %20 = vector.load %arg3[%c1_25, %c0_26, %c0_27] : memref<3x12x128xbf16, #tpu.memory_space<vmem>>, vector<1x12x128xbf16>
    %21 = vector.shape_cast %20 : vector<1x12x128xbf16> to vector<12x128xbf16>
    %cst_28 = arith.constant dense<0.000000e+00> : vector<18x16x128xf32>
    %22 = tpu.matmul %19, %21, %cst_28 {dimension_numbers = #tpu.dot_dimension_numbers<[2], [0], [0, 1], [1], [0, 0, 0, 1, 1, 1], [], []>} : vector<18x16x12xbf16>, vector<12x128xbf16>, vector<18x16x128xf32> -> vector<18x16x128xf32>
    %c0_29 = arith.constant 0 : index
    %c0_30 = arith.constant 0 : index
    %c0_31 = arith.constant 0 : index
    %23 = vector.load %arg9[%c0_29, %c0_30, %c0_31] : memref<18x16x128xf32, #tpu.memory_space<vmem>>, vector<18x16x128xf32>
    %24 = arith.addf %23, %22 : vector<18x16x128xf32>
    %c0_32 = arith.constant 0 : index
    %c0_33 = arith.constant 0 : index
    %c0_34 = arith.constant 0 : index
    %25 = vector.load %arg9[%c0_32, %c0_33, %c0_34] : memref<18x16x128xf32, #tpu.memory_space<vmem>>, vector<18x16x128xf32>
    tpu.vector_store %arg9[%c0_32, %c0_33, %c0_34], %24 {strides = array<i32>} : memref<18x16x128xf32, #tpu.memory_space<vmem>>, vector<18x16x128xf32>,
    %c2_35 = arith.constant 2 : index
    %c0_36 = arith.constant 0 : index
    %c0_37 = arith.constant 0 : index
    %26 = vector.load %arg8[%c2_35, %c0_36, %c0_37] : memref<20x16x12xbf16, #tpu.memory_space<vmem>>, vector<18x16x12xbf16>
    %c2_38 = arith.constant 2 : index
    %c0_39 = arith.constant 0 : index
    %c0_40 = arith.constant 0 : index
    %27 = vector.load %arg3[%c2_38, %c0_39, %c0_40] : memref<3x12x128xbf16, #tpu.memory_space<vmem>>, vector<1x12x128xbf16>
    %28 = vector.shape_cast %27 : vector<1x12x128xbf16> to vector<12x128xbf16>
    %cst_41 = arith.constant dense<0.000000e+00> : vector<18x16x128xf32>
    %29 = tpu.matmul %26, %28, %cst_41 {dimension_numbers = #tpu.dot_dimension_numbers<[2], [0], [0, 1], [1], [0, 0, 0, 1, 1, 1], [], []>} : vector<18x16x12xbf16>, vector<12x128xbf16>, vector<18x16x128xf32> -> vector<18x16x128xf32>
    %c0_42 = arith.constant 0 : index
    %c0_43 = arith.constant 0 : index
    %c0_44 = arith.constant 0 : index
    %30 = vector.load %arg9[%c0_42, %c0_43, %c0_44] : memref<18x16x128xf32, #tpu.memory_space<vmem>>, vector<18x16x128xf32>
    %31 = arith.addf %30, %29 : vector<18x16x128xf32>
    %c0_45 = arith.constant 0 : index
    %c0_46 = arith.constant 0 : index
    %c0_47 = arith.constant 0 : index
    %32 = vector.load %arg9[%c0_45, %c0_46, %c0_47] : memref<18x16x128xf32, #tpu.memory_space<vmem>>, vector<18x16x128xf32>
    tpu.vector_store %arg9[%c0_45, %c0_46, %c0_47], %31 {strides = array<i32>} : memref<18x16x128xf32, #tpu.memory_space<vmem>>, vector<18x16x128xf32>,
    %c0_i32 = arith.constant 0 : i32
    %33 = arith.cmpi eq, %arg1, %c0_i32 : i32
    %34 = arith.extui %33 : i1 to i32
    %c0_i32_48 = arith.constant 0 : i32
    %35 = arith.cmpi ne, %34, %c0_i32_48 : i32
    scf.if %35 {
      %c1_199 = arith.constant 1 : index
      %c0_200 = arith.constant 0 : index
      %c0_201 = arith.constant 0 : index
      %166 = vector.load %arg9[%c1_199, %c0_200, %c0_201] : memref<18x16x128xf32, #tpu.memory_space<vmem>>, vector<1x16x128xf32>
      %167 = vector.shape_cast %166 : vector<1x16x128xf32> to vector<16x128xf32>
      %c0_202 = arith.constant 0 : index
      %c0_203 = arith.constant 0 : index
      %c0_204 = arith.constant 0 : index
      %168 = vector.load %arg9[%c0_202, %c0_203, %c0_204] : memref<18x16x128xf32, #tpu.memory_space<vmem>>, vector<1x16x128xf32>
      %169 = vector.shape_cast %168 : vector<1x16x128xf32> to vector<16x128xf32>
      %170 = vector.shape_cast %167 : vector<16x128xf32> to vector<1x16x128xf32>
      tpu.vector_store %arg9[%c0_202, %c0_203, %c0_204], %170 {strides = array<i32>} : memref<18x16x128xf32, #tpu.memory_space<vmem>>, vector<1x16x128xf32>,
    } else {
    }
    %c0_i32_49 = arith.constant 0 : i32
    %36 = arith.cmpi eq, %arg1, %c0_i32_49 : i32
    %37 = arith.extui %36 : i1 to i32
    %c0_i32_50 = arith.constant 0 : i32
    %38 = arith.cmpi ne, %37, %c0_i32_50 : i32
    scf.if %38 {
      %c16 = arith.constant 16 : index
      %c0_199 = arith.constant 0 : index
      %c0_200 = arith.constant 0 : index
      %166 = vector.load %arg9[%c16, %c0_199, %c0_200] : memref<18x16x128xf32, #tpu.memory_space<vmem>>, vector<1x16x128xf32>
      %167 = vector.shape_cast %166 : vector<1x16x128xf32> to vector<16x128xf32>
      %c17 = arith.constant 17 : index
      %c0_201 = arith.constant 0 : index
      %c0_202 = arith.constant 0 : index
      %168 = vector.load %arg9[%c17, %c0_201, %c0_202] : memref<18x16x128xf32, #tpu.memory_space<vmem>>, vector<1x16x128xf32>
      %169 = vector.shape_cast %168 : vector<1x16x128xf32> to vector<16x128xf32>
      %170 = vector.shape_cast %167 : vector<16x128xf32> to vector<1x16x128xf32>
      tpu.vector_store %arg9[%c17, %c0_201, %c0_202], %170 {strides = array<i32>} : memref<18x16x128xf32, #tpu.memory_space<vmem>>, vector<1x16x128xf32>,
    } else {
    }
    %c0_51 = arith.constant 0 : index
    %c0_52 = arith.constant 0 : index
    %39 = vector.load %arg5[%c0_51, %c0_52] : memref<1x128xf32, #tpu.memory_space<vmem>>, vector<1x128xf32>
    %40 = vector.shape_cast %39 : vector<1x128xf32> to vector<128xf32>
    %c0_53 = arith.constant 0 : index
    %c0_54 = arith.constant 0 : index
    %c0_55 = arith.constant 0 : index
    %41 = vector.load %arg9[%c0_53, %c0_54, %c0_55] : memref<18x16x128xf32, #tpu.memory_space<vmem>>, vector<18x16x128xf32>
    %42 = vector.shape_cast %40 : vector<128xf32> to vector<1x1x128xf32>
    %43 = vector.broadcast %42 : vector<1x1x128xf32> to vector<18x16x128xf32>
    %44 = arith.addf %41, %43 : vector<18x16x128xf32>
    %cst_56 = arith.constant 2.000000e-01 : f32
    %45 = vector.broadcast %cst_56 : f32 to vector<18x16x128xf32>
    %46 = arith.mulf %45, %44 : vector<18x16x128xf32>
    %47 = arith.maximumf %44, %46 : vector<18x16x128xf32>
    %48 = arith.truncf %47 : vector<18x16x128xf32> to vector<18x16x128xbf16>
    %c0_57 = arith.constant 0 : index
    %c0_58 = arith.constant 0 : index
    %c128 = arith.constant 128 : index
    %49 = vector.load %arg10[%c0_57, %c0_58, %c128] : memref<18x16x384xbf16, #tpu.memory_space<vmem>>, vector<18x16x128xbf16>
    tpu.vector_store %arg10[%c0_57, %c0_58, %c128], %48 {strides = array<i32>} : memref<18x16x384xbf16, #tpu.memory_space<vmem>>, vector<18x16x128xbf16>,
    %c0_59 = arith.constant 0 : index
    %c0_60 = arith.constant 0 : index
    %c0_61 = arith.constant 0 : index
    %50 = vector.load %arg9[%c0_59, %c0_60, %c0_61] : memref<18x16x128xf32, #tpu.memory_space<vmem>>, vector<18x1x128xf32>
    %c0_62 = arith.constant 0 : index
    %c0_63 = arith.constant 0 : index
    %c0_64 = arith.constant 0 : index
    %51 = vector.load %arg9[%c0_62, %c0_63, %c0_64] : memref<18x16x128xf32, #tpu.memory_space<vmem>>, vector<18x15x128xf32>
    %52 = tpu.concatenate %50, %51 in 1 : vector<18x1x128xf32>, vector<18x15x128xf32> -> vector<18x16x128xf32>
    %53 = vector.shape_cast %40 : vector<128xf32> to vector<1x1x128xf32>
    %54 = vector.broadcast %53 : vector<1x1x128xf32> to vector<18x16x128xf32>
    %55 = arith.addf %52, %54 : vector<18x16x128xf32>
    %cst_65 = arith.constant 2.000000e-01 : f32
    %56 = vector.broadcast %cst_65 : f32 to vector<18x16x128xf32>
    %57 = arith.mulf %56, %55 : vector<18x16x128xf32>
    %58 = arith.maximumf %55, %57 : vector<18x16x128xf32>
    %59 = arith.truncf %58 : vector<18x16x128xf32> to vector<18x16x128xbf16>
    %c0_66 = arith.constant 0 : index
    %c0_67 = arith.constant 0 : index
    %c0_68 = arith.constant 0 : index
    %60 = vector.load %arg10[%c0_66, %c0_67, %c0_68] : memref<18x16x384xbf16, #tpu.memory_space<vmem>>, vector<18x16x128xbf16>
    tpu.vector_store %arg10[%c0_66, %c0_67, %c0_68], %59 {strides = array<i32>} : memref<18x16x384xbf16, #tpu.memory_space<vmem>>, vector<18x16x128xbf16>,
    %c0_69 = arith.constant 0 : index
    %c1_70 = arith.constant 1 : index
    %c0_71 = arith.constant 0 : index
    %61 = vector.load %arg9[%c0_69, %c1_70, %c0_71] : memref<18x16x128xf32, #tpu.memory_space<vmem>>, vector<18x15x128xf32>
    %c0_72 = arith.constant 0 : index
    %c15 = arith.constant 15 : index
    %c0_73 = arith.constant 0 : index
    %62 = vector.load %arg9[%c0_72, %c15, %c0_73] : memref<18x16x128xf32, #tpu.memory_space<vmem>>, vector<18x1x128xf32>
    %63 = tpu.concatenate %61, %62 in 1 : vector<18x15x128xf32>, vector<18x1x128xf32> -> vector<18x16x128xf32>
    %64 = vector.shape_cast %40 : vector<128xf32> to vector<1x1x128xf32>
    %65 = vector.broadcast %64 : vector<1x1x128xf32> to vector<18x16x128xf32>
    %66 = arith.addf %63, %65 : vector<18x16x128xf32>
    %cst_74 = arith.constant 2.000000e-01 : f32
    %67 = vector.broadcast %cst_74 : f32 to vector<18x16x128xf32>
    %68 = arith.mulf %67, %66 : vector<18x16x128xf32>
    %69 = arith.maximumf %66, %68 : vector<18x16x128xf32>
    %70 = arith.truncf %69 : vector<18x16x128xf32> to vector<18x16x128xbf16>
    %c0_75 = arith.constant 0 : index
    %c0_76 = arith.constant 0 : index
    %c256 = arith.constant 256 : index
    %71 = vector.load %arg10[%c0_75, %c0_76, %c256] : memref<18x16x384xbf16, #tpu.memory_space<vmem>>, vector<18x16x128xbf16>
    tpu.vector_store %arg10[%c0_75, %c0_76, %c256], %70 {strides = array<i32>} : memref<18x16x384xbf16, #tpu.memory_space<vmem>>, vector<18x16x128xbf16>,
    %c0_77 = arith.constant 0 : index
    %c0_78 = arith.constant 0 : index
    %72 = vector.load %arg6[%c0_77, %c0_78] : memref<1x128xf32, #tpu.memory_space<vmem>>, vector<1x128xf32>
    %73 = vector.shape_cast %72 : vector<1x128xf32> to vector<128xf32>
    %c0_79 = arith.constant 0 : index
    %c0_80 = arith.constant 0 : index
    %c0_81 = arith.constant 0 : index
    %74 = vector.load %arg10[%c0_79, %c0_80, %c0_81] : memref<18x16x384xbf16, #tpu.memory_space<vmem>>, vector<16x16x256xbf16>
    %c0_82 = arith.constant 0 : index
    %c0_83 = arith.constant 0 : index
    %c0_84 = arith.constant 0 : index
    %75 = vector.load %arg4[%c0_82, %c0_83, %c0_84] : memref<8x256x128xbf16, #tpu.memory_space<vmem>>, vector<1x256x128xbf16>
    %76 = vector.shape_cast %75 : vector<1x256x128xbf16> to vector<256x128xbf16>
    %cst_85 = arith.constant dense<0.000000e+00> : vector<16x16x128xf32>
    %77 = tpu.matmul %74, %76, %cst_85 {dimension_numbers = #tpu.dot_dimension_numbers<[2], [0], [0, 1], [1], [0, 0, 0, 1, 1, 1], [], []>} : vector<16x16x256xbf16>, vector<256x128xbf16>, vector<16x16x128xf32> -> vector<16x16x128xf32>
    %c0_86 = arith.constant 0 : index
    %c0_87 = arith.constant 0 : index
    %c0_88 = arith.constant 0 : index
    %78 = vector.load %arg11[%c0_86, %c0_87, %c0_88] : memref<16x16x128xf32, #tpu.memory_space<vmem>>, vector<16x16x128xf32>
    tpu.vector_store %arg11[%c0_86, %c0_87, %c0_88], %77 {strides = array<i32>} : memref<16x16x128xf32, #tpu.memory_space<vmem>>, vector<16x16x128xf32>,
    %c1_89 = arith.constant 1 : index
    %c0_90 = arith.constant 0 : index
    %c0_91 = arith.constant 0 : index
    %79 = vector.load %arg10[%c1_89, %c0_90, %c0_91] : memref<18x16x384xbf16, #tpu.memory_space<vmem>>, vector<16x16x256xbf16>
    %c1_92 = arith.constant 1 : index
    %c0_93 = arith.constant 0 : index
    %c0_94 = arith.constant 0 : index
    %80 = vector.load %arg4[%c1_92, %c0_93, %c0_94] : memref<8x256x128xbf16, #tpu.memory_space<vmem>>, vector<1x256x128xbf16>
    %81 = vector.shape_cast %80 : vector<1x256x128xbf16> to vector<256x128xbf16>
    %cst_95 = arith.constant dense<0.000000e+00> : vector<16x16x128xf32>
    %82 = tpu.matmul %79, %81, %cst_95 {dimension_numbers = #tpu.dot_dimension_numbers<[2], [0], [0, 1], [1], [0, 0, 0, 1, 1, 1], [], []>} : vector<16x16x256xbf16>, vector<256x128xbf16>, vector<16x16x128xf32> -> vector<16x16x128xf32>
    %c0_96 = arith.constant 0 : index
    %c0_97 = arith.constant 0 : index
    %c0_98 = arith.constant 0 : index
    %83 = vector.load %arg11[%c0_96, %c0_97, %c0_98] : memref<16x16x128xf32, #tpu.memory_space<vmem>>, vector<16x16x128xf32>
    %84 = arith.addf %83, %82 : vector<16x16x128xf32>
    %c0_99 = arith.constant 0 : index
    %c0_100 = arith.constant 0 : index
    %c0_101 = arith.constant 0 : index
    %85 = vector.load %arg11[%c0_99, %c0_100, %c0_101] : memref<16x16x128xf32, #tpu.memory_space<vmem>>, vector<16x16x128xf32>
    tpu.vector_store %arg11[%c0_99, %c0_100, %c0_101], %84 {strides = array<i32>} : memref<16x16x128xf32, #tpu.memory_space<vmem>>, vector<16x16x128xf32>,
    %c0_102 = arith.constant 0 : index
    %c0_103 = arith.constant 0 : index
    %c0_104 = arith.constant 0 : index
    %86 = vector.load %arg11[%c0_102, %c0_103, %c0_104] : memref<16x16x128xf32, #tpu.memory_space<vmem>>, vector<16x16x128xf32>
    %87 = vector.shape_cast %73 : vector<128xf32> to vector<1x1x128xf32>
    %88 = vector.broadcast %87 : vector<1x1x128xf32> to vector<16x16x128xf32>
    %89 = arith.addf %86, %88 : vector<16x16x128xf32>
    %cst_105 = arith.constant 2.000000e-01 : f32
    %90 = vector.broadcast %cst_105 : f32 to vector<16x16x128xf32>
    %91 = arith.mulf %90, %89 : vector<16x16x128xf32>
    %92 = arith.maximumf %89, %91 : vector<16x16x128xf32>
    %93 = vector.extract_strided_slice %92 {offsets = [0, 0, 0], sizes = [16, 16, 8], strides = [1, 1, 1]} : vector<16x16x128xf32> to vector<16x16x8xf32>
    %c0_106 = arith.constant 0 : index
    %c0_107 = arith.constant 0 : index
    %c0_108 = arith.constant 0 : index
    %c0_109 = arith.constant 0 : index
    %94 = vector.load %arg7[%c0_106, %c0_107, %c0_108, %c0_109] : memref<4x16x16x8xf32, #tpu.memory_space<vmem>>, vector<1x16x16x8xf32>
    %95 = vector.shape_cast %94 : vector<1x16x16x8xf32> to vector<16x16x8xf32>
    %96 = vector.shape_cast %93 : vector<16x16x8xf32> to vector<1x16x16x8xf32>
    tpu.vector_store %arg7[%c0_106, %c0_107, %c0_108, %c0_109], %96 {strides = array<i32>} : memref<4x16x16x8xf32, #tpu.memory_space<vmem>>, vector<1x16x16x8xf32>,
    %c0_110 = arith.constant 0 : index
    %c0_111 = arith.constant 0 : index
    %c128_112 = arith.constant 128 : index
    %97 = vector.load %arg10[%c0_110, %c0_111, %c128_112] : memref<18x16x384xbf16, #tpu.memory_space<vmem>>, vector<16x16x256xbf16>
    %c2_113 = arith.constant 2 : index
    %c0_114 = arith.constant 0 : index
    %c0_115 = arith.constant 0 : index
    %98 = vector.load %arg4[%c2_113, %c0_114, %c0_115] : memref<8x256x128xbf16, #tpu.memory_space<vmem>>, vector<1x256x128xbf16>
    %99 = vector.shape_cast %98 : vector<1x256x128xbf16> to vector<256x128xbf16>
    %cst_116 = arith.constant dense<0.000000e+00> : vector<16x16x128xf32>
    %100 = tpu.matmul %97, %99, %cst_116 {dimension_numbers = #tpu.dot_dimension_numbers<[2], [0], [0, 1], [1], [0, 0, 0, 1, 1, 1], [], []>} : vector<16x16x256xbf16>, vector<256x128xbf16>, vector<16x16x128xf32> -> vector<16x16x128xf32>
    %c0_117 = arith.constant 0 : index
    %c0_118 = arith.constant 0 : index
    %c0_119 = arith.constant 0 : index
    %101 = vector.load %arg11[%c0_117, %c0_118, %c0_119] : memref<16x16x128xf32, #tpu.memory_space<vmem>>, vector<16x16x128xf32>
    tpu.vector_store %arg11[%c0_117, %c0_118, %c0_119], %100 {strides = array<i32>} : memref<16x16x128xf32, #tpu.memory_space<vmem>>, vector<16x16x128xf32>,
    %c1_120 = arith.constant 1 : index
    %c0_121 = arith.constant 0 : index
    %c128_122 = arith.constant 128 : index
    %102 = vector.load %arg10[%c1_120, %c0_121, %c128_122] : memref<18x16x384xbf16, #tpu.memory_space<vmem>>, vector<16x16x256xbf16>
    %c3 = arith.constant 3 : index
    %c0_123 = arith.constant 0 : index
    %c0_124 = arith.constant 0 : index
    %103 = vector.load %arg4[%c3, %c0_123, %c0_124] : memref<8x256x128xbf16, #tpu.memory_space<vmem>>, vector<1x256x128xbf16>
    %104 = vector.shape_cast %103 : vector<1x256x128xbf16> to vector<256x128xbf16>
    %cst_125 = arith.constant dense<0.000000e+00> : vector<16x16x128xf32>
    %105 = tpu.matmul %102, %104, %cst_125 {dimension_numbers = #tpu.dot_dimension_numbers<[2], [0], [0, 1], [1], [0, 0, 0, 1, 1, 1], [], []>} : vector<16x16x256xbf16>, vector<256x128xbf16>, vector<16x16x128xf32> -> vector<16x16x128xf32>
    %c0_126 = arith.constant 0 : index
    %c0_127 = arith.constant 0 : index
    %c0_128 = arith.constant 0 : index
    %106 = vector.load %arg11[%c0_126, %c0_127, %c0_128] : memref<16x16x128xf32, #tpu.memory_space<vmem>>, vector<16x16x128xf32>
    %107 = arith.addf %106, %105 : vector<16x16x128xf32>
    %c0_129 = arith.constant 0 : index
    %c0_130 = arith.constant 0 : index
    %c0_131 = arith.constant 0 : index
    %108 = vector.load %arg11[%c0_129, %c0_130, %c0_131] : memref<16x16x128xf32, #tpu.memory_space<vmem>>, vector<16x16x128xf32>
    tpu.vector_store %arg11[%c0_129, %c0_130, %c0_131], %107 {strides = array<i32>} : memref<16x16x128xf32, #tpu.memory_space<vmem>>, vector<16x16x128xf32>,
    %c0_132 = arith.constant 0 : index
    %c0_133 = arith.constant 0 : index
    %c0_134 = arith.constant 0 : index
    %109 = vector.load %arg11[%c0_132, %c0_133, %c0_134] : memref<16x16x128xf32, #tpu.memory_space<vmem>>, vector<16x16x128xf32>
    %110 = vector.shape_cast %73 : vector<128xf32> to vector<1x1x128xf32>
    %111 = vector.broadcast %110 : vector<1x1x128xf32> to vector<16x16x128xf32>
    %112 = arith.addf %109, %111 : vector<16x16x128xf32>
    %cst_135 = arith.constant 2.000000e-01 : f32
    %113 = vector.broadcast %cst_135 : f32 to vector<16x16x128xf32>
    %114 = arith.mulf %113, %112 : vector<16x16x128xf32>
    %115 = arith.maximumf %112, %114 : vector<16x16x128xf32>
    %116 = vector.extract_strided_slice %115 {offsets = [0, 0, 0], sizes = [16, 16, 8], strides = [1, 1, 1]} : vector<16x16x128xf32> to vector<16x16x8xf32>
    %c1_136 = arith.constant 1 : index
    %c0_137 = arith.constant 0 : index
    %c0_138 = arith.constant 0 : index
    %c0_139 = arith.constant 0 : index
    %117 = vector.load %arg7[%c1_136, %c0_137, %c0_138, %c0_139] : memref<4x16x16x8xf32, #tpu.memory_space<vmem>>, vector<1x16x16x8xf32>
    %118 = vector.shape_cast %117 : vector<1x16x16x8xf32> to vector<16x16x8xf32>
    %119 = vector.shape_cast %116 : vector<16x16x8xf32> to vector<1x16x16x8xf32>
    tpu.vector_store %arg7[%c1_136, %c0_137, %c0_138, %c0_139], %119 {strides = array<i32>} : memref<4x16x16x8xf32, #tpu.memory_space<vmem>>, vector<1x16x16x8xf32>,
    %c1_140 = arith.constant 1 : index
    %c0_141 = arith.constant 0 : index
    %c0_142 = arith.constant 0 : index
    %120 = vector.load %arg10[%c1_140, %c0_141, %c0_142] : memref<18x16x384xbf16, #tpu.memory_space<vmem>>, vector<16x16x256xbf16>
    %c4_143 = arith.constant 4 : index
    %c0_144 = arith.constant 0 : index
    %c0_145 = arith.constant 0 : index
    %121 = vector.load %arg4[%c4_143, %c0_144, %c0_145] : memref<8x256x128xbf16, #tpu.memory_space<vmem>>, vector<1x256x128xbf16>
    %122 = vector.shape_cast %121 : vector<1x256x128xbf16> to vector<256x128xbf16>
    %cst_146 = arith.constant dense<0.000000e+00> : vector<16x16x128xf32>
    %123 = tpu.matmul %120, %122, %cst_146 {dimension_numbers = #tpu.dot_dimension_numbers<[2], [0], [0, 1], [1], [0, 0, 0, 1, 1, 1], [], []>} : vector<16x16x256xbf16>, vector<256x128xbf16>, vector<16x16x128xf32> -> vector<16x16x128xf32>
    %c0_147 = arith.constant 0 : index
    %c0_148 = arith.constant 0 : index
    %c0_149 = arith.constant 0 : index
    %124 = vector.load %arg11[%c0_147, %c0_148, %c0_149] : memref<16x16x128xf32, #tpu.memory_space<vmem>>, vector<16x16x128xf32>
    tpu.vector_store %arg11[%c0_147, %c0_148, %c0_149], %123 {strides = array<i32>} : memref<16x16x128xf32, #tpu.memory_space<vmem>>, vector<16x16x128xf32>,
    %c2_150 = arith.constant 2 : index
    %c0_151 = arith.constant 0 : index
    %c0_152 = arith.constant 0 : index
    %125 = vector.load %arg10[%c2_150, %c0_151, %c0_152] : memref<18x16x384xbf16, #tpu.memory_space<vmem>>, vector<16x16x256xbf16>
    %c5 = arith.constant 5 : index
    %c0_153 = arith.constant 0 : index
    %c0_154 = arith.constant 0 : index
    %126 = vector.load %arg4[%c5, %c0_153, %c0_154] : memref<8x256x128xbf16, #tpu.memory_space<vmem>>, vector<1x256x128xbf16>
    %127 = vector.shape_cast %126 : vector<1x256x128xbf16> to vector<256x128xbf16>
    %cst_155 = arith.constant dense<0.000000e+00> : vector<16x16x128xf32>
    %128 = tpu.matmul %125, %127, %cst_155 {dimension_numbers = #tpu.dot_dimension_numbers<[2], [0], [0, 1], [1], [0, 0, 0, 1, 1, 1], [], []>} : vector<16x16x256xbf16>, vector<256x128xbf16>, vector<16x16x128xf32> -> vector<16x16x128xf32>
    %c0_156 = arith.constant 0 : index
    %c0_157 = arith.constant 0 : index
    %c0_158 = arith.constant 0 : index
    %129 = vector.load %arg11[%c0_156, %c0_157, %c0_158] : memref<16x16x128xf32, #tpu.memory_space<vmem>>, vector<16x16x128xf32>
    %130 = arith.addf %129, %128 : vector<16x16x128xf32>
    %c0_159 = arith.constant 0 : index
    %c0_160 = arith.constant 0 : index
    %c0_161 = arith.constant 0 : index
    %131 = vector.load %arg11[%c0_159, %c0_160, %c0_161] : memref<16x16x128xf32, #tpu.memory_space<vmem>>, vector<16x16x128xf32>
    tpu.vector_store %arg11[%c0_159, %c0_160, %c0_161], %130 {strides = array<i32>} : memref<16x16x128xf32, #tpu.memory_space<vmem>>, vector<16x16x128xf32>,
    %c0_162 = arith.constant 0 : index
    %c0_163 = arith.constant 0 : index
    %c0_164 = arith.constant 0 : index
    %132 = vector.load %arg11[%c0_162, %c0_163, %c0_164] : memref<16x16x128xf32, #tpu.memory_space<vmem>>, vector<16x16x128xf32>
    %133 = vector.shape_cast %73 : vector<128xf32> to vector<1x1x128xf32>
    %134 = vector.broadcast %133 : vector<1x1x128xf32> to vector<16x16x128xf32>
    %135 = arith.addf %132, %134 : vector<16x16x128xf32>
    %cst_165 = arith.constant 2.000000e-01 : f32
    %136 = vector.broadcast %cst_165 : f32 to vector<16x16x128xf32>
    %137 = arith.mulf %136, %135 : vector<16x16x128xf32>
    %138 = arith.maximumf %135, %137 : vector<16x16x128xf32>
    %139 = vector.extract_strided_slice %138 {offsets = [0, 0, 0], sizes = [16, 16, 8], strides = [1, 1, 1]} : vector<16x16x128xf32> to vector<16x16x8xf32>
    %c2_166 = arith.constant 2 : index
    %c0_167 = arith.constant 0 : index
    %c0_168 = arith.constant 0 : index
    %c0_169 = arith.constant 0 : index
    %140 = vector.load %arg7[%c2_166, %c0_167, %c0_168, %c0_169] : memref<4x16x16x8xf32, #tpu.memory_space<vmem>>, vector<1x16x16x8xf32>
    %141 = vector.shape_cast %140 : vector<1x16x16x8xf32> to vector<16x16x8xf32>
    %142 = vector.shape_cast %139 : vector<16x16x8xf32> to vector<1x16x16x8xf32>
    tpu.vector_store %arg7[%c2_166, %c0_167, %c0_168, %c0_169], %142 {strides = array<i32>} : memref<4x16x16x8xf32, #tpu.memory_space<vmem>>, vector<1x16x16x8xf32>,
    %c1_170 = arith.constant 1 : index
    %c0_171 = arith.constant 0 : index
    %c128_172 = arith.constant 128 : index
    %143 = vector.load %arg10[%c1_170, %c0_171, %c128_172] : memref<18x16x384xbf16, #tpu.memory_space<vmem>>, vector<16x16x256xbf16>
    %c6 = arith.constant 6 : index
    %c0_173 = arith.constant 0 : index
    %c0_174 = arith.constant 0 : index
    %144 = vector.load %arg4[%c6, %c0_173, %c0_174] : memref<8x256x128xbf16, #tpu.memory_space<vmem>>, vector<1x256x128xbf16>
    %145 = vector.shape_cast %144 : vector<1x256x128xbf16> to vector<256x128xbf16>
    %cst_175 = arith.constant dense<0.000000e+00> : vector<16x16x128xf32>
    %146 = tpu.matmul %143, %145, %cst_175 {dimension_numbers = #tpu.dot_dimension_numbers<[2], [0], [0, 1], [1], [0, 0, 0, 1, 1, 1], [], []>} : vector<16x16x256xbf16>, vector<256x128xbf16>, vector<16x16x128xf32> -> vector<16x16x128xf32>
    %c0_176 = arith.constant 0 : index
    %c0_177 = arith.constant 0 : index
    %c0_178 = arith.constant 0 : index
    %147 = vector.load %arg11[%c0_176, %c0_177, %c0_178] : memref<16x16x128xf32, #tpu.memory_space<vmem>>, vector<16x16x128xf32>
    tpu.vector_store %arg11[%c0_176, %c0_177, %c0_178], %146 {strides = array<i32>} : memref<16x16x128xf32, #tpu.memory_space<vmem>>, vector<16x16x128xf32>,
    %c2_179 = arith.constant 2 : index
    %c0_180 = arith.constant 0 : index
    %c128_181 = arith.constant 128 : index
    %148 = vector.load %arg10[%c2_179, %c0_180, %c128_181] : memref<18x16x384xbf16, #tpu.memory_space<vmem>>, vector<16x16x256xbf16>
    %c7 = arith.constant 7 : index
    %c0_182 = arith.constant 0 : index
    %c0_183 = arith.constant 0 : index
    %149 = vector.load %arg4[%c7, %c0_182, %c0_183] : memref<8x256x128xbf16, #tpu.memory_space<vmem>>, vector<1x256x128xbf16>
    %150 = vector.shape_cast %149 : vector<1x256x128xbf16> to vector<256x128xbf16>
    %cst_184 = arith.constant dense<0.000000e+00> : vector<16x16x128xf32>
    %151 = tpu.matmul %148, %150, %cst_184 {dimension_numbers = #tpu.dot_dimension_numbers<[2], [0], [0, 1], [1], [0, 0, 0, 1, 1, 1], [], []>} : vector<16x16x256xbf16>, vector<256x128xbf16>, vector<16x16x128xf32> -> vector<16x16x128xf32>
    %c0_185 = arith.constant 0 : index
    %c0_186 = arith.constant 0 : index
    %c0_187 = arith.constant 0 : index
    %152 = vector.load %arg11[%c0_185, %c0_186, %c0_187] : memref<16x16x128xf32, #tpu.memory_space<vmem>>, vector<16x16x128xf32>
    %153 = arith.addf %152, %151 : vector<16x16x128xf32>
    %c0_188 = arith.constant 0 : index
    %c0_189 = arith.constant 0 : index
    %c0_190 = arith.constant 0 : index
    %154 = vector.load %arg11[%c0_188, %c0_189, %c0_190] : memref<16x16x128xf32, #tpu.memory_space<vmem>>, vector<16x16x128xf32>
    tpu.vector_store %arg11[%c0_188, %c0_189, %c0_190], %153 {strides = array<i32>} : memref<16x16x128xf32, #tpu.memory_space<vmem>>, vector<16x16x128xf32>,
    %c0_191 = arith.constant 0 : index
    %c0_192 = arith.constant 0 : index
    %c0_193 = arith.constant 0 : index
    %155 = vector.load %arg11[%c0_191, %c0_192, %c0_193] : memref<16x16x128xf32, #tpu.memory_space<vmem>>, vector<16x16x128xf32>
    %156 = vector.shape_cast %73 : vector<128xf32> to vector<1x1x128xf32>
    %157 = vector.broadcast %156 : vector<1x1x128xf32> to vector<16x16x128xf32>
    %158 = arith.addf %155, %157 : vector<16x16x128xf32>
    %cst_194 = arith.constant 2.000000e-01 : f32
    %159 = vector.broadcast %cst_194 : f32 to vector<16x16x128xf32>
    %160 = arith.mulf %159, %158 : vector<16x16x128xf32>
    %161 = arith.maximumf %158, %160 : vector<16x16x128xf32>
    %162 = vector.extract_strided_slice %161 {offsets = [0, 0, 0], sizes = [16, 16, 8], strides = [1, 1, 1]} : vector<16x16x128xf32> to vector<16x16x8xf32>
    %c3_195 = arith.constant 3 : index
    %c0_196 = arith.constant 0 : index
    %c0_197 = arith.constant 0 : index
    %c0_198 = arith.constant 0 : index
    %163 = vector.load %arg7[%c3_195, %c0_196, %c0_197, %c0_198] : memref<4x16x16x8xf32, #tpu.memory_space<vmem>>, vector<1x16x16x8xf32>
    %164 = vector.shape_cast %163 : vector<1x16x16x8xf32> to vector<16x16x8xf32>
    %165 = vector.shape_cast %162 : vector<16x16x8xf32> to vector<1x16x16x8xf32>
    tpu.vector_store %arg7[%c3_195, %c0_196, %c0_197, %c0_198], %165 {strides = array<i32>} : memref<4x16x16x8xf32, #tpu.memory_space<vmem>>, vector<1x16x16x8xf32>,
    return
  }
  func.func @transform_0(%arg0: i32, %arg1: i32) -> (i32, i32, i32, i32) {
    %c0_i32 = arith.constant 0 : i32
    %c0_i32_0 = arith.constant 0 : i32
    %c0_i32_1 = arith.constant 0 : i32
    %c0_i32_2 = arith.constant 0 : i32
    return %arg0, %c0_i32, %c0_i32_0, %c0_i32_1 : i32, i32, i32, i32
  }
  func.func @transform_1(%arg0: i32, %arg1: i32) -> (i32, i32, i32) {
    %c0_i32 = arith.constant 0 : i32
    %c0_i32_0 = arith.constant 0 : i32
    %c0_i32_1 = arith.constant 0 : i32
    %c0_i32_2 = arith.constant 0 : i32
    return %c0_i32, %c0_i32_0, %c0_i32_1 : i32, i32, i32
  }
  func.func @transform_2(%arg0: i32, %arg1: i32) -> (i32, i32, i32) {
    %c0_i32 = arith.constant 0 : i32
    %c0_i32_0 = arith.constant 0 : i32
    %c0_i32_1 = arith.constant 0 : i32
    %c0_i32_2 = arith.constant 0 : i32
    return %c0_i32, %c0_i32_0, %c0_i32_1 : i32, i32, i32
  }
  func.func @transform_3(%arg0: i32, %arg1: i32) -> (i32, i32) {
    %c0_i32 = arith.constant 0 : i32
    %c0_i32_0 = arith.constant 0 : i32
    %c0_i32_1 = arith.constant 0 : i32
    return %c0_i32, %c0_i32_0 : i32, i32
  }
  func.func @transform_4(%arg0: i32, %arg1: i32) -> (i32, i32) {
    %c0_i32 = arith.constant 0 : i32
    %c0_i32_0 = arith.constant 0 : i32
    %c0_i32_1 = arith.constant 0 : i32
    return %c0_i32, %c0_i32_0 : i32, i32
  }
  func.func @transform_5(%arg0: i32, %arg1: i32) -> (i32, i32, i32, i32) {
    %c0_i32 = arith.constant 0 : i32
    %c0_i32_0 = arith.constant 0 : i32
    %c0_i32_1 = arith.constant 0 : i32
    return %arg0, %arg1, %c0_i32, %c0_i32_0 : i32, i32, i32, i32
  }
}

</mosaic_0001>

<llo_original>
// kernel: custom-call
$region0: #{custom-call}
  %s0 = inlined_call_operand.vmem [shape: f32[36], index: 0, kind: output, shape index: {}]

// kernel: custom-call.1
$region0: #{custom-call.1}
  %s0 = inlined_call_operand.vmem [shape: f32[72], index: 0, kind: output, shape index: {}]

// kernel: up_conv_block.1
$region0: #{up_conv_block.1}
  #allocation0 [shape = 'u32[]', space=smem, size = 0x4, offset = 0x4, fixed_abs, tag = 'smem constant byte address 0x4 - core index']
  #allocation1 [shape = 'u32[144,128]{1,0:T(1,128)}', space=vmem, size = 0x12000, scoped, tag = 'internal scratch']
  #allocation2 [shape = 'bf16[20,16,12]{2,1,0:T(16,128)(2,1)}', space=vmem, size = 0x14000, scoped, tag = 'scratch operand']
  #allocation3 [shape = 'f32[18,16,128]{2,1,0:T(8,128)}', space=vmem, size = 0x24000, scoped, tag = 'scratch operand']
  #allocation4 [shape = 'bf16[18,16,384]{2,1,0:T(16,128)(2,1)}', space=vmem, size = 0x36000, scoped, tag = 'scratch operand']
  #allocation5 [shape = 'f32[16,16,128]{2,1,0:T(8,128)}', space=vmem, size = 0x20000, scoped, tag = 'scratch operand']
  %s0 = inlined_call_operand.vmem [shape: bf16[2,20,18,4], index: 0, kind: input, shape index: {}]
  %s1 = inlined_call_operand.vmem [shape: bf16[3,12,128], index: 1, kind: input, shape index: {}]
  %s2 = inlined_call_operand.vmem [shape: bf16[8,256,128], index: 2, kind: input, shape index: {}]
  %s3 = inlined_call_operand.vmem [shape: f32[1,128], index: 3, kind: input, shape index: {}]
  %s4 = inlined_call_operand.vmem [shape: f32[1,128], index: 4, kind: input, shape index: {}]
  %s5 = inlined_call_operand.vmem [shape: f32[8,16,16,8], index: 5, kind: output, shape index: {}]
  %s6 = sld [smem:[#allocation0]]
  $region57: #{up_conv_block.1} parent=0
    _
  %s8 = ssub.s32 1, %s6
  %s9 = scalar_select 0, %s8, %s6
  loop: start=0, step=1, limit=4
  $region2: #{up_conv_block.1} parent=0 // loop_pre_header
    _
  $region3: #{up_conv_block.1} parent=0 // loop_header
    %s11 = sphi 0, %s15
    %p12 = scmp.ge.s32.totalorder %s11, 4
    %s18 = sphi 0, %s30
    %s19 = sphi 0, %s26
    %s20 = sphi 0, %s18
    %s21 = sphi 0, %s19
    %s22 = sphi 0, %s20
    %s23 = sphi 0, %s21
    %s33 = sphi 0, %s35
    %s36 = sphi 0, %s33
    %s37 = sphi 0, %s36
    %s53 = sphi 0, %s37
    %s57 = sphi 0, %s57
    %s59 = sphi 0, %s57
    %s60 = sphi 0, %s59
    %s74 = sphi 0, %s60
    %s78 = sphi 0, %s78
    %s80 = sphi 0, %s78
    %s81 = sphi 0, %s80
    %s95 = sphi 0, %s81
    %s99 = sphi 0, %s99
    %s101 = sphi 0, %s99
    %s102 = sphi 0, %s101
    %s116 = sphi 0, %s102
    %s120 = sphi 0, %s120
    %s122 = sphi 0, %s120
    %s123 = sphi 0, %s122
    %s137 = sphi 0, %s123
    %s145 = sphi 0, %s147
    %s148 = sphi 0, %s145
    %s149 = sphi 0, %s148
    %s165 = sphi 0, %s149
  $region4: #{up_conv_block.1} parent=0 // loop_header_branch
    %14 = sbr.rel (%p12) target = $region8
  $region5: #{up_conv_block.1} parent=0 // loop_body
    %s16 = ssub.s32 %s11, 1
    %s17 = ssub.s32 %s11, 2
    %s24 = sadd.s32 1, %s19
    %p25 = scmp.ge.s32.totalorder %s24, 1
    %s26 = scalar_select %p25, 0, %s24
    %s27 = sadd.s32 1, %s18
    %s28 = scalar_select %p25, %s27, %s18
    %p29 = scmp.ge.s32.totalorder %s28, 2
    %s30 = scalar_select %p29, 0, %s28
    %s31 = ssub.s32 %s18, %s30
    %p32 = scmp.eq.s32.totalorder %s31, 0
    %s34 = sadd.s32 %s33, 1
    %s35 = scalar_select %p32, %s33, %s34
    %p38 = pneg %p32
    %p39 = scmp.eq.s32.totalorder %s11, 1
    %p40 = por %p38, %p39
    %p41 = scmp.ne.s32.totalorder %s33, %s36
    %p42 = scmp.eq.s32.totalorder %s11, 0
    %p43 = por %p41, %p42
    %p44 = scmp.ne.s32.totalorder %s33, %s36
    %p45 = scmp.eq.s32.totalorder %s16, 1
    %p46 = por %p44, %p45
    %p47 = scmp.ne.s32.totalorder %s36, %s37
    %p48 = scmp.eq.s32.totalorder %s16, 0
    %p49 = por %p47, %p48
    %p50 = scmp.ne.s32.totalorder %s36, %s37
    %p51 = scmp.eq.s32.totalorder %s17, 1
    %p52 = por %p50, %p51
    %p54 = scmp.ne.s32.totalorder %s37, %s53
    %p55 = scmp.eq.s32.totalorder %s17, 0
    %p56 = por %p54, %p55
    %s58 = sadd.s32 %s57, 1
    %p61 = scmp.eq.s32.totalorder %s11, 1
    %p62 = scmp.ne.s32.totalorder %s57, %s59
    %p63 = scmp.eq.s32.totalorder %s11, 0
    %p64 = por %p62, %p63
    %p65 = scmp.ne.s32.totalorder %s57, %s59
    %p66 = scmp.eq.s32.totalorder %s16, 1
    %p67 = por %p65, %p66
    %p68 = scmp.ne.s32.totalorder %s59, %s60
    %p69 = scmp.eq.s32.totalorder %s16, 0
    %p70 = por %p68, %p69
    %p71 = scmp.ne.s32.totalorder %s59, %s60
    %p72 = scmp.eq.s32.totalorder %s17, 1
    %p73 = por %p71, %p72
    %p75 = scmp.ne.s32.totalorder %s60, %s74
    %p76 = scmp.eq.s32.totalorder %s17, 0
    %p77 = por %p75, %p76
    %s79 = sadd.s32 %s78, 1
    %p82 = scmp.eq.s32.totalorder %s11, 1
    %p83 = scmp.ne.s32.totalorder %s78, %s80
    %p84 = scmp.eq.s32.totalorder %s11, 0
    %p85 = por %p83, %p84
    %p86 = scmp.ne.s32.totalorder %s78, %s80
    %p87 = scmp.eq.s32.totalorder %s16, 1
    %p88 = por %p86, %p87
    %p89 = scmp.ne.s32.totalorder %s80, %s81
    %p90 = scmp.eq.s32.totalorder %s16, 0
    %p91 = por %p89, %p90
    %p92 = scmp.ne.s32.totalorder %s80, %s81
    %p93 = scmp.eq.s32.totalorder %s17, 1
    %p94 = por %p92, %p93
    %p96 = scmp.ne.s32.totalorder %s81, %s95
    %p97 = scmp.eq.s32.totalorder %s17, 0
    %p98 = por %p96, %p97
    %s100 = sadd.s32 %s99, 1
    %p103 = scmp.eq.s32.totalorder %s11, 1
    %p104 = scmp.ne.s32.totalorder %s99, %s101
    %p105 = scmp.eq.s32.totalorder %s11, 0
    %p106 = por %p104, %p105
    %p107 = scmp.ne.s32.totalorder %s99, %s101
    %p108 = scmp.eq.s32.totalorder %s16, 1
    %p109 = por %p107, %p108
    %p110 = scmp.ne.s32.totalorder %s101, %s102
    %p111 = scmp.eq.s32.totalorder %s16, 0
    %p112 = por %p110, %p111
    %p113 = scmp.ne.s32.totalorder %s101, %s102
    %p114 = scmp.eq.s32.totalorder %s17, 1
    %p115 = por %p113, %p114
    %p117 = scmp.ne.s32.totalorder %s102, %s116
    %p118 = scmp.eq.s32.totalorder %s17, 0
    %p119 = por %p117, %p118
    %s121 = sadd.s32 %s120, 1
    %p124 = scmp.eq.s32.totalorder %s11, 1
    %p125 = scmp.ne.s32.totalorder %s120, %s122
    %p126 = scmp.eq.s32.totalorder %s11, 0
    %p127 = por %p125, %p126
    %p128 = scmp.ne.s32.totalorder %s120, %s122
    %p129 = scmp.eq.s32.totalorder %s16, 1
    %p130 = por %p128, %p129
    %p131 = scmp.ne.s32.totalorder %s122, %s123
    %p132 = scmp.eq.s32.totalorder %s16, 0
    %p133 = por %p131, %p132
    %p134 = scmp.ne.s32.totalorder %s122, %s123
    %p135 = scmp.eq.s32.totalorder %s17, 1
    %p136 = por %p134, %p135
    %p138 = scmp.ne.s32.totalorder %s123, %s137
    %p139 = scmp.eq.s32.totalorder %s17, 0
    %p140 = por %p138, %p139
    %s141 = ssub.s32 %s18, %s30
    %s142 = ssub.s32 %s19, %s26
    %s143 = sor.u32 %s141, %s142
    %p144 = scmp.eq.s32.totalorder %s143, 0
    %s146 = sadd.s32 %s145, 1
    %s147 = scalar_select %p144, %s145, %s146
    %p150 = pneg %p144
    %p151 = scmp.eq.s32.totalorder %s11, 1
    %p152 = por %p150, %p151
    %p153 = scmp.ne.s32.totalorder %s145, %s148
    %p154 = scmp.eq.s32.totalorder %s11, 0
    %p155 = por %p153, %p154
    %p156 = scmp.ne.s32.totalorder %s145, %s148
    %p157 = scmp.eq.s32.totalorder %s16, 1
    %p158 = por %p156, %p157
    %p159 = scmp.ne.s32.totalorder %s148, %s149
    %p160 = scmp.eq.s32.totalorder %s16, 0
    %p161 = por %p159, %p160
    %p162 = scmp.ne.s32.totalorder %s148, %s149
    %p163 = scmp.eq.s32.totalorder %s17, 1
    %p164 = por %p162, %p163
    %p166 = scmp.ne.s32.totalorder %s149, %s165
    %p167 = scmp.eq.s32.totalorder %s17, 0
    %p168 = por %p166, %p167
    %p169 = scmp.le.s32.totalorder 1, %s11
    %p170 = scmp.lt.s32.totalorder %s11, 3
    %p171 = pnand %p169, %p170
    %p172 = pneg %p171
    // Predicated region
    $region9: #{up_conv_block.1} parent=5 // pred_check
      _
    $region10: #{up_conv_block.1} parent=5 // pred_check_branch
      %174 = sbr.rel (%p171) target = $region12
    $region11: #{up_conv_block.1} parent=5 // pred_region
      %s175 = ssub.s32 %s11, 1
      // Predicated region
      $region13: #{up_conv_block.1} parent=11 // pred_check
        %p176 = pneg %p70
      $region14: #{up_conv_block.1} parent=11 // pred_check_branch
        %178 = sbr.rel (%p176) target = $region16
      $region15: #{up_conv_block.1} parent=11 // pred_region
        _
      $region16: #{up_conv_block.1} parent=11 // pred_fallthru
        _
      // Predicated region
      $region17: #{up_conv_block.1} parent=11 // pred_check
        %p179 = pneg %p91
      $region18: #{up_conv_block.1} parent=11 // pred_check_branch
        %181 = sbr.rel (%p179) target = $region20
      $region19: #{up_conv_block.1} parent=11 // pred_region
        _
      $region20: #{up_conv_block.1} parent=11 // pred_fallthru
        _
      // Predicated region
      $region21: #{up_conv_block.1} parent=11 // pred_check
        %p182 = pneg %p112
      $region22: #{up_conv_block.1} parent=11 // pred_check_branch
        %184 = sbr.rel (%p182) target = $region24
      $region23: #{up_conv_block.1} parent=11 // pred_region
        _
      $region24: #{up_conv_block.1} parent=11 // pred_fallthru
        _
      // Predicated region
      $region25: #{up_conv_block.1} parent=11 // pred_check
        %p185 = pneg %p133
      $region26: #{up_conv_block.1} parent=11 // pred_check_branch
        %187 = sbr.rel (%p185) target = $region28
      $region27: #{up_conv_block.1} parent=11 // pred_region
        _
      $region28: #{up_conv_block.1} parent=11 // pred_fallthru
        _
    $region12: #{up_conv_block.1} parent=5 // pred_fallthru
      _
    %p188 = scmp.lt.s32.totalorder %s11, 2
    // Predicated region
    $region29: #{up_conv_block.1} parent=5 // pred_check
      %p189 = pneg %p188
    $region30: #{up_conv_block.1} parent=5 // pred_check_branch
      %191 = sbr.rel (%p189) target = $region32
    $region31: #{up_conv_block.1} parent=5 // pred_region
      // Predicated region
      $region33: #{up_conv_block.1} parent=31 // pred_check
        %p192 = pneg %p43
      $region34: #{up_conv_block.1} parent=31 // pred_check_branch
        %194 = sbr.rel (%p192) target = $region36
      $region35: #{up_conv_block.1} parent=31 // pred_region
        %p195 = scmp.lt.s32.totalorder %s18, 1
        %s196 = scalar_select %p195, %s18, 1
        %s197 = smul.addr %s196, 60
        %s198 = smul.addr %s197, 4
        %s199 = scalar_lea.vmem %s0, %s198
      $region36: #{up_conv_block.1} parent=31 // pred_fallthru
        _
    $region32: #{up_conv_block.1} parent=5 // pred_fallthru
      _
    %p200 = scmp.le.s32.totalorder 1, %s11
    %p201 = scmp.lt.s32.totalorder %s11, 3
    %p202 = pnand %p200, %p201
    %p203 = pneg %p202
    // Predicated region
    $region37: #{up_conv_block.1} parent=5 // pred_check
      _
    $region38: #{up_conv_block.1} parent=5 // pred_check_branch
      %205 = sbr.rel (%p202) target = $region40
    $region39: #{up_conv_block.1} parent=5 // pred_region
      %s206 = ssub.s32 %s11, 1
      %p207 = scmp.lt.s32.totalorder %s20, 1
      %s208 = scalar_select %p207, %s20, 1
      %s209 = smul.addr %s208, 60
      %s210 = smul.addr %s209, 4
      %s211 = scalar_lea.vmem %s0, %s210
      %p212 = pneg %p49
      %p213 = pneg %p46
      %p214 = pneg %p70
      %p215 = pneg %p67
      %p216 = pneg %p91
      %p217 = pneg %p88
      %p218 = pneg %p112
      %p219 = pneg %p109
      %p220 = pneg %p133
      %p221 = pneg %p130
      %p222 = pneg %p161
      %p223 = pneg %p158
      %s224 = smul.u32 4, %s20
      %s225 = smul.u32 16, %s21
      %p226 = scmp.lt.s32.totalorder %s224, 7
      %s227 = scalar_select %p226, %s224, 7
      %p228 = scmp.lt.s32.totalorder %s225, 15
      %s229 = scalar_select %p228, %s225, 15
      %s230 = smul.addr %s229, 2
      %s231 = smul.addr %s227, 32
      %s232 = sadd.s32 %s230, %s231
      %s233 = smul.addr %s232, 8
      %s234 = scalar_lea.vmem %s5, %s233
      %p235 = scmp.lt.s32.totalorder %s20, 1
      %s236 = scalar_select %p235, %s20, 1
      %s237 = smul.addr %s236, 60
      %s238 = smul.addr %s237, 4
      %s239 = scalar_lea.vmem %s0, %s238
      %s240 = smul.u32 4, %s20
      %s241 = smul.u32 16, %s21
      %p242 = scmp.lt.s32.totalorder %s240, 7
      %s243 = scalar_select %p242, %s240, 7
      %p244 = scmp.lt.s32.totalorder %s241, 15
      %s245 = scalar_select %p244, %s241, 15
      %s246 = smul.addr %s245, 2
      %s247 = smul.addr %s243, 32
      %s248 = sadd.s32 %s246, %s247
      %s249 = smul.addr %s248, 8
      %s250 = scalar_lea.vmem %s5, %s249
      %s251 = smul.u32 4, %s20
      %s252 = smul.u32 16, %s21
      %s254 = smul.u32 %s21, 16
      %s255 = smul.u32 %s254, 3
      %s256 = smul.addr %s255, 4
      %s257 = scalar_lea.vmem %s239, %s256
      %v258 = vld [vmem:[%s257] sm:$0xf]
      %v259 = vld [vmem:[%s257 + $0x4] sm:$0xf]
      %v260 = vld [vmem:[%s257 + $0xc] sm:$0xf]
      %v261 = vld [vmem:[%s257 + $0x10] sm:$0xf]
      %v262 = vld [vmem:[%s257 + $0x18] sm:$0xf]
      %v263 = vld [vmem:[%s257 + $0x1c] sm:$0xf]
      %v264 = vld [vmem:[%s257 + $0x24] sm:$0xf]
      %v265 = vld [vmem:[%s257 + $0x28] sm:$0xf]
      %v266 = vld [vmem:[%s257 + $0x30] sm:$0xf]
      %v267 = vld [vmem:[%s257 + $0x34] sm:$0xf]
      %v268 = vld [vmem:[%s257 + $0x3c] sm:$0xf]
      %v269 = vld [vmem:[%s257 + $0x40] sm:$0xf]
      %v270 = vld [vmem:[%s257 + $0x48] sm:$0xf]
      %v271 = vld [vmem:[%s257 + $0x4c] sm:$0xf]
      %v272 = vld [vmem:[%s257 + $0x54] sm:$0xf]
      %v273 = vld [vmem:[%s257 + $0x58] sm:$0xf]
      %v274 = vld [vmem:[%s257 + $0x60] sm:$0xf]
      %v275 = vld [vmem:[%s257 + $0x64] sm:$0xf]
      %v276 = vld [vmem:[%s257 + $0x6c] sm:$0xf]
      %v277 = vld [vmem:[%s257 + $0x70] sm:$0xf]
      %v278 = vld [vmem:[%s257 + $0x78] sm:$0xf]
      %v279 = vld [vmem:[%s257 + $0x7c] sm:$0xf]
      %v280 = vld [vmem:[%s257 + $0x84] sm:$0xf]
      %v281 = vld [vmem:[%s257 + $0x88] sm:$0xf]
      %v282 = vld [vmem:[%s257 + $0x90] sm:$0xf]
      %v283 = vld [vmem:[%s257 + $0x94] sm:$0xf]
      %v284 = vld [vmem:[%s257 + $0x9c] sm:$0xf]
      %v285 = vld [vmem:[%s257 + $0xa0] sm:$0xf]
      %v286 = vld [vmem:[%s257 + $0xa8] sm:$0xf]
      %v287 = vld [vmem:[%s257 + $0xac] sm:$0xf]
      %v288 = vld [vmem:[%s257 + $0xb4] sm:$0xf]
      %v289 = vld [vmem:[%s257 + $0xb8] sm:$0xf]
      %v290 = vld [vmem:[%s257 + $0xc0] sm:$0xf]
      %v291 = vld [vmem:[%s257 + $0xc4] sm:$0xf]
      %v292 = vld [vmem:[%s257 + $0xcc] sm:$0xf]
      %v293 = vld [vmem:[%s257 + $0xd0] sm:$0xf]
      %v294 = vld [vmem:[%s257 + $0xd8] sm:$0xf]
      %v295 = vld [vmem:[%s257 + $0xdc] sm:$0xf]
      %v296 = vld [vmem:[%s257 + $0xe4] sm:$0xf]
      %v297 = vld [vmem:[%s257 + $0xe8] sm:$0xf]
      %v338 = vunpack.c.l.b16 %v258
      %v339 = vunpack.c.l.b16 %v259
      %v340 = vunpack.c.l.b16 %v260
      %v341 = vunpack.c.l.b16 %v261
      %v342 = vunpack.c.l.b16 %v262
      %v343 = vunpack.c.l.b16 %v263
      %v344 = vunpack.c.l.b16 %v264
      %v345 = vunpack.c.l.b16 %v265
      %v346 = vunpack.c.l.b16 %v266
      %v347 = vunpack.c.l.b16 %v267
      %v348 = vunpack.c.l.b16 %v268
      %v349 = vunpack.c.l.b16 %v269
      %v350 = vunpack.c.l.b16 %v270
      %v351 = vunpack.c.l.b16 %v271
      %v352 = vunpack.c.l.b16 %v272
      %v353 = vunpack.c.l.b16 %v273
      %v354 = vunpack.c.l.b16 %v274
      %v355 = vunpack.c.l.b16 %v275
      %v356 = vunpack.c.l.b16 %v276
      %v357 = vunpack.c.l.b16 %v277
      %v358 = vunpack.c.l.b16 %v278
      %v359 = vunpack.c.l.b16 %v279
      %v360 = vunpack.c.l.b16 %v280
      %v361 = vunpack.c.l.b16 %v281
      %v362 = vunpack.c.l.b16 %v282
      %v363 = vunpack.c.l.b16 %v283
      %v364 = vunpack.c.l.b16 %v284
      %v365 = vunpack.c.l.b16 %v285
      %v366 = vunpack.c.l.b16 %v286
      %v367 = vunpack.c.l.b16 %v287
      %v368 = vunpack.c.l.b16 %v288
      %v369 = vunpack.c.l.b16 %v289
      %v370 = vunpack.c.l.b16 %v290
      %v371 = vunpack.c.l.b16 %v291
      %v372 = vunpack.c.l.b16 %v292
      %v373 = vunpack.c.l.b16 %v293
      %v374 = vunpack.c.l.b16 %v294
      %v375 = vunpack.c.l.b16 %v295
      %v376 = vunpack.c.l.b16 %v296
      %v377 = vunpack.c.l.b16 %v297
      %v378 = vpack.c.b16 %v339, %v338
      %v379 = vpack.c.b16 %v341, %v340
      %v380 = vpack.c.b16 %v343, %v342
      %v381 = vpack.c.b16 %v345, %v344
      %v382 = vpack.c.b16 %v347, %v346
      %v383 = vpack.c.b16 %v349, %v348
      %v384 = vpack.c.b16 %v351, %v350
      %v385 = vpack.c.b16 %v353, %v352
      %v386 = vpack.c.b16 %v355, %v354
      %v387 = vpack.c.b16 %v357, %v356
      %v388 = vpack.c.b16 %v359, %v358
      %v389 = vpack.c.b16 %v361, %v360
      %v390 = vpack.c.b16 %v363, %v362
      %v391 = vpack.c.b16 %v365, %v364
      %v392 = vpack.c.b16 %v367, %v366
      %v393 = vpack.c.b16 %v369, %v368
      %v394 = vpack.c.b16 %v371, %v370
      %v395 = vpack.c.b16 %v373, %v372
      %v396 = vpack.c.b16 %v375, %v374
      %v397 = vpack.c.b16 %v377, %v376
      %vm418 = vcmask 31744
      %419 = vst.msk [vmem:[#allocation2] sm:$0xff] %vm418, %v378
      %420 = vst.msk [vmem:[#allocation2 + $0x8] sm:$0xff] %vm418, %v379
      %421 = vst.msk [vmem:[#allocation2 + $0x10] sm:$0xff] %vm418, %v380
      %422 = vst.msk [vmem:[#allocation2 + $0x18] sm:$0xff] %vm418, %v381
      %423 = vst.msk [vmem:[#allocation2 + $0x20] sm:$0xff] %vm418, %v382
      %424 = vst.msk [vmem:[#allocation2 + $0x28] sm:$0xff] %vm418, %v383
      %425 = vst.msk [vmem:[#allocation2 + $0x30] sm:$0xff] %vm418, %v384
      %426 = vst.msk [vmem:[#allocation2 + $0x38] sm:$0xff] %vm418, %v385
      %427 = vst.msk [vmem:[#allocation2 + $0x40] sm:$0xff] %vm418, %v386
      %428 = vst.msk [vmem:[#allocation2 + $0x48] sm:$0xff] %vm418, %v387
      %429 = vst.msk [vmem:[#allocation2 + $0x50] sm:$0xff] %vm418, %v388
      %430 = vst.msk [vmem:[#allocation2 + $0x58] sm:$0xff] %vm418, %v389
      %431 = vst.msk [vmem:[#allocation2 + $0x60] sm:$0xff] %vm418, %v390
      %432 = vst.msk [vmem:[#allocation2 + $0x68] sm:$0xff] %vm418, %v391
      %433 = vst.msk [vmem:[#allocation2 + $0x70] sm:$0xff] %vm418, %v392
      %434 = vst.msk [vmem:[#allocation2 + $0x78] sm:$0xff] %vm418, %v393
      %435 = vst.msk [vmem:[#allocation2 + $0x80] sm:$0xff] %vm418, %v394
      %436 = vst.msk [vmem:[#allocation2 + $0x88] sm:$0xff] %vm418, %v395
      %437 = vst.msk [vmem:[#allocation2 + $0x90] sm:$0xff] %vm418, %v396
      %438 = vst.msk [vmem:[#allocation2 + $0x98] sm:$0xff] %vm418, %v397
      %v439 = vld [vmem:[%s257] sm:$0xf]
      %v440 = vld [vmem:[%s257 + $0x4] sm:$0xf]
      %v441 = vld [vmem:[%s257 + $0x8] sm:$0x1]
      %v442 = vld [vmem:[%s257 + $0xc] sm:$0xf]
      %v443 = vld [vmem:[%s257 + $0x10] sm:$0xf]
      %v444 = vld [vmem:[%s257 + $0x14] sm:$0x1]
      %v445 = vld [vmem:[%s257 + $0x18] sm:$0xf]
      %v446 = vld [vmem:[%s257 + $0x1c] sm:$0xf]
      %v447 = vld [vmem:[%s257 + $0x20] sm:$0x1]
      %v448 = vld [vmem:[%s257 + $0x24] sm:$0xf]
      %v449 = vld [vmem:[%s257 + $0x28] sm:$0xf]
      %v450 = vld [vmem:[%s257 + $0x2c] sm:$0x1]
      %v451 = vld [vmem:[%s257 + $0x30] sm:$0xf]
      %v452 = vld [vmem:[%s257 + $0x34] sm:$0xf]
      %v453 = vld [vmem:[%s257 + $0x38] sm:$0x1]
      %v454 = vld [vmem:[%s257 + $0x3c] sm:$0xf]
      %v455 = vld [vmem:[%s257 + $0x40] sm:$0xf]
      %v456 = vld [vmem:[%s257 + $0x44] sm:$0x1]
      %v457 = vld [vmem:[%s257 + $0x48] sm:$0xf]
      %v458 = vld [vmem:[%s257 + $0x4c] sm:$0xf]
      %v459 = vld [vmem:[%s257 + $0x50] sm:$0x1]
      %v460 = vld [vmem:[%s257 + $0x54] sm:$0xf]
      %v461 = vld [vmem:[%s257 + $0x58] sm:$0xf]
      %v462 = vld [vmem:[%s257 + $0x5c] sm:$0x1]
      %v463 = vld [vmem:[%s257 + $0x60] sm:$0xf]
      %v464 = vld [vmem:[%s257 + $0x64] sm:$0xf]
      %v465 = vld [vmem:[%s257 + $0x68] sm:$0x1]
      %v466 = vld [vmem:[%s257 + $0x6c] sm:$0xf]
      %v467 = vld [vmem:[%s257 + $0x70] sm:$0xf]
      %v468 = vld [vmem:[%s257 + $0x74] sm:$0x1]
      %v469 = vld [vmem:[%s257 + $0x78] sm:$0xf]
      %v470 = vld [vmem:[%s257 + $0x7c] sm:$0xf]
      %v471 = vld [vmem:[%s257 + $0x80] sm:$0x1]
      %v472 = vld [vmem:[%s257 + $0x84] sm:$0xf]
      %v473 = vld [vmem:[%s257 + $0x88] sm:$0xf]
      %v474 = vld [vmem:[%s257 + $0x8c] sm:$0x1]
      %v475 = vld [vmem:[%s257 + $0x90] sm:$0xf]
      %v476 = vld [vmem:[%s257 + $0x94] sm:$0xf]
      %v477 = vld [vmem:[%s257 + $0x98] sm:$0x1]
      %v478 = vld [vmem:[%s257 + $0x9c] sm:$0xf]
      %v479 = vld [vmem:[%s257 + $0xa0] sm:$0xf]
      %v480 = vld [vmem:[%s257 + $0xa4] sm:$0x1]
      %v481 = vld [vmem:[%s257 + $0xa8] sm:$0xf]
      %v482 = vld [vmem:[%s257 + $0xac] sm:$0xf]
      %v483 = vld [vmem:[%s257 + $0xb0] sm:$0x1]
      %v484 = vld [vmem:[%s257 + $0xb4] sm:$0xf]
      %v485 = vld [vmem:[%s257 + $0xb8] sm:$0xf]
      %v486 = vld [vmem:[%s257 + $0xbc] sm:$0x1]
      %v487 = vld [vmem:[%s257 + $0xc0] sm:$0xf]
      %v488 = vld [vmem:[%s257 + $0xc4] sm:$0xf]
      %v489 = vld [vmem:[%s257 + $0xc8] sm:$0x1]
      %v490 = vld [vmem:[%s257 + $0xcc] sm:$0xf]
      %v491 = vld [vmem:[%s257 + $0xd0] sm:$0xf]
      %v492 = vld [vmem:[%s257 + $0xd4] sm:$0x1]
      %v493 = vld [vmem:[%s257 + $0xd8] sm:$0xf]
      %v494 = vld [vmem:[%s257 + $0xdc] sm:$0xf]
      %v495 = vld [vmem:[%s257 + $0xe0] sm:$0x1]
      %v496 = vld [vmem:[%s257 + $0xe4] sm:$0xf]
      %v497 = vld [vmem:[%s257 + $0xe8] sm:$0xf]
      %v498 = vld [vmem:[%s257 + $0xec] sm:$0x1]
      %v559 = vunpack.c.l.b16 %v439
      %v560 = vunpack.c.l.b16 %v440
      %v561 = vunpack.c.l.b16 %v441
      %v562 = vunpack.c.l.b16 %v442
      %v563 = vunpack.c.l.b16 %v443
      %v564 = vunpack.c.l.b16 %v444
      %v565 = vunpack.c.l.b16 %v445
      %v566 = vunpack.c.l.b16 %v446
      %v567 = vunpack.c.l.b16 %v447
      %v568 = vunpack.c.l.b16 %v448
      %v569 = vunpack.c.l.b16 %v449
      %v570 = vunpack.c.l.b16 %v450
      %v571 = vunpack.c.l.b16 %v451
      %v572 = vunpack.c.l.b16 %v452
      %v573 = vunpack.c.l.b16 %v453
      %v574 = vunpack.c.l.b16 %v454
      %v575 = vunpack.c.l.b16 %v455
      %v576 = vunpack.c.l.b16 %v456
      %v577 = vunpack.c.l.b16 %v457
      %v578 = vunpack.c.l.b16 %v458
      %v579 = vunpack.c.l.b16 %v459
      %v580 = vunpack.c.l.b16 %v460
      %v581 = vunpack.c.l.b16 %v461
      %v582 = vunpack.c.l.b16 %v462
      %v583 = vunpack.c.l.b16 %v463
      %v584 = vunpack.c.l.b16 %v464
      %v585 = vunpack.c.l.b16 %v465
      %v586 = vunpack.c.l.b16 %v466
      %v587 = vunpack.c.l.b16 %v467
      %v588 = vunpack.c.l.b16 %v468
      %v589 = vunpack.c.l.b16 %v469
      %v590 = vunpack.c.l.b16 %v470
      %v591 = vunpack.c.l.b16 %v471
      %v592 = vunpack.c.l.b16 %v472
      %v593 = vunpack.c.l.b16 %v473
      %v594 = vunpack.c.l.b16 %v474
      %v595 = vunpack.c.l.b16 %v475
      %v596 = vunpack.c.l.b16 %v476
      %v597 = vunpack.c.l.b16 %v477
      %v598 = vunpack.c.l.b16 %v478
      %v599 = vunpack.c.l.b16 %v479
      %v600 = vunpack.c.l.b16 %v480
      %v601 = vunpack.c.l.b16 %v481
      %v602 = vunpack.c.l.b16 %v482
      %v603 = vunpack.c.l.b16 %v483
      %v604 = vunpack.c.l.b16 %v484
      %v605 = vunpack.c.l.b16 %v485
      %v606 = vunpack.c.l.b16 %v486
      %v607 = vunpack.c.l.b16 %v487
      %v608 = vunpack.c.l.b16 %v488
      %v609 = vunpack.c.l.b16 %v489
      %v610 = vunpack.c.l.b16 %v490
      %v611 = vunpack.c.l.b16 %v491
      %v612 = vunpack.c.l.b16 %v492
      %v613 = vunpack.c.l.b16 %v493
      %v614 = vunpack.c.l.b16 %v494
      %v615 = vunpack.c.l.b16 %v495
      %v616 = vunpack.c.l.b16 %v496
      %v617 = vunpack.c.l.b16 %v497
      %v618 = vunpack.c.l.b16 %v498
      %v619 = vpack.c.b16 %v560, %v559
      %v620 = vpack.c.b16 %v561, %v561
      %v621 = vpack.c.b16 %v563, %v562
      %v622 = vpack.c.b16 %v564, %v564
      %v623 = vpack.c.b16 %v566, %v565
      %v624 = vpack.c.b16 %v567, %v567
      %v625 = vpack.c.b16 %v569, %v568
      %v626 = vpack.c.b16 %v570, %v570
      %v627 = vpack.c.b16 %v572, %v571
      %v628 = vpack.c.b16 %v573, %v573
      %v629 = vpack.c.b16 %v575, %v574
      %v630 = vpack.c.b16 %v576, %v576
      %v631 = vpack.c.b16 %v578, %v577
      %v632 = vpack.c.b16 %v579, %v579
      %v633 = vpack.c.b16 %v581, %v580
      %v634 = vpack.c.b16 %v582, %v582
      %v635 = vpack.c.b16 %v584, %v583
      %v636 = vpack.c.b16 %v585, %v585
      %v637 = vpack.c.b16 %v587, %v586
      %v638 = vpack.c.b16 %v588, %v588
      %v639 = vpack.c.b16 %v590, %v589
      %v640 = vpack.c.b16 %v591, %v591
      %v641 = vpack.c.b16 %v593, %v592
      %v642 = vpack.c.b16 %v594, %v594
      %v643 = vpack.c.b16 %v596, %v595
      %v644 = vpack.c.b16 %v597, %v597
      %v645 = vpack.c.b16 %v599, %v598
      %v646 = vpack.c.b16 %v600, %v600
      %v647 = vpack.c.b16 %v602, %v601
      %v648 = vpack.c.b16 %v603, %v603
      %v649 = vpack.c.b16 %v605, %v604
      %v650 = vpack.c.b16 %v606, %v606
      %v651 = vpack.c.b16 %v608, %v607
      %v652 = vpack.c.b16 %v609, %v609
      %v653 = vpack.c.b16 %v611, %v610
      %v654 = vpack.c.b16 %v612, %v612
      %v655 = vpack.c.b16 %v614, %v613
      %v656 = vpack.c.b16 %v615, %v615
      %v657 = vpack.c.b16 %v617, %v616
      %v658 = vpack.c.b16 %v618, %v618
      %vm659 = vsmask.f32 7424
      %v661 = vshrl.u32 %v619, 16
      %v663 = vshll.u32 %v619, 16
      %v665 = vrot.slane %v663, 1
      %v666 = vor.u32 %v661, %v665
      %v668 = vshll.u32 %v620, 16
      %v670 = vrot.slane %v668, 1
      %v671 = vsel %vm659, %v666, %v670
      %v673 = vshrl.u32 %v621, 16
      %v675 = vshll.u32 %v621, 16
      %v677 = vrot.slane %v675, 1
      %v678 = vor.u32 %v673, %v677
      %v680 = vshll.u32 %v622, 16
      %v682 = vrot.slane %v680, 1
      %v683 = vsel %vm659, %v678, %v682
      %v685 = vshrl.u32 %v623, 16
      %v687 = vshll.u32 %v623, 16
      %v689 = vrot.slane %v687, 1
      %v690 = vor.u32 %v685, %v689
      %v692 = vshll.u32 %v624, 16
      %v694 = vrot.slane %v692, 1
      %v695 = vsel %vm659, %v690, %v694
      %v697 = vshrl.u32 %v625, 16
      %v699 = vshll.u32 %v625, 16
      %v701 = vrot.slane %v699, 1
      %v702 = vor.u32 %v697, %v701
      %v704 = vshll.u32 %v626, 16
      %v706 = vrot.slane %v704, 1
      %v707 = vsel %vm659, %v702, %v706
      %v709 = vshrl.u32 %v627, 16
      %v711 = vshll.u32 %v627, 16
      %v713 = vrot.slane %v711, 1
      %v714 = vor.u32 %v709, %v713
      %v716 = vshll.u32 %v628, 16
      %v718 = vrot.slane %v716, 1
      %v719 = vsel %vm659, %v714, %v718
      %v721 = vshrl.u32 %v629, 16
      %v723 = vshll.u32 %v629, 16
      %v725 = vrot.slane %v723, 1
      %v726 = vor.u32 %v721, %v725
      %v728 = vshll.u32 %v630, 16
      %v730 = vrot.slane %v728, 1
      %v731 = vsel %vm659, %v726, %v730
      %v733 = vshrl.u32 %v631, 16
      %v735 = vshll.u32 %v631, 16
      %v737 = vrot.slane %v735, 1
      %v738 = vor.u32 %v733, %v737
      %v740 = vshll.u32 %v632, 16
      %v742 = vrot.slane %v740, 1
      %v743 = vsel %vm659, %v738, %v742
      %v745 = vshrl.u32 %v633, 16
      %v747 = vshll.u32 %v633, 16
      %v749 = vrot.slane %v747, 1
      %v750 = vor.u32 %v745, %v749
      %v752 = vshll.u32 %v634, 16
      %v754 = vrot.slane %v752, 1
      %v755 = vsel %vm659, %v750, %v754
      %v757 = vshrl.u32 %v635, 16
      %v759 = vshll.u32 %v635, 16
      %v761 = vrot.slane %v759, 1
      %v762 = vor.u32 %v757, %v761
      %v764 = vshll.u32 %v636, 16
      %v766 = vrot.slane %v764, 1
      %v767 = vsel %vm659, %v762, %v766
      %v769 = vshrl.u32 %v637, 16
      %v771 = vshll.u32 %v637, 16
      %v773 = vrot.slane %v771, 1
      %v774 = vor.u32 %v769, %v773
      %v776 = vshll.u32 %v638, 16
      %v778 = vrot.slane %v776, 1
      %v779 = vsel %vm659, %v774, %v778
      %v781 = vshrl.u32 %v639, 16
      %v783 = vshll.u32 %v639, 16
      %v785 = vrot.slane %v783, 1
      %v786 = vor.u32 %v781, %v785
      %v788 = vshll.u32 %v640, 16
      %v790 = vrot.slane %v788, 1
      %v791 = vsel %vm659, %v786, %v790
      %v793 = vshrl.u32 %v641, 16
      %v795 = vshll.u32 %v641, 16
      %v797 = vrot.slane %v795, 1
      %v798 = vor.u32 %v793, %v797
      %v800 = vshll.u32 %v642, 16
      %v802 = vrot.slane %v800, 1
      %v803 = vsel %vm659, %v798, %v802
      %v805 = vshrl.u32 %v643, 16
      %v807 = vshll.u32 %v643, 16
      %v809 = vrot.slane %v807, 1
      %v810 = vor.u32 %v805, %v809
      %v812 = vshll.u32 %v644, 16
      %v814 = vrot.slane %v812, 1
      %v815 = vsel %vm659, %v810, %v814
      %v817 = vshrl.u32 %v645, 16
      %v819 = vshll.u32 %v645, 16
      %v821 = vrot.slane %v819, 1
      %v822 = vor.u32 %v817, %v821
      %v824 = vshll.u32 %v646, 16
      %v826 = vrot.slane %v824, 1
      %v827 = vsel %vm659, %v822, %v826
      %v829 = vshrl.u32 %v647, 16
      %v831 = vshll.u32 %v647, 16
      %v833 = vrot.slane %v831, 1
      %v834 = vor.u32 %v829, %v833
      %v836 = vshll.u32 %v648, 16
      %v838 = vrot.slane %v836, 1
      %v839 = vsel %vm659, %v834, %v838
      %v841 = vshrl.u32 %v649, 16
      %v843 = vshll.u32 %v649, 16
      %v845 = vrot.slane %v843, 1
      %v846 = vor.u32 %v841, %v845
      %v848 = vshll.u32 %v650, 16
      %v850 = vrot.slane %v848, 1
      %v851 = vsel %vm659, %v846, %v850
      %v853 = vshrl.u32 %v651, 16
      %v855 = vshll.u32 %v651, 16
      %v857 = vrot.slane %v855, 1
      %v858 = vor.u32 %v853, %v857
      %v860 = vshll.u32 %v652, 16
      %v862 = vrot.slane %v860, 1
      %v863 = vsel %vm659, %v858, %v862
      %v865 = vshrl.u32 %v653, 16
      %v867 = vshll.u32 %v653, 16
      %v869 = vrot.slane %v867, 1
      %v870 = vor.u32 %v865, %v869
      %v872 = vshll.u32 %v654, 16
      %v874 = vrot.slane %v872, 1
      %v875 = vsel %vm659, %v870, %v874
      %v877 = vshrl.u32 %v655, 16
      %v879 = vshll.u32 %v655, 16
      %v881 = vrot.slane %v879, 1
      %v882 = vor.u32 %v877, %v881
      %v884 = vshll.u32 %v656, 16
      %v886 = vrot.slane %v884, 1
      %v887 = vsel %vm659, %v882, %v886
      %v889 = vshrl.u32 %v657, 16
      %v891 = vshll.u32 %v657, 16
      %v893 = vrot.slane %v891, 1
      %v894 = vor.u32 %v889, %v893
      %v896 = vshll.u32 %v658, 16
      %v898 = vrot.slane %v896, 1
      %v899 = vsel %vm659, %v894, %v898
      %900 = vrot.lane.b32.xlu0 %v671, 4
      %v901 = vpop.permute.xlu0 %900
      %902 = vrot.lane.b32.xlu0 %v683, 4
      %v903 = vpop.permute.xlu0 %902
      %904 = vrot.lane.b32.xlu0 %v695, 4
      %v905 = vpop.permute.xlu0 %904
      %906 = vrot.lane.b32.xlu0 %v707, 4
      %v907 = vpop.permute.xlu0 %906
      %908 = vrot.lane.b32.xlu0 %v719, 4
      %v909 = vpop.permute.xlu0 %908
      %910 = vrot.lane.b32.xlu0 %v731, 4
      %v911 = vpop.permute.xlu0 %910
      %912 = vrot.lane.b32.xlu0 %v743, 4
      %v913 = vpop.permute.xlu0 %912
      %914 = vrot.lane.b32.xlu0 %v755, 4
      %v915 = vpop.permute.xlu0 %914
      %916 = vrot.lane.b32.xlu0 %v767, 4
      %v917 = vpop.permute.xlu0 %916
      %918 = vrot.lane.b32.xlu0 %v779, 4
      %v919 = vpop.permute.xlu0 %918
      %920 = vrot.lane.b32.xlu0 %v791, 4
      %v921 = vpop.permute.xlu0 %920
      %922 = vrot.lane.b32.xlu0 %v803, 4
      %v923 = vpop.permute.xlu0 %922
      %924 = vrot.lane.b32.xlu0 %v815, 4
      %v925 = vpop.permute.xlu0 %924
      %926 = vrot.lane.b32.xlu0 %v827, 4
      %v927 = vpop.permute.xlu0 %926
      %928 = vrot.lane.b32.xlu0 %v839, 4
      %v929 = vpop.permute.xlu0 %928
      %930 = vrot.lane.b32.xlu0 %v851, 4
      %v931 = vpop.permute.xlu0 %930
      %932 = vrot.lane.b32.xlu0 %v863, 4
      %v933 = vpop.permute.xlu0 %932
      %934 = vrot.lane.b32.xlu0 %v875, 4
      %v935 = vpop.permute.xlu0 %934
      %936 = vrot.lane.b32.xlu0 %v887, 4
      %v937 = vpop.permute.xlu0 %936
      %938 = vrot.lane.b32.xlu0 %v899, 4
      %v939 = vpop.permute.xlu0 %938
      %vm960 = vcmask 64544
      %961 = vst.msk [vmem:[#allocation2] sm:$0xff] %vm960, %v901
      %962 = vst.msk [vmem:[#allocation2 + $0x8] sm:$0xff] %vm960, %v903
      %963 = vst.msk [vmem:[#allocation2 + $0x10] sm:$0xff] %vm960, %v905
      %964 = vst.msk [vmem:[#allocation2 + $0x18] sm:$0xff] %vm960, %v907
      %965 = vst.msk [vmem:[#allocation2 + $0x20] sm:$0xff] %vm960, %v909
      %966 = vst.msk [vmem:[#allocation2 + $0x28] sm:$0xff] %vm960, %v911
      %967 = vst.msk [vmem:[#allocation2 + $0x30] sm:$0xff] %vm960, %v913
      %968 = vst.msk [vmem:[#allocation2 + $0x38] sm:$0xff] %vm960, %v915
      %969 = vst.msk [vmem:[#allocation2 + $0x40] sm:$0xff] %vm960, %v917
      %970 = vst.msk [vmem:[#allocation2 + $0x48] sm:$0xff] %vm960, %v919
      %971 = vst.msk [vmem:[#allocation2 + $0x50] sm:$0xff] %vm960, %v921
      %972 = vst.msk [vmem:[#allocation2 + $0x58] sm:$0xff] %vm960, %v923
      %973 = vst.msk [vmem:[#allocation2 + $0x60] sm:$0xff] %vm960, %v925
      %974 = vst.msk [vmem:[#allocation2 + $0x68] sm:$0xff] %vm960, %v927
      %975 = vst.msk [vmem:[#allocation2 + $0x70] sm:$0xff] %vm960, %v929
      %976 = vst.msk [vmem:[#allocation2 + $0x78] sm:$0xff] %vm960, %v931
      %977 = vst.msk [vmem:[#allocation2 + $0x80] sm:$0xff] %vm960, %v933
      %978 = vst.msk [vmem:[#allocation2 + $0x88] sm:$0xff] %vm960, %v935
      %979 = vst.msk [vmem:[#allocation2 + $0x90] sm:$0xff] %vm960, %v937
      %980 = vst.msk [vmem:[#allocation2 + $0x98] sm:$0xff] %vm960, %v939
      %v981 = vld [vmem:[%s257] sm:$0xe]
      %v982 = vld [vmem:[%s257 + $0x4] sm:$0xf]
      %v983 = vld [vmem:[%s257 + $0x8] sm:$0x1]
      %v984 = vld [vmem:[%s257 + $0xc] sm:$0xe]
      %v985 = vld [vmem:[%s257 + $0x10] sm:$0xf]
      %v986 = vld [vmem:[%s257 + $0x14] sm:$0x1]
      %v987 = vld [vmem:[%s257 + $0x18] sm:$0xe]
      %v988 = vld [vmem:[%s257 + $0x1c] sm:$0xf]
      %v989 = vld [vmem:[%s257 + $0x20] sm:$0x1]
      %v990 = vld [vmem:[%s257 + $0x24] sm:$0xe]
      %v991 = vld [vmem:[%s257 + $0x28] sm:$0xf]
      %v992 = vld [vmem:[%s257 + $0x2c] sm:$0x1]
      %v993 = vld [vmem:[%s257 + $0x30] sm:$0xe]
      %v994 = vld [vmem:[%s257 + $0x34] sm:$0xf]
      %v995 = vld [vmem:[%s257 + $0x38] sm:$0x1]
      %v996 = vld [vmem:[%s257 + $0x3c] sm:$0xe]
      %v997 = vld [vmem:[%s257 + $0x40] sm:$0xf]
      %v998 = vld [vmem:[%s257 + $0x44] sm:$0x1]
      %v999 = vld [vmem:[%s257 + $0x48] sm:$0xe]
      %v1000 = vld [vmem:[%s257 + $0x4c] sm:$0xf]
      %v1001 = vld [vmem:[%s257 + $0x50] sm:$0x1]
      %v1002 = vld [vmem:[%s257 + $0x54] sm:$0xe]
      %v1003 = vld [vmem:[%s257 + $0x58] sm:$0xf]
      %v1004 = vld [vmem:[%s257 + $0x5c] sm:$0x1]
      %v1005 = vld [vmem:[%s257 + $0x60] sm:$0xe]
      %v1006 = vld [vmem:[%s257 + $0x64] sm:$0xf]
      %v1007 = vld [vmem:[%s257 + $0x68] sm:$0x1]
      %v1008 = vld [vmem:[%s257 + $0x6c] sm:$0xe]
      %v1009 = vld [vmem:[%s257 + $0x70] sm:$0xf]
      %v1010 = vld [vmem:[%s257 + $0x74] sm:$0x1]
      %v1011 = vld [vmem:[%s257 + $0x78] sm:$0xe]
      %v1012 = vld [vmem:[%s257 + $0x7c] sm:$0xf]
      %v1013 = vld [vmem:[%s257 + $0x80] sm:$0x1]
      %v1014 = vld [vmem:[%s257 + $0x84] sm:$0xe]
      %v1015 = vld [vmem:[%s257 + $0x88] sm:$0xf]
      %v1016 = vld [vmem:[%s257 + $0x8c] sm:$0x1]
      %v1017 = vld [vmem:[%s257 + $0x90] sm:$0xe]
      %v1018 = vld [vmem:[%s257 + $0x94] sm:$0xf]
      %v1019 = vld [vmem:[%s257 + $0x98] sm:$0x1]
      %v1020 = vld [vmem:[%s257 + $0x9c] sm:$0xe]
      %v1021 = vld [vmem:[%s257 + $0xa0] sm:$0xf]
      %v1022 = vld [vmem:[%s257 + $0xa4] sm:$0x1]
      %v1023 = vld [vmem:[%s257 + $0xa8] sm:$0xe]
      %v1024 = vld [vmem:[%s257 + $0xac] sm:$0xf]
      %v1025 = vld [vmem:[%s257 + $0xb0] sm:$0x1]
      %v1026 = vld [vmem:[%s257 + $0xb4] sm:$0xe]
      %v1027 = vld [vmem:[%s257 + $0xb8] sm:$0xf]
      %v1028 = vld [vmem:[%s257 + $0xbc] sm:$0x1]
      %v1029 = vld [vmem:[%s257 + $0xc0] sm:$0xe]
      %v1030 = vld [vmem:[%s257 + $0xc4] sm:$0xf]
      %v1031 = vld [vmem:[%s257 + $0xc8] sm:$0x1]
      %v1032 = vld [vmem:[%s257 + $0xcc] sm:$0xe]
      %v1033 = vld [vmem:[%s257 + $0xd0] sm:$0xf]
      %v1034 = vld [vmem:[%s257 + $0xd4] sm:$0x1]
      %v1035 = vld [vmem:[%s257 + $0xd8] sm:$0xe]
      %v1036 = vld [vmem:[%s257 + $0xdc] sm:$0xf]
      %v1037 = vld [vmem:[%s257 + $0xe0] sm:$0x1]
      %v1038 = vld [vmem:[%s257 + $0xe4] sm:$0xe]
      %v1039 = vld [vmem:[%s257 + $0xe8] sm:$0xf]
      %v1040 = vld [vmem:[%s257 + $0xec] sm:$0x1]
      %v1101 = vunpack.c.l.b16 %v981
      %v1102 = vunpack.c.l.b16 %v982
      %v1103 = vunpack.c.l.b16 %v983
      %v1104 = vunpack.c.l.b16 %v984
      %v1105 = vunpack.c.l.b16 %v985
      %v1106 = vunpack.c.l.b16 %v986
      %v1107 = vunpack.c.l.b16 %v987
      %v1108 = vunpack.c.l.b16 %v988
      %v1109 = vunpack.c.l.b16 %v989
      %v1110 = vunpack.c.l.b16 %v990
      %v1111 = vunpack.c.l.b16 %v991
      %v1112 = vunpack.c.l.b16 %v992
      %v1113 = vunpack.c.l.b16 %v993
      %v1114 = vunpack.c.l.b16 %v994
      %v1115 = vunpack.c.l.b16 %v995
      %v1116 = vunpack.c.l.b16 %v996
      %v1117 = vunpack.c.l.b16 %v997
      %v1118 = vunpack.c.l.b16 %v998
      %v1119 = vunpack.c.l.b16 %v999
      %v1120 = vunpack.c.l.b16 %v1000
      %v1121 = vunpack.c.l.b16 %v1001
      %v1122 = vunpack.c.l.b16 %v1002
      %v1123 = vunpack.c.l.b16 %v1003
      %v1124 = vunpack.c.l.b16 %v1004
      %v1125 = vunpack.c.l.b16 %v1005
      %v1126 = vunpack.c.l.b16 %v1006
      %v1127 = vunpack.c.l.b16 %v1007
      %v1128 = vunpack.c.l.b16 %v1008
      %v1129 = vunpack.c.l.b16 %v1009
      %v1130 = vunpack.c.l.b16 %v1010
      %v1131 = vunpack.c.l.b16 %v1011
      %v1132 = vunpack.c.l.b16 %v1012
      %v1133 = vunpack.c.l.b16 %v1013
      %v1134 = vunpack.c.l.b16 %v1014
      %v1135 = vunpack.c.l.b16 %v1015
      %v1136 = vunpack.c.l.b16 %v1016
      %v1137 = vunpack.c.l.b16 %v1017
      %v1138 = vunpack.c.l.b16 %v1018
      %v1139 = vunpack.c.l.b16 %v1019
      %v1140 = vunpack.c.l.b16 %v1020
      %v1141 = vunpack.c.l.b16 %v1021
      %v1142 = vunpack.c.l.b16 %v1022
      %v1143 = vunpack.c.l.b16 %v1023
      %v1144 = vunpack.c.l.b16 %v1024
      %v1145 = vunpack.c.l.b16 %v1025
      %v1146 = vunpack.c.l.b16 %v1026
      %v1147 = vunpack.c.l.b16 %v1027
      %v1148 = vunpack.c.l.b16 %v1028
      %v1149 = vunpack.c.l.b16 %v1029
      %v1150 = vunpack.c.l.b16 %v1030
      %v1151 = vunpack.c.l.b16 %v1031
      %v1152 = vunpack.c.l.b16 %v1032
      %v1153 = vunpack.c.l.b16 %v1033
      %v1154 = vunpack.c.l.b16 %v1034
      %v1155 = vunpack.c.l.b16 %v1035
      %v1156 = vunpack.c.l.b16 %v1036
      %v1157 = vunpack.c.l.b16 %v1037
      %v1158 = vunpack.c.l.b16 %v1038
      %v1159 = vunpack.c.l.b16 %v1039
      %v1160 = vunpack.c.l.b16 %v1040
      %v1161 = vpack.c.b16 %v1102, %v1101
      %v1162 = vpack.c.b16 %v1103, %v1103
      %v1163 = vpack.c.b16 %v1105, %v1104
      %v1164 = vpack.c.b16 %v1106, %v1106
      %v1165 = vpack.c.b16 %v1108, %v1107
      %v1166 = vpack.c.b16 %v1109, %v1109
      %v1167 = vpack.c.b16 %v1111, %v1110
      %v1168 = vpack.c.b16 %v1112, %v1112
      %v1169 = vpack.c.b16 %v1114, %v1113
      %v1170 = vpack.c.b16 %v1115, %v1115
      %v1171 = vpack.c.b16 %v1117, %v1116
      %v1172 = vpack.c.b16 %v1118, %v1118
      %v1173 = vpack.c.b16 %v1120, %v1119
      %v1174 = vpack.c.b16 %v1121, %v1121
      %v1175 = vpack.c.b16 %v1123, %v1122
      %v1176 = vpack.c.b16 %v1124, %v1124
      %v1177 = vpack.c.b16 %v1126, %v1125
      %v1178 = vpack.c.b16 %v1127, %v1127
      %v1179 = vpack.c.b16 %v1129, %v1128
      %v1180 = vpack.c.b16 %v1130, %v1130
      %v1181 = vpack.c.b16 %v1132, %v1131
      %v1182 = vpack.c.b16 %v1133, %v1133
      %v1183 = vpack.c.b16 %v1135, %v1134
      %v1184 = vpack.c.b16 %v1136, %v1136
      %v1185 = vpack.c.b16 %v1138, %v1137
      %v1186 = vpack.c.b16 %v1139, %v1139
      %v1187 = vpack.c.b16 %v1141, %v1140
      %v1188 = vpack.c.b16 %v1142, %v1142
      %v1189 = vpack.c.b16 %v1144, %v1143
      %v1190 = vpack.c.b16 %v1145, %v1145
      %v1191 = vpack.c.b16 %v1147, %v1146
      %v1192 = vpack.c.b16 %v1148, %v1148
      %v1193 = vpack.c.b16 %v1150, %v1149
      %v1194 = vpack.c.b16 %v1151, %v1151
      %v1195 = vpack.c.b16 %v1153, %v1152
      %v1196 = vpack.c.b16 %v1154, %v1154
      %v1197 = vpack.c.b16 %v1156, %v1155
      %v1198 = vpack.c.b16 %v1157, %v1157
      %v1199 = vpack.c.b16 %v1159, %v1158
      %v1200 = vpack.c.b16 %v1160, %v1160
      %vm1201 = vcmask 1046528
      %v1202 = vrot.slane %v1161, 1
      %v1203 = vrot.slane %v1162, 1
      %v1204 = vsel %vm1201, %v1202, %v1203
      %v1205 = vrot.slane %v1163, 1
      %v1206 = vrot.slane %v1164, 1
      %v1207 = vsel %vm1201, %v1205, %v1206
      %v1208 = vrot.slane %v1165, 1
      %v1209 = vrot.slane %v1166, 1
      %v1210 = vsel %vm1201, %v1208, %v1209
      %v1211 = vrot.slane %v1167, 1
      %v1212 = vrot.slane %v1168, 1
      %v1213 = vsel %vm1201, %v1211, %v1212
      %v1214 = vrot.slane %v1169, 1
      %v1215 = vrot.slane %v1170, 1
      %v1216 = vsel %vm1201, %v1214, %v1215
      %v1217 = vrot.slane %v1171, 1
      %v1218 = vrot.slane %v1172, 1
      %v1219 = vsel %vm1201, %v1217, %v1218
      %v1220 = vrot.slane %v1173, 1
      %v1221 = vrot.slane %v1174, 1
      %v1222 = vsel %vm1201, %v1220, %v1221
      %v1223 = vrot.slane %v1175, 1
      %v1224 = vrot.slane %v1176, 1
      %v1225 = vsel %vm1201, %v1223, %v1224
      %v1226 = vrot.slane %v1177, 1
      %v1227 = vrot.slane %v1178, 1
      %v1228 = vsel %vm1201, %v1226, %v1227
      %v1229 = vrot.slane %v1179, 1
      %v1230 = vrot.slane %v1180, 1
      %v1231 = vsel %vm1201, %v1229, %v1230
      %v1232 = vrot.slane %v1181, 1
      %v1233 = vrot.slane %v1182, 1
      %v1234 = vsel %vm1201, %v1232, %v1233
      %v1235 = vrot.slane %v1183, 1
      %v1236 = vrot.slane %v1184, 1
      %v1237 = vsel %vm1201, %v1235, %v1236
      %v1238 = vrot.slane %v1185, 1
      %v1239 = vrot.slane %v1186, 1
      %v1240 = vsel %vm1201, %v1238, %v1239
      %v1241 = vrot.slane %v1187, 1
      %v1242 = vrot.slane %v1188, 1
      %v1243 = vsel %vm1201, %v1241, %v1242
      %v1244 = vrot.slane %v1189, 1
      %v1245 = vrot.slane %v1190, 1
      %v1246 = vsel %vm1201, %v1244, %v1245
      %v1247 = vrot.slane %v1191, 1
      %v1248 = vrot.slane %v1192, 1
      %v1249 = vsel %vm1201, %v1247, %v1248
      %v1250 = vrot.slane %v1193, 1
      %v1251 = vrot.slane %v1194, 1
      %v1252 = vsel %vm1201, %v1250, %v1251
      %v1253 = vrot.slane %v1195, 1
      %v1254 = vrot.slane %v1196, 1
      %v1255 = vsel %vm1201, %v1253, %v1254
      %v1256 = vrot.slane %v1197, 1
      %v1257 = vrot.slane %v1198, 1
      %v1258 = vsel %vm1201, %v1256, %v1257
      %v1259 = vrot.slane %v1199, 1
      %v1260 = vrot.slane %v1200, 1
      %v1261 = vsel %vm1201, %v1259, %v1260
      %1262 = vrot.lane.b32.xlu0 %v1204, 8
      %v1263 = vpop.permute.xlu0 %1262
      %1264 = vrot.lane.b32.xlu0 %v1207, 8
      %v1265 = vpop.permute.xlu0 %1264
      %1266 = vrot.lane.b32.xlu0 %v1210, 8
      %v1267 = vpop.permute.xlu0 %1266
      %1268 = vrot.lane.b32.xlu0 %v1213, 8
      %v1269 = vpop.permute.xlu0 %1268
      %1270 = vrot.lane.b32.xlu0 %v1216, 8
      %v1271 = vpop.permute.xlu0 %1270
      %1272 = vrot.lane.b32.xlu0 %v1219, 8
      %v1273 = vpop.permute.xlu0 %1272
      %1274 = vrot.lane.b32.xlu0 %v1222, 8
      %v1275 = vpop.permute.xlu0 %1274
      %1276 = vrot.lane.b32.xlu0 %v1225, 8
      %v1277 = vpop.permute.xlu0 %1276
      %1278 = vrot.lane.b32.xlu0 %v1228, 8
      %v1279 = vpop.permute.xlu0 %1278
      %1280 = vrot.lane.b32.xlu0 %v1231, 8
      %v1281 = vpop.permute.xlu0 %1280
      %1282 = vrot.lane.b32.xlu0 %v1234, 8
      %v1283 = vpop.permute.xlu0 %1282
      %1284 = vrot.lane.b32.xlu0 %v1237, 8
      %v1285 = vpop.permute.xlu0 %1284
      %1286 = vrot.lane.b32.xlu0 %v1240, 8
      %v1287 = vpop.permute.xlu0 %1286
      %1288 = vrot.lane.b32.xlu0 %v1243, 8
      %v1289 = vpop.permute.xlu0 %1288
      %1290 = vrot.lane.b32.xlu0 %v1246, 8
      %v1291 = vpop.permute.xlu0 %1290
      %1292 = vrot.lane.b32.xlu0 %v1249, 8
      %v1293 = vpop.permute.xlu0 %1292
      %1294 = vrot.lane.b32.xlu0 %v1252, 8
      %v1295 = vpop.permute.xlu0 %1294
      %1296 = vrot.lane.b32.xlu0 %v1255, 8
      %v1297 = vpop.permute.xlu0 %1296
      %1298 = vrot.lane.b32.xlu0 %v1258, 8
      %v1299 = vpop.permute.xlu0 %1298
      %1300 = vrot.lane.b32.xlu0 %v1261, 8
      %v1301 = vpop.permute.xlu0 %1300
      %vm1322 = vcmask 97344
      %1323 = vst.msk [vmem:[#allocation2] sm:$0xff] %vm1322, %v1263
      %1324 = vst.msk [vmem:[#allocation2 + $0x8] sm:$0xff] %vm1322, %v1265
      %1325 = vst.msk [vmem:[#allocation2 + $0x10] sm:$0xff] %vm1322, %v1267
      %1326 = vst.msk [vmem:[#allocation2 + $0x18] sm:$0xff] %vm1322, %v1269
      %1327 = vst.msk [vmem:[#allocation2 + $0x20] sm:$0xff] %vm1322, %v1271
      %1328 = vst.msk [vmem:[#allocation2 + $0x28] sm:$0xff] %vm1322, %v1273
      %1329 = vst.msk [vmem:[#allocation2 + $0x30] sm:$0xff] %vm1322, %v1275
      %1330 = vst.msk [vmem:[#allocation2 + $0x38] sm:$0xff] %vm1322, %v1277
      %1331 = vst.msk [vmem:[#allocation2 + $0x40] sm:$0xff] %vm1322, %v1279
      %1332 = vst.msk [vmem:[#allocation2 + $0x48] sm:$0xff] %vm1322, %v1281
      %1333 = vst.msk [vmem:[#allocation2 + $0x50] sm:$0xff] %vm1322, %v1283
      %1334 = vst.msk [vmem:[#allocation2 + $0x58] sm:$0xff] %vm1322, %v1285
      %1335 = vst.msk [vmem:[#allocation2 + $0x60] sm:$0xff] %vm1322, %v1287
      %1336 = vst.msk [vmem:[#allocation2 + $0x68] sm:$0xff] %vm1322, %v1289
      %1337 = vst.msk [vmem:[#allocation2 + $0x70] sm:$0xff] %vm1322, %v1291
      %1338 = vst.msk [vmem:[#allocation2 + $0x78] sm:$0xff] %vm1322, %v1293
      %1339 = vst.msk [vmem:[#allocation2 + $0x80] sm:$0xff] %vm1322, %v1295
      %1340 = vst.msk [vmem:[#allocation2 + $0x88] sm:$0xff] %vm1322, %v1297
      %1341 = vst.msk [vmem:[#allocation2 + $0x90] sm:$0xff] %vm1322, %v1299
      %1342 = vst.msk [vmem:[#allocation2 + $0x98] sm:$0xff] %vm1322, %v1301
      %v1343 = vld [vmem:[#allocation2] sm:$0xff]
      %v1344 = vld [vmem:[#allocation2 + $0x8] sm:$0xff]
      %v1345 = vld [vmem:[#allocation2 + $0x10] sm:$0xff]
      %v1346 = vld [vmem:[#allocation2 + $0x18] sm:$0xff]
      %v1347 = vld [vmem:[#allocation2 + $0x20] sm:$0xff]
      %v1348 = vld [vmem:[#allocation2 + $0x28] sm:$0xff]
      %v1349 = vld [vmem:[#allocation2 + $0x30] sm:$0xff]
      %v1350 = vld [vmem:[#allocation2 + $0x38] sm:$0xff]
      %v1351 = vld [vmem:[#allocation2 + $0x40] sm:$0xff]
      %v1352 = vld [vmem:[#allocation2 + $0x48] sm:$0xff]
      %v1353 = vld [vmem:[#allocation2 + $0x50] sm:$0xff]
      %v1354 = vld [vmem:[#allocation2 + $0x58] sm:$0xff]
      %v1355 = vld [vmem:[#allocation2 + $0x60] sm:$0xff]
      %v1356 = vld [vmem:[#allocation2 + $0x68] sm:$0xff]
      %v1357 = vld [vmem:[#allocation2 + $0x70] sm:$0xff]
      %v1358 = vld [vmem:[#allocation2 + $0x78] sm:$0xff]
      %v1359 = vld [vmem:[#allocation2 + $0x80] sm:$0xff]
      %v1360 = vld [vmem:[#allocation2 + $0x88] sm:$0xff]
      %v1361 = vld [vmem:[%s1] sm:$0xf]
      %v1362 = vld [vmem:[%s1 + $0x4] sm:$0x3]
      %v1365 = vunpack.c.l.b16 %v1361
      %v1366 = vunpack.c.l.b16 %v1362
      %v1367 = vpack.c.b16 %v1366, %v1365
      %vm1368 = vcmask 97280
      %v1370 = vsel %vm1368, %v1343, 0
      %v1373 = vsel %vm1368, %v1344, 0
      %v1376 = vsel %vm1368, %v1345, 0
      %v1379 = vsel %vm1368, %v1346, 0
      %v1382 = vsel %vm1368, %v1347, 0
      %v1385 = vsel %vm1368, %v1348, 0
      %v1388 = vsel %vm1368, %v1349, 0
      %v1391 = vsel %vm1368, %v1350, 0
      %v1394 = vsel %vm1368, %v1351, 0
      %v1397 = vsel %vm1368, %v1352, 0
      %v1400 = vsel %vm1368, %v1353, 0
      %v1403 = vsel %vm1368, %v1354, 0
      %v1406 = vsel %vm1368, %v1355, 0
      %v1409 = vsel %vm1368, %v1356, 0
      %v1412 = vsel %vm1368, %v1357, 0
      %v1415 = vsel %vm1368, %v1358, 0
      %v1418 = vsel %vm1368, %v1359, 0
      %v1421 = vsel %vm1368, %v1360, 0
      %vm1423 = vcmask 1045504
      %v1425 = vsel %vm1423, %v1367, 0
      %1427 = vmatprep.subr.bf16.mxu0 0
      %1428 = vmatpush1.bf16.msra.mxu0 %v1425
      %1429 = vmatprep.subr.bf16.mxu0 0
      %1430 = vmatpush1.bf16.msra.mxu0 0
      %1431 = vmatprep.subr.bf16.mxu0 0
      %1432 = vmatpush1.bf16.msra.mxu0 0
      %1433 = vmatprep.subr.bf16.mxu0 0
      %1434 = vmatpush1.bf16.msra.mxu0 0
      %1435 = vmatprep.subr.bf16.mxu0 0
      %1436 = vmatpush1.bf16.msra.mxu0 0
      %1437 = vmatprep.subr.bf16.mxu0 0
      %1438 = vmatpush1.bf16.msra.mxu0 0
      %1439 = vmatprep.subr.bf16.mxu0 0
      %1440 = vmatpush1.bf16.msra.mxu0 0
      %1441 = vmatprep.subr.bf16.mxu0 0
      %1442 = vmatpush1.bf16.msra.mxu0 0
      %1443 = vmatprep.subr.bf16.mxu0 0
      %1444 = vmatpush1.bf16.msra.mxu0 0
      %1445 = vmatprep.subr.bf16.mxu0 0
      %1446 = vmatpush1.bf16.msra.mxu0 0
      %1447 = vmatprep.subr.bf16.mxu0 0
      %1448 = vmatpush1.bf16.msra.mxu0 0
      %1449 = vmatprep.subr.bf16.mxu0 0
      %1450 = vmatpush1.bf16.msra.mxu0 0
      %1451 = vmatprep.subr.bf16.mxu0 0
      %1452 = vmatpush1.bf16.msra.mxu0 0
      %1453 = vmatprep.subr.bf16.mxu0 0
      %1454 = vmatpush1.bf16.msra.mxu0 0
      %1455 = vmatprep.subr.bf16.mxu0 0
      %1456 = vmatpush1.bf16.msra.mxu0 0
      %1457 = vmatprep.subr.bf16.mxu0 0
      %1458 = vmatpush1.bf16.msra.mxu0 0
      %1459 = vmatprep.mubr.bf16.mxu0 0
      %1460 = vmatmul.mubr.bf16.gmra.mrb[0].mxu0 %v1370
      %v1461 = vpop.f32.mrb[0].mxu0
      %v1462 = vadd.f32 0.0, %v1461
      %v1463 = vpop.f32.mrb[0].mxu0
      %v1464 = vpop.f32.mrb[0].mxu0
      %v1465 = vadd.f32 0.0, %v1464
      %v1466 = vpop.f32.mrb[0].mxu0
      %1467 = vmatprep.mubr.bf16.mxu0 0
      %1468 = vmatmul.mubr.bf16.gmra.mrb[0].mxu0 %v1373
      %v1469 = vpop.f32.mrb[0].mxu0
      %v1470 = vadd.f32 0.0, %v1469
      %v1471 = vpop.f32.mrb[0].mxu0
      %v1472 = vpop.f32.mrb[0].mxu0
      %v1473 = vadd.f32 0.0, %v1472
      %v1474 = vpop.f32.mrb[0].mxu0
      %1475 = vmatprep.mubr.bf16.mxu0 0
      %1476 = vmatmul.mubr.bf16.gmra.mrb[0].mxu0 %v1376
      %v1477 = vpop.f32.mrb[0].mxu0
      %v1478 = vadd.f32 0.0, %v1477
      %v1479 = vpop.f32.mrb[0].mxu0
      %v1480 = vpop.f32.mrb[0].mxu0
      %v1481 = vadd.f32 0.0, %v1480
      %v1482 = vpop.f32.mrb[0].mxu0
      %1483 = vmatprep.mubr.bf16.mxu0 0
      %1484 = vmatmul.mubr.bf16.gmra.mrb[0].mxu0 %v1379
      %v1485 = vpop.f32.mrb[0].mxu0
      %v1486 = vadd.f32 0.0, %v1485
      %v1487 = vpop.f32.mrb[0].mxu0
      %v1488 = vpop.f32.mrb[0].mxu0
      %v1489 = vadd.f32 0.0, %v1488
      %v1490 = vpop.f32.mrb[0].mxu0
      %1491 = vmatprep.mubr.bf16.mxu0 0
      %1492 = vmatmul.mubr.bf16.gmra.mrb[0].mxu0 %v1382
      %v1493 = vpop.f32.mrb[0].mxu0
      %v1494 = vadd.f32 0.0, %v1493
      %v1495 = vpop.f32.mrb[0].mxu0
      %v1496 = vpop.f32.mrb[0].mxu0
      %v1497 = vadd.f32 0.0, %v1496
      %v1498 = vpop.f32.mrb[0].mxu0
      %1499 = vmatprep.mubr.bf16.mxu0 0
      %1500 = vmatmul.mubr.bf16.gmra.mrb[0].mxu0 %v1385
      %v1501 = vpop.f32.mrb[0].mxu0
      %v1502 = vadd.f32 0.0, %v1501
      %v1503 = vpop.f32.mrb[0].mxu0
      %v1504 = vpop.f32.mrb[0].mxu0
      %v1505 = vadd.f32 0.0, %v1504
      %v1506 = vpop.f32.mrb[0].mxu0
      %1507 = vmatprep.mubr.bf16.mxu0 0
      %1508 = vmatmul.mubr.bf16.gmra.mrb[0].mxu0 %v1388
      %v1509 = vpop.f32.mrb[0].mxu0
      %v1510 = vadd.f32 0.0, %v1509
      %v1511 = vpop.f32.mrb[0].mxu0
      %v1512 = vpop.f32.mrb[0].mxu0
      %v1513 = vadd.f32 0.0, %v1512
      %v1514 = vpop.f32.mrb[0].mxu0
      %1515 = vmatprep.mubr.bf16.mxu0 0
      %1516 = vmatmul.mubr.bf16.gmra.mrb[0].mxu0 %v1391
      %v1517 = vpop.f32.mrb[0].mxu0
      %v1518 = vadd.f32 0.0, %v1517
      %v1519 = vpop.f32.mrb[0].mxu0
      %v1520 = vpop.f32.mrb[0].mxu0
      %v1521 = vadd.f32 0.0, %v1520
      %v1522 = vpop.f32.mrb[0].mxu0
      %1523 = vmatprep.mubr.bf16.mxu0 0
      %1524 = vmatmul.mubr.bf16.gmra.mrb[0].mxu0 %v1394
      %v1525 = vpop.f32.mrb[0].mxu0
      %v1526 = vadd.f32 0.0, %v1525
      %v1527 = vpop.f32.mrb[0].mxu0
      %v1528 = vpop.f32.mrb[0].mxu0
      %v1529 = vadd.f32 0.0, %v1528
      %v1530 = vpop.f32.mrb[0].mxu0
      %1531 = vmatprep.mubr.bf16.mxu0 0
      %1532 = vmatmul.mubr.bf16.gmra.mrb[0].mxu0 %v1397
      %v1533 = vpop.f32.mrb[0].mxu0
      %v1534 = vadd.f32 0.0, %v1533
      %v1535 = vpop.f32.mrb[0].mxu0
      %v1536 = vpop.f32.mrb[0].mxu0
      %v1537 = vadd.f32 0.0, %v1536
      %v1538 = vpop.f32.mrb[0].mxu0
      %1539 = vmatprep.mubr.bf16.mxu0 0
      %1540 = vmatmul.mubr.bf16.gmra.mrb[0].mxu0 %v1400
      %v1541 = vpop.f32.mrb[0].mxu0
      %v1542 = vadd.f32 0.0, %v1541
      %v1543 = vpop.f32.mrb[0].mxu0
      %v1544 = vpop.f32.mrb[0].mxu0
      %v1545 = vadd.f32 0.0, %v1544
      %v1546 = vpop.f32.mrb[0].mxu0
      %1547 = vmatprep.mubr.bf16.mxu0 0
      %1548 = vmatmul.mubr.bf16.gmra.mrb[0].mxu0 %v1403
      %v1549 = vpop.f32.mrb[0].mxu0
      %v1550 = vadd.f32 0.0, %v1549
      %v1551 = vpop.f32.mrb[0].mxu0
      %v1552 = vpop.f32.mrb[0].mxu0
      %v1553 = vadd.f32 0.0, %v1552
      %v1554 = vpop.f32.mrb[0].mxu0
      %1555 = vmatprep.mubr.bf16.mxu0 0
      %1556 = vmatmul.mubr.bf16.gmra.mrb[0].mxu0 %v1406
      %v1557 = vpop.f32.mrb[0].mxu0
      %v1558 = vadd.f32 0.0, %v1557
      %v1559 = vpop.f32.mrb[0].mxu0
      %v1560 = vpop.f32.mrb[0].mxu0
      %v1561 = vadd.f32 0.0, %v1560
      %v1562 = vpop.f32.mrb[0].mxu0
      %1563 = vmatprep.mubr.bf16.mxu0 0
      %1564 = vmatmul.mubr.bf16.gmra.mrb[0].mxu0 %v1409
      %v1565 = vpop.f32.mrb[0].mxu0
      %v1566 = vadd.f32 0.0, %v1565
      %v1567 = vpop.f32.mrb[0].mxu0
      %v1568 = vpop.f32.mrb[0].mxu0
      %v1569 = vadd.f32 0.0, %v1568
      %v1570 = vpop.f32.mrb[0].mxu0
      %1571 = vmatprep.mubr.bf16.mxu0 0
      %1572 = vmatmul.mubr.bf16.gmra.mrb[0].mxu0 %v1412
      %v1573 = vpop.f32.mrb[0].mxu0
      %v1574 = vadd.f32 0.0, %v1573
      %v1575 = vpop.f32.mrb[0].mxu0
      %v1576 = vpop.f32.mrb[0].mxu0
      %v1577 = vadd.f32 0.0, %v1576
      %v1578 = vpop.f32.mrb[0].mxu0
      %1579 = vmatprep.mubr.bf16.mxu0 0
      %1580 = vmatmul.mubr.bf16.gmra.mrb[0].mxu0 %v1415
      %v1581 = vpop.f32.mrb[0].mxu0
      %v1582 = vadd.f32 0.0, %v1581
      %v1583 = vpop.f32.mrb[0].mxu0
      %v1584 = vpop.f32.mrb[0].mxu0
      %v1585 = vadd.f32 0.0, %v1584
      %v1586 = vpop.f32.mrb[0].mxu0
      %1587 = vmatprep.mubr.bf16.mxu0 0
      %1588 = vmatmul.mubr.bf16.gmra.mrb[0].mxu0 %v1418
      %v1589 = vpop.f32.mrb[0].mxu0
      %v1590 = vadd.f32 0.0, %v1589
      %v1591 = vpop.f32.mrb[0].mxu0
      %v1592 = vpop.f32.mrb[0].mxu0
      %v1593 = vadd.f32 0.0, %v1592
      %v1594 = vpop.f32.mrb[0].mxu0
      %1595 = vmatprep.mubr.bf16.mxu0 0
      %1596 = vmatmul.mubr.bf16.gmra.mrb[0].mxu0 %v1421
      %v1597 = vpop.f32.mrb[0].mxu0
      %v1598 = vadd.f32 0.0, %v1597
      %v1599 = vpop.f32.mrb[0].mxu0
      %v1600 = vpop.f32.mrb[0].mxu0
      %v1601 = vadd.f32 0.0, %v1600
      %v1602 = vpop.f32.mrb[0].mxu0
      %1603 = vdwg.mxu0
      %1604 = vst [vmem:[#allocation3] sm:$0xff] %v1462
      %1605 = vst [vmem:[#allocation3 + $0x8] sm:$0xff] %v1465
      %1606 = vst [vmem:[#allocation3 + $0x10] sm:$0xff] %v1470
      %1607 = vst [vmem:[#allocation3 + $0x18] sm:$0xff] %v1473
      %1608 = vst [vmem:[#allocation3 + $0x20] sm:$0xff] %v1478
      %1609 = vst [vmem:[#allocation3 + $0x28] sm:$0xff] %v1481
      %1610 = vst [vmem:[#allocation3 + $0x30] sm:$0xff] %v1486
      %1611 = vst [vmem:[#allocation3 + $0x38] sm:$0xff] %v1489
      %1612 = vst [vmem:[#allocation3 + $0x40] sm:$0xff] %v1494
      %1613 = vst [vmem:[#allocation3 + $0x48] sm:$0xff] %v1497
      %1614 = vst [vmem:[#allocation3 + $0x50] sm:$0xff] %v1502
      %1615 = vst [vmem:[#allocation3 + $0x58] sm:$0xff] %v1505
      %1616 = vst [vmem:[#allocation3 + $0x60] sm:$0xff] %v1510
      %1617 = vst [vmem:[#allocation3 + $0x68] sm:$0xff] %v1513
      %1618 = vst [vmem:[#allocation3 + $0x70] sm:$0xff] %v1518
      %1619 = vst [vmem:[#allocation3 + $0x78] sm:$0xff] %v1521
      %1620 = vst [vmem:[#allocation3 + $0x80] sm:$0xff] %v1526
      %1621 = vst [vmem:[#allocation3 + $0x88] sm:$0xff] %v1529
      %1622 = vst [vmem:[#allocation3 + $0x90] sm:$0xff] %v1534
      %1623 = vst [vmem:[#allocation3 + $0x98] sm:$0xff] %v1537
      %1624 = vst [vmem:[#allocation3 + $0xa0] sm:$0xff] %v1542
      %1625 = vst [vmem:[#allocation3 + $0xa8] sm:$0xff] %v1545
      %1626 = vst [vmem:[#allocation3 + $0xb0] sm:$0xff] %v1550
      %1627 = vst [vmem:[#allocation3 + $0xb8] sm:$0xff] %v1553
      %1628 = vst [vmem:[#allocation3 + $0xc0] sm:$0xff] %v1558
      %1629 = vst [vmem:[#allocation3 + $0xc8] sm:$0xff] %v1561
      %1630 = vst [vmem:[#allocation3 + $0xd0] sm:$0xff] %v1566
      %1631 = vst [vmem:[#allocation3 + $0xd8] sm:$0xff] %v1569
      %1632 = vst [vmem:[#allocation3 + $0xe0] sm:$0xff] %v1574
      %1633 = vst [vmem:[#allocation3 + $0xe8] sm:$0xff] %v1577
      %1634 = vst [vmem:[#allocation3 + $0xf0] sm:$0xff] %v1582
      %1635 = vst [vmem:[#allocation3 + $0xf8] sm:$0xff] %v1585
      %1636 = vst [vmem:[#allocation3 + $0x100] sm:$0xff] %v1590
      %1637 = vst [vmem:[#allocation3 + $0x108] sm:$0xff] %v1593
      %1638 = vst [vmem:[#allocation3 + $0x110] sm:$0xff] %v1598
      %1639 = vst [vmem:[#allocation3 + $0x118] sm:$0xff] %v1601
      %s1640 = scalar_lea.vmem [#allocation2], 8
      %v1641 = vld [vmem:[%s1640] sm:$0xff]
      %v1642 = vld [vmem:[%s1640 + $0x8] sm:$0xff]
      %v1643 = vld [vmem:[%s1640 + $0x10] sm:$0xff]
      %v1644 = vld [vmem:[%s1640 + $0x18] sm:$0xff]
      %v1645 = vld [vmem:[%s1640 + $0x20] sm:$0xff]
      %v1646 = vld [vmem:[%s1640 + $0x28] sm:$0xff]
      %v1647 = vld [vmem:[%s1640 + $0x30] sm:$0xff]
      %v1648 = vld [vmem:[%s1640 + $0x38] sm:$0xff]
      %v1649 = vld [vmem:[%s1640 + $0x40] sm:$0xff]
      %v1650 = vld [vmem:[%s1640 + $0x48] sm:$0xff]
      %v1651 = vld [vmem:[%s1640 + $0x50] sm:$0xff]
      %v1652 = vld [vmem:[%s1640 + $0x58] sm:$0xff]
      %v1653 = vld [vmem:[%s1640 + $0x60] sm:$0xff]
      %v1654 = vld [vmem:[%s1640 + $0x68] sm:$0xff]
      %v1655 = vld [vmem:[%s1640 + $0x70] sm:$0xff]
      %v1656 = vld [vmem:[%s1640 + $0x78] sm:$0xff]
      %v1657 = vld [vmem:[%s1640 + $0x80] sm:$0xff]
      %v1658 = vld [vmem:[%s1640 + $0x88] sm:$0xff]
      %s1659 = scalar_lea.vmem %s1, 8
      %v1660 = vld [vmem:[%s1659] sm:$0xf]
      %v1661 = vld [vmem:[%s1659 + $0x4] sm:$0x3]
      %v1664 = vunpack.c.l.b16 %v1660
      %v1665 = vunpack.c.l.b16 %v1661
      %v1666 = vpack.c.b16 %v1665, %v1664
      %v1668 = vsel %vm1368, %v1641, 0
      %v1671 = vsel %vm1368, %v1642, 0
      %v1674 = vsel %vm1368, %v1643, 0
      %v1677 = vsel %vm1368, %v1644, 0
      %v1680 = vsel %vm1368, %v1645, 0
      %v1683 = vsel %vm1368, %v1646, 0
      %v1686 = vsel %vm1368, %v1647, 0
      %v1689 = vsel %vm1368, %v1648, 0
      %v1692 = vsel %vm1368, %v1649, 0
      %v1695 = vsel %vm1368, %v1650, 0
      %v1698 = vsel %vm1368, %v1651, 0
      %v1701 = vsel %vm1368, %v1652, 0
      %v1704 = vsel %vm1368, %v1653, 0
      %v1707 = vsel %vm1368, %v1654, 0
      %v1710 = vsel %vm1368, %v1655, 0
      %v1713 = vsel %vm1368, %v1656, 0
      %v1716 = vsel %vm1368, %v1657, 0
      %v1719 = vsel %vm1368, %v1658, 0
      %v1722 = vsel %vm1423, %v1666, 0
      %1724 = vmatprep.subr.bf16.mxu0 0
      %1725 = vmatpush1.bf16.msra.mxu0 %v1722
      %1726 = vmatprep.subr.bf16.mxu0 0
      %1727 = vmatpush1.bf16.msra.mxu0 0
      %1728 = vmatprep.subr.bf16.mxu0 0
      %1729 = vmatpush1.bf16.msra.mxu0 0
      %1730 = vmatprep.subr.bf16.mxu0 0
      %1731 = vmatpush1.bf16.msra.mxu0 0
      %1732 = vmatprep.subr.bf16.mxu0 0
      %1733 = vmatpush1.bf16.msra.mxu0 0
      %1734 = vmatprep.subr.bf16.mxu0 0
      %1735 = vmatpush1.bf16.msra.mxu0 0
      %1736 = vmatprep.subr.bf16.mxu0 0
      %1737 = vmatpush1.bf16.msra.mxu0 0
      %1738 = vmatprep.subr.bf16.mxu0 0
      %1739 = vmatpush1.bf16.msra.mxu0 0
      %1740 = vmatprep.subr.bf16.mxu0 0
      %1741 = vmatpush1.bf16.msra.mxu0 0
      %1742 = vmatprep.subr.bf16.mxu0 0
      %1743 = vmatpush1.bf16.msra.mxu0 0
      %1744 = vmatprep.subr.bf16.mxu0 0
      %1745 = vmatpush1.bf16.msra.mxu0 0
      %1746 = vmatprep.subr.bf16.mxu0 0
      %1747 = vmatpush1.bf16.msra.mxu0 0
      %1748 = vmatprep.subr.bf16.mxu0 0
      %1749 = vmatpush1.bf16.msra.mxu0 0
      %1750 = vmatprep.subr.bf16.mxu0 0
      %1751 = vmatpush1.bf16.msra.mxu0 0
      %1752 = vmatprep.subr.bf16.mxu0 0
      %1753 = vmatpush1.bf16.msra.mxu0 0
      %1754 = vmatprep.subr.bf16.mxu0 0
      %1755 = vmatpush1.bf16.msra.mxu0 0
      %1756 = vmatprep.mubr.bf16.mxu0 0
      %1757 = vmatmul.mubr.bf16.gmra.mrb[0].mxu0 %v1668
      %v1758 = vpop.f32.mrb[0].mxu0
      %v1759 = vadd.f32 0.0, %v1758
      %v1760 = vpop.f32.mrb[0].mxu0
      %v1761 = vpop.f32.mrb[0].mxu0
      %v1762 = vadd.f32 0.0, %v1761
      %v1763 = vpop.f32.mrb[0].mxu0
      %1764 = vmatprep.mubr.bf16.mxu0 0
      %1765 = vmatmul.mubr.bf16.gmra.mrb[0].mxu0 %v1671
      %v1766 = vpop.f32.mrb[0].mxu0
      %v1767 = vadd.f32 0.0, %v1766
      %v1768 = vpop.f32.mrb[0].mxu0
      %v1769 = vpop.f32.mrb[0].mxu0
      %v1770 = vadd.f32 0.0, %v1769
      %v1771 = vpop.f32.mrb[0].mxu0
      %1772 = vmatprep.mubr.bf16.mxu0 0
      %1773 = vmatmul.mubr.bf16.gmra.mrb[0].mxu0 %v1674
      %v1774 = vpop.f32.mrb[0].mxu0
      %v1775 = vadd.f32 0.0, %v1774
      %v1776 = vpop.f32.mrb[0].mxu0
      %v1777 = vpop.f32.mrb[0].mxu0
      %v1778 = vadd.f32 0.0, %v1777
      %v1779 = vpop.f32.mrb[0].mxu0
      %1780 = vmatprep.mubr.bf16.mxu0 0
      %1781 = vmatmul.mubr.bf16.gmra.mrb[0].mxu0 %v1677
      %v1782 = vpop.f32.mrb[0].mxu0
      %v1783 = vadd.f32 0.0, %v1782
      %v1784 = vpop.f32.mrb[0].mxu0
      %v1785 = vpop.f32.mrb[0].mxu0
      %v1786 = vadd.f32 0.0, %v1785
      %v1787 = vpop.f32.mrb[0].mxu0
      %1788 = vmatprep.mubr.bf16.mxu0 0
      %1789 = vmatmul.mubr.bf16.gmra.mrb[0].mxu0 %v1680
      %v1790 = vpop.f32.mrb[0].mxu0
      %v1791 = vadd.f32 0.0, %v1790
      %v1792 = vpop.f32.mrb[0].mxu0
      %v1793 = vpop.f32.mrb[0].mxu0
      %v1794 = vadd.f32 0.0, %v1793
      %v1795 = vpop.f32.mrb[0].mxu0
      %1796 = vmatprep.mubr.bf16.mxu0 0
      %1797 = vmatmul.mubr.bf16.gmra.mrb[0].mxu0 %v1683
      %v1798 = vpop.f32.mrb[0].mxu0
      %v1799 = vadd.f32 0.0, %v1798
      %v1800 = vpop.f32.mrb[0].mxu0
      %v1801 = vpop.f32.mrb[0].mxu0
      %v1802 = vadd.f32 0.0, %v1801
      %v1803 = vpop.f32.mrb[0].mxu0
      %1804 = vmatprep.mubr.bf16.mxu0 0
      %1805 = vmatmul.mubr.bf16.gmra.mrb[0].mxu0 %v1686
      %v1806 = vpop.f32.mrb[0].mxu0
      %v1807 = vadd.f32 0.0, %v1806
      %v1808 = vpop.f32.mrb[0].mxu0
      %v1809 = vpop.f32.mrb[0].mxu0
      %v1810 = vadd.f32 0.0, %v1809
      %v1811 = vpop.f32.mrb[0].mxu0
      %1812 = vmatprep.mubr.bf16.mxu0 0
      %1813 = vmatmul.mubr.bf16.gmra.mrb[0].mxu0 %v1689
      %v1814 = vpop.f32.mrb[0].mxu0
      %v1815 = vadd.f32 0.0, %v1814
      %v1816 = vpop.f32.mrb[0].mxu0
      %v1817 = vpop.f32.mrb[0].mxu0
      %v1818 = vadd.f32 0.0, %v1817
      %v1819 = vpop.f32.mrb[0].mxu0
      %1820 = vmatprep.mubr.bf16.mxu0 0
      %1821 = vmatmul.mubr.bf16.gmra.mrb[0].mxu0 %v1692
      %v1822 = vpop.f32.mrb[0].mxu0
      %v1823 = vadd.f32 0.0, %v1822
      %v1824 = vpop.f32.mrb[0].mxu0
      %v1825 = vpop.f32.mrb[0].mxu0
      %v1826 = vadd.f32 0.0, %v1825
      %v1827 = vpop.f32.mrb[0].mxu0
      %1828 = vmatprep.mubr.bf16.mxu0 0
      %1829 = vmatmul.mubr.bf16.gmra.mrb[0].mxu0 %v1695
      %v1830 = vpop.f32.mrb[0].mxu0
      %v1831 = vadd.f32 0.0, %v1830
      %v1832 = vpop.f32.mrb[0].mxu0
      %v1833 = vpop.f32.mrb[0].mxu0
      %v1834 = vadd.f32 0.0, %v1833
      %v1835 = vpop.f32.mrb[0].mxu0
      %1836 = vmatprep.mubr.bf16.mxu0 0
      %1837 = vmatmul.mubr.bf16.gmra.mrb[0].mxu0 %v1698
      %v1838 = vpop.f32.mrb[0].mxu0
      %v1839 = vadd.f32 0.0, %v1838
      %v1840 = vpop.f32.mrb[0].mxu0
      %v1841 = vpop.f32.mrb[0].mxu0
      %v1842 = vadd.f32 0.0, %v1841
      %v1843 = vpop.f32.mrb[0].mxu0
      %1844 = vmatprep.mubr.bf16.mxu0 0
      %1845 = vmatmul.mubr.bf16.gmra.mrb[0].mxu0 %v1701
      %v1846 = vpop.f32.mrb[0].mxu0
      %v1847 = vadd.f32 0.0, %v1846
      %v1848 = vpop.f32.mrb[0].mxu0
      %v1849 = vpop.f32.mrb[0].mxu0
      %v1850 = vadd.f32 0.0, %v1849
      %v1851 = vpop.f32.mrb[0].mxu0
      %1852 = vmatprep.mubr.bf16.mxu0 0
      %1853 = vmatmul.mubr.bf16.gmra.mrb[0].mxu0 %v1704
      %v1854 = vpop.f32.mrb[0].mxu0
      %v1855 = vadd.f32 0.0, %v1854
      %v1856 = vpop.f32.mrb[0].mxu0
      %v1857 = vpop.f32.mrb[0].mxu0
      %v1858 = vadd.f32 0.0, %v1857
      %v1859 = vpop.f32.mrb[0].mxu0
      %1860 = vmatprep.mubr.bf16.mxu0 0
      %1861 = vmatmul.mubr.bf16.gmra.mrb[0].mxu0 %v1707
      %v1862 = vpop.f32.mrb[0].mxu0
      %v1863 = vadd.f32 0.0, %v1862
      %v1864 = vpop.f32.mrb[0].mxu0
      %v1865 = vpop.f32.mrb[0].mxu0
      %v1866 = vadd.f32 0.0, %v1865
      %v1867 = vpop.f32.mrb[0].mxu0
      %1868 = vmatprep.mubr.bf16.mxu0 0
      %1869 = vmatmul.mubr.bf16.gmra.mrb[0].mxu0 %v1710
      %v1870 = vpop.f32.mrb[0].mxu0
      %v1871 = vadd.f32 0.0, %v1870
      %v1872 = vpop.f32.mrb[0].mxu0
      %v1873 = vpop.f32.mrb[0].mxu0
      %v1874 = vadd.f32 0.0, %v1873
      %v1875 = vpop.f32.mrb[0].mxu0
      %1876 = vmatprep.mubr.bf16.mxu0 0
      %1877 = vmatmul.mubr.bf16.gmra.mrb[0].mxu0 %v1713
      %v1878 = vpop.f32.mrb[0].mxu0
      %v1879 = vadd.f32 0.0, %v1878
      %v1880 = vpop.f32.mrb[0].mxu0
      %v1881 = vpop.f32.mrb[0].mxu0
      %v1882 = vadd.f32 0.0, %v1881
      %v1883 = vpop.f32.mrb[0].mxu0
      %1884 = vmatprep.mubr.bf16.mxu0 0
      %1885 = vmatmul.mubr.bf16.gmra.mrb[0].mxu0 %v1716
      %v1886 = vpop.f32.mrb[0].mxu0
      %v1887 = vadd.f32 0.0, %v1886
      %v1888 = vpop.f32.mrb[0].mxu0
      %v1889 = vpop.f32.mrb[0].mxu0
      %v1890 = vadd.f32 0.0, %v1889
      %v1891 = vpop.f32.mrb[0].mxu0
      %1892 = vmatprep.mubr.bf16.mxu0 0
      %1893 = vmatmul.mubr.bf16.gmra.mrb[0].mxu0 %v1719
      %v1894 = vpop.f32.mrb[0].mxu0
      %v1895 = vadd.f32 0.0, %v1894
      %v1896 = vpop.f32.mrb[0].mxu0
      %v1897 = vpop.f32.mrb[0].mxu0
      %v1898 = vadd.f32 0.0, %v1897
      %v1899 = vpop.f32.mrb[0].mxu0
      %1900 = vdwg.mxu0
      %v1901 = vld [vmem:[#allocation3] sm:$0xff]
      %v1902 = vld [vmem:[#allocation3 + $0x8] sm:$0xff]
      %v1903 = vld [vmem:[#allocation3 + $0x10] sm:$0xff]
      %v1904 = vld [vmem:[#allocation3 + $0x18] sm:$0xff]
      %v1905 = vld [vmem:[#allocation3 + $0x20] sm:$0xff]
      %v1906 = vld [vmem:[#allocation3 + $0x28] sm:$0xff]
      %v1907 = vld [vmem:[#allocation3 + $0x30] sm:$0xff]
      %v1908 = vld [vmem:[#allocation3 + $0x38] sm:$0xff]
      %v1909 = vld [vmem:[#allocation3 + $0x40] sm:$0xff]
      %v1910 = vld [vmem:[#allocation3 + $0x48] sm:$0xff]
      %v1911 = vld [vmem:[#allocation3 + $0x50] sm:$0xff]
      %v1912 = vld [vmem:[#allocation3 + $0x58] sm:$0xff]
      %v1913 = vld [vmem:[#allocation3 + $0x60] sm:$0xff]
      %v1914 = vld [vmem:[#allocation3 + $0x68] sm:$0xff]
      %v1915 = vld [vmem:[#allocation3 + $0x70] sm:$0xff]
      %v1916 = vld [vmem:[#allocation3 + $0x78] sm:$0xff]
      %v1917 = vld [vmem:[#allocation3 + $0x80] sm:$0xff]
      %v1918 = vld [vmem:[#allocation3 + $0x88] sm:$0xff]
      %v1919 = vld [vmem:[#allocation3 + $0x90] sm:$0xff]
      %v1920 = vld [vmem:[#allocation3 + $0x98] sm:$0xff]
      %v1921 = vld [vmem:[#allocation3 + $0xa0] sm:$0xff]
      %v1922 = vld [vmem:[#allocation3 + $0xa8] sm:$0xff]
      %v1923 = vld [vmem:[#allocation3 + $0xb0] sm:$0xff]
      %v1924 = vld [vmem:[#allocation3 + $0xb8] sm:$0xff]
      %v1925 = vld [vmem:[#allocation3 + $0xc0] sm:$0xff]
      %v1926 = vld [vmem:[#allocation3 + $0xc8] sm:$0xff]
      %v1927 = vld [vmem:[#allocation3 + $0xd0] sm:$0xff]
      %v1928 = vld [vmem:[#allocation3 + $0xd8] sm:$0xff]
      %v1929 = vld [vmem:[#allocation3 + $0xe0] sm:$0xff]
      %v1930 = vld [vmem:[#allocation3 + $0xe8] sm:$0xff]
      %v1931 = vld [vmem:[#allocation3 + $0xf0] sm:$0xff]
      %v1932 = vld [vmem:[#allocation3 + $0xf8] sm:$0xff]
      %v1933 = vld [vmem:[#allocation3 + $0x100] sm:$0xff]
      %v1934 = vld [vmem:[#allocation3 + $0x108] sm:$0xff]
      %v1935 = vld [vmem:[#allocation3 + $0x110] sm:$0xff]
      %v1936 = vld [vmem:[#allocation3 + $0x118] sm:$0xff]
      %v1937 = vadd.f32 %v1901, %v1759
      %v1938 = vadd.f32 %v1902, %v1762
      %v1939 = vadd.f32 %v1903, %v1767
      %v1940 = vadd.f32 %v1904, %v1770
      %v1941 = vadd.f32 %v1905, %v1775
      %v1942 = vadd.f32 %v1906, %v1778
      %v1943 = vadd.f32 %v1907, %v1783
      %v1944 = vadd.f32 %v1908, %v1786
      %v1945 = vadd.f32 %v1909, %v1791
      %v1946 = vadd.f32 %v1910, %v1794
      %v1947 = vadd.f32 %v1911, %v1799
      %v1948 = vadd.f32 %v1912, %v1802
      %v1949 = vadd.f32 %v1913, %v1807
      %v1950 = vadd.f32 %v1914, %v1810
      %v1951 = vadd.f32 %v1915, %v1815
      %v1952 = vadd.f32 %v1916, %v1818
      %v1953 = vadd.f32 %v1917, %v1823
      %v1954 = vadd.f32 %v1918, %v1826
      %v1955 = vadd.f32 %v1919, %v1831
      %v1956 = vadd.f32 %v1920, %v1834
      %v1957 = vadd.f32 %v1921, %v1839
      %v1958 = vadd.f32 %v1922, %v1842
      %v1959 = vadd.f32 %v1923, %v1847
      %v1960 = vadd.f32 %v1924, %v1850
      %v1961 = vadd.f32 %v1925, %v1855
      %v1962 = vadd.f32 %v1926, %v1858
      %v1963 = vadd.f32 %v1927, %v1863
      %v1964 = vadd.f32 %v1928, %v1866
      %v1965 = vadd.f32 %v1929, %v1871
      %v1966 = vadd.f32 %v1930, %v1874
      %v1967 = vadd.f32 %v1931, %v1879
      %v1968 = vadd.f32 %v1932, %v1882
      %v1969 = vadd.f32 %v1933, %v1887
      %v1970 = vadd.f32 %v1934, %v1890
      %v1971 = vadd.f32 %v1935, %v1895
      %v1972 = vadd.f32 %v1936, %v1898
      %1973 = vst [vmem:[#allocation3] sm:$0xff] %v1937
      %1974 = vst [vmem:[#allocation3 + $0x8] sm:$0xff] %v1938
      %1975 = vst [vmem:[#allocation3 + $0x10] sm:$0xff] %v1939
      %1976 = vst [vmem:[#allocation3 + $0x18] sm:$0xff] %v1940
      %1977 = vst [vmem:[#allocation3 + $0x20] sm:$0xff] %v1941
      %1978 = vst [vmem:[#allocation3 + $0x28] sm:$0xff] %v1942
      %1979 = vst [vmem:[#allocation3 + $0x30] sm:$0xff] %v1943
      %1980 = vst [vmem:[#allocation3 + $0x38] sm:$0xff] %v1944
      %1981 = vst [vmem:[#allocation3 + $0x40] sm:$0xff] %v1945
      %1982 = vst [vmem:[#allocation3 + $0x48] sm:$0xff] %v1946
      %1983 = vst [vmem:[#allocation3 + $0x50] sm:$0xff] %v1947
      %1984 = vst [vmem:[#allocation3 + $0x58] sm:$0xff] %v1948
      %1985 = vst [vmem:[#allocation3 + $0x60] sm:$0xff] %v1949
      %1986 = vst [vmem:[#allocation3 + $0x68] sm:$0xff] %v1950
      %1987 = vst [vmem:[#allocation3 + $0x70] sm:$0xff] %v1951
      %1988 = vst [vmem:[#allocation3 + $0x78] sm:$0xff] %v1952
      %1989 = vst [vmem:[#allocation3 + $0x80] sm:$0xff] %v1953
      %1990 = vst [vmem:[#allocation3 + $0x88] sm:$0xff] %v1954
      %1991 = vst [vmem:[#allocation3 + $0x90] sm:$0xff] %v1955
      %1992 = vst [vmem:[#allocation3 + $0x98] sm:$0xff] %v1956
      %1993 = vst [vmem:[#allocation3 + $0xa0] sm:$0xff] %v1957
      %1994 = vst [vmem:[#allocation3 + $0xa8] sm:$0xff] %v1958
      %1995 = vst [vmem:[#allocation3 + $0xb0] sm:$0xff] %v1959
      %1996 = vst [vmem:[#allocation3 + $0xb8] sm:$0xff] %v1960
      %1997 = vst [vmem:[#allocation3 + $0xc0] sm:$0xff] %v1961
      %1998 = vst [vmem:[#allocation3 + $0xc8] sm:$0xff] %v1962
      %1999 = vst [vmem:[#allocation3 + $0xd0] sm:$0xff] %v1963
      %2000 = vst [vmem:[#allocation3 + $0xd8] sm:$0xff] %v1964
      %2001 = vst [vmem:[#allocation3 + $0xe0] sm:$0xff] %v1965
      %2002 = vst [vmem:[#allocation3 + $0xe8] sm:$0xff] %v1966
      %2003 = vst [vmem:[#allocation3 + $0xf0] sm:$0xff] %v1967
      %2004 = vst [vmem:[#allocation3 + $0xf8] sm:$0xff] %v1968
      %2005 = vst [vmem:[#allocation3 + $0x100] sm:$0xff] %v1969
      %2006 = vst [vmem:[#allocation3 + $0x108] sm:$0xff] %v1970
      %2007 = vst [vmem:[#allocation3 + $0x110] sm:$0xff] %v1971
      %2008 = vst [vmem:[#allocation3 + $0x118] sm:$0xff] %v1972
      %s2009 = scalar_lea.vmem [#allocation2], 16
      %v2010 = vld [vmem:[%s2009] sm:$0xff]
      %v2011 = vld [vmem:[%s2009 + $0x8] sm:$0xff]
      %v2012 = vld [vmem:[%s2009 + $0x10] sm:$0xff]
      %v2013 = vld [vmem:[%s2009 + $0x18] sm:$0xff]
      %v2014 = vld [vmem:[%s2009 + $0x20] sm:$0xff]
      %v2015 = vld [vmem:[%s2009 + $0x28] sm:$0xff]
      %v2016 = vld [vmem:[%s2009 + $0x30] sm:$0xff]
      %v2017 = vld [vmem:[%s2009 + $0x38] sm:$0xff]
      %v2018 = vld [vmem:[%s2009 + $0x40] sm:$0xff]
      %v2019 = vld [vmem:[%s2009 + $0x48] sm:$0xff]
      %v2020 = vld [vmem:[%s2009 + $0x50] sm:$0xff]
      %v2021 = vld [vmem:[%s2009 + $0x58] sm:$0xff]
      %v2022 = vld [vmem:[%s2009 + $0x60] sm:$0xff]
      %v2023 = vld [vmem:[%s2009 + $0x68] sm:$0xff]
      %v2024 = vld [vmem:[%s2009 + $0x70] sm:$0xff]
      %v2025 = vld [vmem:[%s2009 + $0x78] sm:$0xff]
      %v2026 = vld [vmem:[%s2009 + $0x80] sm:$0xff]
      %v2027 = vld [vmem:[%s2009 + $0x88] sm:$0xff]
      %s2028 = scalar_lea.vmem %s1, 16
      %v2029 = vld [vmem:[%s2028] sm:$0xf]
      %v2030 = vld [vmem:[%s2028 + $0x4] sm:$0x3]
      %v2033 = vunpack.c.l.b16 %v2029
      %v2034 = vunpack.c.l.b16 %v2030
      %v2035 = vpack.c.b16 %v2034, %v2033
      %v2037 = vsel %vm1368, %v2010, 0
      %v2040 = vsel %vm1368, %v2011, 0
      %v2043 = vsel %vm1368, %v2012, 0
      %v2046 = vsel %vm1368, %v2013, 0
      %v2049 = vsel %vm1368, %v2014, 0
      %v2052 = vsel %vm1368, %v2015, 0
      %v2055 = vsel %vm1368, %v2016, 0
      %v2058 = vsel %vm1368, %v2017, 0
      %v2061 = vsel %vm1368, %v2018, 0
      %v2064 = vsel %vm1368, %v2019, 0
      %v2067 = vsel %vm1368, %v2020, 0
      %v2070 = vsel %vm1368, %v2021, 0
      %v2073 = vsel %vm1368, %v2022, 0
      %v2076 = vsel %vm1368, %v2023, 0
      %v2079 = vsel %vm1368, %v2024, 0
      %v2082 = vsel %vm1368, %v2025, 0
      %v2085 = vsel %vm1368, %v2026, 0
      %v2088 = vsel %vm1368, %v2027, 0
      %v2091 = vsel %vm1423, %v2035, 0
      %2093 = vmatprep.subr.bf16.mxu0 0
      %2094 = vmatpush1.bf16.msra.mxu0 %v2091
      %2095 = vmatprep.subr.bf16.mxu0 0
      %2096 = vmatpush1.bf16.msra.mxu0 0
      %2097 = vmatprep.subr.bf16.mxu0 0
      %2098 = vmatpush1.bf16.msra.mxu0 0
      %2099 = vmatprep.subr.bf16.mxu0 0
      %2100 = vmatpush1.bf16.msra.mxu0 0
      %2101 = vmatprep.subr.bf16.mxu0 0
      %2102 = vmatpush1.bf16.msra.mxu0 0
      %2103 = vmatprep.subr.bf16.mxu0 0
      %2104 = vmatpush1.bf16.msra.mxu0 0
      %2105 = vmatprep.subr.bf16.mxu0 0
      %2106 = vmatpush1.bf16.msra.mxu0 0
      %2107 = vmatprep.subr.bf16.mxu0 0
      %2108 = vmatpush1.bf16.msra.mxu0 0
      %2109 = vmatprep.subr.bf16.mxu0 0
      %2110 = vmatpush1.bf16.msra.mxu0 0
      %2111 = vmatprep.subr.bf16.mxu0 0
      %2112 = vmatpush1.bf16.msra.mxu0 0
      %2113 = vmatprep.subr.bf16.mxu0 0
      %2114 = vmatpush1.bf16.msra.mxu0 0
      %2115 = vmatprep.subr.bf16.mxu0 0
      %2116 = vmatpush1.bf16.msra.mxu0 0
      %2117 = vmatprep.subr.bf16.mxu0 0
      %2118 = vmatpush1.bf16.msra.mxu0 0
      %2119 = vmatprep.subr.bf16.mxu0 0
      %2120 = vmatpush1.bf16.msra.mxu0 0
      %2121 = vmatprep.subr.bf16.mxu0 0
      %2122 = vmatpush1.bf16.msra.mxu0 0
      %2123 = vmatprep.subr.bf16.mxu0 0
      %2124 = vmatpush1.bf16.msra.mxu0 0
      %2125 = vmatprep.mubr.bf16.mxu0 0
      %2126 = vmatmul.mubr.bf16.gmra.mrb[0].mxu0 %v2037
      %v2127 = vpop.f32.mrb[0].mxu0
      %v2128 = vadd.f32 0.0, %v2127
      %v2129 = vpop.f32.mrb[0].mxu0
      %v2130 = vpop.f32.mrb[0].mxu0
      %v2131 = vadd.f32 0.0, %v2130
      %v2132 = vpop.f32.mrb[0].mxu0
      %2133 = vmatprep.mubr.bf16.mxu0 0
      %2134 = vmatmul.mubr.bf16.gmra.mrb[0].mxu0 %v2040
      %v2135 = vpop.f32.mrb[0].mxu0
      %v2136 = vadd.f32 0.0, %v2135
      %v2137 = vpop.f32.mrb[0].mxu0
      %v2138 = vpop.f32.mrb[0].mxu0
      %v2139 = vadd.f32 0.0, %v2138
      %v2140 = vpop.f32.mrb[0].mxu0
      %2141 = vmatprep.mubr.bf16.mxu0 0
      %2142 = vmatmul.mubr.bf16.gmra.mrb[0].mxu0 %v2043
      %v2143 = vpop.f32.mrb[0].mxu0
      %v2144 = vadd.f32 0.0, %v2143
      %v2145 = vpop.f32.mrb[0].mxu0
      %v2146 = vpop.f32.mrb[0].mxu0
      %v2147 = vadd.f32 0.0, %v2146
      %v2148 = vpop.f32.mrb[0].mxu0
      %2149 = vmatprep.mubr.bf16.mxu0 0
      %2150 = vmatmul.mubr.bf16.gmra.mrb[0].mxu0 %v2046
      %v2151 = vpop.f32.mrb[0].mxu0
      %v2152 = vadd.f32 0.0, %v2151
      %v2153 = vpop.f32.mrb[0].mxu0
      %v2154 = vpop.f32.mrb[0].mxu0
      %v2155 = vadd.f32 0.0, %v2154
      %v2156 = vpop.f32.mrb[0].mxu0
      %2157 = vmatprep.mubr.bf16.mxu0 0
      %2158 = vmatmul.mubr.bf16.gmra.mrb[0].mxu0 %v2049
      %v2159 = vpop.f32.mrb[0].mxu0
      %v2160 = vadd.f32 0.0, %v2159
      %v2161 = vpop.f32.mrb[0].mxu0
      %v2162 = vpop.f32.mrb[0].mxu0
      %v2163 = vadd.f32 0.0, %v2162
      %v2164 = vpop.f32.mrb[0].mxu0
      %2165 = vmatprep.mubr.bf16.mxu0 0
      %2166 = vmatmul.mubr.bf16.gmra.mrb[0].mxu0 %v2052
      %v2167 = vpop.f32.mrb[0].mxu0
      %v2168 = vadd.f32 0.0, %v2167
      %v2169 = vpop.f32.mrb[0].mxu0
      %v2170 = vpop.f32.mrb[0].mxu0
      %v2171 = vadd.f32 0.0, %v2170
      %v2172 = vpop.f32.mrb[0].mxu0
      %2173 = vmatprep.mubr.bf16.mxu0 0
      %2174 = vmatmul.mubr.bf16.gmra.mrb[0].mxu0 %v2055
      %v2175 = vpop.f32.mrb[0].mxu0
      %v2176 = vadd.f32 0.0, %v2175
      %v2177 = vpop.f32.mrb[0].mxu0
      %v2178 = vpop.f32.mrb[0].mxu0
      %v2179 = vadd.f32 0.0, %v2178
      %v2180 = vpop.f32.mrb[0].mxu0
      %2181 = vmatprep.mubr.bf16.mxu0 0
      %2182 = vmatmul.mubr.bf16.gmra.mrb[0].mxu0 %v2058
      %v2183 = vpop.f32.mrb[0].mxu0
      %v2184 = vadd.f32 0.0, %v2183
      %v2185 = vpop.f32.mrb[0].mxu0
      %v2186 = vpop.f32.mrb[0].mxu0
      %v2187 = vadd.f32 0.0, %v2186
      %v2188 = vpop.f32.mrb[0].mxu0
      %2189 = vmatprep.mubr.bf16.mxu0 0
      %2190 = vmatmul.mubr.bf16.gmra.mrb[0].mxu0 %v2061
      %v2191 = vpop.f32.mrb[0].mxu0
      %v2192 = vadd.f32 0.0, %v2191
      %v2193 = vpop.f32.mrb[0].mxu0
      %v2194 = vpop.f32.mrb[0].mxu0
      %v2195 = vadd.f32 0.0, %v2194
      %v2196 = vpop.f32.mrb[0].mxu0
      %2197 = vmatprep.mubr.bf16.mxu0 0
      %2198 = vmatmul.mubr.bf16.gmra.mrb[0].mxu0 %v2064
      %v2199 = vpop.f32.mrb[0].mxu0
      %v2200 = vadd.f32 0.0, %v2199
      %v2201 = vpop.f32.mrb[0].mxu0
      %v2202 = vpop.f32.mrb[0].mxu0
      %v2203 = vadd.f32 0.0, %v2202
      %v2204 = vpop.f32.mrb[0].mxu0
      %2205 = vmatprep.mubr.bf16.mxu0 0
      %2206 = vmatmul.mubr.bf16.gmra.mrb[0].mxu0 %v2067
      %v2207 = vpop.f32.mrb[0].mxu0
      %v2208 = vadd.f32 0.0, %v2207
      %v2209 = vpop.f32.mrb[0].mxu0
      %v2210 = vpop.f32.mrb[0].mxu0
      %v2211 = vadd.f32 0.0, %v2210
      %v2212 = vpop.f32.mrb[0].mxu0
      %2213 = vmatprep.mubr.bf16.mxu0 0
      %2214 = vmatmul.mubr.bf16.gmra.mrb[0].mxu0 %v2070
      %v2215 = vpop.f32.mrb[0].mxu0
      %v2216 = vadd.f32 0.0, %v2215
      %v2217 = vpop.f32.mrb[0].mxu0
      %v2218 = vpop.f32.mrb[0].mxu0
      %v2219 = vadd.f32 0.0, %v2218
      %v2220 = vpop.f32.mrb[0].mxu0
      %2221 = vmatprep.mubr.bf16.mxu0 0
      %2222 = vmatmul.mubr.bf16.gmra.mrb[0].mxu0 %v2073
      %v2223 = vpop.f32.mrb[0].mxu0
      %v2224 = vadd.f32 0.0, %v2223
      %v2225 = vpop.f32.mrb[0].mxu0
      %v2226 = vpop.f32.mrb[0].mxu0
      %v2227 = vadd.f32 0.0, %v2226
      %v2228 = vpop.f32.mrb[0].mxu0
      %2229 = vmatprep.mubr.bf16.mxu0 0
      %2230 = vmatmul.mubr.bf16.gmra.mrb[0].mxu0 %v2076
      %v2231 = vpop.f32.mrb[0].mxu0
      %v2232 = vadd.f32 0.0, %v2231
      %v2233 = vpop.f32.mrb[0].mxu0
      %v2234 = vpop.f32.mrb[0].mxu0
      %v2235 = vadd.f32 0.0, %v2234
      %v2236 = vpop.f32.mrb[0].mxu0
      %2237 = vmatprep.mubr.bf16.mxu0 0
      %2238 = vmatmul.mubr.bf16.gmra.mrb[0].mxu0 %v2079
      %v2239 = vpop.f32.mrb[0].mxu0
      %v2240 = vadd.f32 0.0, %v2239
      %v2241 = vpop.f32.mrb[0].mxu0
      %v2242 = vpop.f32.mrb[0].mxu0
      %v2243 = vadd.f32 0.0, %v2242
      %v2244 = vpop.f32.mrb[0].mxu0
      %2245 = vmatprep.mubr.bf16.mxu0 0
      %2246 = vmatmul.mubr.bf16.gmra.mrb[0].mxu0 %v2082
      %v2247 = vpop.f32.mrb[0].mxu0
      %v2248 = vadd.f32 0.0, %v2247
      %v2249 = vpop.f32.mrb[0].mxu0
      %v2250 = vpop.f32.mrb[0].mxu0
      %v2251 = vadd.f32 0.0, %v2250
      %v2252 = vpop.f32.mrb[0].mxu0
      %2253 = vmatprep.mubr.bf16.mxu0 0
      %2254 = vmatmul.mubr.bf16.gmra.mrb[0].mxu0 %v2085
      %v2255 = vpop.f32.mrb[0].mxu0
      %v2256 = vadd.f32 0.0, %v2255
      %v2257 = vpop.f32.mrb[0].mxu0
      %v2258 = vpop.f32.mrb[0].mxu0
      %v2259 = vadd.f32 0.0, %v2258
      %v2260 = vpop.f32.mrb[0].mxu0
      %2261 = vmatprep.mubr.bf16.mxu0 0
      %2262 = vmatmul.mubr.bf16.gmra.mrb[0].mxu0 %v2088
      %v2263 = vpop.f32.mrb[0].mxu0
      %v2264 = vadd.f32 0.0, %v2263
      %v2265 = vpop.f32.mrb[0].mxu0
      %v2266 = vpop.f32.mrb[0].mxu0
      %v2267 = vadd.f32 0.0, %v2266
      %v2268 = vpop.f32.mrb[0].mxu0
      %2269 = vdwg.mxu0
      %v2270 = vld [vmem:[#allocation3] sm:$0xff]
      %v2271 = vld [vmem:[#allocation3 + $0x8] sm:$0xff]
      %v2272 = vld [vmem:[#allocation3 + $0x10] sm:$0xff]
      %v2273 = vld [vmem:[#allocation3 + $0x18] sm:$0xff]
      %v2274 = vld [vmem:[#allocation3 + $0x20] sm:$0xff]
      %v2275 = vld [vmem:[#allocation3 + $0x28] sm:$0xff]
      %v2276 = vld [vmem:[#allocation3 + $0x30] sm:$0xff]
      %v2277 = vld [vmem:[#allocation3 + $0x38] sm:$0xff]
      %v2278 = vld [vmem:[#allocation3 + $0x40] sm:$0xff]
      %v2279 = vld [vmem:[#allocation3 + $0x48] sm:$0xff]
      %v2280 = vld [vmem:[#allocation3 + $0x50] sm:$0xff]
      %v2281 = vld [vmem:[#allocation3 + $0x58] sm:$0xff]
      %v2282 = vld [vmem:[#allocation3 + $0x60] sm:$0xff]
      %v2283 = vld [vmem:[#allocation3 + $0x68] sm:$0xff]
      %v2284 = vld [vmem:[#allocation3 + $0x70] sm:$0xff]
      %v2285 = vld [vmem:[#allocation3 + $0x78] sm:$0xff]
      %v2286 = vld [vmem:[#allocation3 + $0x80] sm:$0xff]
      %v2287 = vld [vmem:[#allocation3 + $0x88] sm:$0xff]
      %v2288 = vld [vmem:[#allocation3 + $0x90] sm:$0xff]
      %v2289 = vld [vmem:[#allocation3 + $0x98] sm:$0xff]
      %v2290 = vld [vmem:[#allocation3 + $0xa0] sm:$0xff]
      %v2291 = vld [vmem:[#allocation3 + $0xa8] sm:$0xff]
      %v2292 = vld [vmem:[#allocation3 + $0xb0] sm:$0xff]
      %v2293 = vld [vmem:[#allocation3 + $0xb8] sm:$0xff]
      %v2294 = vld [vmem:[#allocation3 + $0xc0] sm:$0xff]
      %v2295 = vld [vmem:[#allocation3 + $0xc8] sm:$0xff]
      %v2296 = vld [vmem:[#allocation3 + $0xd0] sm:$0xff]
      %v2297 = vld [vmem:[#allocation3 + $0xd8] sm:$0xff]
      %v2298 = vld [vmem:[#allocation3 + $0xe0] sm:$0xff]
      %v2299 = vld [vmem:[#allocation3 + $0xe8] sm:$0xff]
      %v2300 = vld [vmem:[#allocation3 + $0xf0] sm:$0xff]
      %v2301 = vld [vmem:[#allocation3 + $0xf8] sm:$0xff]
      %v2302 = vld [vmem:[#allocation3 + $0x100] sm:$0xff]
      %v2303 = vld [vmem:[#allocation3 + $0x108] sm:$0xff]
      %v2304 = vld [vmem:[#allocation3 + $0x110] sm:$0xff]
      %v2305 = vld [vmem:[#allocation3 + $0x118] sm:$0xff]
      %v2306 = vadd.f32 %v2270, %v2128
      %v2307 = vadd.f32 %v2271, %v2131
      %v2308 = vadd.f32 %v2272, %v2136
      %v2309 = vadd.f32 %v2273, %v2139
      %v2310 = vadd.f32 %v2274, %v2144
      %v2311 = vadd.f32 %v2275, %v2147
      %v2312 = vadd.f32 %v2276, %v2152
      %v2313 = vadd.f32 %v2277, %v2155
      %v2314 = vadd.f32 %v2278, %v2160
      %v2315 = vadd.f32 %v2279, %v2163
      %v2316 = vadd.f32 %v2280, %v2168
      %v2317 = vadd.f32 %v2281, %v2171
      %v2318 = vadd.f32 %v2282, %v2176
      %v2319 = vadd.f32 %v2283, %v2179
      %v2320 = vadd.f32 %v2284, %v2184
      %v2321 = vadd.f32 %v2285, %v2187
      %v2322 = vadd.f32 %v2286, %v2192
      %v2323 = vadd.f32 %v2287, %v2195
      %v2324 = vadd.f32 %v2288, %v2200
      %v2325 = vadd.f32 %v2289, %v2203
      %v2326 = vadd.f32 %v2290, %v2208
      %v2327 = vadd.f32 %v2291, %v2211
      %v2328 = vadd.f32 %v2292, %v2216
      %v2329 = vadd.f32 %v2293, %v2219
      %v2330 = vadd.f32 %v2294, %v2224
      %v2331 = vadd.f32 %v2295, %v2227
      %v2332 = vadd.f32 %v2296, %v2232
      %v2333 = vadd.f32 %v2297, %v2235
      %v2334 = vadd.f32 %v2298, %v2240
      %v2335 = vadd.f32 %v2299, %v2243
      %v2336 = vadd.f32 %v2300, %v2248
      %v2337 = vadd.f32 %v2301, %v2251
      %v2338 = vadd.f32 %v2302, %v2256
      %v2339 = vadd.f32 %v2303, %v2259
      %v2340 = vadd.f32 %v2304, %v2264
      %v2341 = vadd.f32 %v2305, %v2267
      %2342 = vst [vmem:[#allocation3] sm:$0xff] %v2306
      %2343 = vst [vmem:[#allocation3 + $0x8] sm:$0xff] %v2307
      %2344 = vst [vmem:[#allocation3 + $0x10] sm:$0xff] %v2308
      %2345 = vst [vmem:[#allocation3 + $0x18] sm:$0xff] %v2309
      %2346 = vst [vmem:[#allocation3 + $0x20] sm:$0xff] %v2310
      %2347 = vst [vmem:[#allocation3 + $0x28] sm:$0xff] %v2311
      %2348 = vst [vmem:[#allocation3 + $0x30] sm:$0xff] %v2312
      %2349 = vst [vmem:[#allocation3 + $0x38] sm:$0xff] %v2313
      %2350 = vst [vmem:[#allocation3 + $0x40] sm:$0xff] %v2314
      %2351 = vst [vmem:[#allocation3 + $0x48] sm:$0xff] %v2315
      %2352 = vst [vmem:[#allocation3 + $0x50] sm:$0xff] %v2316
      %2353 = vst [vmem:[#allocation3 + $0x58] sm:$0xff] %v2317
      %2354 = vst [vmem:[#allocation3 + $0x60] sm:$0xff] %v2318
      %2355 = vst [vmem:[#allocation3 + $0x68] sm:$0xff] %v2319
      %2356 = vst [vmem:[#allocation3 + $0x70] sm:$0xff] %v2320
      %2357 = vst [vmem:[#allocation3 + $0x78] sm:$0xff] %v2321
      %2358 = vst [vmem:[#allocation3 + $0x80] sm:$0xff] %v2322
      %2359 = vst [vmem:[#allocation3 + $0x88] sm:$0xff] %v2323
      %2360 = vst [vmem:[#allocation3 + $0x90] sm:$0xff] %v2324
      %2361 = vst [vmem:[#allocation3 + $0x98] sm:$0xff] %v2325
      %2362 = vst [vmem:[#allocation3 + $0xa0] sm:$0xff] %v2326
      %2363 = vst [vmem:[#allocation3 + $0xa8] sm:$0xff] %v2327
      %2364 = vst [vmem:[#allocation3 + $0xb0] sm:$0xff] %v2328
      %2365 = vst [vmem:[#allocation3 + $0xb8] sm:$0xff] %v2329
      %2366 = vst [vmem:[#allocation3 + $0xc0] sm:$0xff] %v2330
      %2367 = vst [vmem:[#allocation3 + $0xc8] sm:$0xff] %v2331
      %2368 = vst [vmem:[#allocation3 + $0xd0] sm:$0xff] %v2332
      %2369 = vst [vmem:[#allocation3 + $0xd8] sm:$0xff] %v2333
      %2370 = vst [vmem:[#allocation3 + $0xe0] sm:$0xff] %v2334
      %2371 = vst [vmem:[#allocation3 + $0xe8] sm:$0xff] %v2335
      %2372 = vst [vmem:[#allocation3 + $0xf0] sm:$0xff] %v2336
      %2373 = vst [vmem:[#allocation3 + $0xf8] sm:$0xff] %v2337
      %2374 = vst [vmem:[#allocation3 + $0x100] sm:$0xff] %v2338
      %2375 = vst [vmem:[#allocation3 + $0x108] sm:$0xff] %v2339
      %2376 = vst [vmem:[#allocation3 + $0x110] sm:$0xff] %v2340
      %2377 = vst [vmem:[#allocation3 + $0x118] sm:$0xff] %v2341
      %p2378 = scmp.eq.s32.totalorder %s21, 0
      // Predicated region
      $region41: #{up_conv_block.1} parent=39 // pred_check
        %p2379 = pneg %p2378
      $region42: #{up_conv_block.1} parent=39 // pred_check_branch
        %2381 = sbr.rel (%p2379) target = $region44
      $region43: #{up_conv_block.1} parent=39 // pred_region
        %s2382 = scalar_lea.vmem [#allocation3], 16
        %v2383 = vld [vmem:[%s2382] sm:$0xff]
        %v2384 = vld [vmem:[%s2382 + $0x8] sm:$0xff]
        %2385 = vst [vmem:[#allocation3] sm:$0xff] %v2383
        %2386 = vst [vmem:[#allocation3 + $0x8] sm:$0xff] %v2384
        %s2387 = scalar_lea.vmem [#allocation3], 256
        %v2388 = vld [vmem:[%s2387] sm:$0xff]
        %v2389 = vld [vmem:[%s2387 + $0x8] sm:$0xff]
        %s2390 = scalar_lea.vmem [#allocation3], 272
        %2391 = vst [vmem:[%s2390] sm:$0xff] %v2388
        %2392 = vst [vmem:[%s2390 + $0x8] sm:$0xff] %v2389
      $region44: #{up_conv_block.1} parent=39 // pred_fallthru
        _
      %v2393 = vld [vmem:[%s3] sm:$0x1]
      %v2394 = vld [vmem:[#allocation3] sm:$0xff]
      %v2395 = vld [vmem:[#allocation3 + $0x8] sm:$0xff]
      %v2396 = vld [vmem:[#allocation3 + $0x10] sm:$0xff]
      %v2397 = vld [vmem:[#allocation3 + $0x18] sm:$0xff]
      %v2398 = vld [vmem:[#allocation3 + $0x20] sm:$0xff]
      %v2399 = vld [vmem:[#allocation3 + $0x28] sm:$0xff]
      %v2400 = vld [vmem:[#allocation3 + $0x30] sm:$0xff]
      %v2401 = vld [vmem:[#allocation3 + $0x38] sm:$0xff]
      %v2402 = vld [vmem:[#allocation3 + $0x40] sm:$0xff]
      %v2403 = vld [vmem:[#allocation3 + $0x48] sm:$0xff]
      %v2404 = vld [vmem:[#allocation3 + $0x50] sm:$0xff]
      %v2405 = vld [vmem:[#allocation3 + $0x58] sm:$0xff]
      %v2406 = vld [vmem:[#allocation3 + $0x60] sm:$0xff]
      %v2407 = vld [vmem:[#allocation3 + $0x68] sm:$0xff]
      %v2408 = vld [vmem:[#allocation3 + $0x70] sm:$0xff]
      %v2409 = vld [vmem:[#allocation3 + $0x78] sm:$0xff]
      %v2410 = vld [vmem:[#allocation3 + $0x80] sm:$0xff]
      %v2411 = vld [vmem:[#allocation3 + $0x88] sm:$0xff]
      %v2412 = vld [vmem:[#allocation3 + $0x90] sm:$0xff]
      %v2413 = vld [vmem:[#allocation3 + $0x98] sm:$0xff]
      %v2414 = vld [vmem:[#allocation3 + $0xa0] sm:$0xff]
      %v2415 = vld [vmem:[#allocation3 + $0xa8] sm:$0xff]
      %v2416 = vld [vmem:[#allocation3 + $0xb0] sm:$0xff]
      %v2417 = vld [vmem:[#allocation3 + $0xb8] sm:$0xff]
      %v2418 = vld [vmem:[#allocation3 + $0xc0] sm:$0xff]
      %v2419 = vld [vmem:[#allocation3 + $0xc8] sm:$0xff]
      %v2420 = vld [vmem:[#allocation3 + $0xd0] sm:$0xff]
      %v2421 = vld [vmem:[#allocation3 + $0xd8] sm:$0xff]
      %v2422 = vld [vmem:[#allocation3 + $0xe0] sm:$0xff]
      %v2423 = vld [vmem:[#allocation3 + $0xe8] sm:$0xff]
      %v2424 = vld [vmem:[#allocation3 + $0xf0] sm:$0xff]
      %v2425 = vld [vmem:[#allocation3 + $0xf8] sm:$0xff]
      %v2426 = vld [vmem:[#allocation3 + $0x100] sm:$0xff]
      %v2427 = vld [vmem:[#allocation3 + $0x108] sm:$0xff]
      %v2428 = vld [vmem:[#allocation3 + $0x110] sm:$0xff]
      %v2429 = vld [vmem:[#allocation3 + $0x118] sm:$0xff]
      %v2431 = vlaneseq
      %v2432 = vshrl.u32 %v2431, 7
      %v2433 = vsub.s32 0, %v2432
      %v2434 = vrot.slane %v2393, %v2433
      %v2436 = vadd.f32 %v2394, %v2434
      %v2437 = vadd.f32 %v2395, %v2434
      %v2438 = vadd.f32 %v2396, %v2434
      %v2439 = vadd.f32 %v2397, %v2434
      %v2440 = vadd.f32 %v2398, %v2434
      %v2441 = vadd.f32 %v2399, %v2434
      %v2442 = vadd.f32 %v2400, %v2434
      %v2443 = vadd.f32 %v2401, %v2434
      %v2444 = vadd.f32 %v2402, %v2434
      %v2445 = vadd.f32 %v2403, %v2434
      %v2446 = vadd.f32 %v2404, %v2434
      %v2447 = vadd.f32 %v2405, %v2434
      %v2448 = vadd.f32 %v2406, %v2434
      %v2449 = vadd.f32 %v2407, %v2434
      %v2450 = vadd.f32 %v2408, %v2434
      %v2451 = vadd.f32 %v2409, %v2434
      %v2452 = vadd.f32 %v2410, %v2434
      %v2453 = vadd.f32 %v2411, %v2434
      %v2454 = vadd.f32 %v2412, %v2434
      %v2455 = vadd.f32 %v2413, %v2434
      %v2456 = vadd.f32 %v2414, %v2434
      %v2457 = vadd.f32 %v2415, %v2434
      %v2458 = vadd.f32 %v2416, %v2434
      %v2459 = vadd.f32 %v2417, %v2434
      %v2460 = vadd.f32 %v2418, %v2434
      %v2461 = vadd.f32 %v2419, %v2434
      %v2462 = vadd.f32 %v2420, %v2434
      %v2463 = vadd.f32 %v2421, %v2434
      %v2464 = vadd.f32 %v2422, %v2434
      %v2465 = vadd.f32 %v2423, %v2434
      %v2466 = vadd.f32 %v2424, %v2434
      %v2467 = vadd.f32 %v2425, %v2434
      %v2468 = vadd.f32 %v2426, %v2434
      %v2469 = vadd.f32 %v2427, %v2434
      %v2470 = vadd.f32 %v2428, %v2434
      %v2471 = vadd.f32 %v2429, %v2434
      %v2472 = vmul.f32 %v2436, 0.2
      %v2473 = vmul.f32 %v2437, 0.2
      %v2474 = vmul.f32 %v2438, 0.2
      %v2475 = vmul.f32 %v2439, 0.2
      %v2476 = vmul.f32 %v2440, 0.2
      %v2477 = vmul.f32 %v2441, 0.2
      %v2478 = vmul.f32 %v2442, 0.2
      %v2479 = vmul.f32 %v2443, 0.2
      %v2480 = vmul.f32 %v2444, 0.2
      %v2481 = vmul.f32 %v2445, 0.2
      %v2482 = vmul.f32 %v2446, 0.2
      %v2483 = vmul.f32 %v2447, 0.2
      %v2484 = vmul.f32 %v2448, 0.2
      %v2485 = vmul.f32 %v2449, 0.2
      %v2486 = vmul.f32 %v2450, 0.2
      %v2487 = vmul.f32 %v2451, 0.2
      %v2488 = vmul.f32 %v2452, 0.2
      %v2489 = vmul.f32 %v2453, 0.2
      %v2490 = vmul.f32 %v2454, 0.2
      %v2491 = vmul.f32 %v2455, 0.2
      %v2492 = vmul.f32 %v2456, 0.2
      %v2493 = vmul.f32 %v2457, 0.2
      %v2494 = vmul.f32 %v2458, 0.2
      %v2495 = vmul.f32 %v2459, 0.2
      %v2496 = vmul.f32 %v2460, 0.2
      %v2497 = vmul.f32 %v2461, 0.2
      %v2498 = vmul.f32 %v2462, 0.2
      %v2499 = vmul.f32 %v2463, 0.2
      %v2500 = vmul.f32 %v2464, 0.2
      %v2501 = vmul.f32 %v2465, 0.2
      %v2502 = vmul.f32 %v2466, 0.2
      %v2503 = vmul.f32 %v2467, 0.2
      %v2504 = vmul.f32 %v2468, 0.2
      %v2505 = vmul.f32 %v2469, 0.2
      %v2506 = vmul.f32 %v2470, 0.2
      %v2507 = vmul.f32 %v2471, 0.2
      %v2508 = vmax.f32 %v2436, %v2472
      %v2509 = vmax.f32 %v2437, %v2473
      %v2510 = vmax.f32 %v2438, %v2474
      %v2511 = vmax.f32 %v2439, %v2475
      %v2512 = vmax.f32 %v2440, %v2476
      %v2513 = vmax.f32 %v2441, %v2477
      %v2514 = vmax.f32 %v2442, %v2478
      %v2515 = vmax.f32 %v2443, %v2479
      %v2516 = vmax.f32 %v2444, %v2480
      %v2517 = vmax.f32 %v2445, %v2481
      %v2518 = vmax.f32 %v2446, %v2482
      %v2519 = vmax.f32 %v2447, %v2483
      %v2520 = vmax.f32 %v2448, %v2484
      %v2521 = vmax.f32 %v2449, %v2485
      %v2522 = vmax.f32 %v2450, %v2486
      %v2523 = vmax.f32 %v2451, %v2487
      %v2524 = vmax.f32 %v2452, %v2488
      %v2525 = vmax.f32 %v2453, %v2489
      %v2526 = vmax.f32 %v2454, %v2490
      %v2527 = vmax.f32 %v2455, %v2491
      %v2528 = vmax.f32 %v2456, %v2492
      %v2529 = vmax.f32 %v2457, %v2493
      %v2530 = vmax.f32 %v2458, %v2494
      %v2531 = vmax.f32 %v2459, %v2495
      %v2532 = vmax.f32 %v2460, %v2496
      %v2533 = vmax.f32 %v2461, %v2497
      %v2534 = vmax.f32 %v2462, %v2498
      %v2535 = vmax.f32 %v2463, %v2499
      %v2536 = vmax.f32 %v2464, %v2500
      %v2537 = vmax.f32 %v2465, %v2501
      %v2538 = vmax.f32 %v2466, %v2502
      %v2539 = vmax.f32 %v2467, %v2503
      %v2540 = vmax.f32 %v2468, %v2504
      %v2541 = vmax.f32 %v2469, %v2505
      %v2542 = vmax.f32 %v2470, %v2506
      %v2543 = vmax.f32 %v2471, %v2507
      %v2544 = vpack.c.bf16 %v2509, %v2508
      %v2545 = vpack.c.bf16 %v2511, %v2510
      %v2546 = vpack.c.bf16 %v2513, %v2512
      %v2547 = vpack.c.bf16 %v2515, %v2514
      %v2548 = vpack.c.bf16 %v2517, %v2516
      %v2549 = vpack.c.bf16 %v2519, %v2518
      %v2550 = vpack.c.bf16 %v2521, %v2520
      %v2551 = vpack.c.bf16 %v2523, %v2522
      %v2552 = vpack.c.bf16 %v2525, %v2524
      %v2553 = vpack.c.bf16 %v2527, %v2526
      %v2554 = vpack.c.bf16 %v2529, %v2528
      %v2555 = vpack.c.bf16 %v2531, %v2530
      %v2556 = vpack.c.bf16 %v2533, %v2532
      %v2557 = vpack.c.bf16 %v2535, %v2534
      %v2558 = vpack.c.bf16 %v2537, %v2536
      %v2559 = vpack.c.bf16 %v2539, %v2538
      %v2560 = vpack.c.bf16 %v2541, %v2540
      %v2561 = vpack.c.bf16 %v2543, %v2542
      %2562 = vst [vmem:[#allocation4 + $0x8] sm:$0xff] %v2544
      %2563 = vst [vmem:[#allocation4 + $0x20] sm:$0xff] %v2545
      %2564 = vst [vmem:[#allocation4 + $0x38] sm:$0xff] %v2546
      %2565 = vst [vmem:[#allocation4 + $0x50] sm:$0xff] %v2547
      %2566 = vst [vmem:[#allocation4 + $0x68] sm:$0xff] %v2548
      %2567 = vst [vmem:[#allocation4 + $0x80] sm:$0xff] %v2549
      %2568 = vst [vmem:[#allocation4 + $0x98] sm:$0xff] %v2550
      %2569 = vst [vmem:[#allocation4 + $0xb0] sm:$0xff] %v2551
      %2570 = vst [vmem:[#allocation4 + $0xc8] sm:$0xff] %v2552
      %2571 = vst [vmem:[#allocation4 + $0xe0] sm:$0xff] %v2553
      %2572 = vst [vmem:[#allocation4 + $0xf8] sm:$0xff] %v2554
      %2573 = vst [vmem:[#allocation4 + $0x110] sm:$0xff] %v2555
      %2574 = vst [vmem:[#allocation4 + $0x128] sm:$0xff] %v2556
      %2575 = vst [vmem:[#allocation4 + $0x140] sm:$0xff] %v2557
      %2576 = vst [vmem:[#allocation4 + $0x158] sm:$0xff] %v2558
      %2577 = vst [vmem:[#allocation4 + $0x170] sm:$0xff] %v2559
      %2578 = vst [vmem:[#allocation4 + $0x188] sm:$0xff] %v2560
      %2579 = vst [vmem:[#allocation4 + $0x1a0] sm:$0xff] %v2561
      %v2580 = vld [vmem:[#allocation3] sm:$0x1]
      %v2581 = vld [vmem:[#allocation3 + $0x10] sm:$0x1]
      %v2582 = vld [vmem:[#allocation3 + $0x20] sm:$0x1]
      %v2583 = vld [vmem:[#allocation3 + $0x30] sm:$0x1]
      %v2584 = vld [vmem:[#allocation3 + $0x40] sm:$0x1]
      %v2585 = vld [vmem:[#allocation3 + $0x50] sm:$0x1]
      %v2586 = vld [vmem:[#allocation3 + $0x60] sm:$0x1]
      %v2587 = vld [vmem:[#allocation3 + $0x70] sm:$0x1]
      %v2588 = vld [vmem:[#allocation3 + $0x80] sm:$0x1]
      %v2589 = vld [vmem:[#allocation3 + $0x90] sm:$0x1]
      %v2590 = vld [vmem:[#allocation3 + $0xa0] sm:$0x1]
      %v2591 = vld [vmem:[#allocation3 + $0xb0] sm:$0x1]
      %v2592 = vld [vmem:[#allocation3 + $0xc0] sm:$0x1]
      %v2593 = vld [vmem:[#allocation3 + $0xd0] sm:$0x1]
      %v2594 = vld [vmem:[#allocation3 + $0xe0] sm:$0x1]
      %v2595 = vld [vmem:[#allocation3 + $0xf0] sm:$0x1]
      %v2596 = vld [vmem:[#allocation3 + $0x100] sm:$0x1]
      %v2597 = vld [vmem:[#allocation3 + $0x110] sm:$0x1]
      %v2598 = vld [vmem:[#allocation3] sm:$0xff]
      %v2599 = vld [vmem:[#allocation3 + $0x8] sm:$0x7f]
      %v2600 = vld [vmem:[#allocation3 + $0x10] sm:$0xff]
      %v2601 = vld [vmem:[#allocation3 + $0x18] sm:$0x7f]
      %v2602 = vld [vmem:[#allocation3 + $0x20] sm:$0xff]
      %v2603 = vld [vmem:[#allocation3 + $0x28] sm:$0x7f]
      %v2604 = vld [vmem:[#allocation3 + $0x30] sm:$0xff]
      %v2605 = vld [vmem:[#allocation3 + $0x38] sm:$0x7f]
      %v2606 = vld [vmem:[#allocation3 + $0x40] sm:$0xff]
      %v2607 = vld [vmem:[#allocation3 + $0x48] sm:$0x7f]
      %v2608 = vld [vmem:[#allocation3 + $0x50] sm:$0xff]
      %v2609 = vld [vmem:[#allocation3 + $0x58] sm:$0x7f]
      %v2610 = vld [vmem:[#allocation3 + $0x60] sm:$0xff]
      %v2611 = vld [vmem:[#allocation3 + $0x68] sm:$0x7f]
      %v2612 = vld [vmem:[#allocation3 + $0x70] sm:$0xff]
      %v2613 = vld [vmem:[#allocation3 + $0x78] sm:$0x7f]
      %v2614 = vld [vmem:[#allocation3 + $0x80] sm:$0xff]
      %v2615 = vld [vmem:[#allocation3 + $0x88] sm:$0x7f]
      %v2616 = vld [vmem:[#allocation3 + $0x90] sm:$0xff]
      %v2617 = vld [vmem:[#allocation3 + $0x98] sm:$0x7f]
      %v2618 = vld [vmem:[#allocation3 + $0xa0] sm:$0xff]
      %v2619 = vld [vmem:[#allocation3 + $0xa8] sm:$0x7f]
      %v2620 = vld [vmem:[#allocation3 + $0xb0] sm:$0xff]
      %v2621 = vld [vmem:[#allocation3 + $0xb8] sm:$0x7f]
      %v2622 = vld [vmem:[#allocation3 + $0xc0] sm:$0xff]
      %v2623 = vld [vmem:[#allocation3 + $0xc8] sm:$0x7f]
      %v2624 = vld [vmem:[#allocation3 + $0xd0] sm:$0xff]
      %v2625 = vld [vmem:[#allocation3 + $0xd8] sm:$0x7f]
      %v2626 = vld [vmem:[#allocation3 + $0xe0] sm:$0xff]
      %v2627 = vld [vmem:[#allocation3 + $0xe8] sm:$0x7f]
      %v2628 = vld [vmem:[#allocation3 + $0xf0] sm:$0xff]
      %v2629 = vld [vmem:[#allocation3 + $0xf8] sm:$0x7f]
      %v2630 = vld [vmem:[#allocation3 + $0x100] sm:$0xff]
      %v2631 = vld [vmem:[#allocation3 + $0x108] sm:$0x7f]
      %v2632 = vld [vmem:[#allocation3 + $0x110] sm:$0xff]
      %v2633 = vld [vmem:[#allocation3 + $0x118] sm:$0x7f]
      %vm2670 = vcmask 1040384
      %v2671 = vrot.slane %v2598, 7
      %v2672 = vrot.slane %v2599, 7
      %v2673 = vsel %vm2670, %v2671, %v2672
      %v2674 = vrot.slane %v2600, 7
      %v2675 = vrot.slane %v2601, 7
      %v2676 = vsel %vm2670, %v2674, %v2675
      %v2677 = vrot.slane %v2602, 7
      %v2678 = vrot.slane %v2603, 7
      %v2679 = vsel %vm2670, %v2677, %v2678
      %v2680 = vrot.slane %v2604, 7
      %v2681 = vrot.slane %v2605, 7
      %v2682 = vsel %vm2670, %v2680, %v2681
      %v2683 = vrot.slane %v2606, 7
      %v2684 = vrot.slane %v2607, 7
      %v2685 = vsel %vm2670, %v2683, %v2684
      %v2686 = vrot.slane %v2608, 7
      %v2687 = vrot.slane %v2609, 7
      %v2688 = vsel %vm2670, %v2686, %v2687
      %v2689 = vrot.slane %v2610, 7
      %v2690 = vrot.slane %v2611, 7
      %v2691 = vsel %vm2670, %v2689, %v2690
      %v2692 = vrot.slane %v2612, 7
      %v2693 = vrot.slane %v2613, 7
      %v2694 = vsel %vm2670, %v2692, %v2693
      %v2695 = vrot.slane %v2614, 7
      %v2696 = vrot.slane %v2615, 7
      %v2697 = vsel %vm2670, %v2695, %v2696
      %v2698 = vrot.slane %v2616, 7
      %v2699 = vrot.slane %v2617, 7
      %v2700 = vsel %vm2670, %v2698, %v2699
      %v2701 = vrot.slane %v2618, 7
      %v2702 = vrot.slane %v2619, 7
      %v2703 = vsel %vm2670, %v2701, %v2702
      %v2704 = vrot.slane %v2620, 7
      %v2705 = vrot.slane %v2621, 7
      %v2706 = vsel %vm2670, %v2704, %v2705
      %v2707 = vrot.slane %v2622, 7
      %v2708 = vrot.slane %v2623, 7
      %v2709 = vsel %vm2670, %v2707, %v2708
      %v2710 = vrot.slane %v2624, 7
      %v2711 = vrot.slane %v2625, 7
      %v2712 = vsel %vm2670, %v2710, %v2711
      %v2713 = vrot.slane %v2626, 7
      %v2714 = vrot.slane %v2627, 7
      %v2715 = vsel %vm2670, %v2713, %v2714
      %v2716 = vrot.slane %v2628, 7
      %v2717 = vrot.slane %v2629, 7
      %v2718 = vsel %vm2670, %v2716, %v2717
      %v2719 = vrot.slane %v2630, 7
      %v2720 = vrot.slane %v2631, 7
      %v2721 = vsel %vm2670, %v2719, %v2720
      %v2722 = vrot.slane %v2632, 7
      %v2723 = vrot.slane %v2633, 7
      %v2724 = vsel %vm2670, %v2722, %v2723
      %v2761 = vsel %vm2670, %v2580, %v2671
      %v2762 = vsel %vm2670, %v2581, %v2674
      %v2763 = vsel %vm2670, %v2582, %v2677
      %v2764 = vsel %vm2670, %v2583, %v2680
      %v2765 = vsel %vm2670, %v2584, %v2683
      %v2766 = vsel %vm2670, %v2585, %v2686
      %v2767 = vsel %vm2670, %v2586, %v2689
      %v2768 = vsel %vm2670, %v2587, %v2692
      %v2769 = vsel %vm2670, %v2588, %v2695
      %v2770 = vsel %vm2670, %v2589, %v2698
      %v2771 = vsel %vm2670, %v2590, %v2701
      %v2772 = vsel %vm2670, %v2591, %v2704
      %v2773 = vsel %vm2670, %v2592, %v2707
      %v2774 = vsel %vm2670, %v2593, %v2710
      %v2775 = vsel %vm2670, %v2594, %v2713
      %v2776 = vsel %vm2670, %v2595, %v2716
      %v2777 = vsel %vm2670, %v2596, %v2719
      %v2778 = vsel %vm2670, %v2597, %v2722
      %v2779 = vadd.f32 %v2761, %v2434
      %v2780 = vadd.f32 %v2673, %v2434
      %v2781 = vadd.f32 %v2762, %v2434
      %v2782 = vadd.f32 %v2676, %v2434
      %v2783 = vadd.f32 %v2763, %v2434
      %v2784 = vadd.f32 %v2679, %v2434
      %v2785 = vadd.f32 %v2764, %v2434
      %v2786 = vadd.f32 %v2682, %v2434
      %v2787 = vadd.f32 %v2765, %v2434
      %v2788 = vadd.f32 %v2685, %v2434
      %v2789 = vadd.f32 %v2766, %v2434
      %v2790 = vadd.f32 %v2688, %v2434
      %v2791 = vadd.f32 %v2767, %v2434
      %v2792 = vadd.f32 %v2691, %v2434
      %v2793 = vadd.f32 %v2768, %v2434
      %v2794 = vadd.f32 %v2694, %v2434
      %v2795 = vadd.f32 %v2769, %v2434
      %v2796 = vadd.f32 %v2697, %v2434
      %v2797 = vadd.f32 %v2770, %v2434
      %v2798 = vadd.f32 %v2700, %v2434
      %v2799 = vadd.f32 %v2771, %v2434
      %v2800 = vadd.f32 %v2703, %v2434
      %v2801 = vadd.f32 %v2772, %v2434
      %v2802 = vadd.f32 %v2706, %v2434
      %v2803 = vadd.f32 %v2773, %v2434
      %v2804 = vadd.f32 %v2709, %v2434
      %v2805 = vadd.f32 %v2774, %v2434
      %v2806 = vadd.f32 %v2712, %v2434
      %v2807 = vadd.f32 %v2775, %v2434
      %v2808 = vadd.f32 %v2715, %v2434
      %v2809 = vadd.f32 %v2776, %v2434
      %v2810 = vadd.f32 %v2718, %v2434
      %v2811 = vadd.f32 %v2777, %v2434
      %v2812 = vadd.f32 %v2721, %v2434
      %v2813 = vadd.f32 %v2778, %v2434
      %v2814 = vadd.f32 %v2724, %v2434
      %v2815 = vmul.f32 %v2779, 0.2
      %v2816 = vmul.f32 %v2780, 0.2
      %v2817 = vmul.f32 %v2781, 0.2
      %v2818 = vmul.f32 %v2782, 0.2
      %v2819 = vmul.f32 %v2783, 0.2
      %v2820 = vmul.f32 %v2784, 0.2
      %v2821 = vmul.f32 %v2785, 0.2
      %v2822 = vmul.f32 %v2786, 0.2
      %v2823 = vmul.f32 %v2787, 0.2
      %v2824 = vmul.f32 %v2788, 0.2
      %v2825 = vmul.f32 %v2789, 0.2
      %v2826 = vmul.f32 %v2790, 0.2
      %v2827 = vmul.f32 %v2791, 0.2
      %v2828 = vmul.f32 %v2792, 0.2
      %v2829 = vmul.f32 %v2793, 0.2
      %v2830 = vmul.f32 %v2794, 0.2
      %v2831 = vmul.f32 %v2795, 0.2
      %v2832 = vmul.f32 %v2796, 0.2
      %v2833 = vmul.f32 %v2797, 0.2
      %v2834 = vmul.f32 %v2798, 0.2
      %v2835 = vmul.f32 %v2799, 0.2
      %v2836 = vmul.f32 %v2800, 0.2
      %v2837 = vmul.f32 %v2801, 0.2
      %v2838 = vmul.f32 %v2802, 0.2
      %v2839 = vmul.f32 %v2803, 0.2
      %v2840 = vmul.f32 %v2804, 0.2
      %v2841 = vmul.f32 %v2805, 0.2
      %v2842 = vmul.f32 %v2806, 0.2
      %v2843 = vmul.f32 %v2807, 0.2
      %v2844 = vmul.f32 %v2808, 0.2
      %v2845 = vmul.f32 %v2809, 0.2
      %v2846 = vmul.f32 %v2810, 0.2
      %v2847 = vmul.f32 %v2811, 0.2
      %v2848 = vmul.f32 %v2812, 0.2
      %v2849 = vmul.f32 %v2813, 0.2
      %v2850 = vmul.f32 %v2814, 0.2
      %v2851 = vmax.f32 %v2779, %v2815
      %v2852 = vmax.f32 %v2780, %v2816
      %v2853 = vmax.f32 %v2781, %v2817
      %v2854 = vmax.f32 %v2782, %v2818
      %v2855 = vmax.f32 %v2783, %v2819
      %v2856 = vmax.f32 %v2784, %v2820
      %v2857 = vmax.f32 %v2785, %v2821
      %v2858 = vmax.f32 %v2786, %v2822
      %v2859 = vmax.f32 %v2787, %v2823
      %v2860 = vmax.f32 %v2788, %v2824
      %v2861 = vmax.f32 %v2789, %v2825
      %v2862 = vmax.f32 %v2790, %v2826
      %v2863 = vmax.f32 %v2791, %v2827
      %v2864 = vmax.f32 %v2792, %v2828
      %v2865 = vmax.f32 %v2793, %v2829
      %v2866 = vmax.f32 %v2794, %v2830
      %v2867 = vmax.f32 %v2795, %v2831
      %v2868 = vmax.f32 %v2796, %v2832
      %v2869 = vmax.f32 %v2797, %v2833
      %v2870 = vmax.f32 %v2798, %v2834
      %v2871 = vmax.f32 %v2799, %v2835
      %v2872 = vmax.f32 %v2800, %v2836
      %v2873 = vmax.f32 %v2801, %v2837
      %v2874 = vmax.f32 %v2802, %v2838
      %v2875 = vmax.f32 %v2803, %v2839
      %v2876 = vmax.f32 %v2804, %v2840
      %v2877 = vmax.f32 %v2805, %v2841
      %v2878 = vmax.f32 %v2806, %v2842
      %v2879 = vmax.f32 %v2807, %v2843
      %v2880 = vmax.f32 %v2808, %v2844
      %v2881 = vmax.f32 %v2809, %v2845
      %v2882 = vmax.f32 %v2810, %v2846
      %v2883 = vmax.f32 %v2811, %v2847
      %v2884 = vmax.f32 %v2812, %v2848
      %v2885 = vmax.f32 %v2813, %v2849
      %v2886 = vmax.f32 %v2814, %v2850
      %v2887 = vpack.c.bf16 %v2852, %v2851
      %v2888 = vpack.c.bf16 %v2854, %v2853
      %v2889 = vpack.c.bf16 %v2856, %v2855
      %v2890 = vpack.c.bf16 %v2858, %v2857
      %v2891 = vpack.c.bf16 %v2860, %v2859
      %v2892 = vpack.c.bf16 %v2862, %v2861
      %v2893 = vpack.c.bf16 %v2864, %v2863
      %v2894 = vpack.c.bf16 %v2866, %v2865
      %v2895 = vpack.c.bf16 %v2868, %v2867
      %v2896 = vpack.c.bf16 %v2870, %v2869
      %v2897 = vpack.c.bf16 %v2872, %v2871
      %v2898 = vpack.c.bf16 %v2874, %v2873
      %v2899 = vpack.c.bf16 %v2876, %v2875
      %v2900 = vpack.c.bf16 %v2878, %v2877
      %v2901 = vpack.c.bf16 %v2880, %v2879
      %v2902 = vpack.c.bf16 %v2882, %v2881
      %v2903 = vpack.c.bf16 %v2884, %v2883
      %v2904 = vpack.c.bf16 %v2886, %v2885
      %2905 = vst [vmem:[#allocation4] sm:$0xff] %v2887
      %2906 = vst [vmem:[#allocation4 + $0x18] sm:$0xff] %v2888
      %2907 = vst [vmem:[#allocation4 + $0x30] sm:$0xff] %v2889
      %2908 = vst [vmem:[#allocation4 + $0x48] sm:$0xff] %v2890
      %2909 = vst [vmem:[#allocation4 + $0x60] sm:$0xff] %v2891
      %2910 = vst [vmem:[#allocation4 + $0x78] sm:$0xff] %v2892
      %2911 = vst [vmem:[#allocation4 + $0x90] sm:$0xff] %v2893
      %2912 = vst [vmem:[#allocation4 + $0xa8] sm:$0xff] %v2894
      %2913 = vst [vmem:[#allocation4 + $0xc0] sm:$0xff] %v2895
      %2914 = vst [vmem:[#allocation4 + $0xd8] sm:$0xff] %v2896
      %2915 = vst [vmem:[#allocation4 + $0xf0] sm:$0xff] %v2897
      %2916 = vst [vmem:[#allocation4 + $0x108] sm:$0xff] %v2898
      %2917 = vst [vmem:[#allocation4 + $0x120] sm:$0xff] %v2899
      %2918 = vst [vmem:[#allocation4 + $0x138] sm:$0xff] %v2900
      %2919 = vst [vmem:[#allocation4 + $0x150] sm:$0xff] %v2901
      %2920 = vst [vmem:[#allocation4 + $0x168] sm:$0xff] %v2902
      %2921 = vst [vmem:[#allocation4 + $0x180] sm:$0xff] %v2903
      %2922 = vst [vmem:[#allocation4 + $0x198] sm:$0xff] %v2904
      %v2923 = vld [vmem:[#allocation3 + $0x1] sm:$0xff]
      %v2924 = vld [vmem:[#allocation3 + $0x9] sm:$0x7f]
      %v2925 = vld [vmem:[#allocation3 + $0x11] sm:$0xff]
      %v2926 = vld [vmem:[#allocation3 + $0x19] sm:$0x7f]
      %v2927 = vld [vmem:[#allocation3 + $0x21] sm:$0xff]
      %v2928 = vld [vmem:[#allocation3 + $0x29] sm:$0x7f]
      %v2929 = vld [vmem:[#allocation3 + $0x31] sm:$0xff]
      %v2930 = vld [vmem:[#allocation3 + $0x39] sm:$0x7f]
      %v2931 = vld [vmem:[#allocation3 + $0x41] sm:$0xff]
      %v2932 = vld [vmem:[#allocation3 + $0x49] sm:$0x7f]
      %v2933 = vld [vmem:[#allocation3 + $0x51] sm:$0xff]
      %v2934 = vld [vmem:[#allocation3 + $0x59] sm:$0x7f]
      %v2935 = vld [vmem:[#allocation3 + $0x61] sm:$0xff]
      %v2936 = vld [vmem:[#allocation3 + $0x69] sm:$0x7f]
      %v2937 = vld [vmem:[#allocation3 + $0x71] sm:$0xff]
      %v2938 = vld [vmem:[#allocation3 + $0x79] sm:$0x7f]
      %v2939 = vld [vmem:[#allocation3 + $0x81] sm:$0xff]
      %v2940 = vld [vmem:[#allocation3 + $0x89] sm:$0x7f]
      %v2941 = vld [vmem:[#allocation3 + $0x91] sm:$0xff]
      %v2942 = vld [vmem:[#allocation3 + $0x99] sm:$0x7f]
      %v2943 = vld [vmem:[#allocation3 + $0xa1] sm:$0xff]
      %v2944 = vld [vmem:[#allocation3 + $0xa9] sm:$0x7f]
      %v2945 = vld [vmem:[#allocation3 + $0xb1] sm:$0xff]
      %v2946 = vld [vmem:[#allocation3 + $0xb9] sm:$0x7f]
      %v2947 = vld [vmem:[#allocation3 + $0xc1] sm:$0xff]
      %v2948 = vld [vmem:[#allocation3 + $0xc9] sm:$0x7f]
      %v2949 = vld [vmem:[#allocation3 + $0xd1] sm:$0xff]
      %v2950 = vld [vmem:[#allocation3 + $0xd9] sm:$0x7f]
      %v2951 = vld [vmem:[#allocation3 + $0xe1] sm:$0xff]
      %v2952 = vld [vmem:[#allocation3 + $0xe9] sm:$0x7f]
      %v2953 = vld [vmem:[#allocation3 + $0xf1] sm:$0xff]
      %v2954 = vld [vmem:[#allocation3 + $0xf9] sm:$0x7f]
      %v2955 = vld [vmem:[#allocation3 + $0x101] sm:$0xff]
      %v2956 = vld [vmem:[#allocation3 + $0x109] sm:$0x7f]
      %v2957 = vld [vmem:[#allocation3 + $0x111] sm:$0xff]
      %v2958 = vld [vmem:[#allocation3 + $0x119] sm:$0x7f]
      %v2959 = vld [vmem:[#allocation3 + $0xf] sm:$0x1]
      %v2960 = vld [vmem:[#allocation3 + $0x1f] sm:$0x1]
      %v2961 = vld [vmem:[#allocation3 + $0x2f] sm:$0x1]
      %v2962 = vld [vmem:[#allocation3 + $0x3f] sm:$0x1]
      %v2963 = vld [vmem:[#allocation3 + $0x4f] sm:$0x1]
      %v2964 = vld [vmem:[#allocation3 + $0x5f] sm:$0x1]
      %v2965 = vld [vmem:[#allocation3 + $0x6f] sm:$0x1]
      %v2966 = vld [vmem:[#allocation3 + $0x7f] sm:$0x1]
      %v2967 = vld [vmem:[#allocation3 + $0x8f] sm:$0x1]
      %v2968 = vld [vmem:[#allocation3 + $0x9f] sm:$0x1]
      %v2969 = vld [vmem:[#allocation3 + $0xaf] sm:$0x1]
      %v2970 = vld [vmem:[#allocation3 + $0xbf] sm:$0x1]
      %v2971 = vld [vmem:[#allocation3 + $0xcf] sm:$0x1]
      %v2972 = vld [vmem:[#allocation3 + $0xdf] sm:$0x1]
      %v2973 = vld [vmem:[#allocation3 + $0xef] sm:$0x1]
      %v2974 = vld [vmem:[#allocation3 + $0xff] sm:$0x1]
      %v2975 = vld [vmem:[#allocation3 + $0x10f] sm:$0x1]
      %v2976 = vld [vmem:[#allocation3 + $0x11f] sm:$0x1]
      %v2995 = vrot.slane %v2959, 1
      %v2996 = vrot.slane %v2960, 1
      %v2997 = vrot.slane %v2961, 1
      %v2998 = vrot.slane %v2962, 1
      %v2999 = vrot.slane %v2963, 1
      %v3000 = vrot.slane %v2964, 1
      %v3001 = vrot.slane %v2965, 1
      %v3002 = vrot.slane %v2966, 1
      %v3003 = vrot.slane %v2967, 1
      %v3004 = vrot.slane %v2968, 1
      %v3005 = vrot.slane %v2969, 1
      %v3006 = vrot.slane %v2970, 1
      %v3007 = vrot.slane %v2971, 1
      %v3008 = vrot.slane %v2972, 1
      %v3009 = vrot.slane %v2973, 1
      %v3010 = vrot.slane %v2974, 1
      %v3011 = vrot.slane %v2975, 1
      %v3012 = vrot.slane %v2976, 1
      %vm3031 = vcmask 1046528
      %v3032 = vsel %vm3031, %v2924, %v2995
      %v3033 = vsel %vm3031, %v2926, %v2996
      %v3034 = vsel %vm3031, %v2928, %v2997
      %v3035 = vsel %vm3031, %v2930, %v2998
      %v3036 = vsel %vm3031, %v2932, %v2999
      %v3037 = vsel %vm3031, %v2934, %v3000
      %v3038 = vsel %vm3031, %v2936, %v3001
      %v3039 = vsel %vm3031, %v2938, %v3002
      %v3040 = vsel %vm3031, %v2940, %v3003
      %v3041 = vsel %vm3031, %v2942, %v3004
      %v3042 = vsel %vm3031, %v2944, %v3005
      %v3043 = vsel %vm3031, %v2946, %v3006
      %v3044 = vsel %vm3031, %v2948, %v3007
      %v3045 = vsel %vm3031, %v2950, %v3008
      %v3046 = vsel %vm3031, %v2952, %v3009
      %v3047 = vsel %vm3031, %v2954, %v3010
      %v3048 = vsel %vm3031, %v2956, %v3011
      %v3049 = vsel %vm3031, %v2958, %v3012
      %v3050 = vadd.f32 %v2923, %v2434
      %v3051 = vadd.f32 %v3032, %v2434
      %v3052 = vadd.f32 %v2925, %v2434
      %v3053 = vadd.f32 %v3033, %v2434
      %v3054 = vadd.f32 %v2927, %v2434
      %v3055 = vadd.f32 %v3034, %v2434
      %v3056 = vadd.f32 %v2929, %v2434
      %v3057 = vadd.f32 %v3035, %v2434
      %v3058 = vadd.f32 %v2931, %v2434
      %v3059 = vadd.f32 %v3036, %v2434
      %v3060 = vadd.f32 %v2933, %v2434
      %v3061 = vadd.f32 %v3037, %v2434
      %v3062 = vadd.f32 %v2935, %v2434
      %v3063 = vadd.f32 %v3038, %v2434
      %v3064 = vadd.f32 %v2937, %v2434
      %v3065 = vadd.f32 %v3039, %v2434
      %v3066 = vadd.f32 %v2939, %v2434
      %v3067 = vadd.f32 %v3040, %v2434
      %v3068 = vadd.f32 %v2941, %v2434
      %v3069 = vadd.f32 %v3041, %v2434
      %v3070 = vadd.f32 %v2943, %v2434
      %v3071 = vadd.f32 %v3042, %v2434
      %v3072 = vadd.f32 %v2945, %v2434
      %v3073 = vadd.f32 %v3043, %v2434
      %v3074 = vadd.f32 %v2947, %v2434
      %v3075 = vadd.f32 %v3044, %v2434
      %v3076 = vadd.f32 %v2949, %v2434
      %v3077 = vadd.f32 %v3045, %v2434
      %v3078 = vadd.f32 %v2951, %v2434
      %v3079 = vadd.f32 %v3046, %v2434
      %v3080 = vadd.f32 %v2953, %v2434
      %v3081 = vadd.f32 %v3047, %v2434
      %v3082 = vadd.f32 %v2955, %v2434
      %v3083 = vadd.f32 %v3048, %v2434
      %v3084 = vadd.f32 %v2957, %v2434
      %v3085 = vadd.f32 %v3049, %v2434
      %v3086 = vmul.f32 %v3050, 0.2
      %v3087 = vmul.f32 %v3051, 0.2
      %v3088 = vmul.f32 %v3052, 0.2
      %v3089 = vmul.f32 %v3053, 0.2
      %v3090 = vmul.f32 %v3054, 0.2
      %v3091 = vmul.f32 %v3055, 0.2
      %v3092 = vmul.f32 %v3056, 0.2
      %v3093 = vmul.f32 %v3057, 0.2
      %v3094 = vmul.f32 %v3058, 0.2
      %v3095 = vmul.f32 %v3059, 0.2
      %v3096 = vmul.f32 %v3060, 0.2
      %v3097 = vmul.f32 %v3061, 0.2
      %v3098 = vmul.f32 %v3062, 0.2
      %v3099 = vmul.f32 %v3063, 0.2
      %v3100 = vmul.f32 %v3064, 0.2
      %v3101 = vmul.f32 %v3065, 0.2
      %v3102 = vmul.f32 %v3066, 0.2
      %v3103 = vmul.f32 %v3067, 0.2
      %v3104 = vmul.f32 %v3068, 0.2
      %v3105 = vmul.f32 %v3069, 0.2
      %v3106 = vmul.f32 %v3070, 0.2
      %v3107 = vmul.f32 %v3071, 0.2
      %v3108 = vmul.f32 %v3072, 0.2
      %v3109 = vmul.f32 %v3073, 0.2
      %v3110 = vmul.f32 %v3074, 0.2
      %v3111 = vmul.f32 %v3075, 0.2
      %v3112 = vmul.f32 %v3076, 0.2
      %v3113 = vmul.f32 %v3077, 0.2
      %v3114 = vmul.f32 %v3078, 0.2
      %v3115 = vmul.f32 %v3079, 0.2
      %v3116 = vmul.f32 %v3080, 0.2
      %v3117 = vmul.f32 %v3081, 0.2
      %v3118 = vmul.f32 %v3082, 0.2
      %v3119 = vmul.f32 %v3083, 0.2
      %v3120 = vmul.f32 %v3084, 0.2
      %v3121 = vmul.f32 %v3085, 0.2
      %v3122 = vmax.f32 %v3050, %v3086
      %v3123 = vmax.f32 %v3051, %v3087
      %v3124 = vmax.f32 %v3052, %v3088
      %v3125 = vmax.f32 %v3053, %v3089
      %v3126 = vmax.f32 %v3054, %v3090
      %v3127 = vmax.f32 %v3055, %v3091
      %v3128 = vmax.f32 %v3056, %v3092
      %v3129 = vmax.f32 %v3057, %v3093
      %v3130 = vmax.f32 %v3058, %v3094
      %v3131 = vmax.f32 %v3059, %v3095
      %v3132 = vmax.f32 %v3060, %v3096
      %v3133 = vmax.f32 %v3061, %v3097
      %v3134 = vmax.f32 %v3062, %v3098
      %v3135 = vmax.f32 %v3063, %v3099
      %v3136 = vmax.f32 %v3064, %v3100
      %v3137 = vmax.f32 %v3065, %v3101
      %v3138 = vmax.f32 %v3066, %v3102
      %v3139 = vmax.f32 %v3067, %v3103
      %v3140 = vmax.f32 %v3068, %v3104
      %v3141 = vmax.f32 %v3069, %v3105
      %v3142 = vmax.f32 %v3070, %v3106
      %v3143 = vmax.f32 %v3071, %v3107
      %v3144 = vmax.f32 %v3072, %v3108
      %v3145 = vmax.f32 %v3073, %v3109
      %v3146 = vmax.f32 %v3074, %v3110
      %v3147 = vmax.f32 %v3075, %v3111
      %v3148 = vmax.f32 %v3076, %v3112
      %v3149 = vmax.f32 %v3077, %v3113
      %v3150 = vmax.f32 %v3078, %v3114
      %v3151 = vmax.f32 %v3079, %v3115
      %v3152 = vmax.f32 %v3080, %v3116
      %v3153 = vmax.f32 %v3081, %v3117
      %v3154 = vmax.f32 %v3082, %v3118
      %v3155 = vmax.f32 %v3083, %v3119
      %v3156 = vmax.f32 %v3084, %v3120
      %v3157 = vmax.f32 %v3085, %v3121
      %v3158 = vpack.c.bf16 %v3123, %v3122
      %v3159 = vpack.c.bf16 %v3125, %v3124
      %v3160 = vpack.c.bf16 %v3127, %v3126
      %v3161 = vpack.c.bf16 %v3129, %v3128
      %v3162 = vpack.c.bf16 %v3131, %v3130
      %v3163 = vpack.c.bf16 %v3133, %v3132
      %v3164 = vpack.c.bf16 %v3135, %v3134
      %v3165 = vpack.c.bf16 %v3137, %v3136
      %v3166 = vpack.c.bf16 %v3139, %v3138
      %v3167 = vpack.c.bf16 %v3141, %v3140
      %v3168 = vpack.c.bf16 %v3143, %v3142
      %v3169 = vpack.c.bf16 %v3145, %v3144
      %v3170 = vpack.c.bf16 %v3147, %v3146
      %v3171 = vpack.c.bf16 %v3149, %v3148
      %v3172 = vpack.c.bf16 %v3151, %v3150
      %v3173 = vpack.c.bf16 %v3153, %v3152
      %v3174 = vpack.c.bf16 %v3155, %v3154
      %v3175 = vpack.c.bf16 %v3157, %v3156
      %3176 = vst [vmem:[#allocation4 + $0x10] sm:$0xff] %v3158
      %3177 = vst [vmem:[#allocation4 + $0x28] sm:$0xff] %v3159
      %3178 = vst [vmem:[#allocation4 + $0x40] sm:$0xff] %v3160
      %3179 = vst [vmem:[#allocation4 + $0x58] sm:$0xff] %v3161
      %3180 = vst [vmem:[#allocation4 + $0x70] sm:$0xff] %v3162
      %3181 = vst [vmem:[#allocation4 + $0x88] sm:$0xff] %v3163
      %3182 = vst [vmem:[#allocation4 + $0xa0] sm:$0xff] %v3164
      %3183 = vst [vmem:[#allocation4 + $0xb8] sm:$0xff] %v3165
      %3184 = vst [vmem:[#allocation4 + $0xd0] sm:$0xff] %v3166
      %3185 = vst [vmem:[#allocation4 + $0xe8] sm:$0xff] %v3167
      %3186 = vst [vmem:[#allocation4 + $0x100] sm:$0xff] %v3168
      %3187 = vst [vmem:[#allocation4 + $0x118] sm:$0xff] %v3169
      %3188 = vst [vmem:[#allocation4 + $0x130] sm:$0xff] %v3170
      %3189 = vst [vmem:[#allocation4 + $0x148] sm:$0xff] %v3171
      %3190 = vst [vmem:[#allocation4 + $0x160] sm:$0xff] %v3172
      %3191 = vst [vmem:[#allocation4 + $0x178] sm:$0xff] %v3173
      %3192 = vst [vmem:[#allocation4 + $0x190] sm:$0xff] %v3174
      %3193 = vst [vmem:[#allocation4 + $0x1a8] sm:$0xff] %v3175
      %v3194 = vld [vmem:[%s4] sm:$0x1]
      %v3195 = vld [vmem:[#allocation4] sm:$0xff]
      %v3196 = vld [vmem:[#allocation4 + $0x8] sm:$0xff]
      %v3197 = vld [vmem:[#allocation4 + $0x18] sm:$0xff]
      %v3198 = vld [vmem:[#allocation4 + $0x20] sm:$0xff]
      %v3199 = vld [vmem:[#allocation4 + $0x30] sm:$0xff]
      %v3200 = vld [vmem:[#allocation4 + $0x38] sm:$0xff]
      %v3201 = vld [vmem:[#allocation4 + $0x48] sm:$0xff]
      %v3202 = vld [vmem:[#allocation4 + $0x50] sm:$0xff]
      %v3203 = vld [vmem:[#allocation4 + $0x60] sm:$0xff]
      %v3204 = vld [vmem:[#allocation4 + $0x68] sm:$0xff]
      %v3205 = vld [vmem:[#allocation4 + $0x78] sm:$0xff]
      %v3206 = vld [vmem:[#allocation4 + $0x80] sm:$0xff]
      %v3207 = vld [vmem:[#allocation4 + $0x90] sm:$0xff]
      %v3208 = vld [vmem:[#allocation4 + $0x98] sm:$0xff]
      %v3209 = vld [vmem:[#allocation4 + $0xa8] sm:$0xff]
      %v3210 = vld [vmem:[#allocation4 + $0xb0] sm:$0xff]
      %v3211 = vld [vmem:[#allocation4 + $0xc0] sm:$0xff]
      %v3212 = vld [vmem:[#allocation4 + $0xc8] sm:$0xff]
      %v3213 = vld [vmem:[#allocation4 + $0xd8] sm:$0xff]
      %v3214 = vld [vmem:[#allocation4 + $0xe0] sm:$0xff]
      %v3215 = vld [vmem:[#allocation4 + $0xf0] sm:$0xff]
      %v3216 = vld [vmem:[#allocation4 + $0xf8] sm:$0xff]
      %v3217 = vld [vmem:[#allocation4 + $0x108] sm:$0xff]
      %v3218 = vld [vmem:[#allocation4 + $0x110] sm:$0xff]
      %v3219 = vld [vmem:[#allocation4 + $0x120] sm:$0xff]
      %v3220 = vld [vmem:[#allocation4 + $0x128] sm:$0xff]
      %v3221 = vld [vmem:[#allocation4 + $0x138] sm:$0xff]
      %v3222 = vld [vmem:[#allocation4 + $0x140] sm:$0xff]
      %v3223 = vld [vmem:[#allocation4 + $0x150] sm:$0xff]
      %v3224 = vld [vmem:[#allocation4 + $0x158] sm:$0xff]
      %v3225 = vld [vmem:[#allocation4 + $0x168] sm:$0xff]
      %v3226 = vld [vmem:[#allocation4 + $0x170] sm:$0xff]
      %v3227 = vld [vmem:[%s2] sm:$0xf]
      %v3228 = vld [vmem:[%s2 + $0x4] sm:$0xf]
      %v3229 = vld [vmem:[%s2 + $0x8] sm:$0xf]
      %v3230 = vld [vmem:[%s2 + $0xc] sm:$0xf]
      %v3231 = vld [vmem:[%s2 + $0x10] sm:$0xf]
      %v3232 = vld [vmem:[%s2 + $0x14] sm:$0xf]
      %v3233 = vld [vmem:[%s2 + $0x18] sm:$0xf]
      %v3234 = vld [vmem:[%s2 + $0x1c] sm:$0xf]
      %v3235 = vld [vmem:[%s2 + $0x20] sm:$0xf]
      %v3236 = vld [vmem:[%s2 + $0x24] sm:$0xf]
      %v3237 = vld [vmem:[%s2 + $0x28] sm:$0xf]
      %v3238 = vld [vmem:[%s2 + $0x2c] sm:$0xf]
      %v3239 = vld [vmem:[%s2 + $0x30] sm:$0xf]
      %v3240 = vld [vmem:[%s2 + $0x34] sm:$0xf]
      %v3241 = vld [vmem:[%s2 + $0x38] sm:$0xf]
      %v3242 = vld [vmem:[%s2 + $0x3c] sm:$0xf]
      %v3243 = vld [vmem:[%s2 + $0x40] sm:$0xf]
      %v3244 = vld [vmem:[%s2 + $0x44] sm:$0xf]
      %v3245 = vld [vmem:[%s2 + $0x48] sm:$0xf]
      %v3246 = vld [vmem:[%s2 + $0x4c] sm:$0xf]
      %v3247 = vld [vmem:[%s2 + $0x50] sm:$0xf]
      %v3248 = vld [vmem:[%s2 + $0x54] sm:$0xf]
      %v3249 = vld [vmem:[%s2 + $0x58] sm:$0xf]
      %v3250 = vld [vmem:[%s2 + $0x5c] sm:$0xf]
      %v3251 = vld [vmem:[%s2 + $0x60] sm:$0xf]
      %v3252 = vld [vmem:[%s2 + $0x64] sm:$0xf]
      %v3253 = vld [vmem:[%s2 + $0x68] sm:$0xf]
      %v3254 = vld [vmem:[%s2 + $0x6c] sm:$0xf]
      %v3255 = vld [vmem:[%s2 + $0x70] sm:$0xf]
      %v3256 = vld [vmem:[%s2 + $0x74] sm:$0xf]
      %v3257 = vld [vmem:[%s2 + $0x78] sm:$0xf]
      %v3258 = vld [vmem:[%s2 + $0x7c] sm:$0xf]
      %v3291 = vunpack.c.l.b16 %v3227
      %v3292 = vunpack.c.l.b16 %v3228
      %v3293 = vunpack.c.l.b16 %v3229
      %v3294 = vunpack.c.l.b16 %v3230
      %v3295 = vunpack.c.l.b16 %v3231
      %v3296 = vunpack.c.l.b16 %v3232
      %v3297 = vunpack.c.l.b16 %v3233
      %v3298 = vunpack.c.l.b16 %v3234
      %v3299 = vunpack.c.l.b16 %v3235
      %v3300 = vunpack.c.l.b16 %v3236
      %v3301 = vunpack.c.l.b16 %v3237
      %v3302 = vunpack.c.l.b16 %v3238
      %v3303 = vunpack.c.l.b16 %v3239
      %v3304 = vunpack.c.l.b16 %v3240
      %v3305 = vunpack.c.l.b16 %v3241
      %v3306 = vunpack.c.l.b16 %v3242
      %v3307 = vunpack.c.l.b16 %v3243
      %v3308 = vunpack.c.l.b16 %v3244
      %v3309 = vunpack.c.l.b16 %v3245
      %v3310 = vunpack.c.l.b16 %v3246
      %v3311 = vunpack.c.l.b16 %v3247
      %v3312 = vunpack.c.l.b16 %v3248
      %v3313 = vunpack.c.l.b16 %v3249
      %v3314 = vunpack.c.l.b16 %v3250
      %v3315 = vunpack.c.l.b16 %v3251
      %v3316 = vunpack.c.l.b16 %v3252
      %v3317 = vunpack.c.l.b16 %v3253
      %v3318 = vunpack.c.l.b16 %v3254
      %v3319 = vunpack.c.l.b16 %v3255
      %v3320 = vunpack.c.l.b16 %v3256
      %v3321 = vunpack.c.l.b16 %v3257
      %v3322 = vunpack.c.l.b16 %v3258
      %v3323 = vpack.c.b16 %v3292, %v3291
      %v3324 = vpack.c.b16 %v3294, %v3293
      %v3325 = vpack.c.b16 %v3296, %v3295
      %v3326 = vpack.c.b16 %v3298, %v3297
      %v3327 = vpack.c.b16 %v3300, %v3299
      %v3328 = vpack.c.b16 %v3302, %v3301
      %v3329 = vpack.c.b16 %v3304, %v3303
      %v3330 = vpack.c.b16 %v3306, %v3305
      %v3331 = vpack.c.b16 %v3308, %v3307
      %v3332 = vpack.c.b16 %v3310, %v3309
      %v3333 = vpack.c.b16 %v3312, %v3311
      %v3334 = vpack.c.b16 %v3314, %v3313
      %v3335 = vpack.c.b16 %v3316, %v3315
      %v3336 = vpack.c.b16 %v3318, %v3317
      %v3337 = vpack.c.b16 %v3320, %v3319
      %v3338 = vpack.c.b16 %v3322, %v3321
      %3355 = vmatprep.subr.bf16.mxu0 0
      %3356 = vmatpush1.bf16.msra.mxu0 %v3323
      %3357 = vmatprep.subr.bf16.mxu0 0
      %3358 = vmatpush1.bf16.msra.mxu0 %v3324
      %3359 = vmatprep.subr.bf16.mxu0 0
      %3360 = vmatpush1.bf16.msra.mxu0 %v3325
      %3361 = vmatprep.subr.bf16.mxu0 0
      %3362 = vmatpush1.bf16.msra.mxu0 %v3326
      %3363 = vmatprep.subr.bf16.mxu0 0
      %3364 = vmatpush1.bf16.msra.mxu0 %v3327
      %3365 = vmatprep.subr.bf16.mxu0 0
      %3366 = vmatpush1.bf16.msra.mxu0 %v3328
      %3367 = vmatprep.subr.bf16.mxu0 0
      %3368 = vmatpush1.bf16.msra.mxu0 %v3329
      %3369 = vmatprep.subr.bf16.mxu0 0
      %3370 = vmatpush1.bf16.msra.mxu0 %v3330
      %3371 = vmatprep.subr.bf16.mxu0 0
      %3372 = vmatpush1.bf16.msra.mxu0 %v3331
      %3373 = vmatprep.subr.bf16.mxu0 0
      %3374 = vmatpush1.bf16.msra.mxu0 %v3332
      %3375 = vmatprep.subr.bf16.mxu0 0
      %3376 = vmatpush1.bf16.msra.mxu0 %v3333
      %3377 = vmatprep.subr.bf16.mxu0 0
      %3378 = vmatpush1.bf16.msra.mxu0 %v3334
      %3379 = vmatprep.subr.bf16.mxu0 0
      %3380 = vmatpush1.bf16.msra.mxu0 %v3335
      %3381 = vmatprep.subr.bf16.mxu0 0
      %3382 = vmatpush1.bf16.msra.mxu0 %v3336
      %3383 = vmatprep.subr.bf16.mxu0 0
      %3384 = vmatpush1.bf16.msra.mxu0 %v3337
      %3385 = vmatprep.subr.bf16.mxu0 0
      %3386 = vmatpush1.bf16.msra.mxu0 %v3338
      %3387 = vmatprep.mubr.bf16.mxu0 %v3196
      %3388 = vmatmul.mubr.bf16.gmra.mrb[0].mxu0 %v3195
      %v3389 = vpop.f32.mrb[0].mxu0
      %v3390 = vadd.f32 0.0, %v3389
      %v3391 = vpop.f32.mrb[0].mxu0
      %v3392 = vpop.f32.mrb[0].mxu0
      %v3393 = vadd.f32 0.0, %v3392
      %v3394 = vpop.f32.mrb[0].mxu0
      %3395 = vmatprep.mubr.bf16.mxu0 %v3198
      %3396 = vmatmul.mubr.bf16.gmra.mrb[0].mxu0 %v3197
      %v3397 = vpop.f32.mrb[0].mxu0
      %v3398 = vadd.f32 0.0, %v3397
      %v3399 = vpop.f32.mrb[0].mxu0
      %v3400 = vpop.f32.mrb[0].mxu0
      %v3401 = vadd.f32 0.0, %v3400
      %v3402 = vpop.f32.mrb[0].mxu0
      %3403 = vmatprep.mubr.bf16.mxu0 %v3200
      %3404 = vmatmul.mubr.bf16.gmra.mrb[0].mxu0 %v3199
      %v3405 = vpop.f32.mrb[0].mxu0
      %v3406 = vadd.f32 0.0, %v3405
      %v3407 = vpop.f32.mrb[0].mxu0
      %v3408 = vpop.f32.mrb[0].mxu0
      %v3409 = vadd.f32 0.0, %v3408
      %v3410 = vpop.f32.mrb[0].mxu0
      %3411 = vmatprep.mubr.bf16.mxu0 %v3202
      %3412 = vmatmul.mubr.bf16.gmra.mrb[0].mxu0 %v3201
      %v3413 = vpop.f32.mrb[0].mxu0
      %v3414 = vadd.f32 0.0, %v3413
      %v3415 = vpop.f32.mrb[0].mxu0
      %v3416 = vpop.f32.mrb[0].mxu0
      %v3417 = vadd.f32 0.0, %v3416
      %v3418 = vpop.f32.mrb[0].mxu0
      %3419 = vmatprep.mubr.bf16.mxu0 %v3204
      %3420 = vmatmul.mubr.bf16.gmra.mrb[0].mxu0 %v3203
      %v3421 = vpop.f32.mrb[0].mxu0
      %v3422 = vadd.f32 0.0, %v3421
      %v3423 = vpop.f32.mrb[0].mxu0
      %v3424 = vpop.f32.mrb[0].mxu0
      %v3425 = vadd.f32 0.0, %v3424
      %v3426 = vpop.f32.mrb[0].mxu0
      %3427 = vmatprep.mubr.bf16.mxu0 %v3206
      %3428 = vmatmul.mubr.bf16.gmra.mrb[0].mxu0 %v3205
      %v3429 = vpop.f32.mrb[0].mxu0
      %v3430 = vadd.f32 0.0, %v3429
      %v3431 = vpop.f32.mrb[0].mxu0
      %v3432 = vpop.f32.mrb[0].mxu0
      %v3433 = vadd.f32 0.0, %v3432
      %v3434 = vpop.f32.mrb[0].mxu0
      %3435 = vmatprep.mubr.bf16.mxu0 %v3208
      %3436 = vmatmul.mubr.bf16.gmra.mrb[0].mxu0 %v3207
      %v3437 = vpop.f32.mrb[0].mxu0
      %v3438 = vadd.f32 0.0, %v3437
      %v3439 = vpop.f32.mrb[0].mxu0
      %v3440 = vpop.f32.mrb[0].mxu0
      %v3441 = vadd.f32 0.0, %v3440
      %v3442 = vpop.f32.mrb[0].mxu0
      %3443 = vmatprep.mubr.bf16.mxu0 %v3210
      %3444 = vmatmul.mubr.bf16.gmra.mrb[0].mxu0 %v3209
      %v3445 = vpop.f32.mrb[0].mxu0
      %v3446 = vadd.f32 0.0, %v3445
      %v3447 = vpop.f32.mrb[0].mxu0
      %v3448 = vpop.f32.mrb[0].mxu0
      %v3449 = vadd.f32 0.0, %v3448
      %v3450 = vpop.f32.mrb[0].mxu0
      %3451 = vmatprep.mubr.bf16.mxu0 %v3212
      %3452 = vmatmul.mubr.bf16.gmra.mrb[0].mxu0 %v3211
      %v3453 = vpop.f32.mrb[0].mxu0
      %v3454 = vadd.f32 0.0, %v3453
      %v3455 = vpop.f32.mrb[0].mxu0
      %v3456 = vpop.f32.mrb[0].mxu0
      %v3457 = vadd.f32 0.0, %v3456
      %v3458 = vpop.f32.mrb[0].mxu0
      %3459 = vmatprep.mubr.bf16.mxu0 %v3214
      %3460 = vmatmul.mubr.bf16.gmra.mrb[0].mxu0 %v3213
      %v3461 = vpop.f32.mrb[0].mxu0
      %v3462 = vadd.f32 0.0, %v3461
      %v3463 = vpop.f32.mrb[0].mxu0
      %v3464 = vpop.f32.mrb[0].mxu0
      %v3465 = vadd.f32 0.0, %v3464
      %v3466 = vpop.f32.mrb[0].mxu0
      %3467 = vmatprep.mubr.bf16.mxu0 %v3216
      %3468 = vmatmul.mubr.bf16.gmra.mrb[0].mxu0 %v3215
      %v3469 = vpop.f32.mrb[0].mxu0
      %v3470 = vadd.f32 0.0, %v3469
      %v3471 = vpop.f32.mrb[0].mxu0
      %v3472 = vpop.f32.mrb[0].mxu0
      %v3473 = vadd.f32 0.0, %v3472
      %v3474 = vpop.f32.mrb[0].mxu0
      %3475 = vmatprep.mubr.bf16.mxu0 %v3218
      %3476 = vmatmul.mubr.bf16.gmra.mrb[0].mxu0 %v3217
      %v3477 = vpop.f32.mrb[0].mxu0
      %v3478 = vadd.f32 0.0, %v3477
      %v3479 = vpop.f32.mrb[0].mxu0
      %v3480 = vpop.f32.mrb[0].mxu0
      %v3481 = vadd.f32 0.0, %v3480
      %v3482 = vpop.f32.mrb[0].mxu0
      %3483 = vmatprep.mubr.bf16.mxu0 %v3220
      %3484 = vmatmul.mubr.bf16.gmra.mrb[0].mxu0 %v3219
      %v3485 = vpop.f32.mrb[0].mxu0
      %v3486 = vadd.f32 0.0, %v3485
      %v3487 = vpop.f32.mrb[0].mxu0
      %v3488 = vpop.f32.mrb[0].mxu0
      %v3489 = vadd.f32 0.0, %v3488
      %v3490 = vpop.f32.mrb[0].mxu0
      %3491 = vmatprep.mubr.bf16.mxu0 %v3222
      %3492 = vmatmul.mubr.bf16.gmra.mrb[0].mxu0 %v3221
      %v3493 = vpop.f32.mrb[0].mxu0
      %v3494 = vadd.f32 0.0, %v3493
      %v3495 = vpop.f32.mrb[0].mxu0
      %v3496 = vpop.f32.mrb[0].mxu0
      %v3497 = vadd.f32 0.0, %v3496
      %v3498 = vpop.f32.mrb[0].mxu0
      %3499 = vmatprep.mubr.bf16.mxu0 %v3224
      %3500 = vmatmul.mubr.bf16.gmra.mrb[0].mxu0 %v3223
      %v3501 = vpop.f32.mrb[0].mxu0
      %v3502 = vadd.f32 0.0, %v3501
      %v3503 = vpop.f32.mrb[0].mxu0
      %v3504 = vpop.f32.mrb[0].mxu0
      %v3505 = vadd.f32 0.0, %v3504
      %v3506 = vpop.f32.mrb[0].mxu0
      %3507 = vmatprep.mubr.bf16.mxu0 %v3226
      %3508 = vmatmul.mubr.bf16.gmra.mrb[0].mxu0 %v3225
      %v3509 = vpop.f32.mrb[0].mxu0
      %v3510 = vadd.f32 0.0, %v3509
      %v3511 = vpop.f32.mrb[0].mxu0
      %v3512 = vpop.f32.mrb[0].mxu0
      %v3513 = vadd.f32 0.0, %v3512
      %v3514 = vpop.f32.mrb[0].mxu0
      %3515 = vdwg.mxu0
      %3516 = vst [vmem:[#allocation5] sm:$0xff] %v3390
      %3517 = vst [vmem:[#allocation5 + $0x8] sm:$0xff] %v3393
      %3518 = vst [vmem:[#allocation5 + $0x10] sm:$0xff] %v3398
      %3519 = vst [vmem:[#allocation5 + $0x18] sm:$0xff] %v3401
      %3520 = vst [vmem:[#allocation5 + $0x20] sm:$0xff] %v3406
      %3521 = vst [vmem:[#allocation5 + $0x28] sm:$0xff] %v3409
      %3522 = vst [vmem:[#allocation5 + $0x30] sm:$0xff] %v3414
      %3523 = vst [vmem:[#allocation5 + $0x38] sm:$0xff] %v3417
      %3524 = vst [vmem:[#allocation5 + $0x40] sm:$0xff] %v3422
      %3525 = vst [vmem:[#allocation5 + $0x48] sm:$0xff] %v3425
      %3526 = vst [vmem:[#allocation5 + $0x50] sm:$0xff] %v3430
      %3527 = vst [vmem:[#allocation5 + $0x58] sm:$0xff] %v3433
      %3528 = vst [vmem:[#allocation5 + $0x60] sm:$0xff] %v3438
      %3529 = vst [vmem:[#allocation5 + $0x68] sm:$0xff] %v3441
      %3530 = vst [vmem:[#allocation5 + $0x70] sm:$0xff] %v3446
      %3531 = vst [vmem:[#allocation5 + $0x78] sm:$0xff] %v3449
      %3532 = vst [vmem:[#allocation5 + $0x80] sm:$0xff] %v3454
      %3533 = vst [vmem:[#allocation5 + $0x88] sm:$0xff] %v3457
      %3534 = vst [vmem:[#allocation5 + $0x90] sm:$0xff] %v3462
      %3535 = vst [vmem:[#allocation5 + $0x98] sm:$0xff] %v3465
      %3536 = vst [vmem:[#allocation5 + $0xa0] sm:$0xff] %v3470
      %3537 = vst [vmem:[#allocation5 + $0xa8] sm:$0xff] %v3473
      %3538 = vst [vmem:[#allocation5 + $0xb0] sm:$0xff] %v3478
      %3539 = vst [vmem:[#allocation5 + $0xb8] sm:$0xff] %v3481
      %3540 = vst [vmem:[#allocation5 + $0xc0] sm:$0xff] %v3486
      %3541 = vst [vmem:[#allocation5 + $0xc8] sm:$0xff] %v3489
      %3542 = vst [vmem:[#allocation5 + $0xd0] sm:$0xff] %v3494
      %3543 = vst [vmem:[#allocation5 + $0xd8] sm:$0xff] %v3497
      %3544 = vst [vmem:[#allocation5 + $0xe0] sm:$0xff] %v3502
      %3545 = vst [vmem:[#allocation5 + $0xe8] sm:$0xff] %v3505
      %3546 = vst [vmem:[#allocation5 + $0xf0] sm:$0xff] %v3510
      %3547 = vst [vmem:[#allocation5 + $0xf8] sm:$0xff] %v3513
      %s3548 = scalar_lea.vmem [#allocation4], 24
      %v3549 = vld [vmem:[%s3548] sm:$0xff]
      %v3550 = vld [vmem:[%s3548 + $0x8] sm:$0xff]
      %v3551 = vld [vmem:[%s3548 + $0x18] sm:$0xff]
      %v3552 = vld [vmem:[%s3548 + $0x20] sm:$0xff]
      %v3553 = vld [vmem:[%s3548 + $0x30] sm:$0xff]
      %v3554 = vld [vmem:[%s3548 + $0x38] sm:$0xff]
      %v3555 = vld [vmem:[%s3548 + $0x48] sm:$0xff]
      %v3556 = vld [vmem:[%s3548 + $0x50] sm:$0xff]
      %v3557 = vld [vmem:[%s3548 + $0x60] sm:$0xff]
      %v3558 = vld [vmem:[%s3548 + $0x68] sm:$0xff]
      %v3559 = vld [vmem:[%s3548 + $0x78] sm:$0xff]
      %v3560 = vld [vmem:[%s3548 + $0x80] sm:$0xff]
      %v3561 = vld [vmem:[%s3548 + $0x90] sm:$0xff]
      %v3562 = vld [vmem:[%s3548 + $0x98] sm:$0xff]
      %v3563 = vld [vmem:[%s3548 + $0xa8] sm:$0xff]
      %v3564 = vld [vmem:[%s3548 + $0xb0] sm:$0xff]
      %v3565 = vld [vmem:[%s3548 + $0xc0] sm:$0xff]
      %v3566 = vld [vmem:[%s3548 + $0xc8] sm:$0xff]
      %v3567 = vld [vmem:[%s3548 + $0xd8] sm:$0xff]
      %v3568 = vld [vmem:[%s3548 + $0xe0] sm:$0xff]
      %v3569 = vld [vmem:[%s3548 + $0xf0] sm:$0xff]
      %v3570 = vld [vmem:[%s3548 + $0xf8] sm:$0xff]
      %v3571 = vld [vmem:[%s3548 + $0x108] sm:$0xff]
      %v3572 = vld [vmem:[%s3548 + $0x110] sm:$0xff]
      %v3573 = vld [vmem:[%s3548 + $0x120] sm:$0xff]
      %v3574 = vld [vmem:[%s3548 + $0x128] sm:$0xff]
      %v3575 = vld [vmem:[%s3548 + $0x138] sm:$0xff]
      %v3576 = vld [vmem:[%s3548 + $0x140] sm:$0xff]
      %v3577 = vld [vmem:[%s3548 + $0x150] sm:$0xff]
      %v3578 = vld [vmem:[%s3548 + $0x158] sm:$0xff]
      %v3579 = vld [vmem:[%s3548 + $0x168] sm:$0xff]
      %v3580 = vld [vmem:[%s3548 + $0x170] sm:$0xff]
      %s3581 = scalar_lea.vmem %s2, 128
      %v3582 = vld [vmem:[%s3581] sm:$0xf]
      %v3583 = vld [vmem:[%s3581 + $0x4] sm:$0xf]
      %v3584 = vld [vmem:[%s3581 + $0x8] sm:$0xf]
      %v3585 = vld [vmem:[%s3581 + $0xc] sm:$0xf]
      %v3586 = vld [vmem:[%s3581 + $0x10] sm:$0xf]
      %v3587 = vld [vmem:[%s3581 + $0x14] sm:$0xf]
      %v3588 = vld [vmem:[%s3581 + $0x18] sm:$0xf]
      %v3589 = vld [vmem:[%s3581 + $0x1c] sm:$0xf]
      %v3590 = vld [vmem:[%s3581 + $0x20] sm:$0xf]
      %v3591 = vld [vmem:[%s3581 + $0x24] sm:$0xf]
      %v3592 = vld [vmem:[%s3581 + $0x28] sm:$0xf]
      %v3593 = vld [vmem:[%s3581 + $0x2c] sm:$0xf]
      %v3594 = vld [vmem:[%s3581 + $0x30] sm:$0xf]
      %v3595 = vld [vmem:[%s3581 + $0x34] sm:$0xf]
      %v3596 = vld [vmem:[%s3581 + $0x38] sm:$0xf]
      %v3597 = vld [vmem:[%s3581 + $0x3c] sm:$0xf]
      %v3598 = vld [vmem:[%s3581 + $0x40] sm:$0xf]
      %v3599 = vld [vmem:[%s3581 + $0x44] sm:$0xf]
      %v3600 = vld [vmem:[%s3581 + $0x48] sm:$0xf]
      %v3601 = vld [vmem:[%s3581 + $0x4c] sm:$0xf]
      %v3602 = vld [vmem:[%s3581 + $0x50] sm:$0xf]
      %v3603 = vld [vmem:[%s3581 + $0x54] sm:$0xf]
      %v3604 = vld [vmem:[%s3581 + $0x58] sm:$0xf]
      %v3605 = vld [vmem:[%s3581 + $0x5c] sm:$0xf]
      %v3606 = vld [vmem:[%s3581 + $0x60] sm:$0xf]
      %v3607 = vld [vmem:[%s3581 + $0x64] sm:$0xf]
      %v3608 = vld [vmem:[%s3581 + $0x68] sm:$0xf]
      %v3609 = vld [vmem:[%s3581 + $0x6c] sm:$0xf]
      %v3610 = vld [vmem:[%s3581 + $0x70] sm:$0xf]
      %v3611 = vld [vmem:[%s3581 + $0x74] sm:$0xf]
      %v3612 = vld [vmem:[%s3581 + $0x78] sm:$0xf]
      %v3613 = vld [vmem:[%s3581 + $0x7c] sm:$0xf]
      %v3646 = vunpack.c.l.b16 %v3582
      %v3647 = vunpack.c.l.b16 %v3583
      %v3648 = vunpack.c.l.b16 %v3584
      %v3649 = vunpack.c.l.b16 %v3585
      %v3650 = vunpack.c.l.b16 %v3586
      %v3651 = vunpack.c.l.b16 %v3587
      %v3652 = vunpack.c.l.b16 %v3588
      %v3653 = vunpack.c.l.b16 %v3589
      %v3654 = vunpack.c.l.b16 %v3590
      %v3655 = vunpack.c.l.b16 %v3591
      %v3656 = vunpack.c.l.b16 %v3592
      %v3657 = vunpack.c.l.b16 %v3593
      %v3658 = vunpack.c.l.b16 %v3594
      %v3659 = vunpack.c.l.b16 %v3595
      %v3660 = vunpack.c.l.b16 %v3596
      %v3661 = vunpack.c.l.b16 %v3597
      %v3662 = vunpack.c.l.b16 %v3598
      %v3663 = vunpack.c.l.b16 %v3599
      %v3664 = vunpack.c.l.b16 %v3600
      %v3665 = vunpack.c.l.b16 %v3601
      %v3666 = vunpack.c.l.b16 %v3602
      %v3667 = vunpack.c.l.b16 %v3603
      %v3668 = vunpack.c.l.b16 %v3604
      %v3669 = vunpack.c.l.b16 %v3605
      %v3670 = vunpack.c.l.b16 %v3606
      %v3671 = vunpack.c.l.b16 %v3607
      %v3672 = vunpack.c.l.b16 %v3608
      %v3673 = vunpack.c.l.b16 %v3609
      %v3674 = vunpack.c.l.b16 %v3610
      %v3675 = vunpack.c.l.b16 %v3611
      %v3676 = vunpack.c.l.b16 %v3612
      %v3677 = vunpack.c.l.b16 %v3613
      %v3678 = vpack.c.b16 %v3647, %v3646
      %v3679 = vpack.c.b16 %v3649, %v3648
      %v3680 = vpack.c.b16 %v3651, %v3650
      %v3681 = vpack.c.b16 %v3653, %v3652
      %v3682 = vpack.c.b16 %v3655, %v3654
      %v3683 = vpack.c.b16 %v3657, %v3656
      %v3684 = vpack.c.b16 %v3659, %v3658
      %v3685 = vpack.c.b16 %v3661, %v3660
      %v3686 = vpack.c.b16 %v3663, %v3662
      %v3687 = vpack.c.b16 %v3665, %v3664
      %v3688 = vpack.c.b16 %v3667, %v3666
      %v3689 = vpack.c.b16 %v3669, %v3668
      %v3690 = vpack.c.b16 %v3671, %v3670
      %v3691 = vpack.c.b16 %v3673, %v3672
      %v3692 = vpack.c.b16 %v3675, %v3674
      %v3693 = vpack.c.b16 %v3677, %v3676
      %3710 = vmatprep.subr.bf16.mxu0 0
      %3711 = vmatpush1.bf16.msra.mxu0 %v3678
      %3712 = vmatprep.subr.bf16.mxu0 0
      %3713 = vmatpush1.bf16.msra.mxu0 %v3679
      %3714 = vmatprep.subr.bf16.mxu0 0
      %3715 = vmatpush1.bf16.msra.mxu0 %v3680
      %3716 = vmatprep.subr.bf16.mxu0 0
      %3717 = vmatpush1.bf16.msra.mxu0 %v3681
      %3718 = vmatprep.subr.bf16.mxu0 0
      %3719 = vmatpush1.bf16.msra.mxu0 %v3682
      %3720 = vmatprep.subr.bf16.mxu0 0
      %3721 = vmatpush1.bf16.msra.mxu0 %v3683
      %3722 = vmatprep.subr.bf16.mxu0 0
      %3723 = vmatpush1.bf16.msra.mxu0 %v3684
      %3724 = vmatprep.subr.bf16.mxu0 0
      %3725 = vmatpush1.bf16.msra.mxu0 %v3685
      %3726 = vmatprep.subr.bf16.mxu0 0
      %3727 = vmatpush1.bf16.msra.mxu0 %v3686
      %3728 = vmatprep.subr.bf16.mxu0 0
      %3729 = vmatpush1.bf16.msra.mxu0 %v3687
      %3730 = vmatprep.subr.bf16.mxu0 0
      %3731 = vmatpush1.bf16.msra.mxu0 %v3688
      %3732 = vmatprep.subr.bf16.mxu0 0
      %3733 = vmatpush1.bf16.msra.mxu0 %v3689
      %3734 = vmatprep.subr.bf16.mxu0 0
      %3735 = vmatpush1.bf16.msra.mxu0 %v3690
      %3736 = vmatprep.subr.bf16.mxu0 0
      %3737 = vmatpush1.bf16.msra.mxu0 %v3691
      %3738 = vmatprep.subr.bf16.mxu0 0
      %3739 = vmatpush1.bf16.msra.mxu0 %v3692
      %3740 = vmatprep.subr.bf16.mxu0 0
      %3741 = vmatpush1.bf16.msra.mxu0 %v3693
      %3742 = vmatprep.mubr.bf16.mxu0 %v3550
      %3743 = vmatmul.mubr.bf16.gmra.mrb[0].mxu0 %v3549
      %v3744 = vpop.f32.mrb[0].mxu0
      %v3745 = vadd.f32 0.0, %v3744
      %v3746 = vpop.f32.mrb[0].mxu0
      %v3747 = vpop.f32.mrb[0].mxu0
      %v3748 = vadd.f32 0.0, %v3747
      %v3749 = vpop.f32.mrb[0].mxu0
      %3750 = vmatprep.mubr.bf16.mxu0 %v3552
      %3751 = vmatmul.mubr.bf16.gmra.mrb[0].mxu0 %v3551
      %v3752 = vpop.f32.mrb[0].mxu0
      %v3753 = vadd.f32 0.0, %v3752
      %v3754 = vpop.f32.mrb[0].mxu0
      %v3755 = vpop.f32.mrb[0].mxu0
      %v3756 = vadd.f32 0.0, %v3755
      %v3757 = vpop.f32.mrb[0].mxu0
      %3758 = vmatprep.mubr.bf16.mxu0 %v3554
      %3759 = vmatmul.mubr.bf16.gmra.mrb[0].mxu0 %v3553
      %v3760 = vpop.f32.mrb[0].mxu0
      %v3761 = vadd.f32 0.0, %v3760
      %v3762 = vpop.f32.mrb[0].mxu0
      %v3763 = vpop.f32.mrb[0].mxu0
      %v3764 = vadd.f32 0.0, %v3763
      %v3765 = vpop.f32.mrb[0].mxu0
      %3766 = vmatprep.mubr.bf16.mxu0 %v3556
      %3767 = vmatmul.mubr.bf16.gmra.mrb[0].mxu0 %v3555
      %v3768 = vpop.f32.mrb[0].mxu0
      %v3769 = vadd.f32 0.0, %v3768
      %v3770 = vpop.f32.mrb[0].mxu0
      %v3771 = vpop.f32.mrb[0].mxu0
      %v3772 = vadd.f32 0.0, %v3771
      %v3773 = vpop.f32.mrb[0].mxu0
      %3774 = vmatprep.mubr.bf16.mxu0 %v3558
      %3775 = vmatmul.mubr.bf16.gmra.mrb[0].mxu0 %v3557
      %v3776 = vpop.f32.mrb[0].mxu0
      %v3777 = vadd.f32 0.0, %v3776
      %v3778 = vpop.f32.mrb[0].mxu0
      %v3779 = vpop.f32.mrb[0].mxu0
      %v3780 = vadd.f32 0.0, %v3779
      %v3781 = vpop.f32.mrb[0].mxu0
      %3782 = vmatprep.mubr.bf16.mxu0 %v3560
      %3783 = vmatmul.mubr.bf16.gmra.mrb[0].mxu0 %v3559
      %v3784 = vpop.f32.mrb[0].mxu0
      %v3785 = vadd.f32 0.0, %v3784
      %v3786 = vpop.f32.mrb[0].mxu0
      %v3787 = vpop.f32.mrb[0].mxu0
      %v3788 = vadd.f32 0.0, %v3787
      %v3789 = vpop.f32.mrb[0].mxu0
      %3790 = vmatprep.mubr.bf16.mxu0 %v3562
      %3791 = vmatmul.mubr.bf16.gmra.mrb[0].mxu0 %v3561
      %v3792 = vpop.f32.mrb[0].mxu0
      %v3793 = vadd.f32 0.0, %v3792
      %v3794 = vpop.f32.mrb[0].mxu0
      %v3795 = vpop.f32.mrb[0].mxu0
      %v3796 = vadd.f32 0.0, %v3795
      %v3797 = vpop.f32.mrb[0].mxu0
      %3798 = vmatprep.mubr.bf16.mxu0 %v3564
      %3799 = vmatmul.mubr.bf16.gmra.mrb[0].mxu0 %v3563
      %v3800 = vpop.f32.mrb[0].mxu0
      %v3801 = vadd.f32 0.0, %v3800
      %v3802 = vpop.f32.mrb[0].mxu0
      %v3803 = vpop.f32.mrb[0].mxu0
      %v3804 = vadd.f32 0.0, %v3803
      %v3805 = vpop.f32.mrb[0].mxu0
      %3806 = vmatprep.mubr.bf16.mxu0 %v3566
      %3807 = vmatmul.mubr.bf16.gmra.mrb[0].mxu0 %v3565
      %v3808 = vpop.f32.mrb[0].mxu0
      %v3809 = vadd.f32 0.0, %v3808
      %v3810 = vpop.f32.mrb[0].mxu0
      %v3811 = vpop.f32.mrb[0].mxu0
      %v3812 = vadd.f32 0.0, %v3811
      %v3813 = vpop.f32.mrb[0].mxu0
      %3814 = vmatprep.mubr.bf16.mxu0 %v3568
      %3815 = vmatmul.mubr.bf16.gmra.mrb[0].mxu0 %v3567
      %v3816 = vpop.f32.mrb[0].mxu0
      %v3817 = vadd.f32 0.0, %v3816
      %v3818 = vpop.f32.mrb[0].mxu0
      %v3819 = vpop.f32.mrb[0].mxu0
      %v3820 = vadd.f32 0.0, %v3819
      %v3821 = vpop.f32.mrb[0].mxu0
      %3822 = vmatprep.mubr.bf16.mxu0 %v3570
      %3823 = vmatmul.mubr.bf16.gmra.mrb[0].mxu0 %v3569
      %v3824 = vpop.f32.mrb[0].mxu0
      %v3825 = vadd.f32 0.0, %v3824
      %v3826 = vpop.f32.mrb[0].mxu0
      %v3827 = vpop.f32.mrb[0].mxu0
      %v3828 = vadd.f32 0.0, %v3827
      %v3829 = vpop.f32.mrb[0].mxu0
      %3830 = vmatprep.mubr.bf16.mxu0 %v3572
      %3831 = vmatmul.mubr.bf16.gmra.mrb[0].mxu0 %v3571
      %v3832 = vpop.f32.mrb[0].mxu0
      %v3833 = vadd.f32 0.0, %v3832
      %v3834 = vpop.f32.mrb[0].mxu0
      %v3835 = vpop.f32.mrb[0].mxu0
      %v3836 = vadd.f32 0.0, %v3835
      %v3837 = vpop.f32.mrb[0].mxu0
      %3838 = vmatprep.mubr.bf16.mxu0 %v3574
      %3839 = vmatmul.mubr.bf16.gmra.mrb[0].mxu0 %v3573
      %v3840 = vpop.f32.mrb[0].mxu0
      %v3841 = vadd.f32 0.0, %v3840
      %v3842 = vpop.f32.mrb[0].mxu0
      %v3843 = vpop.f32.mrb[0].mxu0
      %v3844 = vadd.f32 0.0, %v3843
      %v3845 = vpop.f32.mrb[0].mxu0
      %3846 = vmatprep.mubr.bf16.mxu0 %v3576
      %3847 = vmatmul.mubr.bf16.gmra.mrb[0].mxu0 %v3575
      %v3848 = vpop.f32.mrb[0].mxu0
      %v3849 = vadd.f32 0.0, %v3848
      %v3850 = vpop.f32.mrb[0].mxu0
      %v3851 = vpop.f32.mrb[0].mxu0
      %v3852 = vadd.f32 0.0, %v3851
      %v3853 = vpop.f32.mrb[0].mxu0
      %3854 = vmatprep.mubr.bf16.mxu0 %v3578
      %3855 = vmatmul.mubr.bf16.gmra.mrb[0].mxu0 %v3577
      %v3856 = vpop.f32.mrb[0].mxu0
      %v3857 = vadd.f32 0.0, %v3856
      %v3858 = vpop.f32.mrb[0].mxu0
      %v3859 = vpop.f32.mrb[0].mxu0
      %v3860 = vadd.f32 0.0, %v3859
      %v3861 = vpop.f32.mrb[0].mxu0
      %3862 = vmatprep.mubr.bf16.mxu0 %v3580
      %3863 = vmatmul.mubr.bf16.gmra.mrb[0].mxu0 %v3579
      %v3864 = vpop.f32.mrb[0].mxu0
      %v3865 = vadd.f32 0.0, %v3864
      %v3866 = vpop.f32.mrb[0].mxu0
      %v3867 = vpop.f32.mrb[0].mxu0
      %v3868 = vadd.f32 0.0, %v3867
      %v3869 = vpop.f32.mrb[0].mxu0
      %3870 = vdwg.mxu0
      %v3871 = vld [vmem:[#allocation5] sm:$0xff]
      %v3872 = vld [vmem:[#allocation5 + $0x8] sm:$0xff]
      %v3873 = vld [vmem:[#allocation5 + $0x10] sm:$0xff]
      %v3874 = vld [vmem:[#allocation5 + $0x18] sm:$0xff]
      %v3875 = vld [vmem:[#allocation5 + $0x20] sm:$0xff]
      %v3876 = vld [vmem:[#allocation5 + $0x28] sm:$0xff]
      %v3877 = vld [vmem:[#allocation5 + $0x30] sm:$0xff]
      %v3878 = vld [vmem:[#allocation5 + $0x38] sm:$0xff]
      %v3879 = vld [vmem:[#allocation5 + $0x40] sm:$0xff]
      %v3880 = vld [vmem:[#allocation5 + $0x48] sm:$0xff]
      %v3881 = vld [vmem:[#allocation5 + $0x50] sm:$0xff]
      %v3882 = vld [vmem:[#allocation5 + $0x58] sm:$0xff]
      %v3883 = vld [vmem:[#allocation5 + $0x60] sm:$0xff]
      %v3884 = vld [vmem:[#allocation5 + $0x68] sm:$0xff]
      %v3885 = vld [vmem:[#allocation5 + $0x70] sm:$0xff]
      %v3886 = vld [vmem:[#allocation5 + $0x78] sm:$0xff]
      %v3887 = vld [vmem:[#allocation5 + $0x80] sm:$0xff]
      %v3888 = vld [vmem:[#allocation5 + $0x88] sm:$0xff]
      %v3889 = vld [vmem:[#allocation5 + $0x90] sm:$0xff]
      %v3890 = vld [vmem:[#allocation5 + $0x98] sm:$0xff]
      %v3891 = vld [vmem:[#allocation5 + $0xa0] sm:$0xff]
      %v3892 = vld [vmem:[#allocation5 + $0xa8] sm:$0xff]
      %v3893 = vld [vmem:[#allocation5 + $0xb0] sm:$0xff]
      %v3894 = vld [vmem:[#allocation5 + $0xb8] sm:$0xff]
      %v3895 = vld [vmem:[#allocation5 + $0xc0] sm:$0xff]
      %v3896 = vld [vmem:[#allocation5 + $0xc8] sm:$0xff]
      %v3897 = vld [vmem:[#allocation5 + $0xd0] sm:$0xff]
      %v3898 = vld [vmem:[#allocation5 + $0xd8] sm:$0xff]
      %v3899 = vld [vmem:[#allocation5 + $0xe0] sm:$0xff]
      %v3900 = vld [vmem:[#allocation5 + $0xe8] sm:$0xff]
      %v3901 = vld [vmem:[#allocation5 + $0xf0] sm:$0xff]
      %v3902 = vld [vmem:[#allocation5 + $0xf8] sm:$0xff]
      %v3903 = vadd.f32 %v3871, %v3745
      %v3904 = vadd.f32 %v3872, %v3748
      %v3905 = vadd.f32 %v3873, %v3753
      %v3906 = vadd.f32 %v3874, %v3756
      %v3907 = vadd.f32 %v3875, %v3761
      %v3908 = vadd.f32 %v3876, %v3764
      %v3909 = vadd.f32 %v3877, %v3769
      %v3910 = vadd.f32 %v3878, %v3772
      %v3911 = vadd.f32 %v3879, %v3777
      %v3912 = vadd.f32 %v3880, %v3780
      %v3913 = vadd.f32 %v3881, %v3785
      %v3914 = vadd.f32 %v3882, %v3788
      %v3915 = vadd.f32 %v3883, %v3793
      %v3916 = vadd.f32 %v3884, %v3796
      %v3917 = vadd.f32 %v3885, %v3801
      %v3918 = vadd.f32 %v3886, %v3804
      %v3919 = vadd.f32 %v3887, %v3809
      %v3920 = vadd.f32 %v3888, %v3812
      %v3921 = vadd.f32 %v3889, %v3817
      %v3922 = vadd.f32 %v3890, %v3820
      %v3923 = vadd.f32 %v3891, %v3825
      %v3924 = vadd.f32 %v3892, %v3828
      %v3925 = vadd.f32 %v3893, %v3833
      %v3926 = vadd.f32 %v3894, %v3836
      %v3927 = vadd.f32 %v3895, %v3841
      %v3928 = vadd.f32 %v3896, %v3844
      %v3929 = vadd.f32 %v3897, %v3849
      %v3930 = vadd.f32 %v3898, %v3852
      %v3931 = vadd.f32 %v3899, %v3857
      %v3932 = vadd.f32 %v3900, %v3860
      %v3933 = vadd.f32 %v3901, %v3865
      %v3934 = vadd.f32 %v3902, %v3868
      %3935 = vst [vmem:[#allocation5] sm:$0xff] %v3903
      %3936 = vst [vmem:[#allocation5 + $0x8] sm:$0xff] %v3904
      %3937 = vst [vmem:[#allocation5 + $0x10] sm:$0xff] %v3905
      %3938 = vst [vmem:[#allocation5 + $0x18] sm:$0xff] %v3906
      %3939 = vst [vmem:[#allocation5 + $0x20] sm:$0xff] %v3907
      %3940 = vst [vmem:[#allocation5 + $0x28] sm:$0xff] %v3908
      %3941 = vst [vmem:[#allocation5 + $0x30] sm:$0xff] %v3909
      %3942 = vst [vmem:[#allocation5 + $0x38] sm:$0xff] %v3910
      %3943 = vst [vmem:[#allocation5 + $0x40] sm:$0xff] %v3911
      %3944 = vst [vmem:[#allocation5 + $0x48] sm:$0xff] %v3912
      %3945 = vst [vmem:[#allocation5 + $0x50] sm:$0xff] %v3913
      %3946 = vst [vmem:[#allocation5 + $0x58] sm:$0xff] %v3914
      %3947 = vst [vmem:[#allocation5 + $0x60] sm:$0xff] %v3915
      %3948 = vst [vmem:[#allocation5 + $0x68] sm:$0xff] %v3916
      %3949 = vst [vmem:[#allocation5 + $0x70] sm:$0xff] %v3917
      %3950 = vst [vmem:[#allocation5 + $0x78] sm:$0xff] %v3918
      %3951 = vst [vmem:[#allocation5 + $0x80] sm:$0xff] %v3919
      %3952 = vst [vmem:[#allocation5 + $0x88] sm:$0xff] %v3920
      %3953 = vst [vmem:[#allocation5 + $0x90] sm:$0xff] %v3921
      %3954 = vst [vmem:[#allocation5 + $0x98] sm:$0xff] %v3922
      %3955 = vst [vmem:[#allocation5 + $0xa0] sm:$0xff] %v3923
      %3956 = vst [vmem:[#allocation5 + $0xa8] sm:$0xff] %v3924
      %3957 = vst [vmem:[#allocation5 + $0xb0] sm:$0xff] %v3925
      %3958 = vst [vmem:[#allocation5 + $0xb8] sm:$0xff] %v3926
      %3959 = vst [vmem:[#allocation5 + $0xc0] sm:$0xff] %v3927
      %3960 = vst [vmem:[#allocation5 + $0xc8] sm:$0xff] %v3928
      %3961 = vst [vmem:[#allocation5 + $0xd0] sm:$0xff] %v3929
      %3962 = vst [vmem:[#allocation5 + $0xd8] sm:$0xff] %v3930
      %3963 = vst [vmem:[#allocation5 + $0xe0] sm:$0xff] %v3931
      %3964 = vst [vmem:[#allocation5 + $0xe8] sm:$0xff] %v3932
      %3965 = vst [vmem:[#allocation5 + $0xf0] sm:$0xff] %v3933
      %3966 = vst [vmem:[#allocation5 + $0xf8] sm:$0xff] %v3934
      %v3967 = vld [vmem:[#allocation5] sm:$0xff]
      %v3968 = vld [vmem:[#allocation5 + $0x8] sm:$0xff]
      %v3969 = vld [vmem:[#allocation5 + $0x10] sm:$0xff]
      %v3970 = vld [vmem:[#allocation5 + $0x18] sm:$0xff]
      %v3971 = vld [vmem:[#allocation5 + $0x20] sm:$0xff]
      %v3972 = vld [vmem:[#allocation5 + $0x28] sm:$0xff]
      %v3973 = vld [vmem:[#allocation5 + $0x30] sm:$0xff]
      %v3974 = vld [vmem:[#allocation5 + $0x38] sm:$0xff]
      %v3975 = vld [vmem:[#allocation5 + $0x40] sm:$0xff]
      %v3976 = vld [vmem:[#allocation5 + $0x48] sm:$0xff]
      %v3977 = vld [vmem:[#allocation5 + $0x50] sm:$0xff]
      %v3978 = vld [vmem:[#allocation5 + $0x58] sm:$0xff]
      %v3979 = vld [vmem:[#allocation5 + $0x60] sm:$0xff]
      %v3980 = vld [vmem:[#allocation5 + $0x68] sm:$0xff]
      %v3981 = vld [vmem:[#allocation5 + $0x70] sm:$0xff]
      %v3982 = vld [vmem:[#allocation5 + $0x78] sm:$0xff]
      %v3983 = vld [vmem:[#allocation5 + $0x80] sm:$0xff]
      %v3984 = vld [vmem:[#allocation5 + $0x88] sm:$0xff]
      %v3985 = vld [vmem:[#allocation5 + $0x90] sm:$0xff]
      %v3986 = vld [vmem:[#allocation5 + $0x98] sm:$0xff]
      %v3987 = vld [vmem:[#allocation5 + $0xa0] sm:$0xff]
      %v3988 = vld [vmem:[#allocation5 + $0xa8] sm:$0xff]
      %v3989 = vld [vmem:[#allocation5 + $0xb0] sm:$0xff]
      %v3990 = vld [vmem:[#allocation5 + $0xb8] sm:$0xff]
      %v3991 = vld [vmem:[#allocation5 + $0xc0] sm:$0xff]
      %v3992 = vld [vmem:[#allocation5 + $0xc8] sm:$0xff]
      %v3993 = vld [vmem:[#allocation5 + $0xd0] sm:$0xff]
      %v3994 = vld [vmem:[#allocation5 + $0xd8] sm:$0xff]
      %v3995 = vld [vmem:[#allocation5 + $0xe0] sm:$0xff]
      %v3996 = vld [vmem:[#allocation5 + $0xe8] sm:$0xff]
      %v3997 = vld [vmem:[#allocation5 + $0xf0] sm:$0xff]
      %v3998 = vld [vmem:[#allocation5 + $0xf8] sm:$0xff]
      %v4000 = vlaneseq
      %v4001 = vshrl.u32 %v4000, 7
      %v4002 = vsub.s32 0, %v4001
      %v4003 = vrot.slane %v3194, %v4002
      %v4005 = vadd.f32 %v3967, %v4003
      %v4006 = vadd.f32 %v3968, %v4003
      %v4007 = vadd.f32 %v3969, %v4003
      %v4008 = vadd.f32 %v3970, %v4003
      %v4009 = vadd.f32 %v3971, %v4003
      %v4010 = vadd.f32 %v3972, %v4003
      %v4011 = vadd.f32 %v3973, %v4003
      %v4012 = vadd.f32 %v3974, %v4003
      %v4013 = vadd.f32 %v3975, %v4003
      %v4014 = vadd.f32 %v3976, %v4003
      %v4015 = vadd.f32 %v3977, %v4003
      %v4016 = vadd.f32 %v3978, %v4003
      %v4017 = vadd.f32 %v3979, %v4003
      %v4018 = vadd.f32 %v3980, %v4003
      %v4019 = vadd.f32 %v3981, %v4003
      %v4020 = vadd.f32 %v3982, %v4003
      %v4021 = vadd.f32 %v3983, %v4003
      %v4022 = vadd.f32 %v3984, %v4003
      %v4023 = vadd.f32 %v3985, %v4003
      %v4024 = vadd.f32 %v3986, %v4003
      %v4025 = vadd.f32 %v3987, %v4003
      %v4026 = vadd.f32 %v3988, %v4003
      %v4027 = vadd.f32 %v3989, %v4003
      %v4028 = vadd.f32 %v3990, %v4003
      %v4029 = vadd.f32 %v3991, %v4003
      %v4030 = vadd.f32 %v3992, %v4003
      %v4031 = vadd.f32 %v3993, %v4003
      %v4032 = vadd.f32 %v3994, %v4003
      %v4033 = vadd.f32 %v3995, %v4003
      %v4034 = vadd.f32 %v3996, %v4003
      %v4035 = vadd.f32 %v3997, %v4003
      %v4036 = vadd.f32 %v3998, %v4003
      %v4037 = vmul.f32 %v4005, 0.2
      %v4038 = vmul.f32 %v4006, 0.2
      %v4039 = vmul.f32 %v4007, 0.2
      %v4040 = vmul.f32 %v4008, 0.2
      %v4041 = vmul.f32 %v4009, 0.2
      %v4042 = vmul.f32 %v4010, 0.2
      %v4043 = vmul.f32 %v4011, 0.2
      %v4044 = vmul.f32 %v4012, 0.2
      %v4045 = vmul.f32 %v4013, 0.2
      %v4046 = vmul.f32 %v4014, 0.2
      %v4047 = vmul.f32 %v4015, 0.2
      %v4048 = vmul.f32 %v4016, 0.2
      %v4049 = vmul.f32 %v4017, 0.2
      %v4050 = vmul.f32 %v4018, 0.2
      %v4051 = vmul.f32 %v4019, 0.2
      %v4052 = vmul.f32 %v4020, 0.2
      %v4053 = vmul.f32 %v4021, 0.2
      %v4054 = vmul.f32 %v4022, 0.2
      %v4055 = vmul.f32 %v4023, 0.2
      %v4056 = vmul.f32 %v4024, 0.2
      %v4057 = vmul.f32 %v4025, 0.2
      %v4058 = vmul.f32 %v4026, 0.2
      %v4059 = vmul.f32 %v4027, 0.2
      %v4060 = vmul.f32 %v4028, 0.2
      %v4061 = vmul.f32 %v4029, 0.2
      %v4062 = vmul.f32 %v4030, 0.2
      %v4063 = vmul.f32 %v4031, 0.2
      %v4064 = vmul.f32 %v4032, 0.2
      %v4065 = vmul.f32 %v4033, 0.2
      %v4066 = vmul.f32 %v4034, 0.2
      %v4067 = vmul.f32 %v4035, 0.2
      %v4068 = vmul.f32 %v4036, 0.2
      %v4069 = vmax.f32 %v4005, %v4037
      %v4070 = vmax.f32 %v4006, %v4038
      %v4071 = vmax.f32 %v4007, %v4039
      %v4072 = vmax.f32 %v4008, %v4040
      %v4073 = vmax.f32 %v4009, %v4041
      %v4074 = vmax.f32 %v4010, %v4042
      %v4075 = vmax.f32 %v4011, %v4043
      %v4076 = vmax.f32 %v4012, %v4044
      %v4077 = vmax.f32 %v4013, %v4045
      %v4078 = vmax.f32 %v4014, %v4046
      %v4079 = vmax.f32 %v4015, %v4047
      %v4080 = vmax.f32 %v4016, %v4048
      %v4081 = vmax.f32 %v4017, %v4049
      %v4082 = vmax.f32 %v4018, %v4050
      %v4083 = vmax.f32 %v4019, %v4051
      %v4084 = vmax.f32 %v4020, %v4052
      %v4085 = vmax.f32 %v4021, %v4053
      %v4086 = vmax.f32 %v4022, %v4054
      %v4087 = vmax.f32 %v4023, %v4055
      %v4088 = vmax.f32 %v4024, %v4056
      %v4089 = vmax.f32 %v4025, %v4057
      %v4090 = vmax.f32 %v4026, %v4058
      %v4091 = vmax.f32 %v4027, %v4059
      %v4092 = vmax.f32 %v4028, %v4060
      %v4093 = vmax.f32 %v4029, %v4061
      %v4094 = vmax.f32 %v4030, %v4062
      %v4095 = vmax.f32 %v4031, %v4063
      %v4096 = vmax.f32 %v4032, %v4064
      %v4097 = vmax.f32 %v4033, %v4065
      %v4098 = vmax.f32 %v4034, %v4066
      %v4099 = vmax.f32 %v4035, %v4067
      %v4100 = vmax.f32 %v4036, %v4068
      %vm4101 = vcmask 64512
      %4102 = vst.msk [vmem:[%s250] sm:$0xff] %vm4101, %v4069
      %4103 = vst.msk [vmem:[%s250 + $0x8] sm:$0xff] %vm4101, %v4070
      %4104 = vst.msk [vmem:[%s250 + $0x10] sm:$0xff] %vm4101, %v4071
      %4105 = vst.msk [vmem:[%s250 + $0x18] sm:$0xff] %vm4101, %v4072
      %4106 = vst.msk [vmem:[%s250 + $0x20] sm:$0xff] %vm4101, %v4073
      %4107 = vst.msk [vmem:[%s250 + $0x28] sm:$0xff] %vm4101, %v4074
      %4108 = vst.msk [vmem:[%s250 + $0x30] sm:$0xff] %vm4101, %v4075
      %4109 = vst.msk [vmem:[%s250 + $0x38] sm:$0xff] %vm4101, %v4076
      %4110 = vst.msk [vmem:[%s250 + $0x40] sm:$0xff] %vm4101, %v4077
      %4111 = vst.msk [vmem:[%s250 + $0x48] sm:$0xff] %vm4101, %v4078
      %4112 = vst.msk [vmem:[%s250 + $0x50] sm:$0xff] %vm4101, %v4079
      %4113 = vst.msk [vmem:[%s250 + $0x58] sm:$0xff] %vm4101, %v4080
      %4114 = vst.msk [vmem:[%s250 + $0x60] sm:$0xff] %vm4101, %v4081
      %4115 = vst.msk [vmem:[%s250 + $0x68] sm:$0xff] %vm4101, %v4082
      %4116 = vst.msk [vmem:[%s250 + $0x70] sm:$0xff] %vm4101, %v4083
      %4117 = vst.msk [vmem:[%s250 + $0x78] sm:$0xff] %vm4101, %v4084
      %4118 = vst.msk [vmem:[%s250 + $0x80] sm:$0xff] %vm4101, %v4085
      %4119 = vst.msk [vmem:[%s250 + $0x88] sm:$0xff] %vm4101, %v4086
      %4120 = vst.msk [vmem:[%s250 + $0x90] sm:$0xff] %vm4101, %v4087
      %4121 = vst.msk [vmem:[%s250 + $0x98] sm:$0xff] %vm4101, %v4088
      %4122 = vst.msk [vmem:[%s250 + $0xa0] sm:$0xff] %vm4101, %v4089
      %4123 = vst.msk [vmem:[%s250 + $0xa8] sm:$0xff] %vm4101, %v4090
      %4124 = vst.msk [vmem:[%s250 + $0xb0] sm:$0xff] %vm4101, %v4091
      %4125 = vst.msk [vmem:[%s250 + $0xb8] sm:$0xff] %vm4101, %v4092
      %4126 = vst.msk [vmem:[%s250 + $0xc0] sm:$0xff] %vm4101, %v4093
      %4127 = vst.msk [vmem:[%s250 + $0xc8] sm:$0xff] %vm4101, %v4094
      %4128 = vst.msk [vmem:[%s250 + $0xd0] sm:$0xff] %vm4101, %v4095
      %4129 = vst.msk [vmem:[%s250 + $0xd8] sm:$0xff] %vm4101, %v4096
      %4130 = vst.msk [vmem:[%s250 + $0xe0] sm:$0xff] %vm4101, %v4097
      %4131 = vst.msk [vmem:[%s250 + $0xe8] sm:$0xff] %vm4101, %v4098
      %4132 = vst.msk [vmem:[%s250 + $0xf0] sm:$0xff] %vm4101, %v4099
      %4133 = vst.msk [vmem:[%s250 + $0xf8] sm:$0xff] %vm4101, %v4100
      %v4134 = vld [vmem:[#allocation4 + $0x8] sm:$0xff]
      %v4135 = vld [vmem:[#allocation4 + $0x10] sm:$0xff]
      %v4136 = vld [vmem:[#allocation4 + $0x20] sm:$0xff]
      %v4137 = vld [vmem:[#allocation4 + $0x28] sm:$0xff]
      %v4138 = vld [vmem:[#allocation4 + $0x38] sm:$0xff]
      %v4139 = vld [vmem:[#allocation4 + $0x40] sm:$0xff]
      %v4140 = vld [vmem:[#allocation4 + $0x50] sm:$0xff]
      %v4141 = vld [vmem:[#allocation4 + $0x58] sm:$0xff]
      %v4142 = vld [vmem:[#allocation4 + $0x68] sm:$0xff]
      %v4143 = vld [vmem:[#allocation4 + $0x70] sm:$0xff]
      %v4144 = vld [vmem:[#allocation4 + $0x80] sm:$0xff]
      %v4145 = vld [vmem:[#allocation4 + $0x88] sm:$0xff]
      %v4146 = vld [vmem:[#allocation4 + $0x98] sm:$0xff]
      %v4147 = vld [vmem:[#allocation4 + $0xa0] sm:$0xff]
      %v4148 = vld [vmem:[#allocation4 + $0xb0] sm:$0xff]
      %v4149 = vld [vmem:[#allocation4 + $0xb8] sm:$0xff]
      %v4150 = vld [vmem:[#allocation4 + $0xc8] sm:$0xff]
      %v4151 = vld [vmem:[#allocation4 + $0xd0] sm:$0xff]
      %v4152 = vld [vmem:[#allocation4 + $0xe0] sm:$0xff]
      %v4153 = vld [vmem:[#allocation4 + $0xe8] sm:$0xff]
      %v4154 = vld [vmem:[#allocation4 + $0xf8] sm:$0xff]
      %v4155 = vld [vmem:[#allocation4 + $0x100] sm:$0xff]
      %v4156 = vld [vmem:[#allocation4 + $0x110] sm:$0xff]
      %v4157 = vld [vmem:[#allocation4 + $0x118] sm:$0xff]
      %v4158 = vld [vmem:[#allocation4 + $0x128] sm:$0xff]
      %v4159 = vld [vmem:[#allocation4 + $0x130] sm:$0xff]
      %v4160 = vld [vmem:[#allocation4 + $0x140] sm:$0xff]
      %v4161 = vld [vmem:[#allocation4 + $0x148] sm:$0xff]
      %v4162 = vld [vmem:[#allocation4 + $0x158] sm:$0xff]
      %v4163 = vld [vmem:[#allocation4 + $0x160] sm:$0xff]
      %v4164 = vld [vmem:[#allocation4 + $0x170] sm:$0xff]
      %v4165 = vld [vmem:[#allocation4 + $0x178] sm:$0xff]
      %s4166 = scalar_lea.vmem %s2, 256
      %v4167 = vld [vmem:[%s4166] sm:$0xf]
      %v4168 = vld [vmem:[%s4166 + $0x4] sm:$0xf]
      %v4169 = vld [vmem:[%s4166 + $0x8] sm:$0xf]
      %v4170 = vld [vmem:[%s4166 + $0xc] sm:$0xf]
      %v4171 = vld [vmem:[%s4166 + $0x10] sm:$0xf]
      %v4172 = vld [vmem:[%s4166 + $0x14] sm:$0xf]
      %v4173 = vld [vmem:[%s4166 + $0x18] sm:$0xf]
      %v4174 = vld [vmem:[%s4166 + $0x1c] sm:$0xf]
      %v4175 = vld [vmem:[%s4166 + $0x20] sm:$0xf]
      %v4176 = vld [vmem:[%s4166 + $0x24] sm:$0xf]
      %v4177 = vld [vmem:[%s4166 + $0x28] sm:$0xf]
      %v4178 = vld [vmem:[%s4166 + $0x2c] sm:$0xf]
      %v4179 = vld [vmem:[%s4166 + $0x30] sm:$0xf]
      %v4180 = vld [vmem:[%s4166 + $0x34] sm:$0xf]
      %v4181 = vld [vmem:[%s4166 + $0x38] sm:$0xf]
      %v4182 = vld [vmem:[%s4166 + $0x3c] sm:$0xf]
      %v4183 = vld [vmem:[%s4166 + $0x40] sm:$0xf]
      %v4184 = vld [vmem:[%s4166 + $0x44] sm:$0xf]
      %v4185 = vld [vmem:[%s4166 + $0x48] sm:$0xf]
      %v4186 = vld [vmem:[%s4166 + $0x4c] sm:$0xf]
      %v4187 = vld [vmem:[%s4166 + $0x50] sm:$0xf]
      %v4188 = vld [vmem:[%s4166 + $0x54] sm:$0xf]
      %v4189 = vld [vmem:[%s4166 + $0x58] sm:$0xf]
      %v4190 = vld [vmem:[%s4166 + $0x5c] sm:$0xf]
      %v4191 = vld [vmem:[%s4166 + $0x60] sm:$0xf]
      %v4192 = vld [vmem:[%s4166 + $0x64] sm:$0xf]
      %v4193 = vld [vmem:[%s4166 + $0x68] sm:$0xf]
      %v4194 = vld [vmem:[%s4166 + $0x6c] sm:$0xf]
      %v4195 = vld [vmem:[%s4166 + $0x70] sm:$0xf]
      %v4196 = vld [vmem:[%s4166 + $0x74] sm:$0xf]
      %v4197 = vld [vmem:[%s4166 + $0x78] sm:$0xf]
      %v4198 = vld [vmem:[%s4166 + $0x7c] sm:$0xf]
      %v4231 = vunpack.c.l.b16 %v4167
      %v4232 = vunpack.c.l.b16 %v4168
      %v4233 = vunpack.c.l.b16 %v4169
      %v4234 = vunpack.c.l.b16 %v4170
      %v4235 = vunpack.c.l.b16 %v4171
      %v4236 = vunpack.c.l.b16 %v4172
      %v4237 = vunpack.c.l.b16 %v4173
      %v4238 = vunpack.c.l.b16 %v4174
      %v4239 = vunpack.c.l.b16 %v4175
      %v4240 = vunpack.c.l.b16 %v4176
      %v4241 = vunpack.c.l.b16 %v4177
      %v4242 = vunpack.c.l.b16 %v4178
      %v4243 = vunpack.c.l.b16 %v4179
      %v4244 = vunpack.c.l.b16 %v4180
      %v4245 = vunpack.c.l.b16 %v4181
      %v4246 = vunpack.c.l.b16 %v4182
      %v4247 = vunpack.c.l.b16 %v4183
      %v4248 = vunpack.c.l.b16 %v4184
      %v4249 = vunpack.c.l.b16 %v4185
      %v4250 = vunpack.c.l.b16 %v4186
      %v4251 = vunpack.c.l.b16 %v4187
      %v4252 = vunpack.c.l.b16 %v4188
      %v4253 = vunpack.c.l.b16 %v4189
      %v4254 = vunpack.c.l.b16 %v4190
      %v4255 = vunpack.c.l.b16 %v4191
      %v4256 = vunpack.c.l.b16 %v4192
      %v4257 = vunpack.c.l.b16 %v4193
      %v4258 = vunpack.c.l.b16 %v4194
      %v4259 = vunpack.c.l.b16 %v4195
      %v4260 = vunpack.c.l.b16 %v4196
      %v4261 = vunpack.c.l.b16 %v4197
      %v4262 = vunpack.c.l.b16 %v4198
      %v4263 = vpack.c.b16 %v4232, %v4231
      %v4264 = vpack.c.b16 %v4234, %v4233
      %v4265 = vpack.c.b16 %v4236, %v4235
      %v4266 = vpack.c.b16 %v4238, %v4237
      %v4267 = vpack.c.b16 %v4240, %v4239
      %v4268 = vpack.c.b16 %v4242, %v4241
      %v4269 = vpack.c.b16 %v4244, %v4243
      %v4270 = vpack.c.b16 %v4246, %v4245
      %v4271 = vpack.c.b16 %v4248, %v4247
      %v4272 = vpack.c.b16 %v4250, %v4249
      %v4273 = vpack.c.b16 %v4252, %v4251
      %v4274 = vpack.c.b16 %v4254, %v4253
      %v4275 = vpack.c.b16 %v4256, %v4255
      %v4276 = vpack.c.b16 %v4258, %v4257
      %v4277 = vpack.c.b16 %v4260, %v4259
      %v4278 = vpack.c.b16 %v4262, %v4261
      %4295 = vmatprep.subr.bf16.mxu0 0
      %4296 = vmatpush1.bf16.msra.mxu0 %v4263
      %4297 = vmatprep.subr.bf16.mxu0 0
      %4298 = vmatpush1.bf16.msra.mxu0 %v4264
      %4299 = vmatprep.subr.bf16.mxu0 0
      %4300 = vmatpush1.bf16.msra.mxu0 %v4265
      %4301 = vmatprep.subr.bf16.mxu0 0
      %4302 = vmatpush1.bf16.msra.mxu0 %v4266
      %4303 = vmatprep.subr.bf16.mxu0 0
      %4304 = vmatpush1.bf16.msra.mxu0 %v4267
      %4305 = vmatprep.subr.bf16.mxu0 0
      %4306 = vmatpush1.bf16.msra.mxu0 %v4268
      %4307 = vmatprep.subr.bf16.mxu0 0
      %4308 = vmatpush1.bf16.msra.mxu0 %v4269
      %4309 = vmatprep.subr.bf16.mxu0 0
      %4310 = vmatpush1.bf16.msra.mxu0 %v4270
      %4311 = vmatprep.subr.bf16.mxu0 0
      %4312 = vmatpush1.bf16.msra.mxu0 %v4271
      %4313 = vmatprep.subr.bf16.mxu0 0
      %4314 = vmatpush1.bf16.msra.mxu0 %v4272
      %4315 = vmatprep.subr.bf16.mxu0 0
      %4316 = vmatpush1.bf16.msra.mxu0 %v4273
      %4317 = vmatprep.subr.bf16.mxu0 0
      %4318 = vmatpush1.bf16.msra.mxu0 %v4274
      %4319 = vmatprep.subr.bf16.mxu0 0
      %4320 = vmatpush1.bf16.msra.mxu0 %v4275
      %4321 = vmatprep.subr.bf16.mxu0 0
      %4322 = vmatpush1.bf16.msra.mxu0 %v4276
      %4323 = vmatprep.subr.bf16.mxu0 0
      %4324 = vmatpush1.bf16.msra.mxu0 %v4277
      %4325 = vmatprep.subr.bf16.mxu0 0
      %4326 = vmatpush1.bf16.msra.mxu0 %v4278
      %4327 = vmatprep.mubr.bf16.mxu0 %v4135
      %4328 = vmatmul.mubr.bf16.gmra.mrb[0].mxu0 %v4134
      %v4329 = vpop.f32.mrb[0].mxu0
      %v4330 = vadd.f32 0.0, %v4329
      %v4331 = vpop.f32.mrb[0].mxu0
      %v4332 = vpop.f32.mrb[0].mxu0
      %v4333 = vadd.f32 0.0, %v4332
      %v4334 = vpop.f32.mrb[0].mxu0
      %4335 = vmatprep.mubr.bf16.mxu0 %v4137
      %4336 = vmatmul.mubr.bf16.gmra.mrb[0].mxu0 %v4136
      %v4337 = vpop.f32.mrb[0].mxu0
      %v4338 = vadd.f32 0.0, %v4337
      %v4339 = vpop.f32.mrb[0].mxu0
      %v4340 = vpop.f32.mrb[0].mxu0
      %v4341 = vadd.f32 0.0, %v4340
      %v4342 = vpop.f32.mrb[0].mxu0
      %4343 = vmatprep.mubr.bf16.mxu0 %v4139
      %4344 = vmatmul.mubr.bf16.gmra.mrb[0].mxu0 %v4138
      %v4345 = vpop.f32.mrb[0].mxu0
      %v4346 = vadd.f32 0.0, %v4345
      %v4347 = vpop.f32.mrb[0].mxu0
      %v4348 = vpop.f32.mrb[0].mxu0
      %v4349 = vadd.f32 0.0, %v4348
      %v4350 = vpop.f32.mrb[0].mxu0
      %4351 = vmatprep.mubr.bf16.mxu0 %v4141
      %4352 = vmatmul.mubr.bf16.gmra.mrb[0].mxu0 %v4140
      %v4353 = vpop.f32.mrb[0].mxu0
      %v4354 = vadd.f32 0.0, %v4353
      %v4355 = vpop.f32.mrb[0].mxu0
      %v4356 = vpop.f32.mrb[0].mxu0
      %v4357 = vadd.f32 0.0, %v4356
      %v4358 = vpop.f32.mrb[0].mxu0
      %4359 = vmatprep.mubr.bf16.mxu0 %v4143
      %4360 = vmatmul.mubr.bf16.gmra.mrb[0].mxu0 %v4142
      %v4361 = vpop.f32.mrb[0].mxu0
      %v4362 = vadd.f32 0.0, %v4361
      %v4363 = vpop.f32.mrb[0].mxu0
      %v4364 = vpop.f32.mrb[0].mxu0
      %v4365 = vadd.f32 0.0, %v4364
      %v4366 = vpop.f32.mrb[0].mxu0
      %4367 = vmatprep.mubr.bf16.mxu0 %v4145
      %4368 = vmatmul.mubr.bf16.gmra.mrb[0].mxu0 %v4144
      %v4369 = vpop.f32.mrb[0].mxu0
      %v4370 = vadd.f32 0.0, %v4369
      %v4371 = vpop.f32.mrb[0].mxu0
      %v4372 = vpop.f32.mrb[0].mxu0
      %v4373 = vadd.f32 0.0, %v4372
      %v4374 = vpop.f32.mrb[0].mxu0
      %4375 = vmatprep.mubr.bf16.mxu0 %v4147
      %4376 = vmatmul.mubr.bf16.gmra.mrb[0].mxu0 %v4146
      %v4377 = vpop.f32.mrb[0].mxu0
      %v4378 = vadd.f32 0.0, %v4377
      %v4379 = vpop.f32.mrb[0].mxu0
      %v4380 = vpop.f32.mrb[0].mxu0
      %v4381 = vadd.f32 0.0, %v4380
      %v4382 = vpop.f32.mrb[0].mxu0
      %4383 = vmatprep.mubr.bf16.mxu0 %v4149
      %4384 = vmatmul.mubr.bf16.gmra.mrb[0].mxu0 %v4148
      %v4385 = vpop.f32.mrb[0].mxu0
      %v4386 = vadd.f32 0.0, %v4385
      %v4387 = vpop.f32.mrb[0].mxu0
      %v4388 = vpop.f32.mrb[0].mxu0
      %v4389 = vadd.f32 0.0, %v4388
      %v4390 = vpop.f32.mrb[0].mxu0
      %4391 = vmatprep.mubr.bf16.mxu0 %v4151
      %4392 = vmatmul.mubr.bf16.gmra.mrb[0].mxu0 %v4150
      %v4393 = vpop.f32.mrb[0].mxu0
      %v4394 = vadd.f32 0.0, %v4393
      %v4395 = vpop.f32.mrb[0].mxu0
      %v4396 = vpop.f32.mrb[0].mxu0
      %v4397 = vadd.f32 0.0, %v4396
      %v4398 = vpop.f32.mrb[0].mxu0
      %4399 = vmatprep.mubr.bf16.mxu0 %v4153
      %4400 = vmatmul.mubr.bf16.gmra.mrb[0].mxu0 %v4152
      %v4401 = vpop.f32.mrb[0].mxu0
      %v4402 = vadd.f32 0.0, %v4401
      %v4403 = vpop.f32.mrb[0].mxu0
      %v4404 = vpop.f32.mrb[0].mxu0
      %v4405 = vadd.f32 0.0, %v4404
      %v4406 = vpop.f32.mrb[0].mxu0
      %4407 = vmatprep.mubr.bf16.mxu0 %v4155
      %4408 = vmatmul.mubr.bf16.gmra.mrb[0].mxu0 %v4154
      %v4409 = vpop.f32.mrb[0].mxu0
      %v4410 = vadd.f32 0.0, %v4409
      %v4411 = vpop.f32.mrb[0].mxu0
      %v4412 = vpop.f32.mrb[0].mxu0
      %v4413 = vadd.f32 0.0, %v4412
      %v4414 = vpop.f32.mrb[0].mxu0
      %4415 = vmatprep.mubr.bf16.mxu0 %v4157
      %4416 = vmatmul.mubr.bf16.gmra.mrb[0].mxu0 %v4156
      %v4417 = vpop.f32.mrb[0].mxu0
      %v4418 = vadd.f32 0.0, %v4417
      %v4419 = vpop.f32.mrb[0].mxu0
      %v4420 = vpop.f32.mrb[0].mxu0
      %v4421 = vadd.f32 0.0, %v4420
      %v4422 = vpop.f32.mrb[0].mxu0
      %4423 = vmatprep.mubr.bf16.mxu0 %v4159
      %4424 = vmatmul.mubr.bf16.gmra.mrb[0].mxu0 %v4158
      %v4425 = vpop.f32.mrb[0].mxu0
      %v4426 = vadd.f32 0.0, %v4425
      %v4427 = vpop.f32.mrb[0].mxu0
      %v4428 = vpop.f32.mrb[0].mxu0
      %v4429 = vadd.f32 0.0, %v4428
      %v4430 = vpop.f32.mrb[0].mxu0
      %4431 = vmatprep.mubr.bf16.mxu0 %v4161
      %4432 = vmatmul.mubr.bf16.gmra.mrb[0].mxu0 %v4160
      %v4433 = vpop.f32.mrb[0].mxu0
      %v4434 = vadd.f32 0.0, %v4433
      %v4435 = vpop.f32.mrb[0].mxu0
      %v4436 = vpop.f32.mrb[0].mxu0
      %v4437 = vadd.f32 0.0, %v4436
      %v4438 = vpop.f32.mrb[0].mxu0
      %4439 = vmatprep.mubr.bf16.mxu0 %v4163
      %4440 = vmatmul.mubr.bf16.gmra.mrb[0].mxu0 %v4162
      %v4441 = vpop.f32.mrb[0].mxu0
      %v4442 = vadd.f32 0.0, %v4441
      %v4443 = vpop.f32.mrb[0].mxu0
      %v4444 = vpop.f32.mrb[0].mxu0
      %v4445 = vadd.f32 0.0, %v4444
      %v4446 = vpop.f32.mrb[0].mxu0
      %4447 = vmatprep.mubr.bf16.mxu0 %v4165
      %4448 = vmatmul.mubr.bf16.gmra.mrb[0].mxu0 %v4164
      %v4449 = vpop.f32.mrb[0].mxu0
      %v4450 = vadd.f32 0.0, %v4449
      %v4451 = vpop.f32.mrb[0].mxu0
      %v4452 = vpop.f32.mrb[0].mxu0
      %v4453 = vadd.f32 0.0, %v4452
      %v4454 = vpop.f32.mrb[0].mxu0
      %4455 = vdwg.mxu0
      %4456 = vst [vmem:[#allocation5] sm:$0xff] %v4330
      %4457 = vst [vmem:[#allocation5 + $0x8] sm:$0xff] %v4333
      %4458 = vst [vmem:[#allocation5 + $0x10] sm:$0xff] %v4338
      %4459 = vst [vmem:[#allocation5 + $0x18] sm:$0xff] %v4341
      %4460 = vst [vmem:[#allocation5 + $0x20] sm:$0xff] %v4346
      %4461 = vst [vmem:[#allocation5 + $0x28] sm:$0xff] %v4349
      %4462 = vst [vmem:[#allocation5 + $0x30] sm:$0xff] %v4354
      %4463 = vst [vmem:[#allocation5 + $0x38] sm:$0xff] %v4357
      %4464 = vst [vmem:[#allocation5 + $0x40] sm:$0xff] %v4362
      %4465 = vst [vmem:[#allocation5 + $0x48] sm:$0xff] %v4365
      %4466 = vst [vmem:[#allocation5 + $0x50] sm:$0xff] %v4370
      %4467 = vst [vmem:[#allocation5 + $0x58] sm:$0xff] %v4373
      %4468 = vst [vmem:[#allocation5 + $0x60] sm:$0xff] %v4378
      %4469 = vst [vmem:[#allocation5 + $0x68] sm:$0xff] %v4381
      %4470 = vst [vmem:[#allocation5 + $0x70] sm:$0xff] %v4386
      %4471 = vst [vmem:[#allocation5 + $0x78] sm:$0xff] %v4389
      %4472 = vst [vmem:[#allocation5 + $0x80] sm:$0xff] %v4394
      %4473 = vst [vmem:[#allocation5 + $0x88] sm:$0xff] %v4397
      %4474 = vst [vmem:[#allocation5 + $0x90] sm:$0xff] %v4402
      %4475 = vst [vmem:[#allocation5 + $0x98] sm:$0xff] %v4405
      %4476 = vst [vmem:[#allocation5 + $0xa0] sm:$0xff] %v4410
      %4477 = vst [vmem:[#allocation5 + $0xa8] sm:$0xff] %v4413
      %4478 = vst [vmem:[#allocation5 + $0xb0] sm:$0xff] %v4418
      %4479 = vst [vmem:[#allocation5 + $0xb8] sm:$0xff] %v4421
      %4480 = vst [vmem:[#allocation5 + $0xc0] sm:$0xff] %v4426
      %4481 = vst [vmem:[#allocation5 + $0xc8] sm:$0xff] %v4429
      %4482 = vst [vmem:[#allocation5 + $0xd0] sm:$0xff] %v4434
      %4483 = vst [vmem:[#allocation5 + $0xd8] sm:$0xff] %v4437
      %4484 = vst [vmem:[#allocation5 + $0xe0] sm:$0xff] %v4442
      %4485 = vst [vmem:[#allocation5 + $0xe8] sm:$0xff] %v4445
      %4486 = vst [vmem:[#allocation5 + $0xf0] sm:$0xff] %v4450
      %4487 = vst [vmem:[#allocation5 + $0xf8] sm:$0xff] %v4453
      %v4488 = vld [vmem:[%s3548 + $0x8] sm:$0xff]
      %v4489 = vld [vmem:[%s3548 + $0x10] sm:$0xff]
      %v4490 = vld [vmem:[%s3548 + $0x20] sm:$0xff]
      %v4491 = vld [vmem:[%s3548 + $0x28] sm:$0xff]
      %v4492 = vld [vmem:[%s3548 + $0x38] sm:$0xff]
      %v4493 = vld [vmem:[%s3548 + $0x40] sm:$0xff]
      %v4494 = vld [vmem:[%s3548 + $0x50] sm:$0xff]
      %v4495 = vld [vmem:[%s3548 + $0x58] sm:$0xff]
      %v4496 = vld [vmem:[%s3548 + $0x68] sm:$0xff]
      %v4497 = vld [vmem:[%s3548 + $0x70] sm:$0xff]
      %v4498 = vld [vmem:[%s3548 + $0x80] sm:$0xff]
      %v4499 = vld [vmem:[%s3548 + $0x88] sm:$0xff]
      %v4500 = vld [vmem:[%s3548 + $0x98] sm:$0xff]
      %v4501 = vld [vmem:[%s3548 + $0xa0] sm:$0xff]
      %v4502 = vld [vmem:[%s3548 + $0xb0] sm:$0xff]
      %v4503 = vld [vmem:[%s3548 + $0xb8] sm:$0xff]
      %v4504 = vld [vmem:[%s3548 + $0xc8] sm:$0xff]
      %v4505 = vld [vmem:[%s3548 + $0xd0] sm:$0xff]
      %v4506 = vld [vmem:[%s3548 + $0xe0] sm:$0xff]
      %v4507 = vld [vmem:[%s3548 + $0xe8] sm:$0xff]
      %v4508 = vld [vmem:[%s3548 + $0xf8] sm:$0xff]
      %v4509 = vld [vmem:[%s3548 + $0x100] sm:$0xff]
      %v4510 = vld [vmem:[%s3548 + $0x110] sm:$0xff]
      %v4511 = vld [vmem:[%s3548 + $0x118] sm:$0xff]
      %v4512 = vld [vmem:[%s3548 + $0x128] sm:$0xff]
      %v4513 = vld [vmem:[%s3548 + $0x130] sm:$0xff]
      %v4514 = vld [vmem:[%s3548 + $0x140] sm:$0xff]
      %v4515 = vld [vmem:[%s3548 + $0x148] sm:$0xff]
      %v4516 = vld [vmem:[%s3548 + $0x158] sm:$0xff]
      %v4517 = vld [vmem:[%s3548 + $0x160] sm:$0xff]
      %v4518 = vld [vmem:[%s3548 + $0x170] sm:$0xff]
      %v4519 = vld [vmem:[%s3548 + $0x178] sm:$0xff]
      %s4520 = scalar_lea.vmem %s2, 384
      %v4521 = vld [vmem:[%s4520] sm:$0xf]
      %v4522 = vld [vmem:[%s4520 + $0x4] sm:$0xf]
      %v4523 = vld [vmem:[%s4520 + $0x8] sm:$0xf]
      %v4524 = vld [vmem:[%s4520 + $0xc] sm:$0xf]
      %v4525 = vld [vmem:[%s4520 + $0x10] sm:$0xf]
      %v4526 = vld [vmem:[%s4520 + $0x14] sm:$0xf]
      %v4527 = vld [vmem:[%s4520 + $0x18] sm:$0xf]
      %v4528 = vld [vmem:[%s4520 + $0x1c] sm:$0xf]
      %v4529 = vld [vmem:[%s4520 + $0x20] sm:$0xf]
      %v4530 = vld [vmem:[%s4520 + $0x24] sm:$0xf]
      %v4531 = vld [vmem:[%s4520 + $0x28] sm:$0xf]
      %v4532 = vld [vmem:[%s4520 + $0x2c] sm:$0xf]
      %v4533 = vld [vmem:[%s4520 + $0x30] sm:$0xf]
      %v4534 = vld [vmem:[%s4520 + $0x34] sm:$0xf]
      %v4535 = vld [vmem:[%s4520 + $0x38] sm:$0xf]
      %v4536 = vld [vmem:[%s4520 + $0x3c] sm:$0xf]
      %v4537 = vld [vmem:[%s4520 + $0x40] sm:$0xf]
      %v4538 = vld [vmem:[%s4520 + $0x44] sm:$0xf]
      %v4539 = vld [vmem:[%s4520 + $0x48] sm:$0xf]
      %v4540 = vld [vmem:[%s4520 + $0x4c] sm:$0xf]
      %v4541 = vld [vmem:[%s4520 + $0x50] sm:$0xf]
      %v4542 = vld [vmem:[%s4520 + $0x54] sm:$0xf]
      %v4543 = vld [vmem:[%s4520 + $0x58] sm:$0xf]
      %v4544 = vld [vmem:[%s4520 + $0x5c] sm:$0xf]
      %v4545 = vld [vmem:[%s4520 + $0x60] sm:$0xf]
      %v4546 = vld [vmem:[%s4520 + $0x64] sm:$0xf]
      %v4547 = vld [vmem:[%s4520 + $0x68] sm:$0xf]
      %v4548 = vld [vmem:[%s4520 + $0x6c] sm:$0xf]
      %v4549 = vld [vmem:[%s4520 + $0x70] sm:$0xf]
      %v4550 = vld [vmem:[%s4520 + $0x74] sm:$0xf]
      %v4551 = vld [vmem:[%s4520 + $0x78] sm:$0xf]
      %v4552 = vld [vmem:[%s4520 + $0x7c] sm:$0xf]
      %v4585 = vunpack.c.l.b16 %v4521
      %v4586 = vunpack.c.l.b16 %v4522
      %v4587 = vunpack.c.l.b16 %v4523
      %v4588 = vunpack.c.l.b16 %v4524
      %v4589 = vunpack.c.l.b16 %v4525
      %v4590 = vunpack.c.l.b16 %v4526
      %v4591 = vunpack.c.l.b16 %v4527
      %v4592 = vunpack.c.l.b16 %v4528
      %v4593 = vunpack.c.l.b16 %v4529
      %v4594 = vunpack.c.l.b16 %v4530
      %v4595 = vunpack.c.l.b16 %v4531
      %v4596 = vunpack.c.l.b16 %v4532
      %v4597 = vunpack.c.l.b16 %v4533
      %v4598 = vunpack.c.l.b16 %v4534
      %v4599 = vunpack.c.l.b16 %v4535
      %v4600 = vunpack.c.l.b16 %v4536
      %v4601 = vunpack.c.l.b16 %v4537
      %v4602 = vunpack.c.l.b16 %v4538
      %v4603 = vunpack.c.l.b16 %v4539
      %v4604 = vunpack.c.l.b16 %v4540
      %v4605 = vunpack.c.l.b16 %v4541
      %v4606 = vunpack.c.l.b16 %v4542
      %v4607 = vunpack.c.l.b16 %v4543
      %v4608 = vunpack.c.l.b16 %v4544
      %v4609 = vunpack.c.l.b16 %v4545
      %v4610 = vunpack.c.l.b16 %v4546
      %v4611 = vunpack.c.l.b16 %v4547
      %v4612 = vunpack.c.l.b16 %v4548
      %v4613 = vunpack.c.l.b16 %v4549
      %v4614 = vunpack.c.l.b16 %v4550
      %v4615 = vunpack.c.l.b16 %v4551
      %v4616 = vunpack.c.l.b16 %v4552
      %v4617 = vpack.c.b16 %v4586, %v4585
      %v4618 = vpack.c.b16 %v4588, %v4587
      %v4619 = vpack.c.b16 %v4590, %v4589
      %v4620 = vpack.c.b16 %v4592, %v4591
      %v4621 = vpack.c.b16 %v4594, %v4593
      %v4622 = vpack.c.b16 %v4596, %v4595
      %v4623 = vpack.c.b16 %v4598, %v4597
      %v4624 = vpack.c.b16 %v4600, %v4599
      %v4625 = vpack.c.b16 %v4602, %v4601
      %v4626 = vpack.c.b16 %v4604, %v4603
      %v4627 = vpack.c.b16 %v4606, %v4605
      %v4628 = vpack.c.b16 %v4608, %v4607
      %v4629 = vpack.c.b16 %v4610, %v4609
      %v4630 = vpack.c.b16 %v4612, %v4611
      %v4631 = vpack.c.b16 %v4614, %v4613
      %v4632 = vpack.c.b16 %v4616, %v4615
      %4649 = vmatprep.subr.bf16.mxu0 0
      %4650 = vmatpush1.bf16.msra.mxu0 %v4617
      %4651 = vmatprep.subr.bf16.mxu0 0
      %4652 = vmatpush1.bf16.msra.mxu0 %v4618
      %4653 = vmatprep.subr.bf16.mxu0 0
      %4654 = vmatpush1.bf16.msra.mxu0 %v4619
      %4655 = vmatprep.subr.bf16.mxu0 0
      %4656 = vmatpush1.bf16.msra.mxu0 %v4620
      %4657 = vmatprep.subr.bf16.mxu0 0
      %4658 = vmatpush1.bf16.msra.mxu0 %v4621
      %4659 = vmatprep.subr.bf16.mxu0 0
      %4660 = vmatpush1.bf16.msra.mxu0 %v4622
      %4661 = vmatprep.subr.bf16.mxu0 0
      %4662 = vmatpush1.bf16.msra.mxu0 %v4623
      %4663 = vmatprep.subr.bf16.mxu0 0
      %4664 = vmatpush1.bf16.msra.mxu0 %v4624
      %4665 = vmatprep.subr.bf16.mxu0 0
      %4666 = vmatpush1.bf16.msra.mxu0 %v4625
      %4667 = vmatprep.subr.bf16.mxu0 0
      %4668 = vmatpush1.bf16.msra.mxu0 %v4626
      %4669 = vmatprep.subr.bf16.mxu0 0
      %4670 = vmatpush1.bf16.msra.mxu0 %v4627
      %4671 = vmatprep.subr.bf16.mxu0 0
      %4672 = vmatpush1.bf16.msra.mxu0 %v4628
      %4673 = vmatprep.subr.bf16.mxu0 0
      %4674 = vmatpush1.bf16.msra.mxu0 %v4629
      %4675 = vmatprep.subr.bf16.mxu0 0
      %4676 = vmatpush1.bf16.msra.mxu0 %v4630
      %4677 = vmatprep.subr.bf16.mxu0 0
      %4678 = vmatpush1.bf16.msra.mxu0 %v4631
      %4679 = vmatprep.subr.bf16.mxu0 0
      %4680 = vmatpush1.bf16.msra.mxu0 %v4632
      %4681 = vmatprep.mubr.bf16.mxu0 %v4489
      %4682 = vmatmul.mubr.bf16.gmra.mrb[0].mxu0 %v4488
      %v4683 = vpop.f32.mrb[0].mxu0
      %v4684 = vadd.f32 0.0, %v4683
      %v4685 = vpop.f32.mrb[0].mxu0
      %v4686 = vpop.f32.mrb[0].mxu0
      %v4687 = vadd.f32 0.0, %v4686
      %v4688 = vpop.f32.mrb[0].mxu0
      %4689 = vmatprep.mubr.bf16.mxu0 %v4491
      %4690 = vmatmul.mubr.bf16.gmra.mrb[0].mxu0 %v4490
      %v4691 = vpop.f32.mrb[0].mxu0
      %v4692 = vadd.f32 0.0, %v4691
      %v4693 = vpop.f32.mrb[0].mxu0
      %v4694 = vpop.f32.mrb[0].mxu0
      %v4695 = vadd.f32 0.0, %v4694
      %v4696 = vpop.f32.mrb[0].mxu0
      %4697 = vmatprep.mubr.bf16.mxu0 %v4493
      %4698 = vmatmul.mubr.bf16.gmra.mrb[0].mxu0 %v4492
      %v4699 = vpop.f32.mrb[0].mxu0
      %v4700 = vadd.f32 0.0, %v4699
      %v4701 = vpop.f32.mrb[0].mxu0
      %v4702 = vpop.f32.mrb[0].mxu0
      %v4703 = vadd.f32 0.0, %v4702
      %v4704 = vpop.f32.mrb[0].mxu0
      %4705 = vmatprep.mubr.bf16.mxu0 %v4495
      %4706 = vmatmul.mubr.bf16.gmra.mrb[0].mxu0 %v4494
      %v4707 = vpop.f32.mrb[0].mxu0
      %v4708 = vadd.f32 0.0, %v4707
      %v4709 = vpop.f32.mrb[0].mxu0
      %v4710 = vpop.f32.mrb[0].mxu0
      %v4711 = vadd.f32 0.0, %v4710
      %v4712 = vpop.f32.mrb[0].mxu0
      %4713 = vmatprep.mubr.bf16.mxu0 %v4497
      %4714 = vmatmul.mubr.bf16.gmra.mrb[0].mxu0 %v4496
      %v4715 = vpop.f32.mrb[0].mxu0
      %v4716 = vadd.f32 0.0, %v4715
      %v4717 = vpop.f32.mrb[0].mxu0
      %v4718 = vpop.f32.mrb[0].mxu0
      %v4719 = vadd.f32 0.0, %v4718
      %v4720 = vpop.f32.mrb[0].mxu0
      %4721 = vmatprep.mubr.bf16.mxu0 %v4499
      %4722 = vmatmul.mubr.bf16.gmra.mrb[0].mxu0 %v4498
      %v4723 = vpop.f32.mrb[0].mxu0
      %v4724 = vadd.f32 0.0, %v4723
      %v4725 = vpop.f32.mrb[0].mxu0
      %v4726 = vpop.f32.mrb[0].mxu0
      %v4727 = vadd.f32 0.0, %v4726
      %v4728 = vpop.f32.mrb[0].mxu0
      %4729 = vmatprep.mubr.bf16.mxu0 %v4501
      %4730 = vmatmul.mubr.bf16.gmra.mrb[0].mxu0 %v4500
      %v4731 = vpop.f32.mrb[0].mxu0
      %v4732 = vadd.f32 0.0, %v4731
      %v4733 = vpop.f32.mrb[0].mxu0
      %v4734 = vpop.f32.mrb[0].mxu0
      %v4735 = vadd.f32 0.0, %v4734
      %v4736 = vpop.f32.mrb[0].mxu0
      %4737 = vmatprep.mubr.bf16.mxu0 %v4503
      %4738 = vmatmul.mubr.bf16.gmra.mrb[0].mxu0 %v4502
      %v4739 = vpop.f32.mrb[0].mxu0
      %v4740 = vadd.f32 0.0, %v4739
      %v4741 = vpop.f32.mrb[0].mxu0
      %v4742 = vpop.f32.mrb[0].mxu0
      %v4743 = vadd.f32 0.0, %v4742
      %v4744 = vpop.f32.mrb[0].mxu0
      %4745 = vmatprep.mubr.bf16.mxu0 %v4505
      %4746 = vmatmul.mubr.bf16.gmra.mrb[0].mxu0 %v4504
      %v4747 = vpop.f32.mrb[0].mxu0
      %v4748 = vadd.f32 0.0, %v4747
      %v4749 = vpop.f32.mrb[0].mxu0
      %v4750 = vpop.f32.mrb[0].mxu0
      %v4751 = vadd.f32 0.0, %v4750
      %v4752 = vpop.f32.mrb[0].mxu0
      %4753 = vmatprep.mubr.bf16.mxu0 %v4507
      %4754 = vmatmul.mubr.bf16.gmra.mrb[0].mxu0 %v4506
      %v4755 = vpop.f32.mrb[0].mxu0
      %v4756 = vadd.f32 0.0, %v4755
      %v4757 = vpop.f32.mrb[0].mxu0
      %v4758 = vpop.f32.mrb[0].mxu0
      %v4759 = vadd.f32 0.0, %v4758
      %v4760 = vpop.f32.mrb[0].mxu0
      %4761 = vmatprep.mubr.bf16.mxu0 %v4509
      %4762 = vmatmul.mubr.bf16.gmra.mrb[0].mxu0 %v4508
      %v4763 = vpop.f32.mrb[0].mxu0
      %v4764 = vadd.f32 0.0, %v4763
      %v4765 = vpop.f32.mrb[0].mxu0
      %v4766 = vpop.f32.mrb[0].mxu0
      %v4767 = vadd.f32 0.0, %v4766
      %v4768 = vpop.f32.mrb[0].mxu0
      %4769 = vmatprep.mubr.bf16.mxu0 %v4511
      %4770 = vmatmul.mubr.bf16.gmra.mrb[0].mxu0 %v4510
      %v4771 = vpop.f32.mrb[0].mxu0
      %v4772 = vadd.f32 0.0, %v4771
      %v4773 = vpop.f32.mrb[0].mxu0
      %v4774 = vpop.f32.mrb[0].mxu0
      %v4775 = vadd.f32 0.0, %v4774
      %v4776 = vpop.f32.mrb[0].mxu0
      %4777 = vmatprep.mubr.bf16.mxu0 %v4513
      %4778 = vmatmul.mubr.bf16.gmra.mrb[0].mxu0 %v4512
      %v4779 = vpop.f32.mrb[0].mxu0
      %v4780 = vadd.f32 0.0, %v4779
      %v4781 = vpop.f32.mrb[0].mxu0
      %v4782 = vpop.f32.mrb[0].mxu0
      %v4783 = vadd.f32 0.0, %v4782
      %v4784 = vpop.f32.mrb[0].mxu0
      %4785 = vmatprep.mubr.bf16.mxu0 %v4515
      %4786 = vmatmul.mubr.bf16.gmra.mrb[0].mxu0 %v4514
      %v4787 = vpop.f32.mrb[0].mxu0
      %v4788 = vadd.f32 0.0, %v4787
      %v4789 = vpop.f32.mrb[0].mxu0
      %v4790 = vpop.f32.mrb[0].mxu0
      %v4791 = vadd.f32 0.0, %v4790
      %v4792 = vpop.f32.mrb[0].mxu0
      %4793 = vmatprep.mubr.bf16.mxu0 %v4517
      %4794 = vmatmul.mubr.bf16.gmra.mrb[0].mxu0 %v4516
      %v4795 = vpop.f32.mrb[0].mxu0
      %v4796 = vadd.f32 0.0, %v4795
      %v4797 = vpop.f32.mrb[0].mxu0
      %v4798 = vpop.f32.mrb[0].mxu0
      %v4799 = vadd.f32 0.0, %v4798
      %v4800 = vpop.f32.mrb[0].mxu0
      %4801 = vmatprep.mubr.bf16.mxu0 %v4519
      %4802 = vmatmul.mubr.bf16.gmra.mrb[0].mxu0 %v4518
      %v4803 = vpop.f32.mrb[0].mxu0
      %v4804 = vadd.f32 0.0, %v4803
      %v4805 = vpop.f32.mrb[0].mxu0
      %v4806 = vpop.f32.mrb[0].mxu0
      %v4807 = vadd.f32 0.0, %v4806
      %v4808 = vpop.f32.mrb[0].mxu0
      %4809 = vdwg.mxu0
      %v4810 = vld [vmem:[#allocation5] sm:$0xff]
      %v4811 = vld [vmem:[#allocation5 + $0x8] sm:$0xff]
      %v4812 = vld [vmem:[#allocation5 + $0x10] sm:$0xff]
      %v4813 = vld [vmem:[#allocation5 + $0x18] sm:$0xff]
      %v4814 = vld [vmem:[#allocation5 + $0x20] sm:$0xff]
      %v4815 = vld [vmem:[#allocation5 + $0x28] sm:$0xff]
      %v4816 = vld [vmem:[#allocation5 + $0x30] sm:$0xff]
      %v4817 = vld [vmem:[#allocation5 + $0x38] sm:$0xff]
      %v4818 = vld [vmem:[#allocation5 + $0x40] sm:$0xff]
      %v4819 = vld [vmem:[#allocation5 + $0x48] sm:$0xff]
      %v4820 = vld [vmem:[#allocation5 + $0x50] sm:$0xff]
      %v4821 = vld [vmem:[#allocation5 + $0x58] sm:$0xff]
      %v4822 = vld [vmem:[#allocation5 + $0x60] sm:$0xff]
      %v4823 = vld [vmem:[#allocation5 + $0x68] sm:$0xff]
      %v4824 = vld [vmem:[#allocation5 + $0x70] sm:$0xff]
      %v4825 = vld [vmem:[#allocation5 + $0x78] sm:$0xff]
      %v4826 = vld [vmem:[#allocation5 + $0x80] sm:$0xff]
      %v4827 = vld [vmem:[#allocation5 + $0x88] sm:$0xff]
      %v4828 = vld [vmem:[#allocation5 + $0x90] sm:$0xff]
      %v4829 = vld [vmem:[#allocation5 + $0x98] sm:$0xff]
      %v4830 = vld [vmem:[#allocation5 + $0xa0] sm:$0xff]
      %v4831 = vld [vmem:[#allocation5 + $0xa8] sm:$0xff]
      %v4832 = vld [vmem:[#allocation5 + $0xb0] sm:$0xff]
      %v4833 = vld [vmem:[#allocation5 + $0xb8] sm:$0xff]
      %v4834 = vld [vmem:[#allocation5 + $0xc0] sm:$0xff]
      %v4835 = vld [vmem:[#allocation5 + $0xc8] sm:$0xff]
      %v4836 = vld [vmem:[#allocation5 + $0xd0] sm:$0xff]
      %v4837 = vld [vmem:[#allocation5 + $0xd8] sm:$0xff]
      %v4838 = vld [vmem:[#allocation5 + $0xe0] sm:$0xff]
      %v4839 = vld [vmem:[#allocation5 + $0xe8] sm:$0xff]
      %v4840 = vld [vmem:[#allocation5 + $0xf0] sm:$0xff]
      %v4841 = vld [vmem:[#allocation5 + $0xf8] sm:$0xff]
      %v4842 = vadd.f32 %v4810, %v4684
      %v4843 = vadd.f32 %v4811, %v4687
      %v4844 = vadd.f32 %v4812, %v4692
      %v4845 = vadd.f32 %v4813, %v4695
      %v4846 = vadd.f32 %v4814, %v4700
      %v4847 = vadd.f32 %v4815, %v4703
      %v4848 = vadd.f32 %v4816, %v4708
      %v4849 = vadd.f32 %v4817, %v4711
      %v4850 = vadd.f32 %v4818, %v4716
      %v4851 = vadd.f32 %v4819, %v4719
      %v4852 = vadd.f32 %v4820, %v4724
      %v4853 = vadd.f32 %v4821, %v4727
      %v4854 = vadd.f32 %v4822, %v4732
      %v4855 = vadd.f32 %v4823, %v4735
      %v4856 = vadd.f32 %v4824, %v4740
      %v4857 = vadd.f32 %v4825, %v4743
      %v4858 = vadd.f32 %v4826, %v4748
      %v4859 = vadd.f32 %v4827, %v4751
      %v4860 = vadd.f32 %v4828, %v4756
      %v4861 = vadd.f32 %v4829, %v4759
      %v4862 = vadd.f32 %v4830, %v4764
      %v4863 = vadd.f32 %v4831, %v4767
      %v4864 = vadd.f32 %v4832, %v4772
      %v4865 = vadd.f32 %v4833, %v4775
      %v4866 = vadd.f32 %v4834, %v4780
      %v4867 = vadd.f32 %v4835, %v4783
      %v4868 = vadd.f32 %v4836, %v4788
      %v4869 = vadd.f32 %v4837, %v4791
      %v4870 = vadd.f32 %v4838, %v4796
      %v4871 = vadd.f32 %v4839, %v4799
      %v4872 = vadd.f32 %v4840, %v4804
      %v4873 = vadd.f32 %v4841, %v4807
      %4874 = vst [vmem:[#allocation5] sm:$0xff] %v4842
      %4875 = vst [vmem:[#allocation5 + $0x8] sm:$0xff] %v4843
      %4876 = vst [vmem:[#allocation5 + $0x10] sm:$0xff] %v4844
      %4877 = vst [vmem:[#allocation5 + $0x18] sm:$0xff] %v4845
      %4878 = vst [vmem:[#allocation5 + $0x20] sm:$0xff] %v4846
      %4879 = vst [vmem:[#allocation5 + $0x28] sm:$0xff] %v4847
      %4880 = vst [vmem:[#allocation5 + $0x30] sm:$0xff] %v4848
      %4881 = vst [vmem:[#allocation5 + $0x38] sm:$0xff] %v4849
      %4882 = vst [vmem:[#allocation5 + $0x40] sm:$0xff] %v4850
      %4883 = vst [vmem:[#allocation5 + $0x48] sm:$0xff] %v4851
      %4884 = vst [vmem:[#allocation5 + $0x50] sm:$0xff] %v4852
      %4885 = vst [vmem:[#allocation5 + $0x58] sm:$0xff] %v4853
      %4886 = vst [vmem:[#allocation5 + $0x60] sm:$0xff] %v4854
      %4887 = vst [vmem:[#allocation5 + $0x68] sm:$0xff] %v4855
      %4888 = vst [vmem:[#allocation5 + $0x70] sm:$0xff] %v4856
      %4889 = vst [vmem:[#allocation5 + $0x78] sm:$0xff] %v4857
      %4890 = vst [vmem:[#allocation5 + $0x80] sm:$0xff] %v4858
      %4891 = vst [vmem:[#allocation5 + $0x88] sm:$0xff] %v4859
      %4892 = vst [vmem:[#allocation5 + $0x90] sm:$0xff] %v4860
      %4893 = vst [vmem:[#allocation5 + $0x98] sm:$0xff] %v4861
      %4894 = vst [vmem:[#allocation5 + $0xa0] sm:$0xff] %v4862
      %4895 = vst [vmem:[#allocation5 + $0xa8] sm:$0xff] %v4863
      %4896 = vst [vmem:[#allocation5 + $0xb0] sm:$0xff] %v4864
      %4897 = vst [vmem:[#allocation5 + $0xb8] sm:$0xff] %v4865
      %4898 = vst [vmem:[#allocation5 + $0xc0] sm:$0xff] %v4866
      %4899 = vst [vmem:[#allocation5 + $0xc8] sm:$0xff] %v4867
      %4900 = vst [vmem:[#allocation5 + $0xd0] sm:$0xff] %v4868
      %4901 = vst [vmem:[#allocation5 + $0xd8] sm:$0xff] %v4869
      %4902 = vst [vmem:[#allocation5 + $0xe0] sm:$0xff] %v4870
      %4903 = vst [vmem:[#allocation5 + $0xe8] sm:$0xff] %v4871
      %4904 = vst [vmem:[#allocation5 + $0xf0] sm:$0xff] %v4872
      %4905 = vst [vmem:[#allocation5 + $0xf8] sm:$0xff] %v4873
      %v4906 = vld [vmem:[#allocation5] sm:$0xff]
      %v4907 = vld [vmem:[#allocation5 + $0x8] sm:$0xff]
      %v4908 = vld [vmem:[#allocation5 + $0x10] sm:$0xff]
      %v4909 = vld [vmem:[#allocation5 + $0x18] sm:$0xff]
      %v4910 = vld [vmem:[#allocation5 + $0x20] sm:$0xff]
      %v4911 = vld [vmem:[#allocation5 + $0x28] sm:$0xff]
      %v4912 = vld [vmem:[#allocation5 + $0x30] sm:$0xff]
      %v4913 = vld [vmem:[#allocation5 + $0x38] sm:$0xff]
      %v4914 = vld [vmem:[#allocation5 + $0x40] sm:$0xff]
      %v4915 = vld [vmem:[#allocation5 + $0x48] sm:$0xff]
      %v4916 = vld [vmem:[#allocation5 + $0x50] sm:$0xff]
      %v4917 = vld [vmem:[#allocation5 + $0x58] sm:$0xff]
      %v4918 = vld [vmem:[#allocation5 + $0x60] sm:$0xff]
      %v4919 = vld [vmem:[#allocation5 + $0x68] sm:$0xff]
      %v4920 = vld [vmem:[#allocation5 + $0x70] sm:$0xff]
      %v4921 = vld [vmem:[#allocation5 + $0x78] sm:$0xff]
      %v4922 = vld [vmem:[#allocation5 + $0x80] sm:$0xff]
      %v4923 = vld [vmem:[#allocation5 + $0x88] sm:$0xff]
      %v4924 = vld [vmem:[#allocation5 + $0x90] sm:$0xff]
      %v4925 = vld [vmem:[#allocation5 + $0x98] sm:$0xff]
      %v4926 = vld [vmem:[#allocation5 + $0xa0] sm:$0xff]
      %v4927 = vld [vmem:[#allocation5 + $0xa8] sm:$0xff]
      %v4928 = vld [vmem:[#allocation5 + $0xb0] sm:$0xff]
      %v4929 = vld [vmem:[#allocation5 + $0xb8] sm:$0xff]
      %v4930 = vld [vmem:[#allocation5 + $0xc0] sm:$0xff]
      %v4931 = vld [vmem:[#allocation5 + $0xc8] sm:$0xff]
      %v4932 = vld [vmem:[#allocation5 + $0xd0] sm:$0xff]
      %v4933 = vld [vmem:[#allocation5 + $0xd8] sm:$0xff]
      %v4934 = vld [vmem:[#allocation5 + $0xe0] sm:$0xff]
      %v4935 = vld [vmem:[#allocation5 + $0xe8] sm:$0xff]
      %v4936 = vld [vmem:[#allocation5 + $0xf0] sm:$0xff]
      %v4937 = vld [vmem:[#allocation5 + $0xf8] sm:$0xff]
      %v4938 = vadd.f32 %v4906, %v4003
      %v4939 = vadd.f32 %v4907, %v4003
      %v4940 = vadd.f32 %v4908, %v4003
      %v4941 = vadd.f32 %v4909, %v4003
      %v4942 = vadd.f32 %v4910, %v4003
      %v4943 = vadd.f32 %v4911, %v4003
      %v4944 = vadd.f32 %v4912, %v4003
      %v4945 = vadd.f32 %v4913, %v4003
      %v4946 = vadd.f32 %v4914, %v4003
      %v4947 = vadd.f32 %v4915, %v4003
      %v4948 = vadd.f32 %v4916, %v4003
      %v4949 = vadd.f32 %v4917, %v4003
      %v4950 = vadd.f32 %v4918, %v4003
      %v4951 = vadd.f32 %v4919, %v4003
      %v4952 = vadd.f32 %v4920, %v4003
      %v4953 = vadd.f32 %v4921, %v4003
      %v4954 = vadd.f32 %v4922, %v4003
      %v4955 = vadd.f32 %v4923, %v4003
      %v4956 = vadd.f32 %v4924, %v4003
      %v4957 = vadd.f32 %v4925, %v4003
      %v4958 = vadd.f32 %v4926, %v4003
      %v4959 = vadd.f32 %v4927, %v4003
      %v4960 = vadd.f32 %v4928, %v4003
      %v4961 = vadd.f32 %v4929, %v4003
      %v4962 = vadd.f32 %v4930, %v4003
      %v4963 = vadd.f32 %v4931, %v4003
      %v4964 = vadd.f32 %v4932, %v4003
      %v4965 = vadd.f32 %v4933, %v4003
      %v4966 = vadd.f32 %v4934, %v4003
      %v4967 = vadd.f32 %v4935, %v4003
      %v4968 = vadd.f32 %v4936, %v4003
      %v4969 = vadd.f32 %v4937, %v4003
      %v4970 = vmul.f32 %v4938, 0.2
      %v4971 = vmul.f32 %v4939, 0.2
      %v4972 = vmul.f32 %v4940, 0.2
      %v4973 = vmul.f32 %v4941, 0.2
      %v4974 = vmul.f32 %v4942, 0.2
      %v4975 = vmul.f32 %v4943, 0.2
      %v4976 = vmul.f32 %v4944, 0.2
      %v4977 = vmul.f32 %v4945, 0.2
      %v4978 = vmul.f32 %v4946, 0.2
      %v4979 = vmul.f32 %v4947, 0.2
      %v4980 = vmul.f32 %v4948, 0.2
      %v4981 = vmul.f32 %v4949, 0.2
      %v4982 = vmul.f32 %v4950, 0.2
      %v4983 = vmul.f32 %v4951, 0.2
      %v4984 = vmul.f32 %v4952, 0.2
      %v4985 = vmul.f32 %v4953, 0.2
      %v4986 = vmul.f32 %v4954, 0.2
      %v4987 = vmul.f32 %v4955, 0.2
      %v4988 = vmul.f32 %v4956, 0.2
      %v4989 = vmul.f32 %v4957, 0.2
      %v4990 = vmul.f32 %v4958, 0.2
      %v4991 = vmul.f32 %v4959, 0.2
      %v4992 = vmul.f32 %v4960, 0.2
      %v4993 = vmul.f32 %v4961, 0.2
      %v4994 = vmul.f32 %v4962, 0.2
      %v4995 = vmul.f32 %v4963, 0.2
      %v4996 = vmul.f32 %v4964, 0.2
      %v4997 = vmul.f32 %v4965, 0.2
      %v4998 = vmul.f32 %v4966, 0.2
      %v4999 = vmul.f32 %v4967, 0.2
      %v5000 = vmul.f32 %v4968, 0.2
      %v5001 = vmul.f32 %v4969, 0.2
      %v5002 = vmax.f32 %v4938, %v4970
      %v5003 = vmax.f32 %v4939, %v4971
      %v5004 = vmax.f32 %v4940, %v4972
      %v5005 = vmax.f32 %v4941, %v4973
      %v5006 = vmax.f32 %v4942, %v4974
      %v5007 = vmax.f32 %v4943, %v4975
      %v5008 = vmax.f32 %v4944, %v4976
      %v5009 = vmax.f32 %v4945, %v4977
      %v5010 = vmax.f32 %v4946, %v4978
      %v5011 = vmax.f32 %v4947, %v4979
      %v5012 = vmax.f32 %v4948, %v4980
      %v5013 = vmax.f32 %v4949, %v4981
      %v5014 = vmax.f32 %v4950, %v4982
      %v5015 = vmax.f32 %v4951, %v4983
      %v5016 = vmax.f32 %v4952, %v4984
      %v5017 = vmax.f32 %v4953, %v4985
      %v5018 = vmax.f32 %v4954, %v4986
      %v5019 = vmax.f32 %v4955, %v4987
      %v5020 = vmax.f32 %v4956, %v4988
      %v5021 = vmax.f32 %v4957, %v4989
      %v5022 = vmax.f32 %v4958, %v4990
      %v5023 = vmax.f32 %v4959, %v4991
      %v5024 = vmax.f32 %v4960, %v4992
      %v5025 = vmax.f32 %v4961, %v4993
      %v5026 = vmax.f32 %v4962, %v4994
      %v5027 = vmax.f32 %v4963, %v4995
      %v5028 = vmax.f32 %v4964, %v4996
      %v5029 = vmax.f32 %v4965, %v4997
      %v5030 = vmax.f32 %v4966, %v4998
      %v5031 = vmax.f32 %v4967, %v4999
      %v5032 = vmax.f32 %v4968, %v5000
      %v5033 = vmax.f32 %v4969, %v5001
      %s5034 = scalar_lea.vmem %s250, 256
      %5035 = vst.msk [vmem:[%s5034] sm:$0xff] %vm4101, %v5002
      %5036 = vst.msk [vmem:[%s5034 + $0x8] sm:$0xff] %vm4101, %v5003
      %5037 = vst.msk [vmem:[%s5034 + $0x10] sm:$0xff] %vm4101, %v5004
      %5038 = vst.msk [vmem:[%s5034 + $0x18] sm:$0xff] %vm4101, %v5005
      %5039 = vst.msk [vmem:[%s5034 + $0x20] sm:$0xff] %vm4101, %v5006
      %5040 = vst.msk [vmem:[%s5034 + $0x28] sm:$0xff] %vm4101, %v5007
      %5041 = vst.msk [vmem:[%s5034 + $0x30] sm:$0xff] %vm4101, %v5008
      %5042 = vst.msk [vmem:[%s5034 + $0x38] sm:$0xff] %vm4101, %v5009
      %5043 = vst.msk [vmem:[%s5034 + $0x40] sm:$0xff] %vm4101, %v5010
      %5044 = vst.msk [vmem:[%s5034 + $0x48] sm:$0xff] %vm4101, %v5011
      %5045 = vst.msk [vmem:[%s5034 + $0x50] sm:$0xff] %vm4101, %v5012
      %5046 = vst.msk [vmem:[%s5034 + $0x58] sm:$0xff] %vm4101, %v5013
      %5047 = vst.msk [vmem:[%s5034 + $0x60] sm:$0xff] %vm4101, %v5014
      %5048 = vst.msk [vmem:[%s5034 + $0x68] sm:$0xff] %vm4101, %v5015
      %5049 = vst.msk [vmem:[%s5034 + $0x70] sm:$0xff] %vm4101, %v5016
      %5050 = vst.msk [vmem:[%s5034 + $0x78] sm:$0xff] %vm4101, %v5017
      %5051 = vst.msk [vmem:[%s5034 + $0x80] sm:$0xff] %vm4101, %v5018
      %5052 = vst.msk [vmem:[%s5034 + $0x88] sm:$0xff] %vm4101, %v5019
      %5053 = vst.msk [vmem:[%s5034 + $0x90] sm:$0xff] %vm4101, %v5020
      %5054 = vst.msk [vmem:[%s5034 + $0x98] sm:$0xff] %vm4101, %v5021
      %5055 = vst.msk [vmem:[%s5034 + $0xa0] sm:$0xff] %vm4101, %v5022
      %5056 = vst.msk [vmem:[%s5034 + $0xa8] sm:$0xff] %vm4101, %v5023
      %5057 = vst.msk [vmem:[%s5034 + $0xb0] sm:$0xff] %vm4101, %v5024
      %5058 = vst.msk [vmem:[%s5034 + $0xb8] sm:$0xff] %vm4101, %v5025
      %5059 = vst.msk [vmem:[%s5034 + $0xc0] sm:$0xff] %vm4101, %v5026
      %5060 = vst.msk [vmem:[%s5034 + $0xc8] sm:$0xff] %vm4101, %v5027
      %5061 = vst.msk [vmem:[%s5034 + $0xd0] sm:$0xff] %vm4101, %v5028
      %5062 = vst.msk [vmem:[%s5034 + $0xd8] sm:$0xff] %vm4101, %v5029
      %5063 = vst.msk [vmem:[%s5034 + $0xe0] sm:$0xff] %vm4101, %v5030
      %5064 = vst.msk [vmem:[%s5034 + $0xe8] sm:$0xff] %vm4101, %v5031
      %5065 = vst.msk [vmem:[%s5034 + $0xf0] sm:$0xff] %vm4101, %v5032
      %5066 = vst.msk [vmem:[%s5034 + $0xf8] sm:$0xff] %vm4101, %v5033
      %v5067 = vld [vmem:[%s3548] sm:$0xff]
      %v5068 = vld [vmem:[%s3548 + $0x8] sm:$0xff]
      %v5069 = vld [vmem:[%s3548 + $0x18] sm:$0xff]
      %v5070 = vld [vmem:[%s3548 + $0x20] sm:$0xff]
      %v5071 = vld [vmem:[%s3548 + $0x30] sm:$0xff]
      %v5072 = vld [vmem:[%s3548 + $0x38] sm:$0xff]
      %v5073 = vld [vmem:[%s3548 + $0x48] sm:$0xff]
      %v5074 = vld [vmem:[%s3548 + $0x50] sm:$0xff]
      %v5075 = vld [vmem:[%s3548 + $0x60] sm:$0xff]
      %v5076 = vld [vmem:[%s3548 + $0x68] sm:$0xff]
      %v5077 = vld [vmem:[%s3548 + $0x78] sm:$0xff]
      %v5078 = vld [vmem:[%s3548 + $0x80] sm:$0xff]
      %v5079 = vld [vmem:[%s3548 + $0x90] sm:$0xff]
      %v5080 = vld [vmem:[%s3548 + $0x98] sm:$0xff]
      %v5081 = vld [vmem:[%s3548 + $0xa8] sm:$0xff]
      %v5082 = vld [vmem:[%s3548 + $0xb0] sm:$0xff]
      %v5083 = vld [vmem:[%s3548 + $0xc0] sm:$0xff]
      %v5084 = vld [vmem:[%s3548 + $0xc8] sm:$0xff]
      %v5085 = vld [vmem:[%s3548 + $0xd8] sm:$0xff]
      %v5086 = vld [vmem:[%s3548 + $0xe0] sm:$0xff]
      %v5087 = vld [vmem:[%s3548 + $0xf0] sm:$0xff]
      %v5088 = vld [vmem:[%s3548 + $0xf8] sm:$0xff]
      %v5089 = vld [vmem:[%s3548 + $0x108] sm:$0xff]
      %v5090 = vld [vmem:[%s3548 + $0x110] sm:$0xff]
      %v5091 = vld [vmem:[%s3548 + $0x120] sm:$0xff]
      %v5092 = vld [vmem:[%s3548 + $0x128] sm:$0xff]
      %v5093 = vld [vmem:[%s3548 + $0x138] sm:$0xff]
      %v5094 = vld [vmem:[%s3548 + $0x140] sm:$0xff]
      %v5095 = vld [vmem:[%s3548 + $0x150] sm:$0xff]
      %v5096 = vld [vmem:[%s3548 + $0x158] sm:$0xff]
      %v5097 = vld [vmem:[%s3548 + $0x168] sm:$0xff]
      %v5098 = vld [vmem:[%s3548 + $0x170] sm:$0xff]
      %s5099 = scalar_lea.vmem %s2, 512
      %v5100 = vld [vmem:[%s5099] sm:$0xf]
      %v5101 = vld [vmem:[%s5099 + $0x4] sm:$0xf]
      %v5102 = vld [vmem:[%s5099 + $0x8] sm:$0xf]
      %v5103 = vld [vmem:[%s5099 + $0xc] sm:$0xf]
      %v5104 = vld [vmem:[%s5099 + $0x10] sm:$0xf]
      %v5105 = vld [vmem:[%s5099 + $0x14] sm:$0xf]
      %v5106 = vld [vmem:[%s5099 + $0x18] sm:$0xf]
      %v5107 = vld [vmem:[%s5099 + $0x1c] sm:$0xf]
      %v5108 = vld [vmem:[%s5099 + $0x20] sm:$0xf]
      %v5109 = vld [vmem:[%s5099 + $0x24] sm:$0xf]
      %v5110 = vld [vmem:[%s5099 + $0x28] sm:$0xf]
      %v5111 = vld [vmem:[%s5099 + $0x2c] sm:$0xf]
      %v5112 = vld [vmem:[%s5099 + $0x30] sm:$0xf]
      %v5113 = vld [vmem:[%s5099 + $0x34] sm:$0xf]
      %v5114 = vld [vmem:[%s5099 + $0x38] sm:$0xf]
      %v5115 = vld [vmem:[%s5099 + $0x3c] sm:$0xf]
      %v5116 = vld [vmem:[%s5099 + $0x40] sm:$0xf]
      %v5117 = vld [vmem:[%s5099 + $0x44] sm:$0xf]
      %v5118 = vld [vmem:[%s5099 + $0x48] sm:$0xf]
      %v5119 = vld [vmem:[%s5099 + $0x4c] sm:$0xf]
      %v5120 = vld [vmem:[%s5099 + $0x50] sm:$0xf]
      %v5121 = vld [vmem:[%s5099 + $0x54] sm:$0xf]
      %v5122 = vld [vmem:[%s5099 + $0x58] sm:$0xf]
      %v5123 = vld [vmem:[%s5099 + $0x5c] sm:$0xf]
      %v5124 = vld [vmem:[%s5099 + $0x60] sm:$0xf]
      %v5125 = vld [vmem:[%s5099 + $0x64] sm:$0xf]
      %v5126 = vld [vmem:[%s5099 + $0x68] sm:$0xf]
      %v5127 = vld [vmem:[%s5099 + $0x6c] sm:$0xf]
      %v5128 = vld [vmem:[%s5099 + $0x70] sm:$0xf]
      %v5129 = vld [vmem:[%s5099 + $0x74] sm:$0xf]
      %v5130 = vld [vmem:[%s5099 + $0x78] sm:$0xf]
      %v5131 = vld [vmem:[%s5099 + $0x7c] sm:$0xf]
      %v5164 = vunpack.c.l.b16 %v5100
      %v5165 = vunpack.c.l.b16 %v5101
      %v5166 = vunpack.c.l.b16 %v5102
      %v5167 = vunpack.c.l.b16 %v5103
      %v5168 = vunpack.c.l.b16 %v5104
      %v5169 = vunpack.c.l.b16 %v5105
      %v5170 = vunpack.c.l.b16 %v5106
      %v5171 = vunpack.c.l.b16 %v5107
      %v5172 = vunpack.c.l.b16 %v5108
      %v5173 = vunpack.c.l.b16 %v5109
      %v5174 = vunpack.c.l.b16 %v5110
      %v5175 = vunpack.c.l.b16 %v5111
      %v5176 = vunpack.c.l.b16 %v5112
      %v5177 = vunpack.c.l.b16 %v5113
      %v5178 = vunpack.c.l.b16 %v5114
      %v5179 = vunpack.c.l.b16 %v5115
      %v5180 = vunpack.c.l.b16 %v5116
      %v5181 = vunpack.c.l.b16 %v5117
      %v5182 = vunpack.c.l.b16 %v5118
      %v5183 = vunpack.c.l.b16 %v5119
      %v5184 = vunpack.c.l.b16 %v5120
      %v5185 = vunpack.c.l.b16 %v5121
      %v5186 = vunpack.c.l.b16 %v5122
      %v5187 = vunpack.c.l.b16 %v5123
      %v5188 = vunpack.c.l.b16 %v5124
      %v5189 = vunpack.c.l.b16 %v5125
      %v5190 = vunpack.c.l.b16 %v5126
      %v5191 = vunpack.c.l.b16 %v5127
      %v5192 = vunpack.c.l.b16 %v5128
      %v5193 = vunpack.c.l.b16 %v5129
      %v5194 = vunpack.c.l.b16 %v5130
      %v5195 = vunpack.c.l.b16 %v5131
      %v5196 = vpack.c.b16 %v5165, %v5164
      %v5197 = vpack.c.b16 %v5167, %v5166
      %v5198 = vpack.c.b16 %v5169, %v5168
      %v5199 = vpack.c.b16 %v5171, %v5170
      %v5200 = vpack.c.b16 %v5173, %v5172
      %v5201 = vpack.c.b16 %v5175, %v5174
      %v5202 = vpack.c.b16 %v5177, %v5176
      %v5203 = vpack.c.b16 %v5179, %v5178
      %v5204 = vpack.c.b16 %v5181, %v5180
      %v5205 = vpack.c.b16 %v5183, %v5182
      %v5206 = vpack.c.b16 %v5185, %v5184
      %v5207 = vpack.c.b16 %v5187, %v5186
      %v5208 = vpack.c.b16 %v5189, %v5188
      %v5209 = vpack.c.b16 %v5191, %v5190
      %v5210 = vpack.c.b16 %v5193, %v5192
      %v5211 = vpack.c.b16 %v5195, %v5194
      %5228 = vmatprep.subr.bf16.mxu0 0
      %5229 = vmatpush1.bf16.msra.mxu0 %v5196
      %5230 = vmatprep.subr.bf16.mxu0 0
      %5231 = vmatpush1.bf16.msra.mxu0 %v5197
      %5232 = vmatprep.subr.bf16.mxu0 0
      %5233 = vmatpush1.bf16.msra.mxu0 %v5198
      %5234 = vmatprep.subr.bf16.mxu0 0
      %5235 = vmatpush1.bf16.msra.mxu0 %v5199
      %5236 = vmatprep.subr.bf16.mxu0 0
      %5237 = vmatpush1.bf16.msra.mxu0 %v5200
      %5238 = vmatprep.subr.bf16.mxu0 0
      %5239 = vmatpush1.bf16.msra.mxu0 %v5201
      %5240 = vmatprep.subr.bf16.mxu0 0
      %5241 = vmatpush1.bf16.msra.mxu0 %v5202
      %5242 = vmatprep.subr.bf16.mxu0 0
      %5243 = vmatpush1.bf16.msra.mxu0 %v5203
      %5244 = vmatprep.subr.bf16.mxu0 0
      %5245 = vmatpush1.bf16.msra.mxu0 %v5204
      %5246 = vmatprep.subr.bf16.mxu0 0
      %5247 = vmatpush1.bf16.msra.mxu0 %v5205
      %5248 = vmatprep.subr.bf16.mxu0 0
      %5249 = vmatpush1.bf16.msra.mxu0 %v5206
      %5250 = vmatprep.subr.bf16.mxu0 0
      %5251 = vmatpush1.bf16.msra.mxu0 %v5207
      %5252 = vmatprep.subr.bf16.mxu0 0
      %5253 = vmatpush1.bf16.msra.mxu0 %v5208
      %5254 = vmatprep.subr.bf16.mxu0 0
      %5255 = vmatpush1.bf16.msra.mxu0 %v5209
      %5256 = vmatprep.subr.bf16.mxu0 0
      %5257 = vmatpush1.bf16.msra.mxu0 %v5210
      %5258 = vmatprep.subr.bf16.mxu0 0
      %5259 = vmatpush1.bf16.msra.mxu0 %v5211
      %5260 = vmatprep.mubr.bf16.mxu0 %v5068
      %5261 = vmatmul.mubr.bf16.gmra.mrb[0].mxu0 %v5067
      %v5262 = vpop.f32.mrb[0].mxu0
      %v5263 = vadd.f32 0.0, %v5262
      %v5264 = vpop.f32.mrb[0].mxu0
      %v5265 = vpop.f32.mrb[0].mxu0
      %v5266 = vadd.f32 0.0, %v5265
      %v5267 = vpop.f32.mrb[0].mxu0
      %5268 = vmatprep.mubr.bf16.mxu0 %v5070
      %5269 = vmatmul.mubr.bf16.gmra.mrb[0].mxu0 %v5069
      %v5270 = vpop.f32.mrb[0].mxu0
      %v5271 = vadd.f32 0.0, %v5270
      %v5272 = vpop.f32.mrb[0].mxu0
      %v5273 = vpop.f32.mrb[0].mxu0
      %v5274 = vadd.f32 0.0, %v5273
      %v5275 = vpop.f32.mrb[0].mxu0
      %5276 = vmatprep.mubr.bf16.mxu0 %v5072
      %5277 = vmatmul.mubr.bf16.gmra.mrb[0].mxu0 %v5071
      %v5278 = vpop.f32.mrb[0].mxu0
      %v5279 = vadd.f32 0.0, %v5278
      %v5280 = vpop.f32.mrb[0].mxu0
      %v5281 = vpop.f32.mrb[0].mxu0
      %v5282 = vadd.f32 0.0, %v5281
      %v5283 = vpop.f32.mrb[0].mxu0
      %5284 = vmatprep.mubr.bf16.mxu0 %v5074
      %5285 = vmatmul.mubr.bf16.gmra.mrb[0].mxu0 %v5073
      %v5286 = vpop.f32.mrb[0].mxu0
      %v5287 = vadd.f32 0.0, %v5286
      %v5288 = vpop.f32.mrb[0].mxu0
      %v5289 = vpop.f32.mrb[0].mxu0
      %v5290 = vadd.f32 0.0, %v5289
      %v5291 = vpop.f32.mrb[0].mxu0
      %5292 = vmatprep.mubr.bf16.mxu0 %v5076
      %5293 = vmatmul.mubr.bf16.gmra.mrb[0].mxu0 %v5075
      %v5294 = vpop.f32.mrb[0].mxu0
      %v5295 = vadd.f32 0.0, %v5294
      %v5296 = vpop.f32.mrb[0].mxu0
      %v5297 = vpop.f32.mrb[0].mxu0
      %v5298 = vadd.f32 0.0, %v5297
      %v5299 = vpop.f32.mrb[0].mxu0
      %5300 = vmatprep.mubr.bf16.mxu0 %v5078
      %5301 = vmatmul.mubr.bf16.gmra.mrb[0].mxu0 %v5077
      %v5302 = vpop.f32.mrb[0].mxu0
      %v5303 = vadd.f32 0.0, %v5302
      %v5304 = vpop.f32.mrb[0].mxu0
      %v5305 = vpop.f32.mrb[0].mxu0
      %v5306 = vadd.f32 0.0, %v5305
      %v5307 = vpop.f32.mrb[0].mxu0
      %5308 = vmatprep.mubr.bf16.mxu0 %v5080
      %5309 = vmatmul.mubr.bf16.gmra.mrb[0].mxu0 %v5079
      %v5310 = vpop.f32.mrb[0].mxu0
      %v5311 = vadd.f32 0.0, %v5310
      %v5312 = vpop.f32.mrb[0].mxu0
      %v5313 = vpop.f32.mrb[0].mxu0
      %v5314 = vadd.f32 0.0, %v5313
      %v5315 = vpop.f32.mrb[0].mxu0
      %5316 = vmatprep.mubr.bf16.mxu0 %v5082
      %5317 = vmatmul.mubr.bf16.gmra.mrb[0].mxu0 %v5081
      %v5318 = vpop.f32.mrb[0].mxu0
      %v5319 = vadd.f32 0.0, %v5318
      %v5320 = vpop.f32.mrb[0].mxu0
      %v5321 = vpop.f32.mrb[0].mxu0
      %v5322 = vadd.f32 0.0, %v5321
      %v5323 = vpop.f32.mrb[0].mxu0
      %5324 = vmatprep.mubr.bf16.mxu0 %v5084
      %5325 = vmatmul.mubr.bf16.gmra.mrb[0].mxu0 %v5083
      %v5326 = vpop.f32.mrb[0].mxu0
      %v5327 = vadd.f32 0.0, %v5326
      %v5328 = vpop.f32.mrb[0].mxu0
      %v5329 = vpop.f32.mrb[0].mxu0
      %v5330 = vadd.f32 0.0, %v5329
      %v5331 = vpop.f32.mrb[0].mxu0
      %5332 = vmatprep.mubr.bf16.mxu0 %v5086
      %5333 = vmatmul.mubr.bf16.gmra.mrb[0].mxu0 %v5085
      %v5334 = vpop.f32.mrb[0].mxu0
      %v5335 = vadd.f32 0.0, %v5334
      %v5336 = vpop.f32.mrb[0].mxu0
      %v5337 = vpop.f32.mrb[0].mxu0
      %v5338 = vadd.f32 0.0, %v5337
      %v5339 = vpop.f32.mrb[0].mxu0
      %5340 = vmatprep.mubr.bf16.mxu0 %v5088
      %5341 = vmatmul.mubr.bf16.gmra.mrb[0].mxu0 %v5087
      %v5342 = vpop.f32.mrb[0].mxu0
      %v5343 = vadd.f32 0.0, %v5342
      %v5344 = vpop.f32.mrb[0].mxu0
      %v5345 = vpop.f32.mrb[0].mxu0
      %v5346 = vadd.f32 0.0, %v5345
      %v5347 = vpop.f32.mrb[0].mxu0
      %5348 = vmatprep.mubr.bf16.mxu0 %v5090
      %5349 = vmatmul.mubr.bf16.gmra.mrb[0].mxu0 %v5089
      %v5350 = vpop.f32.mrb[0].mxu0
      %v5351 = vadd.f32 0.0, %v5350
      %v5352 = vpop.f32.mrb[0].mxu0
      %v5353 = vpop.f32.mrb[0].mxu0
      %v5354 = vadd.f32 0.0, %v5353
      %v5355 = vpop.f32.mrb[0].mxu0
      %5356 = vmatprep.mubr.bf16.mxu0 %v5092
      %5357 = vmatmul.mubr.bf16.gmra.mrb[0].mxu0 %v5091
      %v5358 = vpop.f32.mrb[0].mxu0
      %v5359 = vadd.f32 0.0, %v5358
      %v5360 = vpop.f32.mrb[0].mxu0
      %v5361 = vpop.f32.mrb[0].mxu0
      %v5362 = vadd.f32 0.0, %v5361
      %v5363 = vpop.f32.mrb[0].mxu0
      %5364 = vmatprep.mubr.bf16.mxu0 %v5094
      %5365 = vmatmul.mubr.bf16.gmra.mrb[0].mxu0 %v5093
      %v5366 = vpop.f32.mrb[0].mxu0
      %v5367 = vadd.f32 0.0, %v5366
      %v5368 = vpop.f32.mrb[0].mxu0
      %v5369 = vpop.f32.mrb[0].mxu0
      %v5370 = vadd.f32 0.0, %v5369
      %v5371 = vpop.f32.mrb[0].mxu0
      %5372 = vmatprep.mubr.bf16.mxu0 %v5096
      %5373 = vmatmul.mubr.bf16.gmra.mrb[0].mxu0 %v5095
      %v5374 = vpop.f32.mrb[0].mxu0
      %v5375 = vadd.f32 0.0, %v5374
      %v5376 = vpop.f32.mrb[0].mxu0
      %v5377 = vpop.f32.mrb[0].mxu0
      %v5378 = vadd.f32 0.0, %v5377
      %v5379 = vpop.f32.mrb[0].mxu0
      %5380 = vmatprep.mubr.bf16.mxu0 %v5098
      %5381 = vmatmul.mubr.bf16.gmra.mrb[0].mxu0 %v5097
      %v5382 = vpop.f32.mrb[0].mxu0
      %v5383 = vadd.f32 0.0, %v5382
      %v5384 = vpop.f32.mrb[0].mxu0
      %v5385 = vpop.f32.mrb[0].mxu0
      %v5386 = vadd.f32 0.0, %v5385
      %v5387 = vpop.f32.mrb[0].mxu0
      %5388 = vdwg.mxu0
      %5389 = vst [vmem:[#allocation5] sm:$0xff] %v5263
      %5390 = vst [vmem:[#allocation5 + $0x8] sm:$0xff] %v5266
      %5391 = vst [vmem:[#allocation5 + $0x10] sm:$0xff] %v5271
      %5392 = vst [vmem:[#allocation5 + $0x18] sm:$0xff] %v5274
      %5393 = vst [vmem:[#allocation5 + $0x20] sm:$0xff] %v5279
      %5394 = vst [vmem:[#allocation5 + $0x28] sm:$0xff] %v5282
      %5395 = vst [vmem:[#allocation5 + $0x30] sm:$0xff] %v5287
      %5396 = vst [vmem:[#allocation5 + $0x38] sm:$0xff] %v5290
      %5397 = vst [vmem:[#allocation5 + $0x40] sm:$0xff] %v5295
      %5398 = vst [vmem:[#allocation5 + $0x48] sm:$0xff] %v5298
      %5399 = vst [vmem:[#allocation5 + $0x50] sm:$0xff] %v5303
      %5400 = vst [vmem:[#allocation5 + $0x58] sm:$0xff] %v5306
      %5401 = vst [vmem:[#allocation5 + $0x60] sm:$0xff] %v5311
      %5402 = vst [vmem:[#allocation5 + $0x68] sm:$0xff] %v5314
      %5403 = vst [vmem:[#allocation5 + $0x70] sm:$0xff] %v5319
      %5404 = vst [vmem:[#allocation5 + $0x78] sm:$0xff] %v5322
      %5405 = vst [vmem:[#allocation5 + $0x80] sm:$0xff] %v5327
      %5406 = vst [vmem:[#allocation5 + $0x88] sm:$0xff] %v5330
      %5407 = vst [vmem:[#allocation5 + $0x90] sm:$0xff] %v5335
      %5408 = vst [vmem:[#allocation5 + $0x98] sm:$0xff] %v5338
      %5409 = vst [vmem:[#allocation5 + $0xa0] sm:$0xff] %v5343
      %5410 = vst [vmem:[#allocation5 + $0xa8] sm:$0xff] %v5346
      %5411 = vst [vmem:[#allocation5 + $0xb0] sm:$0xff] %v5351
      %5412 = vst [vmem:[#allocation5 + $0xb8] sm:$0xff] %v5354
      %5413 = vst [vmem:[#allocation5 + $0xc0] sm:$0xff] %v5359
      %5414 = vst [vmem:[#allocation5 + $0xc8] sm:$0xff] %v5362
      %5415 = vst [vmem:[#allocation5 + $0xd0] sm:$0xff] %v5367
      %5416 = vst [vmem:[#allocation5 + $0xd8] sm:$0xff] %v5370
      %5417 = vst [vmem:[#allocation5 + $0xe0] sm:$0xff] %v5375
      %5418 = vst [vmem:[#allocation5 + $0xe8] sm:$0xff] %v5378
      %5419 = vst [vmem:[#allocation5 + $0xf0] sm:$0xff] %v5383
      %5420 = vst [vmem:[#allocation5 + $0xf8] sm:$0xff] %v5386
      %s5421 = scalar_lea.vmem [#allocation4], 48
      %v5422 = vld [vmem:[%s5421] sm:$0xff]
      %v5423 = vld [vmem:[%s5421 + $0x8] sm:$0xff]
      %v5424 = vld [vmem:[%s5421 + $0x18] sm:$0xff]
      %v5425 = vld [vmem:[%s5421 + $0x20] sm:$0xff]
      %v5426 = vld [vmem:[%s5421 + $0x30] sm:$0xff]
      %v5427 = vld [vmem:[%s5421 + $0x38] sm:$0xff]
      %v5428 = vld [vmem:[%s5421 + $0x48] sm:$0xff]
      %v5429 = vld [vmem:[%s5421 + $0x50] sm:$0xff]
      %v5430 = vld [vmem:[%s5421 + $0x60] sm:$0xff]
      %v5431 = vld [vmem:[%s5421 + $0x68] sm:$0xff]
      %v5432 = vld [vmem:[%s5421 + $0x78] sm:$0xff]
      %v5433 = vld [vmem:[%s5421 + $0x80] sm:$0xff]
      %v5434 = vld [vmem:[%s5421 + $0x90] sm:$0xff]
      %v5435 = vld [vmem:[%s5421 + $0x98] sm:$0xff]
      %v5436 = vld [vmem:[%s5421 + $0xa8] sm:$0xff]
      %v5437 = vld [vmem:[%s5421 + $0xb0] sm:$0xff]
      %v5438 = vld [vmem:[%s5421 + $0xc0] sm:$0xff]
      %v5439 = vld [vmem:[%s5421 + $0xc8] sm:$0xff]
      %v5440 = vld [vmem:[%s5421 + $0xd8] sm:$0xff]
      %v5441 = vld [vmem:[%s5421 + $0xe0] sm:$0xff]
      %v5442 = vld [vmem:[%s5421 + $0xf0] sm:$0xff]
      %v5443 = vld [vmem:[%s5421 + $0xf8] sm:$0xff]
      %v5444 = vld [vmem:[%s5421 + $0x108] sm:$0xff]
      %v5445 = vld [vmem:[%s5421 + $0x110] sm:$0xff]
      %v5446 = vld [vmem:[%s5421 + $0x120] sm:$0xff]
      %v5447 = vld [vmem:[%s5421 + $0x128] sm:$0xff]
      %v5448 = vld [vmem:[%s5421 + $0x138] sm:$0xff]
      %v5449 = vld [vmem:[%s5421 + $0x140] sm:$0xff]
      %v5450 = vld [vmem:[%s5421 + $0x150] sm:$0xff]
      %v5451 = vld [vmem:[%s5421 + $0x158] sm:$0xff]
      %v5452 = vld [vmem:[%s5421 + $0x168] sm:$0xff]
      %v5453 = vld [vmem:[%s5421 + $0x170] sm:$0xff]
      %s5454 = scalar_lea.vmem %s2, 640
      %v5455 = vld [vmem:[%s5454] sm:$0xf]
      %v5456 = vld [vmem:[%s5454 + $0x4] sm:$0xf]
      %v5457 = vld [vmem:[%s5454 + $0x8] sm:$0xf]
      %v5458 = vld [vmem:[%s5454 + $0xc] sm:$0xf]
      %v5459 = vld [vmem:[%s5454 + $0x10] sm:$0xf]
      %v5460 = vld [vmem:[%s5454 + $0x14] sm:$0xf]
      %v5461 = vld [vmem:[%s5454 + $0x18] sm:$0xf]
      %v5462 = vld [vmem:[%s5454 + $0x1c] sm:$0xf]
      %v5463 = vld [vmem:[%s5454 + $0x20] sm:$0xf]
      %v5464 = vld [vmem:[%s5454 + $0x24] sm:$0xf]
      %v5465 = vld [vmem:[%s5454 + $0x28] sm:$0xf]
      %v5466 = vld [vmem:[%s5454 + $0x2c] sm:$0xf]
      %v5467 = vld [vmem:[%s5454 + $0x30] sm:$0xf]
      %v5468 = vld [vmem:[%s5454 + $0x34] sm:$0xf]
      %v5469 = vld [vmem:[%s5454 + $0x38] sm:$0xf]
      %v5470 = vld [vmem:[%s5454 + $0x3c] sm:$0xf]
      %v5471 = vld [vmem:[%s5454 + $0x40] sm:$0xf]
      %v5472 = vld [vmem:[%s5454 + $0x44] sm:$0xf]
      %v5473 = vld [vmem:[%s5454 + $0x48] sm:$0xf]
      %v5474 = vld [vmem:[%s5454 + $0x4c] sm:$0xf]
      %v5475 = vld [vmem:[%s5454 + $0x50] sm:$0xf]
      %v5476 = vld [vmem:[%s5454 + $0x54] sm:$0xf]
      %v5477 = vld [vmem:[%s5454 + $0x58] sm:$0xf]
      %v5478 = vld [vmem:[%s5454 + $0x5c] sm:$0xf]
      %v5479 = vld [vmem:[%s5454 + $0x60] sm:$0xf]
      %v5480 = vld [vmem:[%s5454 + $0x64] sm:$0xf]
      %v5481 = vld [vmem:[%s5454 + $0x68] sm:$0xf]
      %v5482 = vld [vmem:[%s5454 + $0x6c] sm:$0xf]
      %v5483 = vld [vmem:[%s5454 + $0x70] sm:$0xf]
      %v5484 = vld [vmem:[%s5454 + $0x74] sm:$0xf]
      %v5485 = vld [vmem:[%s5454 + $0x78] sm:$0xf]
      %v5486 = vld [vmem:[%s5454 + $0x7c] sm:$0xf]
      %v5519 = vunpack.c.l.b16 %v5455
      %v5520 = vunpack.c.l.b16 %v5456
      %v5521 = vunpack.c.l.b16 %v5457
      %v5522 = vunpack.c.l.b16 %v5458
      %v5523 = vunpack.c.l.b16 %v5459
      %v5524 = vunpack.c.l.b16 %v5460
      %v5525 = vunpack.c.l.b16 %v5461
      %v5526 = vunpack.c.l.b16 %v5462
      %v5527 = vunpack.c.l.b16 %v5463
      %v5528 = vunpack.c.l.b16 %v5464
      %v5529 = vunpack.c.l.b16 %v5465
      %v5530 = vunpack.c.l.b16 %v5466
      %v5531 = vunpack.c.l.b16 %v5467
      %v5532 = vunpack.c.l.b16 %v5468
      %v5533 = vunpack.c.l.b16 %v5469
      %v5534 = vunpack.c.l.b16 %v5470
      %v5535 = vunpack.c.l.b16 %v5471
      %v5536 = vunpack.c.l.b16 %v5472
      %v5537 = vunpack.c.l.b16 %v5473
      %v5538 = vunpack.c.l.b16 %v5474
      %v5539 = vunpack.c.l.b16 %v5475
      %v5540 = vunpack.c.l.b16 %v5476
      %v5541 = vunpack.c.l.b16 %v5477
      %v5542 = vunpack.c.l.b16 %v5478
      %v5543 = vunpack.c.l.b16 %v5479
      %v5544 = vunpack.c.l.b16 %v5480
      %v5545 = vunpack.c.l.b16 %v5481
      %v5546 = vunpack.c.l.b16 %v5482
      %v5547 = vunpack.c.l.b16 %v5483
      %v5548 = vunpack.c.l.b16 %v5484
      %v5549 = vunpack.c.l.b16 %v5485
      %v5550 = vunpack.c.l.b16 %v5486
      %v5551 = vpack.c.b16 %v5520, %v5519
      %v5552 = vpack.c.b16 %v5522, %v5521
      %v5553 = vpack.c.b16 %v5524, %v5523
      %v5554 = vpack.c.b16 %v5526, %v5525
      %v5555 = vpack.c.b16 %v5528, %v5527
      %v5556 = vpack.c.b16 %v5530, %v5529
      %v5557 = vpack.c.b16 %v5532, %v5531
      %v5558 = vpack.c.b16 %v5534, %v5533
      %v5559 = vpack.c.b16 %v5536, %v5535
      %v5560 = vpack.c.b16 %v5538, %v5537
      %v5561 = vpack.c.b16 %v5540, %v5539
      %v5562 = vpack.c.b16 %v5542, %v5541
      %v5563 = vpack.c.b16 %v5544, %v5543
      %v5564 = vpack.c.b16 %v5546, %v5545
      %v5565 = vpack.c.b16 %v5548, %v5547
      %v5566 = vpack.c.b16 %v5550, %v5549
      %5583 = vmatprep.subr.bf16.mxu0 0
      %5584 = vmatpush1.bf16.msra.mxu0 %v5551
      %5585 = vmatprep.subr.bf16.mxu0 0
      %5586 = vmatpush1.bf16.msra.mxu0 %v5552
      %5587 = vmatprep.subr.bf16.mxu0 0
      %5588 = vmatpush1.bf16.msra.mxu0 %v5553
      %5589 = vmatprep.subr.bf16.mxu0 0
      %5590 = vmatpush1.bf16.msra.mxu0 %v5554
      %5591 = vmatprep.subr.bf16.mxu0 0
      %5592 = vmatpush1.bf16.msra.mxu0 %v5555
      %5593 = vmatprep.subr.bf16.mxu0 0
      %5594 = vmatpush1.bf16.msra.mxu0 %v5556
      %5595 = vmatprep.subr.bf16.mxu0 0
      %5596 = vmatpush1.bf16.msra.mxu0 %v5557
      %5597 = vmatprep.subr.bf16.mxu0 0
      %5598 = vmatpush1.bf16.msra.mxu0 %v5558
      %5599 = vmatprep.subr.bf16.mxu0 0
      %5600 = vmatpush1.bf16.msra.mxu0 %v5559
      %5601 = vmatprep.subr.bf16.mxu0 0
      %5602 = vmatpush1.bf16.msra.mxu0 %v5560
      %5603 = vmatprep.subr.bf16.mxu0 0
      %5604 = vmatpush1.bf16.msra.mxu0 %v5561
      %5605 = vmatprep.subr.bf16.mxu0 0
      %5606 = vmatpush1.bf16.msra.mxu0 %v5562
      %5607 = vmatprep.subr.bf16.mxu0 0
      %5608 = vmatpush1.bf16.msra.mxu0 %v5563
      %5609 = vmatprep.subr.bf16.mxu0 0
      %5610 = vmatpush1.bf16.msra.mxu0 %v5564
      %5611 = vmatprep.subr.bf16.mxu0 0
      %5612 = vmatpush1.bf16.msra.mxu0 %v5565
      %5613 = vmatprep.subr.bf16.mxu0 0
      %5614 = vmatpush1.bf16.msra.mxu0 %v5566
      %5615 = vmatprep.mubr.bf16.mxu0 %v5423
      %5616 = vmatmul.mubr.bf16.gmra.mrb[0].mxu0 %v5422
      %v5617 = vpop.f32.mrb[0].mxu0
      %v5618 = vadd.f32 0.0, %v5617
      %v5619 = vpop.f32.mrb[0].mxu0
      %v5620 = vpop.f32.mrb[0].mxu0
      %v5621 = vadd.f32 0.0, %v5620
      %v5622 = vpop.f32.mrb[0].mxu0
      %5623 = vmatprep.mubr.bf16.mxu0 %v5425
      %5624 = vmatmul.mubr.bf16.gmra.mrb[0].mxu0 %v5424
      %v5625 = vpop.f32.mrb[0].mxu0
      %v5626 = vadd.f32 0.0, %v5625
      %v5627 = vpop.f32.mrb[0].mxu0
      %v5628 = vpop.f32.mrb[0].mxu0
      %v5629 = vadd.f32 0.0, %v5628
      %v5630 = vpop.f32.mrb[0].mxu0
      %5631 = vmatprep.mubr.bf16.mxu0 %v5427
      %5632 = vmatmul.mubr.bf16.gmra.mrb[0].mxu0 %v5426
      %v5633 = vpop.f32.mrb[0].mxu0
      %v5634 = vadd.f32 0.0, %v5633
      %v5635 = vpop.f32.mrb[0].mxu0
      %v5636 = vpop.f32.mrb[0].mxu0
      %v5637 = vadd.f32 0.0, %v5636
      %v5638 = vpop.f32.mrb[0].mxu0
      %5639 = vmatprep.mubr.bf16.mxu0 %v5429
      %5640 = vmatmul.mubr.bf16.gmra.mrb[0].mxu0 %v5428
      %v5641 = vpop.f32.mrb[0].mxu0
      %v5642 = vadd.f32 0.0, %v5641
      %v5643 = vpop.f32.mrb[0].mxu0
      %v5644 = vpop.f32.mrb[0].mxu0
      %v5645 = vadd.f32 0.0, %v5644
      %v5646 = vpop.f32.mrb[0].mxu0
      %5647 = vmatprep.mubr.bf16.mxu0 %v5431
      %5648 = vmatmul.mubr.bf16.gmra.mrb[0].mxu0 %v5430
      %v5649 = vpop.f32.mrb[0].mxu0
      %v5650 = vadd.f32 0.0, %v5649
      %v5651 = vpop.f32.mrb[0].mxu0
      %v5652 = vpop.f32.mrb[0].mxu0
      %v5653 = vadd.f32 0.0, %v5652
      %v5654 = vpop.f32.mrb[0].mxu0
      %5655 = vmatprep.mubr.bf16.mxu0 %v5433
      %5656 = vmatmul.mubr.bf16.gmra.mrb[0].mxu0 %v5432
      %v5657 = vpop.f32.mrb[0].mxu0
      %v5658 = vadd.f32 0.0, %v5657
      %v5659 = vpop.f32.mrb[0].mxu0
      %v5660 = vpop.f32.mrb[0].mxu0
      %v5661 = vadd.f32 0.0, %v5660
      %v5662 = vpop.f32.mrb[0].mxu0
      %5663 = vmatprep.mubr.bf16.mxu0 %v5435
      %5664 = vmatmul.mubr.bf16.gmra.mrb[0].mxu0 %v5434
      %v5665 = vpop.f32.mrb[0].mxu0
      %v5666 = vadd.f32 0.0, %v5665
      %v5667 = vpop.f32.mrb[0].mxu0
      %v5668 = vpop.f32.mrb[0].mxu0
      %v5669 = vadd.f32 0.0, %v5668
      %v5670 = vpop.f32.mrb[0].mxu0
      %5671 = vmatprep.mubr.bf16.mxu0 %v5437
      %5672 = vmatmul.mubr.bf16.gmra.mrb[0].mxu0 %v5436
      %v5673 = vpop.f32.mrb[0].mxu0
      %v5674 = vadd.f32 0.0, %v5673
      %v5675 = vpop.f32.mrb[0].mxu0
      %v5676 = vpop.f32.mrb[0].mxu0
      %v5677 = vadd.f32 0.0, %v5676
      %v5678 = vpop.f32.mrb[0].mxu0
      %5679 = vmatprep.mubr.bf16.mxu0 %v5439
      %5680 = vmatmul.mubr.bf16.gmra.mrb[0].mxu0 %v5438
      %v5681 = vpop.f32.mrb[0].mxu0
      %v5682 = vadd.f32 0.0, %v5681
      %v5683 = vpop.f32.mrb[0].mxu0
      %v5684 = vpop.f32.mrb[0].mxu0
      %v5685 = vadd.f32 0.0, %v5684
      %v5686 = vpop.f32.mrb[0].mxu0
      %5687 = vmatprep.mubr.bf16.mxu0 %v5441
      %5688 = vmatmul.mubr.bf16.gmra.mrb[0].mxu0 %v5440
      %v5689 = vpop.f32.mrb[0].mxu0
      %v5690 = vadd.f32 0.0, %v5689
      %v5691 = vpop.f32.mrb[0].mxu0
      %v5692 = vpop.f32.mrb[0].mxu0
      %v5693 = vadd.f32 0.0, %v5692
      %v5694 = vpop.f32.mrb[0].mxu0
      %5695 = vmatprep.mubr.bf16.mxu0 %v5443
      %5696 = vmatmul.mubr.bf16.gmra.mrb[0].mxu0 %v5442
      %v5697 = vpop.f32.mrb[0].mxu0
      %v5698 = vadd.f32 0.0, %v5697
      %v5699 = vpop.f32.mrb[0].mxu0
      %v5700 = vpop.f32.mrb[0].mxu0
      %v5701 = vadd.f32 0.0, %v5700
      %v5702 = vpop.f32.mrb[0].mxu0
      %5703 = vmatprep.mubr.bf16.mxu0 %v5445
      %5704 = vmatmul.mubr.bf16.gmra.mrb[0].mxu0 %v5444
      %v5705 = vpop.f32.mrb[0].mxu0
      %v5706 = vadd.f32 0.0, %v5705
      %v5707 = vpop.f32.mrb[0].mxu0
      %v5708 = vpop.f32.mrb[0].mxu0
      %v5709 = vadd.f32 0.0, %v5708
      %v5710 = vpop.f32.mrb[0].mxu0
      %5711 = vmatprep.mubr.bf16.mxu0 %v5447
      %5712 = vmatmul.mubr.bf16.gmra.mrb[0].mxu0 %v5446
      %v5713 = vpop.f32.mrb[0].mxu0
      %v5714 = vadd.f32 0.0, %v5713
      %v5715 = vpop.f32.mrb[0].mxu0
      %v5716 = vpop.f32.mrb[0].mxu0
      %v5717 = vadd.f32 0.0, %v5716
      %v5718 = vpop.f32.mrb[0].mxu0
      %5719 = vmatprep.mubr.bf16.mxu0 %v5449
      %5720 = vmatmul.mubr.bf16.gmra.mrb[0].mxu0 %v5448
      %v5721 = vpop.f32.mrb[0].mxu0
      %v5722 = vadd.f32 0.0, %v5721
      %v5723 = vpop.f32.mrb[0].mxu0
      %v5724 = vpop.f32.mrb[0].mxu0
      %v5725 = vadd.f32 0.0, %v5724
      %v5726 = vpop.f32.mrb[0].mxu0
      %5727 = vmatprep.mubr.bf16.mxu0 %v5451
      %5728 = vmatmul.mubr.bf16.gmra.mrb[0].mxu0 %v5450
      %v5729 = vpop.f32.mrb[0].mxu0
      %v5730 = vadd.f32 0.0, %v5729
      %v5731 = vpop.f32.mrb[0].mxu0
      %v5732 = vpop.f32.mrb[0].mxu0
      %v5733 = vadd.f32 0.0, %v5732
      %v5734 = vpop.f32.mrb[0].mxu0
      %5735 = vmatprep.mubr.bf16.mxu0 %v5453
      %5736 = vmatmul.mubr.bf16.gmra.mrb[0].mxu0 %v5452
      %v5737 = vpop.f32.mrb[0].mxu0
      %v5738 = vadd.f32 0.0, %v5737
      %v5739 = vpop.f32.mrb[0].mxu0
      %v5740 = vpop.f32.mrb[0].mxu0
      %v5741 = vadd.f32 0.0, %v5740
      %v5742 = vpop.f32.mrb[0].mxu0
      %5743 = vdwg.mxu0
      %v5744 = vld [vmem:[#allocation5] sm:$0xff]
      %v5745 = vld [vmem:[#allocation5 + $0x8] sm:$0xff]
      %v5746 = vld [vmem:[#allocation5 + $0x10] sm:$0xff]
      %v5747 = vld [vmem:[#allocation5 + $0x18] sm:$0xff]
      %v5748 = vld [vmem:[#allocation5 + $0x20] sm:$0xff]
      %v5749 = vld [vmem:[#allocation5 + $0x28] sm:$0xff]
      %v5750 = vld [vmem:[#allocation5 + $0x30] sm:$0xff]
      %v5751 = vld [vmem:[#allocation5 + $0x38] sm:$0xff]
      %v5752 = vld [vmem:[#allocation5 + $0x40] sm:$0xff]
      %v5753 = vld [vmem:[#allocation5 + $0x48] sm:$0xff]
      %v5754 = vld [vmem:[#allocation5 + $0x50] sm:$0xff]
      %v5755 = vld [vmem:[#allocation5 + $0x58] sm:$0xff]
      %v5756 = vld [vmem:[#allocation5 + $0x60] sm:$0xff]
      %v5757 = vld [vmem:[#allocation5 + $0x68] sm:$0xff]
      %v5758 = vld [vmem:[#allocation5 + $0x70] sm:$0xff]
      %v5759 = vld [vmem:[#allocation5 + $0x78] sm:$0xff]
      %v5760 = vld [vmem:[#allocation5 + $0x80] sm:$0xff]
      %v5761 = vld [vmem:[#allocation5 + $0x88] sm:$0xff]
      %v5762 = vld [vmem:[#allocation5 + $0x90] sm:$0xff]
      %v5763 = vld [vmem:[#allocation5 + $0x98] sm:$0xff]
      %v5764 = vld [vmem:[#allocation5 + $0xa0] sm:$0xff]
      %v5765 = vld [vmem:[#allocation5 + $0xa8] sm:$0xff]
      %v5766 = vld [vmem:[#allocation5 + $0xb0] sm:$0xff]
      %v5767 = vld [vmem:[#allocation5 + $0xb8] sm:$0xff]
      %v5768 = vld [vmem:[#allocation5 + $0xc0] sm:$0xff]
      %v5769 = vld [vmem:[#allocation5 + $0xc8] sm:$0xff]
      %v5770 = vld [vmem:[#allocation5 + $0xd0] sm:$0xff]
      %v5771 = vld [vmem:[#allocation5 + $0xd8] sm:$0xff]
      %v5772 = vld [vmem:[#allocation5 + $0xe0] sm:$0xff]
      %v5773 = vld [vmem:[#allocation5 + $0xe8] sm:$0xff]
      %v5774 = vld [vmem:[#allocation5 + $0xf0] sm:$0xff]
      %v5775 = vld [vmem:[#allocation5 + $0xf8] sm:$0xff]
      %v5776 = vadd.f32 %v5744, %v5618
      %v5777 = vadd.f32 %v5745, %v5621
      %v5778 = vadd.f32 %v5746, %v5626
      %v5779 = vadd.f32 %v5747, %v5629
      %v5780 = vadd.f32 %v5748, %v5634
      %v5781 = vadd.f32 %v5749, %v5637
      %v5782 = vadd.f32 %v5750, %v5642
      %v5783 = vadd.f32 %v5751, %v5645
      %v5784 = vadd.f32 %v5752, %v5650
      %v5785 = vadd.f32 %v5753, %v5653
      %v5786 = vadd.f32 %v5754, %v5658
      %v5787 = vadd.f32 %v5755, %v5661
      %v5788 = vadd.f32 %v5756, %v5666
      %v5789 = vadd.f32 %v5757, %v5669
      %v5790 = vadd.f32 %v5758, %v5674
      %v5791 = vadd.f32 %v5759, %v5677
      %v5792 = vadd.f32 %v5760, %v5682
      %v5793 = vadd.f32 %v5761, %v5685
      %v5794 = vadd.f32 %v5762, %v5690
      %v5795 = vadd.f32 %v5763, %v5693
      %v5796 = vadd.f32 %v5764, %v5698
      %v5797 = vadd.f32 %v5765, %v5701
      %v5798 = vadd.f32 %v5766, %v5706
      %v5799 = vadd.f32 %v5767, %v5709
      %v5800 = vadd.f32 %v5768, %v5714
      %v5801 = vadd.f32 %v5769, %v5717
      %v5802 = vadd.f32 %v5770, %v5722
      %v5803 = vadd.f32 %v5771, %v5725
      %v5804 = vadd.f32 %v5772, %v5730
      %v5805 = vadd.f32 %v5773, %v5733
      %v5806 = vadd.f32 %v5774, %v5738
      %v5807 = vadd.f32 %v5775, %v5741
      %5808 = vst [vmem:[#allocation5] sm:$0xff] %v5776
      %5809 = vst [vmem:[#allocation5 + $0x8] sm:$0xff] %v5777
      %5810 = vst [vmem:[#allocation5 + $0x10] sm:$0xff] %v5778
      %5811 = vst [vmem:[#allocation5 + $0x18] sm:$0xff] %v5779
      %5812 = vst [vmem:[#allocation5 + $0x20] sm:$0xff] %v5780
      %5813 = vst [vmem:[#allocation5 + $0x28] sm:$0xff] %v5781
      %5814 = vst [vmem:[#allocation5 + $0x30] sm:$0xff] %v5782
      %5815 = vst [vmem:[#allocation5 + $0x38] sm:$0xff] %v5783
      %5816 = vst [vmem:[#allocation5 + $0x40] sm:$0xff] %v5784
      %5817 = vst [vmem:[#allocation5 + $0x48] sm:$0xff] %v5785
      %5818 = vst [vmem:[#allocation5 + $0x50] sm:$0xff] %v5786
      %5819 = vst [vmem:[#allocation5 + $0x58] sm:$0xff] %v5787
      %5820 = vst [vmem:[#allocation5 + $0x60] sm:$0xff] %v5788
      %5821 = vst [vmem:[#allocation5 + $0x68] sm:$0xff] %v5789
      %5822 = vst [vmem:[#allocation5 + $0x70] sm:$0xff] %v5790
      %5823 = vst [vmem:[#allocation5 + $0x78] sm:$0xff] %v5791
      %5824 = vst [vmem:[#allocation5 + $0x80] sm:$0xff] %v5792
      %5825 = vst [vmem:[#allocation5 + $0x88] sm:$0xff] %v5793
      %5826 = vst [vmem:[#allocation5 + $0x90] sm:$0xff] %v5794
      %5827 = vst [vmem:[#allocation5 + $0x98] sm:$0xff] %v5795
      %5828 = vst [vmem:[#allocation5 + $0xa0] sm:$0xff] %v5796
      %5829 = vst [vmem:[#allocation5 + $0xa8] sm:$0xff] %v5797
      %5830 = vst [vmem:[#allocation5 + $0xb0] sm:$0xff] %v5798
      %5831 = vst [vmem:[#allocation5 + $0xb8] sm:$0xff] %v5799
      %5832 = vst [vmem:[#allocation5 + $0xc0] sm:$0xff] %v5800
      %5833 = vst [vmem:[#allocation5 + $0xc8] sm:$0xff] %v5801
      %5834 = vst [vmem:[#allocation5 + $0xd0] sm:$0xff] %v5802
      %5835 = vst [vmem:[#allocation5 + $0xd8] sm:$0xff] %v5803
      %5836 = vst [vmem:[#allocation5 + $0xe0] sm:$0xff] %v5804
      %5837 = vst [vmem:[#allocation5 + $0xe8] sm:$0xff] %v5805
      %5838 = vst [vmem:[#allocation5 + $0xf0] sm:$0xff] %v5806
      %5839 = vst [vmem:[#allocation5 + $0xf8] sm:$0xff] %v5807
      %v5840 = vld [vmem:[#allocation5] sm:$0xff]
      %v5841 = vld [vmem:[#allocation5 + $0x8] sm:$0xff]
      %v5842 = vld [vmem:[#allocation5 + $0x10] sm:$0xff]
      %v5843 = vld [vmem:[#allocation5 + $0x18] sm:$0xff]
      %v5844 = vld [vmem:[#allocation5 + $0x20] sm:$0xff]
      %v5845 = vld [vmem:[#allocation5 + $0x28] sm:$0xff]
      %v5846 = vld [vmem:[#allocation5 + $0x30] sm:$0xff]
      %v5847 = vld [vmem:[#allocation5 + $0x38] sm:$0xff]
      %v5848 = vld [vmem:[#allocation5 + $0x40] sm:$0xff]
      %v5849 = vld [vmem:[#allocation5 + $0x48] sm:$0xff]
      %v5850 = vld [vmem:[#allocation5 + $0x50] sm:$0xff]
      %v5851 = vld [vmem:[#allocation5 + $0x58] sm:$0xff]
      %v5852 = vld [vmem:[#allocation5 + $0x60] sm:$0xff]
      %v5853 = vld [vmem:[#allocation5 + $0x68] sm:$0xff]
      %v5854 = vld [vmem:[#allocation5 + $0x70] sm:$0xff]
      %v5855 = vld [vmem:[#allocation5 + $0x78] sm:$0xff]
      %v5856 = vld [vmem:[#allocation5 + $0x80] sm:$0xff]
      %v5857 = vld [vmem:[#allocation5 + $0x88] sm:$0xff]
      %v5858 = vld [vmem:[#allocation5 + $0x90] sm:$0xff]
      %v5859 = vld [vmem:[#allocation5 + $0x98] sm:$0xff]
      %v5860 = vld [vmem:[#allocation5 + $0xa0] sm:$0xff]
      %v5861 = vld [vmem:[#allocation5 + $0xa8] sm:$0xff]
      %v5862 = vld [vmem:[#allocation5 + $0xb0] sm:$0xff]
      %v5863 = vld [vmem:[#allocation5 + $0xb8] sm:$0xff]
      %v5864 = vld [vmem:[#allocation5 + $0xc0] sm:$0xff]
      %v5865 = vld [vmem:[#allocation5 + $0xc8] sm:$0xff]
      %v5866 = vld [vmem:[#allocation5 + $0xd0] sm:$0xff]
      %v5867 = vld [vmem:[#allocation5 + $0xd8] sm:$0xff]
      %v5868 = vld [vmem:[#allocation5 + $0xe0] sm:$0xff]
      %v5869 = vld [vmem:[#allocation5 + $0xe8] sm:$0xff]
      %v5870 = vld [vmem:[#allocation5 + $0xf0] sm:$0xff]
      %v5871 = vld [vmem:[#allocation5 + $0xf8] sm:$0xff]
      %v5872 = vadd.f32 %v5840, %v4003
      %v5873 = vadd.f32 %v5841, %v4003
      %v5874 = vadd.f32 %v5842, %v4003
      %v5875 = vadd.f32 %v5843, %v4003
      %v5876 = vadd.f32 %v5844, %v4003
      %v5877 = vadd.f32 %v5845, %v4003
      %v5878 = vadd.f32 %v5846, %v4003
      %v5879 = vadd.f32 %v5847, %v4003
      %v5880 = vadd.f32 %v5848, %v4003
      %v5881 = vadd.f32 %v5849, %v4003
      %v5882 = vadd.f32 %v5850, %v4003
      %v5883 = vadd.f32 %v5851, %v4003
      %v5884 = vadd.f32 %v5852, %v4003
      %v5885 = vadd.f32 %v5853, %v4003
      %v5886 = vadd.f32 %v5854, %v4003
      %v5887 = vadd.f32 %v5855, %v4003
      %v5888 = vadd.f32 %v5856, %v4003
      %v5889 = vadd.f32 %v5857, %v4003
      %v5890 = vadd.f32 %v5858, %v4003
      %v5891 = vadd.f32 %v5859, %v4003
      %v5892 = vadd.f32 %v5860, %v4003
      %v5893 = vadd.f32 %v5861, %v4003
      %v5894 = vadd.f32 %v5862, %v4003
      %v5895 = vadd.f32 %v5863, %v4003
      %v5896 = vadd.f32 %v5864, %v4003
      %v5897 = vadd.f32 %v5865, %v4003
      %v5898 = vadd.f32 %v5866, %v4003
      %v5899 = vadd.f32 %v5867, %v4003
      %v5900 = vadd.f32 %v5868, %v4003
      %v5901 = vadd.f32 %v5869, %v4003
      %v5902 = vadd.f32 %v5870, %v4003
      %v5903 = vadd.f32 %v5871, %v4003
      %v5904 = vmul.f32 %v5872, 0.2
      %v5905 = vmul.f32 %v5873, 0.2
      %v5906 = vmul.f32 %v5874, 0.2
      %v5907 = vmul.f32 %v5875, 0.2
      %v5908 = vmul.f32 %v5876, 0.2
      %v5909 = vmul.f32 %v5877, 0.2
      %v5910 = vmul.f32 %v5878, 0.2
      %v5911 = vmul.f32 %v5879, 0.2
      %v5912 = vmul.f32 %v5880, 0.2
      %v5913 = vmul.f32 %v5881, 0.2
      %v5914 = vmul.f32 %v5882, 0.2
      %v5915 = vmul.f32 %v5883, 0.2
      %v5916 = vmul.f32 %v5884, 0.2
      %v5917 = vmul.f32 %v5885, 0.2
      %v5918 = vmul.f32 %v5886, 0.2
      %v5919 = vmul.f32 %v5887, 0.2
      %v5920 = vmul.f32 %v5888, 0.2
      %v5921 = vmul.f32 %v5889, 0.2
      %v5922 = vmul.f32 %v5890, 0.2
      %v5923 = vmul.f32 %v5891, 0.2
      %v5924 = vmul.f32 %v5892, 0.2
      %v5925 = vmul.f32 %v5893, 0.2
      %v5926 = vmul.f32 %v5894, 0.2
      %v5927 = vmul.f32 %v5895, 0.2
      %v5928 = vmul.f32 %v5896, 0.2
      %v5929 = vmul.f32 %v5897, 0.2
      %v5930 = vmul.f32 %v5898, 0.2
      %v5931 = vmul.f32 %v5899, 0.2
      %v5932 = vmul.f32 %v5900, 0.2
      %v5933 = vmul.f32 %v5901, 0.2
      %v5934 = vmul.f32 %v5902, 0.2
      %v5935 = vmul.f32 %v5903, 0.2
      %v5936 = vmax.f32 %v5872, %v5904
      %v5937 = vmax.f32 %v5873, %v5905
      %v5938 = vmax.f32 %v5874, %v5906
      %v5939 = vmax.f32 %v5875, %v5907
      %v5940 = vmax.f32 %v5876, %v5908
      %v5941 = vmax.f32 %v5877, %v5909
      %v5942 = vmax.f32 %v5878, %v5910
      %v5943 = vmax.f32 %v5879, %v5911
      %v5944 = vmax.f32 %v5880, %v5912
      %v5945 = vmax.f32 %v5881, %v5913
      %v5946 = vmax.f32 %v5882, %v5914
      %v5947 = vmax.f32 %v5883, %v5915
      %v5948 = vmax.f32 %v5884, %v5916
      %v5949 = vmax.f32 %v5885, %v5917
      %v5950 = vmax.f32 %v5886, %v5918
      %v5951 = vmax.f32 %v5887, %v5919
      %v5952 = vmax.f32 %v5888, %v5920
      %v5953 = vmax.f32 %v5889, %v5921
      %v5954 = vmax.f32 %v5890, %v5922
      %v5955 = vmax.f32 %v5891, %v5923
      %v5956 = vmax.f32 %v5892, %v5924
      %v5957 = vmax.f32 %v5893, %v5925
      %v5958 = vmax.f32 %v5894, %v5926
      %v5959 = vmax.f32 %v5895, %v5927
      %v5960 = vmax.f32 %v5896, %v5928
      %v5961 = vmax.f32 %v5897, %v5929
      %v5962 = vmax.f32 %v5898, %v5930
      %v5963 = vmax.f32 %v5899, %v5931
      %v5964 = vmax.f32 %v5900, %v5932
      %v5965 = vmax.f32 %v5901, %v5933
      %v5966 = vmax.f32 %v5902, %v5934
      %v5967 = vmax.f32 %v5903, %v5935
      %s5968 = scalar_lea.vmem %s250, 512
      %5969 = vst.msk [vmem:[%s5968] sm:$0xff] %vm4101, %v5936
      %5970 = vst.msk [vmem:[%s5968 + $0x8] sm:$0xff] %vm4101, %v5937
      %5971 = vst.msk [vmem:[%s5968 + $0x10] sm:$0xff] %vm4101, %v5938
      %5972 = vst.msk [vmem:[%s5968 + $0x18] sm:$0xff] %vm4101, %v5939
      %5973 = vst.msk [vmem:[%s5968 + $0x20] sm:$0xff] %vm4101, %v5940
      %5974 = vst.msk [vmem:[%s5968 + $0x28] sm:$0xff] %vm4101, %v5941
      %5975 = vst.msk [vmem:[%s5968 + $0x30] sm:$0xff] %vm4101, %v5942
      %5976 = vst.msk [vmem:[%s5968 + $0x38] sm:$0xff] %vm4101, %v5943
      %5977 = vst.msk [vmem:[%s5968 + $0x40] sm:$0xff] %vm4101, %v5944
      %5978 = vst.msk [vmem:[%s5968 + $0x48] sm:$0xff] %vm4101, %v5945
      %5979 = vst.msk [vmem:[%s5968 + $0x50] sm:$0xff] %vm4101, %v5946
      %5980 = vst.msk [vmem:[%s5968 + $0x58] sm:$0xff] %vm4101, %v5947
      %5981 = vst.msk [vmem:[%s5968 + $0x60] sm:$0xff] %vm4101, %v5948
      %5982 = vst.msk [vmem:[%s5968 + $0x68] sm:$0xff] %vm4101, %v5949
      %5983 = vst.msk [vmem:[%s5968 + $0x70] sm:$0xff] %vm4101, %v5950
      %5984 = vst.msk [vmem:[%s5968 + $0x78] sm:$0xff] %vm4101, %v5951
      %5985 = vst.msk [vmem:[%s5968 + $0x80] sm:$0xff] %vm4101, %v5952
      %5986 = vst.msk [vmem:[%s5968 + $0x88] sm:$0xff] %vm4101, %v5953
      %5987 = vst.msk [vmem:[%s5968 + $0x90] sm:$0xff] %vm4101, %v5954
      %5988 = vst.msk [vmem:[%s5968 + $0x98] sm:$0xff] %vm4101, %v5955
      %5989 = vst.msk [vmem:[%s5968 + $0xa0] sm:$0xff] %vm4101, %v5956
      %5990 = vst.msk [vmem:[%s5968 + $0xa8] sm:$0xff] %vm4101, %v5957
      %5991 = vst.msk [vmem:[%s5968 + $0xb0] sm:$0xff] %vm4101, %v5958
      %5992 = vst.msk [vmem:[%s5968 + $0xb8] sm:$0xff] %vm4101, %v5959
      %5993 = vst.msk [vmem:[%s5968 + $0xc0] sm:$0xff] %vm4101, %v5960
      %5994 = vst.msk [vmem:[%s5968 + $0xc8] sm:$0xff] %vm4101, %v5961
      %5995 = vst.msk [vmem:[%s5968 + $0xd0] sm:$0xff] %vm4101, %v5962
      %5996 = vst.msk [vmem:[%s5968 + $0xd8] sm:$0xff] %vm4101, %v5963
      %5997 = vst.msk [vmem:[%s5968 + $0xe0] sm:$0xff] %vm4101, %v5964
      %5998 = vst.msk [vmem:[%s5968 + $0xe8] sm:$0xff] %vm4101, %v5965
      %5999 = vst.msk [vmem:[%s5968 + $0xf0] sm:$0xff] %vm4101, %v5966
      %6000 = vst.msk [vmem:[%s5968 + $0xf8] sm:$0xff] %vm4101, %v5967
      %v6001 = vld [vmem:[%s3548 + $0x8] sm:$0xff]
      %v6002 = vld [vmem:[%s3548 + $0x10] sm:$0xff]
      %v6003 = vld [vmem:[%s3548 + $0x20] sm:$0xff]
      %v6004 = vld [vmem:[%s3548 + $0x28] sm:$0xff]
      %v6005 = vld [vmem:[%s3548 + $0x38] sm:$0xff]
      %v6006 = vld [vmem:[%s3548 + $0x40] sm:$0xff]
      %v6007 = vld [vmem:[%s3548 + $0x50] sm:$0xff]
      %v6008 = vld [vmem:[%s3548 + $0x58] sm:$0xff]
      %v6009 = vld [vmem:[%s3548 + $0x68] sm:$0xff]
      %v6010 = vld [vmem:[%s3548 + $0x70] sm:$0xff]
      %v6011 = vld [vmem:[%s3548 + $0x80] sm:$0xff]
      %v6012 = vld [vmem:[%s3548 + $0x88] sm:$0xff]
      %v6013 = vld [vmem:[%s3548 + $0x98] sm:$0xff]
      %v6014 = vld [vmem:[%s3548 + $0xa0] sm:$0xff]
      %v6015 = vld [vmem:[%s3548 + $0xb0] sm:$0xff]
      %v6016 = vld [vmem:[%s3548 + $0xb8] sm:$0xff]
      %v6017 = vld [vmem:[%s3548 + $0xc8] sm:$0xff]
      %v6018 = vld [vmem:[%s3548 + $0xd0] sm:$0xff]
      %v6019 = vld [vmem:[%s3548 + $0xe0] sm:$0xff]
      %v6020 = vld [vmem:[%s3548 + $0xe8] sm:$0xff]
      %v6021 = vld [vmem:[%s3548 + $0xf8] sm:$0xff]
      %v6022 = vld [vmem:[%s3548 + $0x100] sm:$0xff]
      %v6023 = vld [vmem:[%s3548 + $0x110] sm:$0xff]
      %v6024 = vld [vmem:[%s3548 + $0x118] sm:$0xff]
      %v6025 = vld [vmem:[%s3548 + $0x128] sm:$0xff]
      %v6026 = vld [vmem:[%s3548 + $0x130] sm:$0xff]
      %v6027 = vld [vmem:[%s3548 + $0x140] sm:$0xff]
      %v6028 = vld [vmem:[%s3548 + $0x148] sm:$0xff]
      %v6029 = vld [vmem:[%s3548 + $0x158] sm:$0xff]
      %v6030 = vld [vmem:[%s3548 + $0x160] sm:$0xff]
      %v6031 = vld [vmem:[%s3548 + $0x170] sm:$0xff]
      %v6032 = vld [vmem:[%s3548 + $0x178] sm:$0xff]
      %s6033 = scalar_lea.vmem %s2, 768
      %v6034 = vld [vmem:[%s6033] sm:$0xf]
      %v6035 = vld [vmem:[%s6033 + $0x4] sm:$0xf]
      %v6036 = vld [vmem:[%s6033 + $0x8] sm:$0xf]
      %v6037 = vld [vmem:[%s6033 + $0xc] sm:$0xf]
      %v6038 = vld [vmem:[%s6033 + $0x10] sm:$0xf]
      %v6039 = vld [vmem:[%s6033 + $0x14] sm:$0xf]
      %v6040 = vld [vmem:[%s6033 + $0x18] sm:$0xf]
      %v6041 = vld [vmem:[%s6033 + $0x1c] sm:$0xf]
      %v6042 = vld [vmem:[%s6033 + $0x20] sm:$0xf]
      %v6043 = vld [vmem:[%s6033 + $0x24] sm:$0xf]
      %v6044 = vld [vmem:[%s6033 + $0x28] sm:$0xf]
      %v6045 = vld [vmem:[%s6033 + $0x2c] sm:$0xf]
      %v6046 = vld [vmem:[%s6033 + $0x30] sm:$0xf]
      %v6047 = vld [vmem:[%s6033 + $0x34] sm:$0xf]
      %v6048 = vld [vmem:[%s6033 + $0x38] sm:$0xf]
      %v6049 = vld [vmem:[%s6033 + $0x3c] sm:$0xf]
      %v6050 = vld [vmem:[%s6033 + $0x40] sm:$0xf]
      %v6051 = vld [vmem:[%s6033 + $0x44] sm:$0xf]
      %v6052 = vld [vmem:[%s6033 + $0x48] sm:$0xf]
      %v6053 = vld [vmem:[%s6033 + $0x4c] sm:$0xf]
      %v6054 = vld [vmem:[%s6033 + $0x50] sm:$0xf]
      %v6055 = vld [vmem:[%s6033 + $0x54] sm:$0xf]
      %v6056 = vld [vmem:[%s6033 + $0x58] sm:$0xf]
      %v6057 = vld [vmem:[%s6033 + $0x5c] sm:$0xf]
      %v6058 = vld [vmem:[%s6033 + $0x60] sm:$0xf]
      %v6059 = vld [vmem:[%s6033 + $0x64] sm:$0xf]
      %v6060 = vld [vmem:[%s6033 + $0x68] sm:$0xf]
      %v6061 = vld [vmem:[%s6033 + $0x6c] sm:$0xf]
      %v6062 = vld [vmem:[%s6033 + $0x70] sm:$0xf]
      %v6063 = vld [vmem:[%s6033 + $0x74] sm:$0xf]
      %v6064 = vld [vmem:[%s6033 + $0x78] sm:$0xf]
      %v6065 = vld [vmem:[%s6033 + $0x7c] sm:$0xf]
      %v6098 = vunpack.c.l.b16 %v6034
      %v6099 = vunpack.c.l.b16 %v6035
      %v6100 = vunpack.c.l.b16 %v6036
      %v6101 = vunpack.c.l.b16 %v6037
      %v6102 = vunpack.c.l.b16 %v6038
      %v6103 = vunpack.c.l.b16 %v6039
      %v6104 = vunpack.c.l.b16 %v6040
      %v6105 = vunpack.c.l.b16 %v6041
      %v6106 = vunpack.c.l.b16 %v6042
      %v6107 = vunpack.c.l.b16 %v6043
      %v6108 = vunpack.c.l.b16 %v6044
      %v6109 = vunpack.c.l.b16 %v6045
      %v6110 = vunpack.c.l.b16 %v6046
      %v6111 = vunpack.c.l.b16 %v6047
      %v6112 = vunpack.c.l.b16 %v6048
      %v6113 = vunpack.c.l.b16 %v6049
      %v6114 = vunpack.c.l.b16 %v6050
      %v6115 = vunpack.c.l.b16 %v6051
      %v6116 = vunpack.c.l.b16 %v6052
      %v6117 = vunpack.c.l.b16 %v6053
      %v6118 = vunpack.c.l.b16 %v6054
      %v6119 = vunpack.c.l.b16 %v6055
      %v6120 = vunpack.c.l.b16 %v6056
      %v6121 = vunpack.c.l.b16 %v6057
      %v6122 = vunpack.c.l.b16 %v6058
      %v6123 = vunpack.c.l.b16 %v6059
      %v6124 = vunpack.c.l.b16 %v6060
      %v6125 = vunpack.c.l.b16 %v6061
      %v6126 = vunpack.c.l.b16 %v6062
      %v6127 = vunpack.c.l.b16 %v6063
      %v6128 = vunpack.c.l.b16 %v6064
      %v6129 = vunpack.c.l.b16 %v6065
      %v6130 = vpack.c.b16 %v6099, %v6098
      %v6131 = vpack.c.b16 %v6101, %v6100
      %v6132 = vpack.c.b16 %v6103, %v6102
      %v6133 = vpack.c.b16 %v6105, %v6104
      %v6134 = vpack.c.b16 %v6107, %v6106
      %v6135 = vpack.c.b16 %v6109, %v6108
      %v6136 = vpack.c.b16 %v6111, %v6110
      %v6137 = vpack.c.b16 %v6113, %v6112
      %v6138 = vpack.c.b16 %v6115, %v6114
      %v6139 = vpack.c.b16 %v6117, %v6116
      %v6140 = vpack.c.b16 %v6119, %v6118
      %v6141 = vpack.c.b16 %v6121, %v6120
      %v6142 = vpack.c.b16 %v6123, %v6122
      %v6143 = vpack.c.b16 %v6125, %v6124
      %v6144 = vpack.c.b16 %v6127, %v6126
      %v6145 = vpack.c.b16 %v6129, %v6128
      %6162 = vmatprep.subr.bf16.mxu0 0
      %6163 = vmatpush1.bf16.msra.mxu0 %v6130
      %6164 = vmatprep.subr.bf16.mxu0 0
      %6165 = vmatpush1.bf16.msra.mxu0 %v6131
      %6166 = vmatprep.subr.bf16.mxu0 0
      %6167 = vmatpush1.bf16.msra.mxu0 %v6132
      %6168 = vmatprep.subr.bf16.mxu0 0
      %6169 = vmatpush1.bf16.msra.mxu0 %v6133
      %6170 = vmatprep.subr.bf16.mxu0 0
      %6171 = vmatpush1.bf16.msra.mxu0 %v6134
      %6172 = vmatprep.subr.bf16.mxu0 0
      %6173 = vmatpush1.bf16.msra.mxu0 %v6135
      %6174 = vmatprep.subr.bf16.mxu0 0
      %6175 = vmatpush1.bf16.msra.mxu0 %v6136
      %6176 = vmatprep.subr.bf16.mxu0 0
      %6177 = vmatpush1.bf16.msra.mxu0 %v6137
      %6178 = vmatprep.subr.bf16.mxu0 0
      %6179 = vmatpush1.bf16.msra.mxu0 %v6138
      %6180 = vmatprep.subr.bf16.mxu0 0
      %6181 = vmatpush1.bf16.msra.mxu0 %v6139
      %6182 = vmatprep.subr.bf16.mxu0 0
      %6183 = vmatpush1.bf16.msra.mxu0 %v6140
      %6184 = vmatprep.subr.bf16.mxu0 0
      %6185 = vmatpush1.bf16.msra.mxu0 %v6141
      %6186 = vmatprep.subr.bf16.mxu0 0
      %6187 = vmatpush1.bf16.msra.mxu0 %v6142
      %6188 = vmatprep.subr.bf16.mxu0 0
      %6189 = vmatpush1.bf16.msra.mxu0 %v6143
      %6190 = vmatprep.subr.bf16.mxu0 0
      %6191 = vmatpush1.bf16.msra.mxu0 %v6144
      %6192 = vmatprep.subr.bf16.mxu0 0
      %6193 = vmatpush1.bf16.msra.mxu0 %v6145
      %6194 = vmatprep.mubr.bf16.mxu0 %v6002
      %6195 = vmatmul.mubr.bf16.gmra.mrb[0].mxu0 %v6001
      %v6196 = vpop.f32.mrb[0].mxu0
      %v6197 = vadd.f32 0.0, %v6196
      %v6198 = vpop.f32.mrb[0].mxu0
      %v6199 = vpop.f32.mrb[0].mxu0
      %v6200 = vadd.f32 0.0, %v6199
      %v6201 = vpop.f32.mrb[0].mxu0
      %6202 = vmatprep.mubr.bf16.mxu0 %v6004
      %6203 = vmatmul.mubr.bf16.gmra.mrb[0].mxu0 %v6003
      %v6204 = vpop.f32.mrb[0].mxu0
      %v6205 = vadd.f32 0.0, %v6204
      %v6206 = vpop.f32.mrb[0].mxu0
      %v6207 = vpop.f32.mrb[0].mxu0
      %v6208 = vadd.f32 0.0, %v6207
      %v6209 = vpop.f32.mrb[0].mxu0
      %6210 = vmatprep.mubr.bf16.mxu0 %v6006
      %6211 = vmatmul.mubr.bf16.gmra.mrb[0].mxu0 %v6005
      %v6212 = vpop.f32.mrb[0].mxu0
      %v6213 = vadd.f32 0.0, %v6212
      %v6214 = vpop.f32.mrb[0].mxu0
      %v6215 = vpop.f32.mrb[0].mxu0
      %v6216 = vadd.f32 0.0, %v6215
      %v6217 = vpop.f32.mrb[0].mxu0
      %6218 = vmatprep.mubr.bf16.mxu0 %v6008
      %6219 = vmatmul.mubr.bf16.gmra.mrb[0].mxu0 %v6007
      %v6220 = vpop.f32.mrb[0].mxu0
      %v6221 = vadd.f32 0.0, %v6220
      %v6222 = vpop.f32.mrb[0].mxu0
      %v6223 = vpop.f32.mrb[0].mxu0
      %v6224 = vadd.f32 0.0, %v6223
      %v6225 = vpop.f32.mrb[0].mxu0
      %6226 = vmatprep.mubr.bf16.mxu0 %v6010
      %6227 = vmatmul.mubr.bf16.gmra.mrb[0].mxu0 %v6009
      %v6228 = vpop.f32.mrb[0].mxu0
      %v6229 = vadd.f32 0.0, %v6228
      %v6230 = vpop.f32.mrb[0].mxu0
      %v6231 = vpop.f32.mrb[0].mxu0
      %v6232 = vadd.f32 0.0, %v6231
      %v6233 = vpop.f32.mrb[0].mxu0
      %6234 = vmatprep.mubr.bf16.mxu0 %v6012
      %6235 = vmatmul.mubr.bf16.gmra.mrb[0].mxu0 %v6011
      %v6236 = vpop.f32.mrb[0].mxu0
      %v6237 = vadd.f32 0.0, %v6236
      %v6238 = vpop.f32.mrb[0].mxu0
      %v6239 = vpop.f32.mrb[0].mxu0
      %v6240 = vadd.f32 0.0, %v6239
      %v6241 = vpop.f32.mrb[0].mxu0
      %6242 = vmatprep.mubr.bf16.mxu0 %v6014
      %6243 = vmatmul.mubr.bf16.gmra.mrb[0].mxu0 %v6013
      %v6244 = vpop.f32.mrb[0].mxu0
      %v6245 = vadd.f32 0.0, %v6244
      %v6246 = vpop.f32.mrb[0].mxu0
      %v6247 = vpop.f32.mrb[0].mxu0
      %v6248 = vadd.f32 0.0, %v6247
      %v6249 = vpop.f32.mrb[0].mxu0
      %6250 = vmatprep.mubr.bf16.mxu0 %v6016
      %6251 = vmatmul.mubr.bf16.gmra.mrb[0].mxu0 %v6015
      %v6252 = vpop.f32.mrb[0].mxu0
      %v6253 = vadd.f32 0.0, %v6252
      %v6254 = vpop.f32.mrb[0].mxu0
      %v6255 = vpop.f32.mrb[0].mxu0
      %v6256 = vadd.f32 0.0, %v6255
      %v6257 = vpop.f32.mrb[0].mxu0
      %6258 = vmatprep.mubr.bf16.mxu0 %v6018
      %6259 = vmatmul.mubr.bf16.gmra.mrb[0].mxu0 %v6017
      %v6260 = vpop.f32.mrb[0].mxu0
      %v6261 = vadd.f32 0.0, %v6260
      %v6262 = vpop.f32.mrb[0].mxu0
      %v6263 = vpop.f32.mrb[0].mxu0
      %v6264 = vadd.f32 0.0, %v6263
      %v6265 = vpop.f32.mrb[0].mxu0
      %6266 = vmatprep.mubr.bf16.mxu0 %v6020
      %6267 = vmatmul.mubr.bf16.gmra.mrb[0].mxu0 %v6019
      %v6268 = vpop.f32.mrb[0].mxu0
      %v6269 = vadd.f32 0.0, %v6268
      %v6270 = vpop.f32.mrb[0].mxu0
      %v6271 = vpop.f32.mrb[0].mxu0
      %v6272 = vadd.f32 0.0, %v6271
      %v6273 = vpop.f32.mrb[0].mxu0
      %6274 = vmatprep.mubr.bf16.mxu0 %v6022
      %6275 = vmatmul.mubr.bf16.gmra.mrb[0].mxu0 %v6021
      %v6276 = vpop.f32.mrb[0].mxu0
      %v6277 = vadd.f32 0.0, %v6276
      %v6278 = vpop.f32.mrb[0].mxu0
      %v6279 = vpop.f32.mrb[0].mxu0
      %v6280 = vadd.f32 0.0, %v6279
      %v6281 = vpop.f32.mrb[0].mxu0
      %6282 = vmatprep.mubr.bf16.mxu0 %v6024
      %6283 = vmatmul.mubr.bf16.gmra.mrb[0].mxu0 %v6023
      %v6284 = vpop.f32.mrb[0].mxu0
      %v6285 = vadd.f32 0.0, %v6284
      %v6286 = vpop.f32.mrb[0].mxu0
      %v6287 = vpop.f32.mrb[0].mxu0
      %v6288 = vadd.f32 0.0, %v6287
      %v6289 = vpop.f32.mrb[0].mxu0
      %6290 = vmatprep.mubr.bf16.mxu0 %v6026
      %6291 = vmatmul.mubr.bf16.gmra.mrb[0].mxu0 %v6025
      %v6292 = vpop.f32.mrb[0].mxu0
      %v6293 = vadd.f32 0.0, %v6292
      %v6294 = vpop.f32.mrb[0].mxu0
      %v6295 = vpop.f32.mrb[0].mxu0
      %v6296 = vadd.f32 0.0, %v6295
      %v6297 = vpop.f32.mrb[0].mxu0
      %6298 = vmatprep.mubr.bf16.mxu0 %v6028
      %6299 = vmatmul.mubr.bf16.gmra.mrb[0].mxu0 %v6027
      %v6300 = vpop.f32.mrb[0].mxu0
      %v6301 = vadd.f32 0.0, %v6300
      %v6302 = vpop.f32.mrb[0].mxu0
      %v6303 = vpop.f32.mrb[0].mxu0
      %v6304 = vadd.f32 0.0, %v6303
      %v6305 = vpop.f32.mrb[0].mxu0
      %6306 = vmatprep.mubr.bf16.mxu0 %v6030
      %6307 = vmatmul.mubr.bf16.gmra.mrb[0].mxu0 %v6029
      %v6308 = vpop.f32.mrb[0].mxu0
      %v6309 = vadd.f32 0.0, %v6308
      %v6310 = vpop.f32.mrb[0].mxu0
      %v6311 = vpop.f32.mrb[0].mxu0
      %v6312 = vadd.f32 0.0, %v6311
      %v6313 = vpop.f32.mrb[0].mxu0
      %6314 = vmatprep.mubr.bf16.mxu0 %v6032
      %6315 = vmatmul.mubr.bf16.gmra.mrb[0].mxu0 %v6031
      %v6316 = vpop.f32.mrb[0].mxu0
      %v6317 = vadd.f32 0.0, %v6316
      %v6318 = vpop.f32.mrb[0].mxu0
      %v6319 = vpop.f32.mrb[0].mxu0
      %v6320 = vadd.f32 0.0, %v6319
      %v6321 = vpop.f32.mrb[0].mxu0
      %6322 = vdwg.mxu0
      %6323 = vst [vmem:[#allocation5] sm:$0xff] %v6197
      %6324 = vst [vmem:[#allocation5 + $0x8] sm:$0xff] %v6200
      %6325 = vst [vmem:[#allocation5 + $0x10] sm:$0xff] %v6205
      %6326 = vst [vmem:[#allocation5 + $0x18] sm:$0xff] %v6208
      %6327 = vst [vmem:[#allocation5 + $0x20] sm:$0xff] %v6213
      %6328 = vst [vmem:[#allocation5 + $0x28] sm:$0xff] %v6216
      %6329 = vst [vmem:[#allocation5 + $0x30] sm:$0xff] %v6221
      %6330 = vst [vmem:[#allocation5 + $0x38] sm:$0xff] %v6224
      %6331 = vst [vmem:[#allocation5 + $0x40] sm:$0xff] %v6229
      %6332 = vst [vmem:[#allocation5 + $0x48] sm:$0xff] %v6232
      %6333 = vst [vmem:[#allocation5 + $0x50] sm:$0xff] %v6237
      %6334 = vst [vmem:[#allocation5 + $0x58] sm:$0xff] %v6240
      %6335 = vst [vmem:[#allocation5 + $0x60] sm:$0xff] %v6245
      %6336 = vst [vmem:[#allocation5 + $0x68] sm:$0xff] %v6248
      %6337 = vst [vmem:[#allocation5 + $0x70] sm:$0xff] %v6253
      %6338 = vst [vmem:[#allocation5 + $0x78] sm:$0xff] %v6256
      %6339 = vst [vmem:[#allocation5 + $0x80] sm:$0xff] %v6261
      %6340 = vst [vmem:[#allocation5 + $0x88] sm:$0xff] %v6264
      %6341 = vst [vmem:[#allocation5 + $0x90] sm:$0xff] %v6269
      %6342 = vst [vmem:[#allocation5 + $0x98] sm:$0xff] %v6272
      %6343 = vst [vmem:[#allocation5 + $0xa0] sm:$0xff] %v6277
      %6344 = vst [vmem:[#allocation5 + $0xa8] sm:$0xff] %v6280
      %6345 = vst [vmem:[#allocation5 + $0xb0] sm:$0xff] %v6285
      %6346 = vst [vmem:[#allocation5 + $0xb8] sm:$0xff] %v6288
      %6347 = vst [vmem:[#allocation5 + $0xc0] sm:$0xff] %v6293
      %6348 = vst [vmem:[#allocation5 + $0xc8] sm:$0xff] %v6296
      %6349 = vst [vmem:[#allocation5 + $0xd0] sm:$0xff] %v6301
      %6350 = vst [vmem:[#allocation5 + $0xd8] sm:$0xff] %v6304
      %6351 = vst [vmem:[#allocation5 + $0xe0] sm:$0xff] %v6309
      %6352 = vst [vmem:[#allocation5 + $0xe8] sm:$0xff] %v6312
      %6353 = vst [vmem:[#allocation5 + $0xf0] sm:$0xff] %v6317
      %6354 = vst [vmem:[#allocation5 + $0xf8] sm:$0xff] %v6320
      %v6355 = vld [vmem:[%s5421 + $0x8] sm:$0xff]
      %v6356 = vld [vmem:[%s5421 + $0x10] sm:$0xff]
      %v6357 = vld [vmem:[%s5421 + $0x20] sm:$0xff]
      %v6358 = vld [vmem:[%s5421 + $0x28] sm:$0xff]
      %v6359 = vld [vmem:[%s5421 + $0x38] sm:$0xff]
      %v6360 = vld [vmem:[%s5421 + $0x40] sm:$0xff]
      %v6361 = vld [vmem:[%s5421 + $0x50] sm:$0xff]
      %v6362 = vld [vmem:[%s5421 + $0x58] sm:$0xff]
      %v6363 = vld [vmem:[%s5421 + $0x68] sm:$0xff]
      %v6364 = vld [vmem:[%s5421 + $0x70] sm:$0xff]
      %v6365 = vld [vmem:[%s5421 + $0x80] sm:$0xff]
      %v6366 = vld [vmem:[%s5421 + $0x88] sm:$0xff]
      %v6367 = vld [vmem:[%s5421 + $0x98] sm:$0xff]
      %v6368 = vld [vmem:[%s5421 + $0xa0] sm:$0xff]
      %v6369 = vld [vmem:[%s5421 + $0xb0] sm:$0xff]
      %v6370 = vld [vmem:[%s5421 + $0xb8] sm:$0xff]
      %v6371 = vld [vmem:[%s5421 + $0xc8] sm:$0xff]
      %v6372 = vld [vmem:[%s5421 + $0xd0] sm:$0xff]
      %v6373 = vld [vmem:[%s5421 + $0xe0] sm:$0xff]
      %v6374 = vld [vmem:[%s5421 + $0xe8] sm:$0xff]
      %v6375 = vld [vmem:[%s5421 + $0xf8] sm:$0xff]
      %v6376 = vld [vmem:[%s5421 + $0x100] sm:$0xff]
      %v6377 = vld [vmem:[%s5421 + $0x110] sm:$0xff]
      %v6378 = vld [vmem:[%s5421 + $0x118] sm:$0xff]
      %v6379 = vld [vmem:[%s5421 + $0x128] sm:$0xff]
      %v6380 = vld [vmem:[%s5421 + $0x130] sm:$0xff]
      %v6381 = vld [vmem:[%s5421 + $0x140] sm:$0xff]
      %v6382 = vld [vmem:[%s5421 + $0x148] sm:$0xff]
      %v6383 = vld [vmem:[%s5421 + $0x158] sm:$0xff]
      %v6384 = vld [vmem:[%s5421 + $0x160] sm:$0xff]
      %v6385 = vld [vmem:[%s5421 + $0x170] sm:$0xff]
      %v6386 = vld [vmem:[%s5421 + $0x178] sm:$0xff]
      %s6387 = scalar_lea.vmem %s2, 896
      %v6388 = vld [vmem:[%s6387] sm:$0xf]
      %v6389 = vld [vmem:[%s6387 + $0x4] sm:$0xf]
      %v6390 = vld [vmem:[%s6387 + $0x8] sm:$0xf]
      %v6391 = vld [vmem:[%s6387 + $0xc] sm:$0xf]
      %v6392 = vld [vmem:[%s6387 + $0x10] sm:$0xf]
      %v6393 = vld [vmem:[%s6387 + $0x14] sm:$0xf]
      %v6394 = vld [vmem:[%s6387 + $0x18] sm:$0xf]
      %v6395 = vld [vmem:[%s6387 + $0x1c] sm:$0xf]
      %v6396 = vld [vmem:[%s6387 + $0x20] sm:$0xf]
      %v6397 = vld [vmem:[%s6387 + $0x24] sm:$0xf]
      %v6398 = vld [vmem:[%s6387 + $0x28] sm:$0xf]
      %v6399 = vld [vmem:[%s6387 + $0x2c] sm:$0xf]
      %v6400 = vld [vmem:[%s6387 + $0x30] sm:$0xf]
      %v6401 = vld [vmem:[%s6387 + $0x34] sm:$0xf]
      %v6402 = vld [vmem:[%s6387 + $0x38] sm:$0xf]
      %v6403 = vld [vmem:[%s6387 + $0x3c] sm:$0xf]
      %v6404 = vld [vmem:[%s6387 + $0x40] sm:$0xf]
      %v6405 = vld [vmem:[%s6387 + $0x44] sm:$0xf]
      %v6406 = vld [vmem:[%s6387 + $0x48] sm:$0xf]
      %v6407 = vld [vmem:[%s6387 + $0x4c] sm:$0xf]
      %v6408 = vld [vmem:[%s6387 + $0x50] sm:$0xf]
      %v6409 = vld [vmem:[%s6387 + $0x54] sm:$0xf]
      %v6410 = vld [vmem:[%s6387 + $0x58] sm:$0xf]
      %v6411 = vld [vmem:[%s6387 + $0x5c] sm:$0xf]
      %v6412 = vld [vmem:[%s6387 + $0x60] sm:$0xf]
      %v6413 = vld [vmem:[%s6387 + $0x64] sm:$0xf]
      %v6414 = vld [vmem:[%s6387 + $0x68] sm:$0xf]
      %v6415 = vld [vmem:[%s6387 + $0x6c] sm:$0xf]
      %v6416 = vld [vmem:[%s6387 + $0x70] sm:$0xf]
      %v6417 = vld [vmem:[%s6387 + $0x74] sm:$0xf]
      %v6418 = vld [vmem:[%s6387 + $0x78] sm:$0xf]
      %v6419 = vld [vmem:[%s6387 + $0x7c] sm:$0xf]
      %v6452 = vunpack.c.l.b16 %v6388
      %v6453 = vunpack.c.l.b16 %v6389
      %v6454 = vunpack.c.l.b16 %v6390
      %v6455 = vunpack.c.l.b16 %v6391
      %v6456 = vunpack.c.l.b16 %v6392
      %v6457 = vunpack.c.l.b16 %v6393
      %v6458 = vunpack.c.l.b16 %v6394
      %v6459 = vunpack.c.l.b16 %v6395
      %v6460 = vunpack.c.l.b16 %v6396
      %v6461 = vunpack.c.l.b16 %v6397
      %v6462 = vunpack.c.l.b16 %v6398
      %v6463 = vunpack.c.l.b16 %v6399
      %v6464 = vunpack.c.l.b16 %v6400
      %v6465 = vunpack.c.l.b16 %v6401
      %v6466 = vunpack.c.l.b16 %v6402
      %v6467 = vunpack.c.l.b16 %v6403
      %v6468 = vunpack.c.l.b16 %v6404
      %v6469 = vunpack.c.l.b16 %v6405
      %v6470 = vunpack.c.l.b16 %v6406
      %v6471 = vunpack.c.l.b16 %v6407
      %v6472 = vunpack.c.l.b16 %v6408
      %v6473 = vunpack.c.l.b16 %v6409
      %v6474 = vunpack.c.l.b16 %v6410
      %v6475 = vunpack.c.l.b16 %v6411
      %v6476 = vunpack.c.l.b16 %v6412
      %v6477 = vunpack.c.l.b16 %v6413
      %v6478 = vunpack.c.l.b16 %v6414
      %v6479 = vunpack.c.l.b16 %v6415
      %v6480 = vunpack.c.l.b16 %v6416
      %v6481 = vunpack.c.l.b16 %v6417
      %v6482 = vunpack.c.l.b16 %v6418
      %v6483 = vunpack.c.l.b16 %v6419
      %v6484 = vpack.c.b16 %v6453, %v6452
      %v6485 = vpack.c.b16 %v6455, %v6454
      %v6486 = vpack.c.b16 %v6457, %v6456
      %v6487 = vpack.c.b16 %v6459, %v6458
      %v6488 = vpack.c.b16 %v6461, %v6460
      %v6489 = vpack.c.b16 %v6463, %v6462
      %v6490 = vpack.c.b16 %v6465, %v6464
      %v6491 = vpack.c.b16 %v6467, %v6466
      %v6492 = vpack.c.b16 %v6469, %v6468
      %v6493 = vpack.c.b16 %v6471, %v6470
      %v6494 = vpack.c.b16 %v6473, %v6472
      %v6495 = vpack.c.b16 %v6475, %v6474
      %v6496 = vpack.c.b16 %v6477, %v6476
      %v6497 = vpack.c.b16 %v6479, %v6478
      %v6498 = vpack.c.b16 %v6481, %v6480
      %v6499 = vpack.c.b16 %v6483, %v6482
      %6516 = vmatprep.subr.bf16.mxu0 0
      %6517 = vmatpush1.bf16.msra.mxu0 %v6484
      %6518 = vmatprep.subr.bf16.mxu0 0
      %6519 = vmatpush1.bf16.msra.mxu0 %v6485
      %6520 = vmatprep.subr.bf16.mxu0 0
      %6521 = vmatpush1.bf16.msra.mxu0 %v6486
      %6522 = vmatprep.subr.bf16.mxu0 0
      %6523 = vmatpush1.bf16.msra.mxu0 %v6487
      %6524 = vmatprep.subr.bf16.mxu0 0
      %6525 = vmatpush1.bf16.msra.mxu0 %v6488
      %6526 = vmatprep.subr.bf16.mxu0 0
      %6527 = vmatpush1.bf16.msra.mxu0 %v6489
      %6528 = vmatprep.subr.bf16.mxu0 0
      %6529 = vmatpush1.bf16.msra.mxu0 %v6490
      %6530 = vmatprep.subr.bf16.mxu0 0
      %6531 = vmatpush1.bf16.msra.mxu0 %v6491
      %6532 = vmatprep.subr.bf16.mxu0 0
      %6533 = vmatpush1.bf16.msra.mxu0 %v6492
      %6534 = vmatprep.subr.bf16.mxu0 0
      %6535 = vmatpush1.bf16.msra.mxu0 %v6493
      %6536 = vmatprep.subr.bf16.mxu0 0
      %6537 = vmatpush1.bf16.msra.mxu0 %v6494
      %6538 = vmatprep.subr.bf16.mxu0 0
      %6539 = vmatpush1.bf16.msra.mxu0 %v6495
      %6540 = vmatprep.subr.bf16.mxu0 0
      %6541 = vmatpush1.bf16.msra.mxu0 %v6496
      %6542 = vmatprep.subr.bf16.mxu0 0
      %6543 = vmatpush1.bf16.msra.mxu0 %v6497
      %6544 = vmatprep.subr.bf16.mxu0 0
      %6545 = vmatpush1.bf16.msra.mxu0 %v6498
      %6546 = vmatprep.subr.bf16.mxu0 0
      %6547 = vmatpush1.bf16.msra.mxu0 %v6499
      %6548 = vmatprep.mubr.bf16.mxu0 %v6356
      %6549 = vmatmul.mubr.bf16.gmra.mrb[0].mxu0 %v6355
      %v6550 = vpop.f32.mrb[0].mxu0
      %v6551 = vadd.f32 0.0, %v6550
      %v6552 = vpop.f32.mrb[0].mxu0
      %v6553 = vpop.f32.mrb[0].mxu0
      %v6554 = vadd.f32 0.0, %v6553
      %v6555 = vpop.f32.mrb[0].mxu0
      %6556 = vmatprep.mubr.bf16.mxu0 %v6358
      %6557 = vmatmul.mubr.bf16.gmra.mrb[0].mxu0 %v6357
      %v6558 = vpop.f32.mrb[0].mxu0
      %v6559 = vadd.f32 0.0, %v6558
      %v6560 = vpop.f32.mrb[0].mxu0
      %v6561 = vpop.f32.mrb[0].mxu0
      %v6562 = vadd.f32 0.0, %v6561
      %v6563 = vpop.f32.mrb[0].mxu0
      %6564 = vmatprep.mubr.bf16.mxu0 %v6360
      %6565 = vmatmul.mubr.bf16.gmra.mrb[0].mxu0 %v6359
      %v6566 = vpop.f32.mrb[0].mxu0
      %v6567 = vadd.f32 0.0, %v6566
      %v6568 = vpop.f32.mrb[0].mxu0
      %v6569 = vpop.f32.mrb[0].mxu0
      %v6570 = vadd.f32 0.0, %v6569
      %v6571 = vpop.f32.mrb[0].mxu0
      %6572 = vmatprep.mubr.bf16.mxu0 %v6362
      %6573 = vmatmul.mubr.bf16.gmra.mrb[0].mxu0 %v6361
      %v6574 = vpop.f32.mrb[0].mxu0
      %v6575 = vadd.f32 0.0, %v6574
      %v6576 = vpop.f32.mrb[0].mxu0
      %v6577 = vpop.f32.mrb[0].mxu0
      %v6578 = vadd.f32 0.0, %v6577
      %v6579 = vpop.f32.mrb[0].mxu0
      %6580 = vmatprep.mubr.bf16.mxu0 %v6364
      %6581 = vmatmul.mubr.bf16.gmra.mrb[0].mxu0 %v6363
      %v6582 = vpop.f32.mrb[0].mxu0
      %v6583 = vadd.f32 0.0, %v6582
      %v6584 = vpop.f32.mrb[0].mxu0
      %v6585 = vpop.f32.mrb[0].mxu0
      %v6586 = vadd.f32 0.0, %v6585
      %v6587 = vpop.f32.mrb[0].mxu0
      %6588 = vmatprep.mubr.bf16.mxu0 %v6366
      %6589 = vmatmul.mubr.bf16.gmra.mrb[0].mxu0 %v6365
      %v6590 = vpop.f32.mrb[0].mxu0
      %v6591 = vadd.f32 0.0, %v6590
      %v6592 = vpop.f32.mrb[0].mxu0
      %v6593 = vpop.f32.mrb[0].mxu0
      %v6594 = vadd.f32 0.0, %v6593
      %v6595 = vpop.f32.mrb[0].mxu0
      %6596 = vmatprep.mubr.bf16.mxu0 %v6368
      %6597 = vmatmul.mubr.bf16.gmra.mrb[0].mxu0 %v6367
      %v6598 = vpop.f32.mrb[0].mxu0
      %v6599 = vadd.f32 0.0, %v6598
      %v6600 = vpop.f32.mrb[0].mxu0
      %v6601 = vpop.f32.mrb[0].mxu0
      %v6602 = vadd.f32 0.0, %v6601
      %v6603 = vpop.f32.mrb[0].mxu0
      %6604 = vmatprep.mubr.bf16.mxu0 %v6370
      %6605 = vmatmul.mubr.bf16.gmra.mrb[0].mxu0 %v6369
      %v6606 = vpop.f32.mrb[0].mxu0
      %v6607 = vadd.f32 0.0, %v6606
      %v6608 = vpop.f32.mrb[0].mxu0
      %v6609 = vpop.f32.mrb[0].mxu0
      %v6610 = vadd.f32 0.0, %v6609
      %v6611 = vpop.f32.mrb[0].mxu0
      %6612 = vmatprep.mubr.bf16.mxu0 %v6372
      %6613 = vmatmul.mubr.bf16.gmra.mrb[0].mxu0 %v6371
      %v6614 = vpop.f32.mrb[0].mxu0
      %v6615 = vadd.f32 0.0, %v6614
      %v6616 = vpop.f32.mrb[0].mxu0
      %v6617 = vpop.f32.mrb[0].mxu0
      %v6618 = vadd.f32 0.0, %v6617
      %v6619 = vpop.f32.mrb[0].mxu0
      %6620 = vmatprep.mubr.bf16.mxu0 %v6374
      %6621 = vmatmul.mubr.bf16.gmra.mrb[0].mxu0 %v6373
      %v6622 = vpop.f32.mrb[0].mxu0
      %v6623 = vadd.f32 0.0, %v6622
      %v6624 = vpop.f32.mrb[0].mxu0
      %v6625 = vpop.f32.mrb[0].mxu0
      %v6626 = vadd.f32 0.0, %v6625
      %v6627 = vpop.f32.mrb[0].mxu0
      %6628 = vmatprep.mubr.bf16.mxu0 %v6376
      %6629 = vmatmul.mubr.bf16.gmra.mrb[0].mxu0 %v6375
      %v6630 = vpop.f32.mrb[0].mxu0
      %v6631 = vadd.f32 0.0, %v6630
      %v6632 = vpop.f32.mrb[0].mxu0
      %v6633 = vpop.f32.mrb[0].mxu0
      %v6634 = vadd.f32 0.0, %v6633
      %v6635 = vpop.f32.mrb[0].mxu0
      %6636 = vmatprep.mubr.bf16.mxu0 %v6378
      %6637 = vmatmul.mubr.bf16.gmra.mrb[0].mxu0 %v6377
      %v6638 = vpop.f32.mrb[0].mxu0
      %v6639 = vadd.f32 0.0, %v6638
      %v6640 = vpop.f32.mrb[0].mxu0
      %v6641 = vpop.f32.mrb[0].mxu0
      %v6642 = vadd.f32 0.0, %v6641
      %v6643 = vpop.f32.mrb[0].mxu0
      %6644 = vmatprep.mubr.bf16.mxu0 %v6380
      %6645 = vmatmul.mubr.bf16.gmra.mrb[0].mxu0 %v6379
      %v6646 = vpop.f32.mrb[0].mxu0
      %v6647 = vadd.f32 0.0, %v6646
      %v6648 = vpop.f32.mrb[0].mxu0
      %v6649 = vpop.f32.mrb[0].mxu0
      %v6650 = vadd.f32 0.0, %v6649
      %v6651 = vpop.f32.mrb[0].mxu0
      %6652 = vmatprep.mubr.bf16.mxu0 %v6382
      %6653 = vmatmul.mubr.bf16.gmra.mrb[0].mxu0 %v6381
      %v6654 = vpop.f32.mrb[0].mxu0
      %v6655 = vadd.f32 0.0, %v6654
      %v6656 = vpop.f32.mrb[0].mxu0
      %v6657 = vpop.f32.mrb[0].mxu0
      %v6658 = vadd.f32 0.0, %v6657
      %v6659 = vpop.f32.mrb[0].mxu0
      %6660 = vmatprep.mubr.bf16.mxu0 %v6384
      %6661 = vmatmul.mubr.bf16.gmra.mrb[0].mxu0 %v6383
      %v6662 = vpop.f32.mrb[0].mxu0
      %v6663 = vadd.f32 0.0, %v6662
      %v6664 = vpop.f32.mrb[0].mxu0
      %v6665 = vpop.f32.mrb[0].mxu0
      %v6666 = vadd.f32 0.0, %v6665
      %v6667 = vpop.f32.mrb[0].mxu0
      %6668 = vmatprep.mubr.bf16.mxu0 %v6386
      %6669 = vmatmul.mubr.bf16.gmra.mrb[0].mxu0 %v6385
      %v6670 = vpop.f32.mrb[0].mxu0
      %v6671 = vadd.f32 0.0, %v6670
      %v6672 = vpop.f32.mrb[0].mxu0
      %v6673 = vpop.f32.mrb[0].mxu0
      %v6674 = vadd.f32 0.0, %v6673
      %v6675 = vpop.f32.mrb[0].mxu0
      %6676 = vdwg.mxu0
      %v6677 = vld [vmem:[#allocation5] sm:$0xff]
      %v6678 = vld [vmem:[#allocation5 + $0x8] sm:$0xff]
      %v6679 = vld [vmem:[#allocation5 + $0x10] sm:$0xff]
      %v6680 = vld [vmem:[#allocation5 + $0x18] sm:$0xff]
      %v6681 = vld [vmem:[#allocation5 + $0x20] sm:$0xff]
      %v6682 = vld [vmem:[#allocation5 + $0x28] sm:$0xff]
      %v6683 = vld [vmem:[#allocation5 + $0x30] sm:$0xff]
      %v6684 = vld [vmem:[#allocation5 + $0x38] sm:$0xff]
      %v6685 = vld [vmem:[#allocation5 + $0x40] sm:$0xff]
      %v6686 = vld [vmem:[#allocation5 + $0x48] sm:$0xff]
      %v6687 = vld [vmem:[#allocation5 + $0x50] sm:$0xff]
      %v6688 = vld [vmem:[#allocation5 + $0x58] sm:$0xff]
      %v6689 = vld [vmem:[#allocation5 + $0x60] sm:$0xff]
      %v6690 = vld [vmem:[#allocation5 + $0x68] sm:$0xff]
      %v6691 = vld [vmem:[#allocation5 + $0x70] sm:$0xff]
      %v6692 = vld [vmem:[#allocation5 + $0x78] sm:$0xff]
      %v6693 = vld [vmem:[#allocation5 + $0x80] sm:$0xff]
      %v6694 = vld [vmem:[#allocation5 + $0x88] sm:$0xff]
      %v6695 = vld [vmem:[#allocation5 + $0x90] sm:$0xff]
      %v6696 = vld [vmem:[#allocation5 + $0x98] sm:$0xff]
      %v6697 = vld [vmem:[#allocation5 + $0xa0] sm:$0xff]
      %v6698 = vld [vmem:[#allocation5 + $0xa8] sm:$0xff]
      %v6699 = vld [vmem:[#allocation5 + $0xb0] sm:$0xff]
      %v6700 = vld [vmem:[#allocation5 + $0xb8] sm:$0xff]
      %v6701 = vld [vmem:[#allocation5 + $0xc0] sm:$0xff]
      %v6702 = vld [vmem:[#allocation5 + $0xc8] sm:$0xff]
      %v6703 = vld [vmem:[#allocation5 + $0xd0] sm:$0xff]
      %v6704 = vld [vmem:[#allocation5 + $0xd8] sm:$0xff]
      %v6705 = vld [vmem:[#allocation5 + $0xe0] sm:$0xff]
      %v6706 = vld [vmem:[#allocation5 + $0xe8] sm:$0xff]
      %v6707 = vld [vmem:[#allocation5 + $0xf0] sm:$0xff]
      %v6708 = vld [vmem:[#allocation5 + $0xf8] sm:$0xff]
      %v6709 = vadd.f32 %v6677, %v6551
      %v6710 = vadd.f32 %v6678, %v6554
      %v6711 = vadd.f32 %v6679, %v6559
      %v6712 = vadd.f32 %v6680, %v6562
      %v6713 = vadd.f32 %v6681, %v6567
      %v6714 = vadd.f32 %v6682, %v6570
      %v6715 = vadd.f32 %v6683, %v6575
      %v6716 = vadd.f32 %v6684, %v6578
      %v6717 = vadd.f32 %v6685, %v6583
      %v6718 = vadd.f32 %v6686, %v6586
      %v6719 = vadd.f32 %v6687, %v6591
      %v6720 = vadd.f32 %v6688, %v6594
      %v6721 = vadd.f32 %v6689, %v6599
      %v6722 = vadd.f32 %v6690, %v6602
      %v6723 = vadd.f32 %v6691, %v6607
      %v6724 = vadd.f32 %v6692, %v6610
      %v6725 = vadd.f32 %v6693, %v6615
      %v6726 = vadd.f32 %v6694, %v6618
      %v6727 = vadd.f32 %v6695, %v6623
      %v6728 = vadd.f32 %v6696, %v6626
      %v6729 = vadd.f32 %v6697, %v6631
      %v6730 = vadd.f32 %v6698, %v6634
      %v6731 = vadd.f32 %v6699, %v6639
      %v6732 = vadd.f32 %v6700, %v6642
      %v6733 = vadd.f32 %v6701, %v6647
      %v6734 = vadd.f32 %v6702, %v6650
      %v6735 = vadd.f32 %v6703, %v6655
      %v6736 = vadd.f32 %v6704, %v6658
      %v6737 = vadd.f32 %v6705, %v6663
      %v6738 = vadd.f32 %v6706, %v6666
      %v6739 = vadd.f32 %v6707, %v6671
      %v6740 = vadd.f32 %v6708, %v6674
      %6741 = vst [vmem:[#allocation5] sm:$0xff] %v6709
      %6742 = vst [vmem:[#allocation5 + $0x8] sm:$0xff] %v6710
      %6743 = vst [vmem:[#allocation5 + $0x10] sm:$0xff] %v6711
      %6744 = vst [vmem:[#allocation5 + $0x18] sm:$0xff] %v6712
      %6745 = vst [vmem:[#allocation5 + $0x20] sm:$0xff] %v6713
      %6746 = vst [vmem:[#allocation5 + $0x28] sm:$0xff] %v6714
      %6747 = vst [vmem:[#allocation5 + $0x30] sm:$0xff] %v6715
      %6748 = vst [vmem:[#allocation5 + $0x38] sm:$0xff] %v6716
      %6749 = vst [vmem:[#allocation5 + $0x40] sm:$0xff] %v6717
      %6750 = vst [vmem:[#allocation5 + $0x48] sm:$0xff] %v6718
      %6751 = vst [vmem:[#allocation5 + $0x50] sm:$0xff] %v6719
      %6752 = vst [vmem:[#allocation5 + $0x58] sm:$0xff] %v6720
      %6753 = vst [vmem:[#allocation5 + $0x60] sm:$0xff] %v6721
      %6754 = vst [vmem:[#allocation5 + $0x68] sm:$0xff] %v6722
      %6755 = vst [vmem:[#allocation5 + $0x70] sm:$0xff] %v6723
      %6756 = vst [vmem:[#allocation5 + $0x78] sm:$0xff] %v6724
      %6757 = vst [vmem:[#allocation5 + $0x80] sm:$0xff] %v6725
      %6758 = vst [vmem:[#allocation5 + $0x88] sm:$0xff] %v6726
      %6759 = vst [vmem:[#allocation5 + $0x90] sm:$0xff] %v6727
      %6760 = vst [vmem:[#allocation5 + $0x98] sm:$0xff] %v6728
      %6761 = vst [vmem:[#allocation5 + $0xa0] sm:$0xff] %v6729
      %6762 = vst [vmem:[#allocation5 + $0xa8] sm:$0xff] %v6730
      %6763 = vst [vmem:[#allocation5 + $0xb0] sm:$0xff] %v6731
      %6764 = vst [vmem:[#allocation5 + $0xb8] sm:$0xff] %v6732
      %6765 = vst [vmem:[#allocation5 + $0xc0] sm:$0xff] %v6733
      %6766 = vst [vmem:[#allocation5 + $0xc8] sm:$0xff] %v6734
      %6767 = vst [vmem:[#allocation5 + $0xd0] sm:$0xff] %v6735
      %6768 = vst [vmem:[#allocation5 + $0xd8] sm:$0xff] %v6736
      %6769 = vst [vmem:[#allocation5 + $0xe0] sm:$0xff] %v6737
      %6770 = vst [vmem:[#allocation5 + $0xe8] sm:$0xff] %v6738
      %6771 = vst [vmem:[#allocation5 + $0xf0] sm:$0xff] %v6739
      %6772 = vst [vmem:[#allocation5 + $0xf8] sm:$0xff] %v6740
      %v6773 = vld [vmem:[#allocation5] sm:$0xff]
      %v6774 = vld [vmem:[#allocation5 + $0x8] sm:$0xff]
      %v6775 = vld [vmem:[#allocation5 + $0x10] sm:$0xff]
      %v6776 = vld [vmem:[#allocation5 + $0x18] sm:$0xff]
      %v6777 = vld [vmem:[#allocation5 + $0x20] sm:$0xff]
      %v6778 = vld [vmem:[#allocation5 + $0x28] sm:$0xff]
      %v6779 = vld [vmem:[#allocation5 + $0x30] sm:$0xff]
      %v6780 = vld [vmem:[#allocation5 + $0x38] sm:$0xff]
      %v6781 = vld [vmem:[#allocation5 + $0x40] sm:$0xff]
      %v6782 = vld [vmem:[#allocation5 + $0x48] sm:$0xff]
      %v6783 = vld [vmem:[#allocation5 + $0x50] sm:$0xff]
      %v6784 = vld [vmem:[#allocation5 + $0x58] sm:$0xff]
      %v6785 = vld [vmem:[#allocation5 + $0x60] sm:$0xff]
      %v6786 = vld [vmem:[#allocation5 + $0x68] sm:$0xff]
      %v6787 = vld [vmem:[#allocation5 + $0x70] sm:$0xff]
      %v6788 = vld [vmem:[#allocation5 + $0x78] sm:$0xff]
      %v6789 = vld [vmem:[#allocation5 + $0x80] sm:$0xff]
      %v6790 = vld [vmem:[#allocation5 + $0x88] sm:$0xff]
      %v6791 = vld [vmem:[#allocation5 + $0x90] sm:$0xff]
      %v6792 = vld [vmem:[#allocation5 + $0x98] sm:$0xff]
      %v6793 = vld [vmem:[#allocation5 + $0xa0] sm:$0xff]
      %v6794 = vld [vmem:[#allocation5 + $0xa8] sm:$0xff]
      %v6795 = vld [vmem:[#allocation5 + $0xb0] sm:$0xff]
      %v6796 = vld [vmem:[#allocation5 + $0xb8] sm:$0xff]
      %v6797 = vld [vmem:[#allocation5 + $0xc0] sm:$0xff]
      %v6798 = vld [vmem:[#allocation5 + $0xc8] sm:$0xff]
      %v6799 = vld [vmem:[#allocation5 + $0xd0] sm:$0xff]
      %v6800 = vld [vmem:[#allocation5 + $0xd8] sm:$0xff]
      %v6801 = vld [vmem:[#allocation5 + $0xe0] sm:$0xff]
      %v6802 = vld [vmem:[#allocation5 + $0xe8] sm:$0xff]
      %v6803 = vld [vmem:[#allocation5 + $0xf0] sm:$0xff]
      %v6804 = vld [vmem:[#allocation5 + $0xf8] sm:$0xff]
      %v6805 = vadd.f32 %v6773, %v4003
      %v6806 = vadd.f32 %v6774, %v4003
      %v6807 = vadd.f32 %v6775, %v4003
      %v6808 = vadd.f32 %v6776, %v4003
      %v6809 = vadd.f32 %v6777, %v4003
      %v6810 = vadd.f32 %v6778, %v4003
      %v6811 = vadd.f32 %v6779, %v4003
      %v6812 = vadd.f32 %v6780, %v4003
      %v6813 = vadd.f32 %v6781, %v4003
      %v6814 = vadd.f32 %v6782, %v4003
      %v6815 = vadd.f32 %v6783, %v4003
      %v6816 = vadd.f32 %v6784, %v4003
      %v6817 = vadd.f32 %v6785, %v4003
      %v6818 = vadd.f32 %v6786, %v4003
      %v6819 = vadd.f32 %v6787, %v4003
      %v6820 = vadd.f32 %v6788, %v4003
      %v6821 = vadd.f32 %v6789, %v4003
      %v6822 = vadd.f32 %v6790, %v4003
      %v6823 = vadd.f32 %v6791, %v4003
      %v6824 = vadd.f32 %v6792, %v4003
      %v6825 = vadd.f32 %v6793, %v4003
      %v6826 = vadd.f32 %v6794, %v4003
      %v6827 = vadd.f32 %v6795, %v4003
      %v6828 = vadd.f32 %v6796, %v4003
      %v6829 = vadd.f32 %v6797, %v4003
      %v6830 = vadd.f32 %v6798, %v4003
      %v6831 = vadd.f32 %v6799, %v4003
      %v6832 = vadd.f32 %v6800, %v4003
      %v6833 = vadd.f32 %v6801, %v4003
      %v6834 = vadd.f32 %v6802, %v4003
      %v6835 = vadd.f32 %v6803, %v4003
      %v6836 = vadd.f32 %v6804, %v4003
      %v6837 = vmul.f32 %v6805, 0.2
      %v6838 = vmul.f32 %v6806, 0.2
      %v6839 = vmul.f32 %v6807, 0.2
      %v6840 = vmul.f32 %v6808, 0.2
      %v6841 = vmul.f32 %v6809, 0.2
      %v6842 = vmul.f32 %v6810, 0.2
      %v6843 = vmul.f32 %v6811, 0.2
      %v6844 = vmul.f32 %v6812, 0.2
      %v6845 = vmul.f32 %v6813, 0.2
      %v6846 = vmul.f32 %v6814, 0.2
      %v6847 = vmul.f32 %v6815, 0.2
      %v6848 = vmul.f32 %v6816, 0.2
      %v6849 = vmul.f32 %v6817, 0.2
      %v6850 = vmul.f32 %v6818, 0.2
      %v6851 = vmul.f32 %v6819, 0.2
      %v6852 = vmul.f32 %v6820, 0.2
      %v6853 = vmul.f32 %v6821, 0.2
      %v6854 = vmul.f32 %v6822, 0.2
      %v6855 = vmul.f32 %v6823, 0.2
      %v6856 = vmul.f32 %v6824, 0.2
      %v6857 = vmul.f32 %v6825, 0.2
      %v6858 = vmul.f32 %v6826, 0.2
      %v6859 = vmul.f32 %v6827, 0.2
      %v6860 = vmul.f32 %v6828, 0.2
      %v6861 = vmul.f32 %v6829, 0.2
      %v6862 = vmul.f32 %v6830, 0.2
      %v6863 = vmul.f32 %v6831, 0.2
      %v6864 = vmul.f32 %v6832, 0.2
      %v6865 = vmul.f32 %v6833, 0.2
      %v6866 = vmul.f32 %v6834, 0.2
      %v6867 = vmul.f32 %v6835, 0.2
      %v6868 = vmul.f32 %v6836, 0.2
      %v6869 = vmax.f32 %v6805, %v6837
      %v6870 = vmax.f32 %v6806, %v6838
      %v6871 = vmax.f32 %v6807, %v6839
      %v6872 = vmax.f32 %v6808, %v6840
      %v6873 = vmax.f32 %v6809, %v6841
      %v6874 = vmax.f32 %v6810, %v6842
      %v6875 = vmax.f32 %v6811, %v6843
      %v6876 = vmax.f32 %v6812, %v6844
      %v6877 = vmax.f32 %v6813, %v6845
      %v6878 = vmax.f32 %v6814, %v6846
      %v6879 = vmax.f32 %v6815, %v6847
      %v6880 = vmax.f32 %v6816, %v6848
      %v6881 = vmax.f32 %v6817, %v6849
      %v6882 = vmax.f32 %v6818, %v6850
      %v6883 = vmax.f32 %v6819, %v6851
      %v6884 = vmax.f32 %v6820, %v6852
      %v6885 = vmax.f32 %v6821, %v6853
      %v6886 = vmax.f32 %v6822, %v6854
      %v6887 = vmax.f32 %v6823, %v6855
      %v6888 = vmax.f32 %v6824, %v6856
      %v6889 = vmax.f32 %v6825, %v6857
      %v6890 = vmax.f32 %v6826, %v6858
      %v6891 = vmax.f32 %v6827, %v6859
      %v6892 = vmax.f32 %v6828, %v6860
      %v6893 = vmax.f32 %v6829, %v6861
      %v6894 = vmax.f32 %v6830, %v6862
      %v6895 = vmax.f32 %v6831, %v6863
      %v6896 = vmax.f32 %v6832, %v6864
      %v6897 = vmax.f32 %v6833, %v6865
      %v6898 = vmax.f32 %v6834, %v6866
      %v6899 = vmax.f32 %v6835, %v6867
      %v6900 = vmax.f32 %v6836, %v6868
      %s6901 = scalar_lea.vmem %s250, 768
      %6902 = vst.msk [vmem:[%s6901] sm:$0xff] %vm4101, %v6869
      %6903 = vst.msk [vmem:[%s6901 + $0x8] sm:$0xff] %vm4101, %v6870
      %6904 = vst.msk [vmem:[%s6901 + $0x10] sm:$0xff] %vm4101, %v6871
      %6905 = vst.msk [vmem:[%s6901 + $0x18] sm:$0xff] %vm4101, %v6872
      %6906 = vst.msk [vmem:[%s6901 + $0x20] sm:$0xff] %vm4101, %v6873
      %6907 = vst.msk [vmem:[%s6901 + $0x28] sm:$0xff] %vm4101, %v6874
      %6908 = vst.msk [vmem:[%s6901 + $0x30] sm:$0xff] %vm4101, %v6875
      %6909 = vst.msk [vmem:[%s6901 + $0x38] sm:$0xff] %vm4101, %v6876
      %6910 = vst.msk [vmem:[%s6901 + $0x40] sm:$0xff] %vm4101, %v6877
      %6911 = vst.msk [vmem:[%s6901 + $0x48] sm:$0xff] %vm4101, %v6878
      %6912 = vst.msk [vmem:[%s6901 + $0x50] sm:$0xff] %vm4101, %v6879
      %6913 = vst.msk [vmem:[%s6901 + $0x58] sm:$0xff] %vm4101, %v6880
      %6914 = vst.msk [vmem:[%s6901 + $0x60] sm:$0xff] %vm4101, %v6881
      %6915 = vst.msk [vmem:[%s6901 + $0x68] sm:$0xff] %vm4101, %v6882
      %6916 = vst.msk [vmem:[%s6901 + $0x70] sm:$0xff] %vm4101, %v6883
      %6917 = vst.msk [vmem:[%s6901 + $0x78] sm:$0xff] %vm4101, %v6884
      %6918 = vst.msk [vmem:[%s6901 + $0x80] sm:$0xff] %vm4101, %v6885
      %6919 = vst.msk [vmem:[%s6901 + $0x88] sm:$0xff] %vm4101, %v6886
      %6920 = vst.msk [vmem:[%s6901 + $0x90] sm:$0xff] %vm4101, %v6887
      %6921 = vst.msk [vmem:[%s6901 + $0x98] sm:$0xff] %vm4101, %v6888
      %6922 = vst.msk [vmem:[%s6901 + $0xa0] sm:$0xff] %vm4101, %v6889
      %6923 = vst.msk [vmem:[%s6901 + $0xa8] sm:$0xff] %vm4101, %v6890
      %6924 = vst.msk [vmem:[%s6901 + $0xb0] sm:$0xff] %vm4101, %v6891
      %6925 = vst.msk [vmem:[%s6901 + $0xb8] sm:$0xff] %vm4101, %v6892
      %6926 = vst.msk [vmem:[%s6901 + $0xc0] sm:$0xff] %vm4101, %v6893
      %6927 = vst.msk [vmem:[%s6901 + $0xc8] sm:$0xff] %vm4101, %v6894
      %6928 = vst.msk [vmem:[%s6901 + $0xd0] sm:$0xff] %vm4101, %v6895
      %6929 = vst.msk [vmem:[%s6901 + $0xd8] sm:$0xff] %vm4101, %v6896
      %6930 = vst.msk [vmem:[%s6901 + $0xe0] sm:$0xff] %vm4101, %v6897
      %6931 = vst.msk [vmem:[%s6901 + $0xe8] sm:$0xff] %vm4101, %v6898
      %6932 = vst.msk [vmem:[%s6901 + $0xf0] sm:$0xff] %vm4101, %v6899
      %6933 = vst.msk [vmem:[%s6901 + $0xf8] sm:$0xff] %vm4101, %v6900
      %s6934 = smul.u32 4, %s20
      %s6935 = smul.u32 16, %s21
      %p6936 = scmp.lt.s32.totalorder %s6934, 7
      %s6937 = scalar_select %p6936, %s6934, 7
      %p6938 = scmp.lt.s32.totalorder %s6935, 15
      %s6939 = scalar_select %p6938, %s6935, 15
      %s6940 = smul.addr %s6939, 2
      %s6941 = smul.addr %s6937, 32
      %s6942 = sadd.s32 %s6940, %s6941
      %s6943 = smul.addr %s6942, 8
      %s6944 = scalar_lea.vmem %s5, %s6943
      // Predicated region
      $region45: #{up_conv_block.1} parent=39 // pred_check
        %p6945 = pneg %p158
      $region46: #{up_conv_block.1} parent=39 // pred_check_branch
        %6947 = sbr.rel (%p6945) target = $region48
      $region47: #{up_conv_block.1} parent=39 // pred_region
        %s6948 = smul.u32 4, %s20
        %s6949 = smul.u32 16, %s21
      $region48: #{up_conv_block.1} parent=39 // pred_fallthru
        _
    $region40: #{up_conv_block.1} parent=5 // pred_fallthru
      _
    %p6950 = scmp.le.s32.totalorder 2, %s11
    // Predicated region
    $region49: #{up_conv_block.1} parent=5 // pred_check
      %p6951 = pneg %p6950
    $region50: #{up_conv_block.1} parent=5 // pred_check_branch
      %6953 = sbr.rel (%p6951) target = $region52
    $region51: #{up_conv_block.1} parent=5 // pred_region
      %s6954 = ssub.s32 %s11, 2
      // Predicated region
      $region53: #{up_conv_block.1} parent=51 // pred_check
        %p6955 = pneg %p164
      $region54: #{up_conv_block.1} parent=51 // pred_check_branch
        %6957 = sbr.rel (%p6955) target = $region56
      $region55: #{up_conv_block.1} parent=51 // pred_region
        %s6958 = smul.u32 4, %s22
        %s6959 = smul.u32 16, %s23
        %p6960 = scmp.lt.s32.totalorder %s6958, 7
        %s6961 = scalar_select %p6960, %s6958, 7
        %p6962 = scmp.lt.s32.totalorder %s6959, 15
        %s6963 = scalar_select %p6962, %s6959, 15
        %s6964 = smul.addr %s6963, 2
        %s6965 = smul.addr %s6961, 32
        %s6966 = sadd.s32 %s6964, %s6965
        %s6967 = smul.addr %s6966, 8
        %s6968 = scalar_lea.vmem %s5, %s6967
      $region56: #{up_conv_block.1} parent=51 // pred_fallthru
        _
    $region52: #{up_conv_block.1} parent=5 // pred_fallthru
      _
  $region6: #{up_conv_block.1} parent=0 // loop_footer
    %s15 = sadd.s32 1, %s11
  $region7: #{up_conv_block.1} parent=0 // loop_footer_branch
    %10 = sbr.rel target = $region3
  $region8: #{up_conv_block.1} parent=0 // loop_exit
    _

</llo_original>
